<compile_context>
chip_gen: v6e
topology: v6e:2x2x1
jax: 0.10.0
libtpu: 0.0.40
codegen_flags: <defaults>
</compile_context>

<pallas_src>
import math
import functools

import jax
import jax.numpy as jnp
from jax.experimental import pallas as pl
from jax.experimental.pallas import tpu as pltpu


LN_EPS = 1e-12  # HF ViT layer_norm_eps
_VMEM_LIMIT = 48 * 1024 * 1024  # explicit scoped-VMEM budget; < physical on v5e/v6e/v7x


# ----------------------------- in-kernel helpers -----------------------------

def _ln_math(x, g, b, eps=LN_EPS):
    mu = jnp.mean(x, axis=-1, keepdims=True)
    var = jnp.mean((x - mu) ** 2, axis=-1, keepdims=True)
    return (x - mu) * jax.lax.rsqrt(var + eps) * g + b


# ----------------------------- patch-embed dense -----------------------------

def _dense_kernel(x_ref, w_ref, b_ref, o_ref):
    o_ref[...] = jnp.dot(x_ref[...], w_ref[...],
                         preferred_element_type=jnp.float32) + b_ref[...]


def dense(x, w, b, *, block_m=512):
    """x:(M,K) bf16, w:(K,N) bf16, b:(1,N) f32 -> (M,N) f32, row-tiled grid.

    block_m: 512 hits ~85% of HBM roofline; 1024 is a marginal win on v5e/v6e
    (128 MiB VMEM), keep <=512 on v7x (64 MiB, double-buffered row tiles).
    """
    M, K = x.shape
    _, N = w.shape
    bm = M if M <= block_m else block_m
    vmem = pl.BlockSpec(memory_space=pltpu.MemorySpace.VMEM)   # weights: single VMEM copy
    return pl.pallas_call(
        _dense_kernel,
        out_shape=jax.ShapeDtypeStruct((M, N), jnp.float32),
        grid=(pl.cdiv(M, bm),),
        in_specs=[pl.BlockSpec((bm, K), lambda i: (i, 0)), vmem, vmem],
        out_specs=pl.BlockSpec((bm, N), lambda i: (i, 0)),
        compiler_params=pltpu.CompilerParams(
            dimension_semantics=("parallel",),
            vmem_limit_bytes=_VMEM_LIMIT),
    )(x, w, b)


# ----------------------------- fused ViT encoder layer -----------------------------

def _vit_layer_kernel(x_ref, ln1_g_ref, ln1_b_ref, wqkv_ref, bqkv_ref,
                      wo_ref, bo_ref, ln2_g_ref, ln2_b_ref,
                      w1_ref, b1_ref, w2_ref, b2_ref, o_ref, ctx_sc,
                      *, num_heads, scale, bt, seq):
    r = pl.program_id(0)                              # branch index -> stacked-weight slice
    D = x_ref.shape[-1]
    Dh = D // num_heads
    rows = bt * seq

    # bf16 layer input, f32 in-kernel math; fold the batch tile into M for big matmuls.
    x = x_ref[0].astype(jnp.float32).reshape(rows, D)            # (Bt*S, D)

    # ---- attention block (pre-LN), one fused QKV matmul over the whole batch tile ----
    hn = _ln_math(x, ln1_g_ref[r], ln1_b_ref[r])
    qkv = jnp.dot(hn.astype(jnp.bfloat16), wqkv_ref[r],
                  preferred_element_type=jnp.float32) + bqkv_ref[r]     # (Bt*S, 3D) f32
    qkv_bf = qkv.astype(jnp.bfloat16)                  # single hoisted cast (not per head)

    # Per-sample, per-head softmax attention; each head's output is written straight
    # into the VMEM ctx scratch (no Python-list + concatenate relayout).
    # TODO(synk): at real ViT dims (Dh=64) lane-pad / permute the fused-QKV column
    # layout offline so these static head slices stay 128-lane aligned.
    for b in range(bt):
        r0 = b * seq
        qkv_b = qkv_bf[r0:r0 + seq, :]
        for h in range(num_heads):
            qh = qkv_b[:, h * Dh:(h + 1) * Dh]
            kh = qkv_b[:, D + h * Dh:D + (h + 1) * Dh]
            vh = qkv_b[:, 2 * D + h * Dh:2 * D + (h + 1) * Dh]
            s = jax.lax.dot_general(qh, kh, (((1,), (1,)), ((), ())),
                                    preferred_element_type=jnp.float32) * scale   # (S, S)
            s = s - jnp.max(s, axis=-1, keepdims=True)
            p = jnp.exp(s)
            p = p * pl.reciprocal(jnp.sum(p, axis=-1, keepdims=True), approx=True)
            ctx_sc[r0:r0 + seq, h * Dh:(h + 1) * Dh] = jnp.dot(
                p.astype(jnp.bfloat16), vh, preferred_element_type=jnp.float32)

    attn_out = jnp.dot(ctx_sc[...].astype(jnp.bfloat16), wo_ref[r],
                       preferred_element_type=jnp.float32) + bo_ref[r]
    h1 = x + attn_out

    # ---- MLP block ----
    hn2 = _ln_math(h1, ln2_g_ref[r], ln2_b_ref[r])
    # TODO(synk): HF ViT uses exact erf-GELU; tanh-approx GELU kept for robust TPU lowering.
    m = jnp.dot(hn2.astype(jnp.bfloat16), w1_ref[r],
                preferred_element_type=jnp.float32) + b1_ref[r]
    m = jax.nn.gelu(m, approximate=True)
    m = jnp.dot(m.astype(jnp.bfloat16), w2_ref[r],
                preferred_element_type=jnp.float32) + b2_ref[r]
    o_ref[0] = (h1 + m).reshape(bt, seq, D).astype(o_ref.dtype)   # bf16 layer boundary


def vit_layer_stack(x, lyr, num_heads, bt):
    """One fused encoder layer over stacked branches.

    x: (R, B, S, D) bf16; every weight in `lyr` has a leading branch axis R
    (R=1 shared encoder, R=2 food/ingre branches running concurrently).
    grid = (R, B // Bt), both axes "parallel" (on v7x each TC can take a branch).
    """
    R, B, S, D = x.shape
    scale = 1.0 / math.sqrt(D // num_heads)

    # Weights: whole-array VMEM operands -> not windowed/pipelined, a single
    # resident copy (no double-buffering of constant-index weight blocks).
    wspec = pl.BlockSpec(memory_space=pltpu.MemorySpace.VMEM)
    act_spec = pl.BlockSpec((1, bt, S, D), lambda r, b: (r, b, 0, 0))

    weights = (lyr["ln1_g"], lyr["ln1_b"], lyr["wqkv"], lyr["bqkv"],
               lyr["wo"], lyr["bo"], lyr["ln2_g"], lyr["ln2_b"],
               lyr["w1"], lyr["b1"], lyr["w2"], lyr["b2"])

    return pl.pallas_call(
        functools.partial(_vit_layer_kernel, num_heads=num_heads, scale=scale,
                          bt=bt, seq=S),
        out_shape=jax.ShapeDtypeStruct((R, B, S, D), jnp.bfloat16),
        grid=(R, B // bt),
        in_specs=[act_spec] + [wspec] * len(weights),
        out_specs=act_spec,
        scratch_shapes=[pltpu.VMEM((bt * S, D), jnp.float32)],   # per-head ctx slab
        compiler_params=pltpu.CompilerParams(
            dimension_semantics=("parallel", "parallel"),
            vmem_limit_bytes=_VMEM_LIMIT),
    )(x, *weights)


# ----------------------------- fused multitask head -----------------------------

def _head_kernel(food_cls_ref, ingre_cls_ref, ln_g_ref, ln_b_ref,
                 wimg_f_ref, wimg_i_ref, bimg_ref, wing_ref, bing_ref,
                 food_logits_ref, ingre_logits_ref):
    g, bb = ln_g_ref[...], ln_b_ref[...]
    fc = _ln_math(food_cls_ref[...].astype(jnp.float32), g, bb)
    ic = _ln_math(ingre_cls_ref[...].astype(jnp.float32), g, bb)

    # imageclassifier(cat(food_cls, ingre_cls)) == fc @ W_top + ic @ W_bottom + b
    food_logits_ref[...] = (jnp.dot(fc.astype(jnp.bfloat16), wimg_f_ref[...],
                                    preferred_element_type=jnp.float32)
                            + jnp.dot(ic.astype(jnp.bfloat16), wimg_i_ref[...],
                                      preferred_element_type=jnp.float32)
                            + bimg_ref[...])
    ingre_logits_ref[...] = jnp.dot(ic.astype(jnp.bfloat16), wing_ref[...],
                                    preferred_element_type=jnp.float32) + bing_ref[...]


def head_forward(food_cls, ingre_cls, params):
    B = food_cls.shape[0]
    L = params["img_b"].shape[-1]
    NI = params["ing_b"].shape[-1]
    vmem = pl.BlockSpec(memory_space=pltpu.MemorySpace.VMEM)
    return pl.pallas_call(
        _head_kernel,
        out_shape=(jax.ShapeDtypeStruct((B, L), jnp.float32),
                   jax.ShapeDtypeStruct((B, NI), jnp.float32)),
        in_specs=[vmem] * 9,
        out_specs=(vmem, vmem),
        compiler_params=pltpu.CompilerParams(vmem_limit_bytes=_VMEM_LIMIT),
    )(food_cls, ingre_cls, params["ln_g"], params["ln_b"],
      params["img_w_food"], params["img_w_ingre"], params["img_b"],
      params["ing_w"], params["ing_b"])


# ----------------------------- params & forward -----------------------------

def init_params(key, cfg):
    C, p, D = cfg["channels"], cfg["patch"], cfg["hidden"]
    mlp = cfg["mlp"]
    n_labels, n_ingres = cfg["num_labels"], cfg["num_ingres"]
    nh, nw = cfg["grid"]
    S = nh * nw + 1

    kiter = iter(jax.random.split(key, 1024))

    def nrm(shape, s=0.02):
        return s * jax.random.normal(next(kiter), shape, dtype=jnp.float32)

    def make_layer(repeat):
        # One weight set replicated along a leading branch axis.  repeat=2 mirrors
        # IngreEncoder = deepcopy(FoodEncoder): identical initial values
        # (branch 0 = food, branch 1 = ingre).
        wq, wk, wv = nrm((D, D)), nrm((D, D)), nrm((D, D))
        base = {
            "ln1_g": jnp.ones((1, D), jnp.float32), "ln1_b": jnp.zeros((1, D), jnp.float32),
            "wqkv": jnp.concatenate([wq, wk, wv], axis=1).astype(jnp.bfloat16),
            "bqkv": jnp.zeros((1, 3 * D), jnp.float32),
            "wo": nrm((D, D)).astype(jnp.bfloat16), "bo": jnp.zeros((1, D), jnp.float32),
            "ln2_g": jnp.ones((1, D), jnp.float32), "ln2_b": jnp.zeros((1, D), jnp.float32),
            "w1": nrm((D, mlp)).astype(jnp.bfloat16), "b1": jnp.zeros((1, mlp), jnp.float32),
            "w2": nrm((mlp, D)).astype(jnp.bfloat16), "b2": jnp.zeros((1, D), jnp.float32),
        }
        return {k: jnp.stack([v] * repeat, axis=0) for k, v in base.items()}

    return {
        # TODO(synk): real Conv2d patch weights must be flattened (D,C,p,p) -> (C*p*p,D).
        "patch_w": nrm((C * p * p, D)).astype(jnp.bfloat16),
        "patch_b": jnp.zeros((1, D), jnp.float32),
        "cls_token": nrm((1, 1, D)),
        "pos_emb": nrm((1, S, D)),
        "ln_g": jnp.ones((1, D), jnp.float32), "ln_b": jnp.zeros((1, D), jnp.float32),
        "img_w_food": nrm((D, n_labels)).astype(jnp.bfloat16),
        "img_w_ingre": nrm((D, n_labels)).astype(jnp.bfloat16),
        "img_b": jnp.zeros((1, n_labels), jnp.float32),
        "ing_w": nrm((D, n_ingres)).astype(jnp.bfloat16),
        "ing_b": jnp.zeros((1, n_ingres), jnp.float32),
        "shared_layers": [make_layer(1) for _ in range(cfg["shared_layers"])],
        "branch_layers": [make_layer(2) for _ in range(cfg["branch_layers"])],
    }


def _pick_bt(B, block_b):
    """Largest divisor of B not exceeding block_b (VMEM-driven batch tile)."""
    if not block_b or block_b >= B:
        return B
    bt = int(block_b)
    while B % bt:
        bt -= 1
    return max(bt, 1)


def vit_multitask_forward(params, images, food_onehot, ingre_labels, cfg):
    B, C, H, W = images.shape
    p, D, nH = cfg["patch"], cfg["hidden"], cfg["heads"]
    nh, nw = H // p, W // p
    nP = nh * nw

    # --- shared embeddings: Conv2d(k=stride=p) == patch-flatten + matmul, + CLS + pos-emb ---
    x = images.reshape(B, C, nh, p, nw, p).transpose(0, 2, 4, 1, 3, 5)
    x = x.reshape(B * nP, C * p * p).astype(jnp.bfloat16)   # bf16 stream: halves HBM->VMEM bytes
    tok = dense(x, params["patch_w"], params["patch_b"]).reshape(B, nP, D)
    cls = jnp.broadcast_to(params["cls_token"], (B, 1, D))
    h = jnp.concatenate([cls, tok], axis=1) + params["pos_emb"]       # (B, S, D) f32

    bt = _pick_bt(B, cfg.get("block_b"))

    # --- shared encoder (branch axis R=1), bf16 activations between layers ---
    hs = h.astype(jnp.bfloat16)[None]                                  # (1, B, S, D)
    for lyr in params["shared_layers"]:
        hs = vit_layer_stack(hs, lyr, nH, bt)

    # --- food / ingredient branches run concurrently on a branch axis of size 2 ---
    hb = jnp.concatenate([hs, hs], axis=0)                             # (2, B, S, D)
    for lyr in params["branch_layers"]:
        hb = vit_layer_stack(hb, lyr, nH, bt)

    # --- fused head: LN(CLS) for both branches + both classifiers ---
    food_cls, ingre_cls = hb[0, :, 0, :], hb[1, :, 0, :]
    food_logits, ingre_logits = head_forward(food_cls, ingre_cls, params)

    # --- losses in plain JAX (per review: no (1,1) masked-store kernel outputs) ---
    mx = jnp.max(food_logits, axis=-1, keepdims=True)
    lse = jnp.log(jnp.sum(jnp.exp(food_logits - mx), axis=-1, keepdims=True)) + mx
    food_loss = jnp.mean(jnp.sum(food_onehot * (lse - food_logits), axis=-1))     # CrossEntropy
    z, y = ingre_logits, ingre_labels
    ingre_loss = jnp.mean(jnp.maximum(z, 0.0) - z * y + jnp.log1p(jnp.exp(-jnp.abs(z))))  # BCE

    return food_loss, ingre_loss, food_logits, ingre_logits


# ----------------------------- Main -----------------------------

if __name__ == "__main__":
    # NOTE: toy sizes are for correctness only (D=32 < 128 lanes, S=5 < 8 sublanes).
    # Do NOT tune/benchmark at this size: pad D to a multiple of 128 and Bt*S to a
    # multiple of 8 (or use real ViT dims) before drawing any performance signal.
    cfg = dict(channels=4, patch=8, hidden=32, heads=4, mlp=64,
               shared_layers=2, branch_layers=2,
               num_labels=5, num_ingres=10, grid=(2, 2),   # 16x16 / patch 8 -> 2x2 patches, S=5
               block_b=None)                               # batch tile; None -> whole batch

    key = jax.random.PRNGKey(0)
    k_param, k_img, k_food, k_ing = jax.random.split(key, 4)

    params = init_params(k_param, cfg)

    B = 2
    images = jax.random.normal(k_img, (B, cfg["channels"], 16, 16), dtype=jnp.float32)
    foodlabels = jax.random.randint(k_food, (B,), 0, cfg["num_labels"])
    food_onehot = jax.nn.one_hot(foodlabels, cfg["num_labels"], dtype=jnp.float32)
    ingrelabels = jax.random.bernoulli(k_ing, 0.3, (B, cfg["num_ingres"])).astype(jnp.float32)

    fwd = jax.jit(functools.partial(vit_multitask_forward, cfg=cfg))
    food_loss, ingre_loss, food_logits, ingre_logits = fwd(params, images, food_onehot, ingrelabels)
    jax.block_until_ready((food_loss, ingre_loss, food_logits, ingre_logits))

    assert food_logits.shape == (B, cfg["num_labels"])
    assert ingre_logits.shape == (B, cfg["num_ingres"])
    assert bool(jnp.isfinite(food_loss)) and bool(jnp.isfinite(ingre_loss))
    print("KERNEL_OK")
</pallas_src>

<mosaic_0001>
module attributes {stable_mosaic.version = 11 : i64} {
  func.func @_dense_kernel(%arg0: i32, %arg1: memref<8x256xbf16, #tpu.memory_space<vmem>>, %arg2: memref<256x32xbf16, #tpu.memory_space<vmem>>, %arg3: memref<1x32xf32, #tpu.memory_space<vmem>>, %arg4: memref<8x32xf32, #tpu.memory_space<vmem>>) attributes {dimension_semantics = [#tpu.dimension_semantics<parallel>], iteration_bounds = array<i64: 1>, scalar_prefetch = 0 : i64, scratch_operands = 0 : i64, tpu.core_type = #tpu.core_type<tc>, window_params = [{transform_indices = @transform_0, window_bounds = array<i64: 8, 256>}, {pipeline_mode = #tpu.pipeline_mode<synchronous>, transform_indices = @transform_1, window_bounds = array<i64: 256, 32>}, {pipeline_mode = #tpu.pipeline_mode<synchronous>, transform_indices = @transform_2, window_bounds = array<i64: 1, 32>}, {transform_indices = @transform_3, window_bounds = array<i64: 8, 32>}]} {
    %c0 = arith.constant 0 : index
    %c0_0 = arith.constant 0 : index
    %0 = vector.load %arg1[%c0, %c0_0] : memref<8x256xbf16, #tpu.memory_space<vmem>>, vector<8x256xbf16>
    %c0_1 = arith.constant 0 : index
    %c0_2 = arith.constant 0 : index
    %1 = vector.load %arg2[%c0_1, %c0_2] : memref<256x32xbf16, #tpu.memory_space<vmem>>, vector<256x32xbf16>
    %cst = arith.constant dense<0.000000e+00> : vector<8x32xf32>
    %2 = tpu.matmul %0, %1, %cst {dimension_numbers = #tpu.dot_dimension_numbers<[1], [0], [0], [1], [0, 0, 1, 1], [], []>} : vector<8x256xbf16>, vector<256x32xbf16>, vector<8x32xf32> -> vector<8x32xf32>
    %c0_3 = arith.constant 0 : index
    %c0_4 = arith.constant 0 : index
    %3 = vector.load %arg3[%c0_3, %c0_4] : memref<1x32xf32, #tpu.memory_space<vmem>>, vector<1x32xf32>
    %4 = vector.broadcast %3 : vector<1x32xf32> to vector<8x32xf32>
    %5 = arith.addf %2, %4 : vector<8x32xf32>
    %c0_5 = arith.constant 0 : index
    %c0_6 = arith.constant 0 : index
    %6 = vector.load %arg4[%c0_5, %c0_6] : memref<8x32xf32, #tpu.memory_space<vmem>>, vector<8x32xf32>
    tpu.vector_store %arg4[%c0_5, %c0_6], %5 {strides = array<i32>} : memref<8x32xf32, #tpu.memory_space<vmem>>, vector<8x32xf32>,
    return
  }
  func.func @transform_0(%arg0: i32) -> (i32, i32) {
    %c0_i32 = arith.constant 0 : i32
    %c0_i32_0 = arith.constant 0 : i32
    return %arg0, %c0_i32 : i32, i32
  }
  func.func @transform_1(%arg0: i32) -> (i32, i32) {
    %c0_i32 = arith.constant 0 : i32
    %c0_i32_0 = arith.constant 0 : i32
    %c0_i32_1 = arith.constant 0 : i32
    return %c0_i32, %c0_i32_0 : i32, i32
  }
  func.func @transform_2(%arg0: i32) -> (i32, i32) {
    %c0_i32 = arith.constant 0 : i32
    %c0_i32_0 = arith.constant 0 : i32
    %c0_i32_1 = arith.constant 0 : i32
    return %c0_i32, %c0_i32_0 : i32, i32
  }
  func.func @transform_3(%arg0: i32) -> (i32, i32) {
    %c0_i32 = arith.constant 0 : i32
    %c0_i32_0 = arith.constant 0 : i32
    return %arg0, %c0_i32 : i32, i32
  }
}

module attributes {stable_mosaic.version = 11 : i64} {
  func.func @_vit_layer_kernel(%arg0: i32, %arg1: i32, %arg2: memref<1x2x5x32xbf16, #tpu.memory_space<vmem>>, %arg3: memref<1x1x32xf32, #tpu.memory_space<vmem>>, %arg4: memref<1x1x32xf32, #tpu.memory_space<vmem>>, %arg5: memref<1x32x96xbf16, #tpu.memory_space<vmem>>, %arg6: memref<1x1x96xf32, #tpu.memory_space<vmem>>, %arg7: memref<1x32x32xbf16, #tpu.memory_space<vmem>>, %arg8: memref<1x1x32xf32, #tpu.memory_space<vmem>>, %arg9: memref<1x1x32xf32, #tpu.memory_space<vmem>>, %arg10: memref<1x1x32xf32, #tpu.memory_space<vmem>>, %arg11: memref<1x32x64xbf16, #tpu.memory_space<vmem>>, %arg12: memref<1x1x64xf32, #tpu.memory_space<vmem>>, %arg13: memref<1x64x32xbf16, #tpu.memory_space<vmem>>, %arg14: memref<1x1x32xf32, #tpu.memory_space<vmem>>, %arg15: memref<1x2x5x32xbf16, #tpu.memory_space<vmem>>, %arg16: memref<10x32xf32, #tpu.memory_space<vmem>>) attributes {dimension_semantics = [#tpu.dimension_semantics<parallel>, #tpu.dimension_semantics<parallel>], iteration_bounds = array<i64: 1, 1>, scalar_prefetch = 0 : i64, scratch_operands = 1 : i64, tpu.core_type = #tpu.core_type<tc>, window_params = [{transform_indices = @transform_0, window_bounds = array<i64: 1, 2, 5, 32>}, {pipeline_mode = #tpu.pipeline_mode<synchronous>, transform_indices = @transform_1, window_bounds = array<i64: 1, 1, 32>}, {pipeline_mode = #tpu.pipeline_mode<synchronous>, transform_indices = @transform_2, window_bounds = array<i64: 1, 1, 32>}, {pipeline_mode = #tpu.pipeline_mode<synchronous>, transform_indices = @transform_3, window_bounds = array<i64: 1, 32, 96>}, {pipeline_mode = #tpu.pipeline_mode<synchronous>, transform_indices = @transform_4, window_bounds = array<i64: 1, 1, 96>}, {pipeline_mode = #tpu.pipeline_mode<synchronous>, transform_indices = @transform_5, window_bounds = array<i64: 1, 32, 32>}, {pipeline_mode = #tpu.pipeline_mode<synchronous>, transform_indices = @transform_6, window_bounds = array<i64: 1, 1, 32>}, {pipeline_mode = #tpu.pipeline_mode<synchronous>, transform_indices = @transform_7, window_bounds = array<i64: 1, 1, 32>}, {pipeline_mode = #tpu.pipeline_mode<synchronous>, transform_indices = @transform_8, window_bounds = array<i64: 1, 1, 32>}, {pipeline_mode = #tpu.pipeline_mode<synchronous>, transform_indices = @transform_9, window_bounds = array<i64: 1, 32, 64>}, {pipeline_mode = #tpu.pipeline_mode<synchronous>, transform_indices = @transform_10, window_bounds = array<i64: 1, 1, 64>}, {pipeline_mode = #tpu.pipeline_mode<synchronous>, transform_indices = @transform_11, window_bounds = array<i64: 1, 64, 32>}, {pipeline_mode = #tpu.pipeline_mode<synchronous>, transform_indices = @transform_12, window_bounds = array<i64: 1, 1, 32>}, {transform_indices = @transform_13, window_bounds = array<i64: 1, 2, 5, 32>}]} {
    %c0 = arith.constant 0 : index
    %c0_0 = arith.constant 0 : index
    %c0_1 = arith.constant 0 : index
    %c0_2 = arith.constant 0 : index
    %0 = vector.load %arg2[%c0, %c0_0, %c0_1, %c0_2] : memref<1x2x5x32xbf16, #tpu.memory_space<vmem>>, vector<1x2x5x32xbf16>
    %1 = vector.shape_cast %0 : vector<1x2x5x32xbf16> to vector<2x5x32xbf16>
    %2 = arith.extf %1 : vector<2x5x32xbf16> to vector<2x5x32xf32>
    %3 = vector.shape_cast %2 : vector<2x5x32xf32> to vector<10x32xf32>
    %4 = arith.index_cast %arg0 : i32 to index
    %c0_3 = arith.constant 0 : index
    %c0_4 = arith.constant 0 : index
    %5 = vector.load %arg3[%4, %c0_3, %c0_4] : memref<1x1x32xf32, #tpu.memory_space<vmem>>, vector<1x1x32xf32>
    %6 = vector.shape_cast %5 : vector<1x1x32xf32> to vector<1x32xf32>
    %7 = arith.index_cast %arg0 : i32 to index
    %c0_5 = arith.constant 0 : index
    %c0_6 = arith.constant 0 : index
    %8 = vector.load %arg4[%7, %c0_5, %c0_6] : memref<1x1x32xf32, #tpu.memory_space<vmem>>, vector<1x1x32xf32>
    %9 = vector.shape_cast %8 : vector<1x1x32xf32> to vector<1x32xf32>
    %cst = arith.constant dense<0.000000e+00> : vector<10xf32>
    %10 = vector.multi_reduction <add>, %3, %cst [1] : vector<10x32xf32> to vector<10xf32>
    %11 = vector.shape_cast %10 : vector<10xf32> to vector<10x1xf32>
    %cst_7 = arith.constant 3.200000e+01 : f32
    %12 = vector.broadcast %cst_7 : f32 to vector<10x1xf32>
    %13 = arith.divf %11, %12 : vector<10x1xf32>
    %14 = vector.broadcast %13 : vector<10x1xf32> to vector<10x32xf32>
    %15 = arith.subf %3, %14 : vector<10x32xf32>
    %16 = arith.mulf %15, %15 : vector<10x32xf32>
    %cst_8 = arith.constant dense<0.000000e+00> : vector<10xf32>
    %17 = vector.multi_reduction <add>, %16, %cst_8 [1] : vector<10x32xf32> to vector<10xf32>
    %18 = vector.shape_cast %17 : vector<10xf32> to vector<10x1xf32>
    %cst_9 = arith.constant 3.200000e+01 : f32
    %19 = vector.broadcast %cst_9 : f32 to vector<10x1xf32>
    %20 = arith.divf %18, %19 : vector<10x1xf32>
    %21 = vector.broadcast %13 : vector<10x1xf32> to vector<10x32xf32>
    %22 = arith.subf %3, %21 : vector<10x32xf32>
    %cst_10 = arith.constant 9.99999996E-13 : f32
    %23 = vector.broadcast %cst_10 : f32 to vector<10x1xf32>
    %24 = arith.addf %20, %23 : vector<10x1xf32>
    %25 = math.rsqrt %24 : vector<10x1xf32>
    %26 = vector.broadcast %25 : vector<10x1xf32> to vector<10x32xf32>
    %27 = arith.mulf %22, %26 : vector<10x32xf32>
    %28 = vector.broadcast %6 : vector<1x32xf32> to vector<10x32xf32>
    %29 = arith.mulf %27, %28 : vector<10x32xf32>
    %30 = vector.broadcast %9 : vector<1x32xf32> to vector<10x32xf32>
    %31 = arith.addf %29, %30 : vector<10x32xf32>
    %32 = arith.truncf %31 : vector<10x32xf32> to vector<10x32xbf16>
    %33 = arith.index_cast %arg0 : i32 to index
    %c0_11 = arith.constant 0 : index
    %c0_12 = arith.constant 0 : index
    %34 = vector.load %arg5[%33, %c0_11, %c0_12] : memref<1x32x96xbf16, #tpu.memory_space<vmem>>, vector<1x32x96xbf16>
    %35 = vector.shape_cast %34 : vector<1x32x96xbf16> to vector<32x96xbf16>
    %cst_13 = arith.constant dense<0.000000e+00> : vector<10x96xf32>
    %36 = tpu.matmul %32, %35, %cst_13 {dimension_numbers = #tpu.dot_dimension_numbers<[1], [0], [0], [1], [0, 0, 1, 1], [], []>} : vector<10x32xbf16>, vector<32x96xbf16>, vector<10x96xf32> -> vector<10x96xf32>
    %37 = arith.index_cast %arg0 : i32 to index
    %c0_14 = arith.constant 0 : index
    %c0_15 = arith.constant 0 : index
    %38 = vector.load %arg6[%37, %c0_14, %c0_15] : memref<1x1x96xf32, #tpu.memory_space<vmem>>, vector<1x1x96xf32>
    %39 = vector.shape_cast %38 : vector<1x1x96xf32> to vector<1x96xf32>
    %40 = vector.broadcast %39 : vector<1x96xf32> to vector<10x96xf32>
    %41 = arith.addf %36, %40 : vector<10x96xf32>
    %42 = arith.truncf %41 : vector<10x96xf32> to vector<10x96xbf16>
    %43 = vector.extract_strided_slice %42 {offsets = [0, 0], sizes = [5, 96], strides = [1, 1]} : vector<10x96xbf16> to vector<5x96xbf16>
    %44 = vector.extract_strided_slice %43 {offsets = [0, 0], sizes = [5, 8], strides = [1, 1]} : vector<5x96xbf16> to vector<5x8xbf16>
    %45 = vector.extract_strided_slice %43 {offsets = [0, 32], sizes = [5, 8], strides = [1, 1]} : vector<5x96xbf16> to vector<5x8xbf16>
    %46 = vector.extract_strided_slice %43 {offsets = [0, 64], sizes = [5, 8], strides = [1, 1]} : vector<5x96xbf16> to vector<5x8xbf16>
    %cst_16 = arith.constant dense<0.000000e+00> : vector<5x5xf32>
    %47 = tpu.matmul %44, %45, %cst_16 {dimension_numbers = #tpu.dot_dimension_numbers<[1], [1], [0], [0], [0, 0, 1, 0], [], []>} : vector<5x8xbf16>, vector<5x8xbf16>, vector<5x5xf32> -> vector<5x5xf32>
    %cst_17 = arith.constant 0.353553385 : f32
    %48 = vector.broadcast %cst_17 : f32 to vector<5x5xf32>
    %49 = arith.mulf %47, %48 : vector<5x5xf32>
    %cst_18 = arith.constant dense<0xFF800000> : vector<5xf32>
    %50 = vector.multi_reduction <maximumf>, %49, %cst_18 [1] : vector<5x5xf32> to vector<5xf32>
    %51 = vector.shape_cast %50 : vector<5xf32> to vector<5x1xf32>
    %52 = vector.broadcast %51 : vector<5x1xf32> to vector<5x5xf32>
    %53 = arith.subf %49, %52 : vector<5x5xf32>
    %54 = math.exp %53 : vector<5x5xf32>
    %cst_19 = arith.constant dense<0.000000e+00> : vector<5xf32>
    %55 = vector.multi_reduction <add>, %54, %cst_19 [1] : vector<5x5xf32> to vector<5xf32>
    %56 = vector.shape_cast %55 : vector<5xf32> to vector<5x1xf32>
    %57 = tpu.reciprocal %56 {approx = true} : vector<5x1xf32> -> vector<5x1xf32>
    %58 = vector.broadcast %57 : vector<5x1xf32> to vector<5x5xf32>
    %59 = arith.mulf %54, %58 : vector<5x5xf32>
    %60 = arith.truncf %59 : vector<5x5xf32> to vector<5x5xbf16>
    %cst_20 = arith.constant dense<0.000000e+00> : vector<5x8xf32>
    %61 = tpu.matmul %60, %46, %cst_20 {dimension_numbers = #tpu.dot_dimension_numbers<[1], [0], [0], [1], [0, 0, 1, 1], [], []>} : vector<5x5xbf16>, vector<5x8xbf16>, vector<5x8xf32> -> vector<5x8xf32>
    %c0_21 = arith.constant 0 : index
    %c0_22 = arith.constant 0 : index
    %62 = vector.load %arg16[%c0_21, %c0_22] : memref<10x32xf32, #tpu.memory_space<vmem>>, vector<5x8xf32>
    tpu.vector_store %arg16[%c0_21, %c0_22], %61 {strides = array<i32>} : memref<10x32xf32, #tpu.memory_space<vmem>>, vector<5x8xf32>,
    %63 = vector.extract_strided_slice %43 {offsets = [0, 8], sizes = [5, 8], strides = [1, 1]} : vector<5x96xbf16> to vector<5x8xbf16>
    %64 = vector.extract_strided_slice %43 {offsets = [0, 40], sizes = [5, 8], strides = [1, 1]} : vector<5x96xbf16> to vector<5x8xbf16>
    %65 = vector.extract_strided_slice %43 {offsets = [0, 72], sizes = [5, 8], strides = [1, 1]} : vector<5x96xbf16> to vector<5x8xbf16>
    %cst_23 = arith.constant dense<0.000000e+00> : vector<5x5xf32>
    %66 = tpu.matmul %63, %64, %cst_23 {dimension_numbers = #tpu.dot_dimension_numbers<[1], [1], [0], [0], [0, 0, 1, 0], [], []>} : vector<5x8xbf16>, vector<5x8xbf16>, vector<5x5xf32> -> vector<5x5xf32>
    %cst_24 = arith.constant 0.353553385 : f32
    %67 = vector.broadcast %cst_24 : f32 to vector<5x5xf32>
    %68 = arith.mulf %66, %67 : vector<5x5xf32>
    %cst_25 = arith.constant dense<0xFF800000> : vector<5xf32>
    %69 = vector.multi_reduction <maximumf>, %68, %cst_25 [1] : vector<5x5xf32> to vector<5xf32>
    %70 = vector.shape_cast %69 : vector<5xf32> to vector<5x1xf32>
    %71 = vector.broadcast %70 : vector<5x1xf32> to vector<5x5xf32>
    %72 = arith.subf %68, %71 : vector<5x5xf32>
    %73 = math.exp %72 : vector<5x5xf32>
    %cst_26 = arith.constant dense<0.000000e+00> : vector<5xf32>
    %74 = vector.multi_reduction <add>, %73, %cst_26 [1] : vector<5x5xf32> to vector<5xf32>
    %75 = vector.shape_cast %74 : vector<5xf32> to vector<5x1xf32>
    %76 = tpu.reciprocal %75 {approx = true} : vector<5x1xf32> -> vector<5x1xf32>
    %77 = vector.broadcast %76 : vector<5x1xf32> to vector<5x5xf32>
    %78 = arith.mulf %73, %77 : vector<5x5xf32>
    %79 = arith.truncf %78 : vector<5x5xf32> to vector<5x5xbf16>
    %cst_27 = arith.constant dense<0.000000e+00> : vector<5x8xf32>
    %80 = tpu.matmul %79, %65, %cst_27 {dimension_numbers = #tpu.dot_dimension_numbers<[1], [0], [0], [1], [0, 0, 1, 1], [], []>} : vector<5x5xbf16>, vector<5x8xbf16>, vector<5x8xf32> -> vector<5x8xf32>
    %c0_28 = arith.constant 0 : index
    %c8 = arith.constant 8 : index
    %81 = vector.load %arg16[%c0_28, %c8] : memref<10x32xf32, #tpu.memory_space<vmem>>, vector<5x8xf32>
    tpu.vector_store %arg16[%c0_28, %c8], %80 {strides = array<i32>} : memref<10x32xf32, #tpu.memory_space<vmem>>, vector<5x8xf32>,
    %82 = vector.extract_strided_slice %43 {offsets = [0, 16], sizes = [5, 8], strides = [1, 1]} : vector<5x96xbf16> to vector<5x8xbf16>
    %83 = vector.extract_strided_slice %43 {offsets = [0, 48], sizes = [5, 8], strides = [1, 1]} : vector<5x96xbf16> to vector<5x8xbf16>
    %84 = vector.extract_strided_slice %43 {offsets = [0, 80], sizes = [5, 8], strides = [1, 1]} : vector<5x96xbf16> to vector<5x8xbf16>
    %cst_29 = arith.constant dense<0.000000e+00> : vector<5x5xf32>
    %85 = tpu.matmul %82, %83, %cst_29 {dimension_numbers = #tpu.dot_dimension_numbers<[1], [1], [0], [0], [0, 0, 1, 0], [], []>} : vector<5x8xbf16>, vector<5x8xbf16>, vector<5x5xf32> -> vector<5x5xf32>
    %cst_30 = arith.constant 0.353553385 : f32
    %86 = vector.broadcast %cst_30 : f32 to vector<5x5xf32>
    %87 = arith.mulf %85, %86 : vector<5x5xf32>
    %cst_31 = arith.constant dense<0xFF800000> : vector<5xf32>
    %88 = vector.multi_reduction <maximumf>, %87, %cst_31 [1] : vector<5x5xf32> to vector<5xf32>
    %89 = vector.shape_cast %88 : vector<5xf32> to vector<5x1xf32>
    %90 = vector.broadcast %89 : vector<5x1xf32> to vector<5x5xf32>
    %91 = arith.subf %87, %90 : vector<5x5xf32>
    %92 = math.exp %91 : vector<5x5xf32>
    %cst_32 = arith.constant dense<0.000000e+00> : vector<5xf32>
    %93 = vector.multi_reduction <add>, %92, %cst_32 [1] : vector<5x5xf32> to vector<5xf32>
    %94 = vector.shape_cast %93 : vector<5xf32> to vector<5x1xf32>
    %95 = tpu.reciprocal %94 {approx = true} : vector<5x1xf32> -> vector<5x1xf32>
    %96 = vector.broadcast %95 : vector<5x1xf32> to vector<5x5xf32>
    %97 = arith.mulf %92, %96 : vector<5x5xf32>
    %98 = arith.truncf %97 : vector<5x5xf32> to vector<5x5xbf16>
    %cst_33 = arith.constant dense<0.000000e+00> : vector<5x8xf32>
    %99 = tpu.matmul %98, %84, %cst_33 {dimension_numbers = #tpu.dot_dimension_numbers<[1], [0], [0], [1], [0, 0, 1, 1], [], []>} : vector<5x5xbf16>, vector<5x8xbf16>, vector<5x8xf32> -> vector<5x8xf32>
    %c0_34 = arith.constant 0 : index
    %c16 = arith.constant 16 : index
    %100 = vector.load %arg16[%c0_34, %c16] : memref<10x32xf32, #tpu.memory_space<vmem>>, vector<5x8xf32>
    tpu.vector_store %arg16[%c0_34, %c16], %99 {strides = array<i32>} : memref<10x32xf32, #tpu.memory_space<vmem>>, vector<5x8xf32>,
    %101 = vector.extract_strided_slice %43 {offsets = [0, 24], sizes = [5, 8], strides = [1, 1]} : vector<5x96xbf16> to vector<5x8xbf16>
    %102 = vector.extract_strided_slice %43 {offsets = [0, 56], sizes = [5, 8], strides = [1, 1]} : vector<5x96xbf16> to vector<5x8xbf16>
    %103 = vector.extract_strided_slice %43 {offsets = [0, 88], sizes = [5, 8], strides = [1, 1]} : vector<5x96xbf16> to vector<5x8xbf16>
    %cst_35 = arith.constant dense<0.000000e+00> : vector<5x5xf32>
    %104 = tpu.matmul %101, %102, %cst_35 {dimension_numbers = #tpu.dot_dimension_numbers<[1], [1], [0], [0], [0, 0, 1, 0], [], []>} : vector<5x8xbf16>, vector<5x8xbf16>, vector<5x5xf32> -> vector<5x5xf32>
    %cst_36 = arith.constant 0.353553385 : f32
    %105 = vector.broadcast %cst_36 : f32 to vector<5x5xf32>
    %106 = arith.mulf %104, %105 : vector<5x5xf32>
    %cst_37 = arith.constant dense<0xFF800000> : vector<5xf32>
    %107 = vector.multi_reduction <maximumf>, %106, %cst_37 [1] : vector<5x5xf32> to vector<5xf32>
    %108 = vector.shape_cast %107 : vector<5xf32> to vector<5x1xf32>
    %109 = vector.broadcast %108 : vector<5x1xf32> to vector<5x5xf32>
    %110 = arith.subf %106, %109 : vector<5x5xf32>
    %111 = math.exp %110 : vector<5x5xf32>
    %cst_38 = arith.constant dense<0.000000e+00> : vector<5xf32>
    %112 = vector.multi_reduction <add>, %111, %cst_38 [1] : vector<5x5xf32> to vector<5xf32>
    %113 = vector.shape_cast %112 : vector<5xf32> to vector<5x1xf32>
    %114 = tpu.reciprocal %113 {approx = true} : vector<5x1xf32> -> vector<5x1xf32>
    %115 = vector.broadcast %114 : vector<5x1xf32> to vector<5x5xf32>
    %116 = arith.mulf %111, %115 : vector<5x5xf32>
    %117 = arith.truncf %116 : vector<5x5xf32> to vector<5x5xbf16>
    %cst_39 = arith.constant dense<0.000000e+00> : vector<5x8xf32>
    %118 = tpu.matmul %117, %103, %cst_39 {dimension_numbers = #tpu.dot_dimension_numbers<[1], [0], [0], [1], [0, 0, 1, 1], [], []>} : vector<5x5xbf16>, vector<5x8xbf16>, vector<5x8xf32> -> vector<5x8xf32>
    %c0_40 = arith.constant 0 : index
    %c24 = arith.constant 24 : index
    %119 = vector.load %arg16[%c0_40, %c24] : memref<10x32xf32, #tpu.memory_space<vmem>>, vector<5x8xf32>
    tpu.vector_store %arg16[%c0_40, %c24], %118 {strides = array<i32>} : memref<10x32xf32, #tpu.memory_space<vmem>>, vector<5x8xf32>,
    %120 = vector.extract_strided_slice %42 {offsets = [5, 0], sizes = [5, 96], strides = [1, 1]} : vector<10x96xbf16> to vector<5x96xbf16>
    %121 = vector.extract_strided_slice %120 {offsets = [0, 0], sizes = [5, 8], strides = [1, 1]} : vector<5x96xbf16> to vector<5x8xbf16>
    %122 = vector.extract_strided_slice %120 {offsets = [0, 32], sizes = [5, 8], strides = [1, 1]} : vector<5x96xbf16> to vector<5x8xbf16>
    %123 = vector.extract_strided_slice %120 {offsets = [0, 64], sizes = [5, 8], strides = [1, 1]} : vector<5x96xbf16> to vector<5x8xbf16>
    %cst_41 = arith.constant dense<0.000000e+00> : vector<5x5xf32>
    %124 = tpu.matmul %121, %122, %cst_41 {dimension_numbers = #tpu.dot_dimension_numbers<[1], [1], [0], [0], [0, 0, 1, 0], [], []>} : vector<5x8xbf16>, vector<5x8xbf16>, vector<5x5xf32> -> vector<5x5xf32>
    %cst_42 = arith.constant 0.353553385 : f32
    %125 = vector.broadcast %cst_42 : f32 to vector<5x5xf32>
    %126 = arith.mulf %124, %125 : vector<5x5xf32>
    %cst_43 = arith.constant dense<0xFF800000> : vector<5xf32>
    %127 = vector.multi_reduction <maximumf>, %126, %cst_43 [1] : vector<5x5xf32> to vector<5xf32>
    %128 = vector.shape_cast %127 : vector<5xf32> to vector<5x1xf32>
    %129 = vector.broadcast %128 : vector<5x1xf32> to vector<5x5xf32>
    %130 = arith.subf %126, %129 : vector<5x5xf32>
    %131 = math.exp %130 : vector<5x5xf32>
    %cst_44 = arith.constant dense<0.000000e+00> : vector<5xf32>
    %132 = vector.multi_reduction <add>, %131, %cst_44 [1] : vector<5x5xf32> to vector<5xf32>
    %133 = vector.shape_cast %132 : vector<5xf32> to vector<5x1xf32>
    %134 = tpu.reciprocal %133 {approx = true} : vector<5x1xf32> -> vector<5x1xf32>
    %135 = vector.broadcast %134 : vector<5x1xf32> to vector<5x5xf32>
    %136 = arith.mulf %131, %135 : vector<5x5xf32>
    %137 = arith.truncf %136 : vector<5x5xf32> to vector<5x5xbf16>
    %cst_45 = arith.constant dense<0.000000e+00> : vector<5x8xf32>
    %138 = tpu.matmul %137, %123, %cst_45 {dimension_numbers = #tpu.dot_dimension_numbers<[1], [0], [0], [1], [0, 0, 1, 1], [], []>} : vector<5x5xbf16>, vector<5x8xbf16>, vector<5x8xf32> -> vector<5x8xf32>
    %c5 = arith.constant 5 : index
    %c0_46 = arith.constant 0 : index
    %139 = vector.load %arg16[%c5, %c0_46] : memref<10x32xf32, #tpu.memory_space<vmem>>, vector<5x8xf32>
    tpu.vector_store %arg16[%c5, %c0_46], %138 {strides = array<i32>} : memref<10x32xf32, #tpu.memory_space<vmem>>, vector<5x8xf32>,
    %140 = vector.extract_strided_slice %120 {offsets = [0, 8], sizes = [5, 8], strides = [1, 1]} : vector<5x96xbf16> to vector<5x8xbf16>
    %141 = vector.extract_strided_slice %120 {offsets = [0, 40], sizes = [5, 8], strides = [1, 1]} : vector<5x96xbf16> to vector<5x8xbf16>
    %142 = vector.extract_strided_slice %120 {offsets = [0, 72], sizes = [5, 8], strides = [1, 1]} : vector<5x96xbf16> to vector<5x8xbf16>
    %cst_47 = arith.constant dense<0.000000e+00> : vector<5x5xf32>
    %143 = tpu.matmul %140, %141, %cst_47 {dimension_numbers = #tpu.dot_dimension_numbers<[1], [1], [0], [0], [0, 0, 1, 0], [], []>} : vector<5x8xbf16>, vector<5x8xbf16>, vector<5x5xf32> -> vector<5x5xf32>
    %cst_48 = arith.constant 0.353553385 : f32
    %144 = vector.broadcast %cst_48 : f32 to vector<5x5xf32>
    %145 = arith.mulf %143, %144 : vector<5x5xf32>
    %cst_49 = arith.constant dense<0xFF800000> : vector<5xf32>
    %146 = vector.multi_reduction <maximumf>, %145, %cst_49 [1] : vector<5x5xf32> to vector<5xf32>
    %147 = vector.shape_cast %146 : vector<5xf32> to vector<5x1xf32>
    %148 = vector.broadcast %147 : vector<5x1xf32> to vector<5x5xf32>
    %149 = arith.subf %145, %148 : vector<5x5xf32>
    %150 = math.exp %149 : vector<5x5xf32>
    %cst_50 = arith.constant dense<0.000000e+00> : vector<5xf32>
    %151 = vector.multi_reduction <add>, %150, %cst_50 [1] : vector<5x5xf32> to vector<5xf32>
    %152 = vector.shape_cast %151 : vector<5xf32> to vector<5x1xf32>
    %153 = tpu.reciprocal %152 {approx = true} : vector<5x1xf32> -> vector<5x1xf32>
    %154 = vector.broadcast %153 : vector<5x1xf32> to vector<5x5xf32>
    %155 = arith.mulf %150, %154 : vector<5x5xf32>
    %156 = arith.truncf %155 : vector<5x5xf32> to vector<5x5xbf16>
    %cst_51 = arith.constant dense<0.000000e+00> : vector<5x8xf32>
    %157 = tpu.matmul %156, %142, %cst_51 {dimension_numbers = #tpu.dot_dimension_numbers<[1], [0], [0], [1], [0, 0, 1, 1], [], []>} : vector<5x5xbf16>, vector<5x8xbf16>, vector<5x8xf32> -> vector<5x8xf32>
    %c5_52 = arith.constant 5 : index
    %c8_53 = arith.constant 8 : index
    %158 = vector.load %arg16[%c5_52, %c8_53] : memref<10x32xf32, #tpu.memory_space<vmem>>, vector<5x8xf32>
    tpu.vector_store %arg16[%c5_52, %c8_53], %157 {strides = array<i32>} : memref<10x32xf32, #tpu.memory_space<vmem>>, vector<5x8xf32>,
    %159 = vector.extract_strided_slice %120 {offsets = [0, 16], sizes = [5, 8], strides = [1, 1]} : vector<5x96xbf16> to vector<5x8xbf16>
    %160 = vector.extract_strided_slice %120 {offsets = [0, 48], sizes = [5, 8], strides = [1, 1]} : vector<5x96xbf16> to vector<5x8xbf16>
    %161 = vector.extract_strided_slice %120 {offsets = [0, 80], sizes = [5, 8], strides = [1, 1]} : vector<5x96xbf16> to vector<5x8xbf16>
    %cst_54 = arith.constant dense<0.000000e+00> : vector<5x5xf32>
    %162 = tpu.matmul %159, %160, %cst_54 {dimension_numbers = #tpu.dot_dimension_numbers<[1], [1], [0], [0], [0, 0, 1, 0], [], []>} : vector<5x8xbf16>, vector<5x8xbf16>, vector<5x5xf32> -> vector<5x5xf32>
    %cst_55 = arith.constant 0.353553385 : f32
    %163 = vector.broadcast %cst_55 : f32 to vector<5x5xf32>
    %164 = arith.mulf %162, %163 : vector<5x5xf32>
    %cst_56 = arith.constant dense<0xFF800000> : vector<5xf32>
    %165 = vector.multi_reduction <maximumf>, %164, %cst_56 [1] : vector<5x5xf32> to vector<5xf32>
    %166 = vector.shape_cast %165 : vector<5xf32> to vector<5x1xf32>
    %167 = vector.broadcast %166 : vector<5x1xf32> to vector<5x5xf32>
    %168 = arith.subf %164, %167 : vector<5x5xf32>
    %169 = math.exp %168 : vector<5x5xf32>
    %cst_57 = arith.constant dense<0.000000e+00> : vector<5xf32>
    %170 = vector.multi_reduction <add>, %169, %cst_57 [1] : vector<5x5xf32> to vector<5xf32>
    %171 = vector.shape_cast %170 : vector<5xf32> to vector<5x1xf32>
    %172 = tpu.reciprocal %171 {approx = true} : vector<5x1xf32> -> vector<5x1xf32>
    %173 = vector.broadcast %172 : vector<5x1xf32> to vector<5x5xf32>
    %174 = arith.mulf %169, %173 : vector<5x5xf32>
    %175 = arith.truncf %174 : vector<5x5xf32> to vector<5x5xbf16>
    %cst_58 = arith.constant dense<0.000000e+00> : vector<5x8xf32>
    %176 = tpu.matmul %175, %161, %cst_58 {dimension_numbers = #tpu.dot_dimension_numbers<[1], [0], [0], [1], [0, 0, 1, 1], [], []>} : vector<5x5xbf16>, vector<5x8xbf16>, vector<5x8xf32> -> vector<5x8xf32>
    %c5_59 = arith.constant 5 : index
    %c16_60 = arith.constant 16 : index
    %177 = vector.load %arg16[%c5_59, %c16_60] : memref<10x32xf32, #tpu.memory_space<vmem>>, vector<5x8xf32>
    tpu.vector_store %arg16[%c5_59, %c16_60], %176 {strides = array<i32>} : memref<10x32xf32, #tpu.memory_space<vmem>>, vector<5x8xf32>,
    %178 = vector.extract_strided_slice %120 {offsets = [0, 24], sizes = [5, 8], strides = [1, 1]} : vector<5x96xbf16> to vector<5x8xbf16>
    %179 = vector.extract_strided_slice %120 {offsets = [0, 56], sizes = [5, 8], strides = [1, 1]} : vector<5x96xbf16> to vector<5x8xbf16>
    %180 = vector.extract_strided_slice %120 {offsets = [0, 88], sizes = [5, 8], strides = [1, 1]} : vector<5x96xbf16> to vector<5x8xbf16>
    %cst_61 = arith.constant dense<0.000000e+00> : vector<5x5xf32>
    %181 = tpu.matmul %178, %179, %cst_61 {dimension_numbers = #tpu.dot_dimension_numbers<[1], [1], [0], [0], [0, 0, 1, 0], [], []>} : vector<5x8xbf16>, vector<5x8xbf16>, vector<5x5xf32> -> vector<5x5xf32>
    %cst_62 = arith.constant 0.353553385 : f32
    %182 = vector.broadcast %cst_62 : f32 to vector<5x5xf32>
    %183 = arith.mulf %181, %182 : vector<5x5xf32>
    %cst_63 = arith.constant dense<0xFF800000> : vector<5xf32>
    %184 = vector.multi_reduction <maximumf>, %183, %cst_63 [1] : vector<5x5xf32> to vector<5xf32>
    %185 = vector.shape_cast %184 : vector<5xf32> to vector<5x1xf32>
    %186 = vector.broadcast %185 : vector<5x1xf32> to vector<5x5xf32>
    %187 = arith.subf %183, %186 : vector<5x5xf32>
    %188 = math.exp %187 : vector<5x5xf32>
    %cst_64 = arith.constant dense<0.000000e+00> : vector<5xf32>
    %189 = vector.multi_reduction <add>, %188, %cst_64 [1] : vector<5x5xf32> to vector<5xf32>
    %190 = vector.shape_cast %189 : vector<5xf32> to vector<5x1xf32>
    %191 = tpu.reciprocal %190 {approx = true} : vector<5x1xf32> -> vector<5x1xf32>
    %192 = vector.broadcast %191 : vector<5x1xf32> to vector<5x5xf32>
    %193 = arith.mulf %188, %192 : vector<5x5xf32>
    %194 = arith.truncf %193 : vector<5x5xf32> to vector<5x5xbf16>
    %cst_65 = arith.constant dense<0.000000e+00> : vector<5x8xf32>
    %195 = tpu.matmul %194, %180, %cst_65 {dimension_numbers = #tpu.dot_dimension_numbers<[1], [0], [0], [1], [0, 0, 1, 1], [], []>} : vector<5x5xbf16>, vector<5x8xbf16>, vector<5x8xf32> -> vector<5x8xf32>
    %c5_66 = arith.constant 5 : index
    %c24_67 = arith.constant 24 : index
    %196 = vector.load %arg16[%c5_66, %c24_67] : memref<10x32xf32, #tpu.memory_space<vmem>>, vector<5x8xf32>
    tpu.vector_store %arg16[%c5_66, %c24_67], %195 {strides = array<i32>} : memref<10x32xf32, #tpu.memory_space<vmem>>, vector<5x8xf32>,
    %c0_68 = arith.constant 0 : index
    %c0_69 = arith.constant 0 : index
    %197 = vector.load %arg16[%c0_68, %c0_69] : memref<10x32xf32, #tpu.memory_space<vmem>>, vector<10x32xf32>
    %198 = arith.truncf %197 : vector<10x32xf32> to vector<10x32xbf16>
    %199 = arith.index_cast %arg0 : i32 to index
    %c0_70 = arith.constant 0 : index
    %c0_71 = arith.constant 0 : index
    %200 = vector.load %arg7[%199, %c0_70, %c0_71] : memref<1x32x32xbf16, #tpu.memory_space<vmem>>, vector<1x32x32xbf16>
    %201 = vector.shape_cast %200 : vector<1x32x32xbf16> to vector<32x32xbf16>
    %cst_72 = arith.constant dense<0.000000e+00> : vector<10x32xf32>
    %202 = tpu.matmul %198, %201, %cst_72 {dimension_numbers = #tpu.dot_dimension_numbers<[1], [0], [0], [1], [0, 0, 1, 1], [], []>} : vector<10x32xbf16>, vector<32x32xbf16>, vector<10x32xf32> -> vector<10x32xf32>
    %203 = arith.index_cast %arg0 : i32 to index
    %c0_73 = arith.constant 0 : index
    %c0_74 = arith.constant 0 : index
    %204 = vector.load %arg8[%203, %c0_73, %c0_74] : memref<1x1x32xf32, #tpu.memory_space<vmem>>, vector<1x1x32xf32>
    %205 = vector.shape_cast %204 : vector<1x1x32xf32> to vector<1x32xf32>
    %206 = vector.broadcast %205 : vector<1x32xf32> to vector<10x32xf32>
    %207 = arith.addf %202, %206 : vector<10x32xf32>
    %208 = arith.addf %3, %207 : vector<10x32xf32>
    %209 = arith.index_cast %arg0 : i32 to index
    %c0_75 = arith.constant 0 : index
    %c0_76 = arith.constant 0 : index
    %210 = vector.load %arg9[%209, %c0_75, %c0_76] : memref<1x1x32xf32, #tpu.memory_space<vmem>>, vector<1x1x32xf32>
    %211 = vector.shape_cast %210 : vector<1x1x32xf32> to vector<1x32xf32>
    %212 = arith.index_cast %arg0 : i32 to index
    %c0_77 = arith.constant 0 : index
    %c0_78 = arith.constant 0 : index
    %213 = vector.load %arg10[%212, %c0_77, %c0_78] : memref<1x1x32xf32, #tpu.memory_space<vmem>>, vector<1x1x32xf32>
    %214 = vector.shape_cast %213 : vector<1x1x32xf32> to vector<1x32xf32>
    %cst_79 = arith.constant dense<0.000000e+00> : vector<10xf32>
    %215 = vector.multi_reduction <add>, %208, %cst_79 [1] : vector<10x32xf32> to vector<10xf32>
    %216 = vector.shape_cast %215 : vector<10xf32> to vector<10x1xf32>
    %cst_80 = arith.constant 3.200000e+01 : f32
    %217 = vector.broadcast %cst_80 : f32 to vector<10x1xf32>
    %218 = arith.divf %216, %217 : vector<10x1xf32>
    %219 = vector.broadcast %218 : vector<10x1xf32> to vector<10x32xf32>
    %220 = arith.subf %208, %219 : vector<10x32xf32>
    %221 = arith.mulf %220, %220 : vector<10x32xf32>
    %cst_81 = arith.constant dense<0.000000e+00> : vector<10xf32>
    %222 = vector.multi_reduction <add>, %221, %cst_81 [1] : vector<10x32xf32> to vector<10xf32>
    %223 = vector.shape_cast %222 : vector<10xf32> to vector<10x1xf32>
    %cst_82 = arith.constant 3.200000e+01 : f32
    %224 = vector.broadcast %cst_82 : f32 to vector<10x1xf32>
    %225 = arith.divf %223, %224 : vector<10x1xf32>
    %226 = vector.broadcast %218 : vector<10x1xf32> to vector<10x32xf32>
    %227 = arith.subf %208, %226 : vector<10x32xf32>
    %cst_83 = arith.constant 9.99999996E-13 : f32
    %228 = vector.broadcast %cst_83 : f32 to vector<10x1xf32>
    %229 = arith.addf %225, %228 : vector<10x1xf32>
    %230 = math.rsqrt %229 : vector<10x1xf32>
    %231 = vector.broadcast %230 : vector<10x1xf32> to vector<10x32xf32>
    %232 = arith.mulf %227, %231 : vector<10x32xf32>
    %233 = vector.broadcast %211 : vector<1x32xf32> to vector<10x32xf32>
    %234 = arith.mulf %232, %233 : vector<10x32xf32>
    %235 = vector.broadcast %214 : vector<1x32xf32> to vector<10x32xf32>
    %236 = arith.addf %234, %235 : vector<10x32xf32>
    %237 = arith.truncf %236 : vector<10x32xf32> to vector<10x32xbf16>
    %238 = arith.index_cast %arg0 : i32 to index
    %c0_84 = arith.constant 0 : index
    %c0_85 = arith.constant 0 : index
    %239 = vector.load %arg11[%238, %c0_84, %c0_85] : memref<1x32x64xbf16, #tpu.memory_space<vmem>>, vector<1x32x64xbf16>
    %240 = vector.shape_cast %239 : vector<1x32x64xbf16> to vector<32x64xbf16>
    %cst_86 = arith.constant dense<0.000000e+00> : vector<10x64xf32>
    %241 = tpu.matmul %237, %240, %cst_86 {dimension_numbers = #tpu.dot_dimension_numbers<[1], [0], [0], [1], [0, 0, 1, 1], [], []>} : vector<10x32xbf16>, vector<32x64xbf16>, vector<10x64xf32> -> vector<10x64xf32>
    %242 = arith.index_cast %arg0 : i32 to index
    %c0_87 = arith.constant 0 : index
    %c0_88 = arith.constant 0 : index
    %243 = vector.load %arg12[%242, %c0_87, %c0_88] : memref<1x1x64xf32, #tpu.memory_space<vmem>>, vector<1x1x64xf32>
    %244 = vector.shape_cast %243 : vector<1x1x64xf32> to vector<1x64xf32>
    %245 = vector.broadcast %244 : vector<1x64xf32> to vector<10x64xf32>
    %246 = arith.addf %241, %245 : vector<10x64xf32>
    %247 = arith.mulf %246, %246 : vector<10x64xf32>
    %248 = arith.mulf %246, %247 : vector<10x64xf32>
    %cst_89 = arith.constant 4.471500e-02 : f32
    %249 = vector.broadcast %cst_89 : f32 to vector<10x64xf32>
    %250 = arith.mulf %249, %248 : vector<10x64xf32>
    %251 = arith.addf %246, %250 : vector<10x64xf32>
    %cst_90 = arith.constant 0.797884583 : f32
    %252 = vector.broadcast %cst_90 : f32 to vector<10x64xf32>
    %253 = arith.mulf %252, %251 : vector<10x64xf32>
    %254 = math.tanh %253 : vector<10x64xf32>
    %cst_91 = arith.constant 1.000000e+00 : f32
    %255 = vector.broadcast %cst_91 : f32 to vector<10x64xf32>
    %256 = arith.addf %255, %254 : vector<10x64xf32>
    %cst_92 = arith.constant 5.000000e-01 : f32
    %257 = vector.broadcast %cst_92 : f32 to vector<10x64xf32>
    %258 = arith.mulf %257, %256 : vector<10x64xf32>
    %259 = arith.mulf %246, %258 : vector<10x64xf32>
    %260 = arith.truncf %259 : vector<10x64xf32> to vector<10x64xbf16>
    %261 = arith.index_cast %arg0 : i32 to index
    %c0_93 = arith.constant 0 : index
    %c0_94 = arith.constant 0 : index
    %262 = vector.load %arg13[%261, %c0_93, %c0_94] : memref<1x64x32xbf16, #tpu.memory_space<vmem>>, vector<1x64x32xbf16>
    %263 = vector.shape_cast %262 : vector<1x64x32xbf16> to vector<64x32xbf16>
    %cst_95 = arith.constant dense<0.000000e+00> : vector<10x32xf32>
    %264 = tpu.matmul %260, %263, %cst_95 {dimension_numbers = #tpu.dot_dimension_numbers<[1], [0], [0], [1], [0, 0, 1, 1], [], []>} : vector<10x64xbf16>, vector<64x32xbf16>, vector<10x32xf32> -> vector<10x32xf32>
    %265 = arith.index_cast %arg0 : i32 to index
    %c0_96 = arith.constant 0 : index
    %c0_97 = arith.constant 0 : index
    %266 = vector.load %arg14[%265, %c0_96, %c0_97] : memref<1x1x32xf32, #tpu.memory_space<vmem>>, vector<1x1x32xf32>
    %267 = vector.shape_cast %266 : vector<1x1x32xf32> to vector<1x32xf32>
    %268 = vector.broadcast %267 : vector<1x32xf32> to vector<10x32xf32>
    %269 = arith.addf %264, %268 : vector<10x32xf32>
    %270 = arith.addf %208, %269 : vector<10x32xf32>
    %271 = vector.shape_cast %270 : vector<10x32xf32> to vector<2x5x32xf32>
    %272 = arith.truncf %271 : vector<2x5x32xf32> to vector<2x5x32xbf16>
    %c0_98 = arith.constant 0 : index
    %c0_99 = arith.constant 0 : index
    %c0_100 = arith.constant 0 : index
    %c0_101 = arith.constant 0 : index
    %273 = vector.load %arg15[%c0_98, %c0_99, %c0_100, %c0_101] : memref<1x2x5x32xbf16, #tpu.memory_space<vmem>>, vector<1x2x5x32xbf16>
    %274 = vector.shape_cast %273 : vector<1x2x5x32xbf16> to vector<2x5x32xbf16>
    %275 = vector.shape_cast %272 : vector<2x5x32xbf16> to vector<1x2x5x32xbf16>
    tpu.vector_store %arg15[%c0_98, %c0_99, %c0_100, %c0_101], %275 {strides = array<i32>} : memref<1x2x5x32xbf16, #tpu.memory_space<vmem>>, vector<1x2x5x32xbf16>,
    return
  }
  func.func @transform_0(%arg0: i32, %arg1: i32) -> (i32, i32, i32, i32) {
    %c0_i32 = arith.constant 0 : i32
    %c0_i32_0 = arith.constant 0 : i32
    %c0_i32_1 = arith.constant 0 : i32
    return %arg0, %arg1, %c0_i32, %c0_i32_0 : i32, i32, i32, i32
  }
  func.func @transform_1(%arg0: i32, %arg1: i32) -> (i32, i32, i32) {
    %c0_i32 = arith.constant 0 : i32
    %c0_i32_0 = arith.constant 0 : i32
    %c0_i32_1 = arith.constant 0 : i32
    %c0_i32_2 = arith.constant 0 : i32
    return %c0_i32, %c0_i32_0, %c0_i32_1 : i32, i32, i32
  }
  func.func @transform_2(%arg0: i32, %arg1: i32) -> (i32, i32, i32) {
    %c0_i32 = arith.constant 0 : i32
    %c0_i32_0 = arith.constant 0 : i32
    %c0_i32_1 = arith.constant 0 : i32
    %c0_i32_2 = arith.constant 0 : i32
    return %c0_i32, %c0_i32_0, %c0_i32_1 : i32, i32, i32
  }
  func.func @transform_3(%arg0: i32, %arg1: i32) -> (i32, i32, i32) {
    %c0_i32 = arith.constant 0 : i32
    %c0_i32_0 = arith.constant 0 : i32
    %c0_i32_1 = arith.constant 0 : i32
    %c0_i32_2 = arith.constant 0 : i32
    return %c0_i32, %c0_i32_0, %c0_i32_1 : i32, i32, i32
  }
  func.func @transform_4(%arg0: i32, %arg1: i32) -> (i32, i32, i32) {
    %c0_i32 = arith.constant 0 : i32
    %c0_i32_0 = arith.constant 0 : i32
    %c0_i32_1 = arith.constant 0 : i32
    %c0_i32_2 = arith.constant 0 : i32
    return %c0_i32, %c0_i32_0, %c0_i32_1 : i32, i32, i32
  }
  func.func @transform_5(%arg0: i32, %arg1: i32) -> (i32, i32, i32) {
    %c0_i32 = arith.constant 0 : i32
    %c0_i32_0 = arith.constant 0 : i32
    %c0_i32_1 = arith.constant 0 : i32
    %c0_i32_2 = arith.constant 0 : i32
    return %c0_i32, %c0_i32_0, %c0_i32_1 : i32, i32, i32
  }
  func.func @transform_6(%arg0: i32, %arg1: i32) -> (i32, i32, i32) {
    %c0_i32 = arith.constant 0 : i32
    %c0_i32_0 = arith.constant 0 : i32
    %c0_i32_1 = arith.constant 0 : i32
    %c0_i32_2 = arith.constant 0 : i32
    return %c0_i32, %c0_i32_0, %c0_i32_1 : i32, i32, i32
  }
  func.func @transform_7(%arg0: i32, %arg1: i32) -> (i32, i32, i32) {
    %c0_i32 = arith.constant 0 : i32
    %c0_i32_0 = arith.constant 0 : i32
    %c0_i32_1 = arith.constant 0 : i32
    %c0_i32_2 = arith.constant 0 : i32
    return %c0_i32, %c0_i32_0, %c0_i32_1 : i32, i32, i32
  }
  func.func @transform_8(%arg0: i32, %arg1: i32) -> (i32, i32, i32) {
    %c0_i32 = arith.constant 0 : i32
    %c0_i32_0 = arith.constant 0 : i32
    %c0_i32_1 = arith.constant 0 : i32
    %c0_i32_2 = arith.constant 0 : i32
    return %c0_i32, %c0_i32_0, %c0_i32_1 : i32, i32, i32
  }
  func.func @transform_9(%arg0: i32, %arg1: i32) -> (i32, i32, i32) {
    %c0_i32 = arith.constant 0 : i32
    %c0_i32_0 = arith.constant 0 : i32
    %c0_i32_1 = arith.constant 0 : i32
    %c0_i32_2 = arith.constant 0 : i32
    return %c0_i32, %c0_i32_0, %c0_i32_1 : i32, i32, i32
  }
  func.func @transform_10(%arg0: i32, %arg1: i32) -> (i32, i32, i32) {
    %c0_i32 = arith.constant 0 : i32
    %c0_i32_0 = arith.constant 0 : i32
    %c0_i32_1 = arith.constant 0 : i32
    %c0_i32_2 = arith.constant 0 : i32
    return %c0_i32, %c0_i32_0, %c0_i32_1 : i32, i32, i32
  }
  func.func @transform_11(%arg0: i32, %arg1: i32) -> (i32, i32, i32) {
    %c0_i32 = arith.constant 0 : i32
    %c0_i32_0 = arith.constant 0 : i32
    %c0_i32_1 = arith.constant 0 : i32
    %c0_i32_2 = arith.constant 0 : i32
    return %c0_i32, %c0_i32_0, %c0_i32_1 : i32, i32, i32
  }
  func.func @transform_12(%arg0: i32, %arg1: i32) -> (i32, i32, i32) {
    %c0_i32 = arith.constant 0 : i32
    %c0_i32_0 = arith.constant 0 : i32
    %c0_i32_1 = arith.constant 0 : i32
    %c0_i32_2 = arith.constant 0 : i32
    return %c0_i32, %c0_i32_0, %c0_i32_1 : i32, i32, i32
  }
  func.func @transform_13(%arg0: i32, %arg1: i32) -> (i32, i32, i32, i32) {
    %c0_i32 = arith.constant 0 : i32
    %c0_i32_0 = arith.constant 0 : i32
    %c0_i32_1 = arith.constant 0 : i32
    return %arg0, %arg1, %c0_i32, %c0_i32_0 : i32, i32, i32, i32
  }
}

module attributes {stable_mosaic.version = 11 : i64} {
  func.func @_vit_layer_kernel(%arg0: i32, %arg1: i32, %arg2: memref<1x2x5x32xbf16, #tpu.memory_space<vmem>>, %arg3: memref<2x1x32xf32, #tpu.memory_space<vmem>>, %arg4: memref<2x1x32xf32, #tpu.memory_space<vmem>>, %arg5: memref<2x32x96xbf16, #tpu.memory_space<vmem>>, %arg6: memref<2x1x96xf32, #tpu.memory_space<vmem>>, %arg7: memref<2x32x32xbf16, #tpu.memory_space<vmem>>, %arg8: memref<2x1x32xf32, #tpu.memory_space<vmem>>, %arg9: memref<2x1x32xf32, #tpu.memory_space<vmem>>, %arg10: memref<2x1x32xf32, #tpu.memory_space<vmem>>, %arg11: memref<2x32x64xbf16, #tpu.memory_space<vmem>>, %arg12: memref<2x1x64xf32, #tpu.memory_space<vmem>>, %arg13: memref<2x64x32xbf16, #tpu.memory_space<vmem>>, %arg14: memref<2x1x32xf32, #tpu.memory_space<vmem>>, %arg15: memref<1x2x5x32xbf16, #tpu.memory_space<vmem>>, %arg16: memref<10x32xf32, #tpu.memory_space<vmem>>) attributes {dimension_semantics = [#tpu.dimension_semantics<parallel>, #tpu.dimension_semantics<parallel>], iteration_bounds = array<i64: 2, 1>, scalar_prefetch = 0 : i64, scratch_operands = 1 : i64, tpu.core_type = #tpu.core_type<tc>, window_params = [{transform_indices = @transform_0, window_bounds = array<i64: 1, 2, 5, 32>}, {pipeline_mode = #tpu.pipeline_mode<synchronous>, transform_indices = @transform_1, window_bounds = array<i64: 2, 1, 32>}, {pipeline_mode = #tpu.pipeline_mode<synchronous>, transform_indices = @transform_2, window_bounds = array<i64: 2, 1, 32>}, {pipeline_mode = #tpu.pipeline_mode<synchronous>, transform_indices = @transform_3, window_bounds = array<i64: 2, 32, 96>}, {pipeline_mode = #tpu.pipeline_mode<synchronous>, transform_indices = @transform_4, window_bounds = array<i64: 2, 1, 96>}, {pipeline_mode = #tpu.pipeline_mode<synchronous>, transform_indices = @transform_5, window_bounds = array<i64: 2, 32, 32>}, {pipeline_mode = #tpu.pipeline_mode<synchronous>, transform_indices = @transform_6, window_bounds = array<i64: 2, 1, 32>}, {pipeline_mode = #tpu.pipeline_mode<synchronous>, transform_indices = @transform_7, window_bounds = array<i64: 2, 1, 32>}, {pipeline_mode = #tpu.pipeline_mode<synchronous>, transform_indices = @transform_8, window_bounds = array<i64: 2, 1, 32>}, {pipeline_mode = #tpu.pipeline_mode<synchronous>, transform_indices = @transform_9, window_bounds = array<i64: 2, 32, 64>}, {pipeline_mode = #tpu.pipeline_mode<synchronous>, transform_indices = @transform_10, window_bounds = array<i64: 2, 1, 64>}, {pipeline_mode = #tpu.pipeline_mode<synchronous>, transform_indices = @transform_11, window_bounds = array<i64: 2, 64, 32>}, {pipeline_mode = #tpu.pipeline_mode<synchronous>, transform_indices = @transform_12, window_bounds = array<i64: 2, 1, 32>}, {transform_indices = @transform_13, window_bounds = array<i64: 1, 2, 5, 32>}]} {
    %c0 = arith.constant 0 : index
    %c0_0 = arith.constant 0 : index
    %c0_1 = arith.constant 0 : index
    %c0_2 = arith.constant 0 : index
    %0 = vector.load %arg2[%c0, %c0_0, %c0_1, %c0_2] : memref<1x2x5x32xbf16, #tpu.memory_space<vmem>>, vector<1x2x5x32xbf16>
    %1 = vector.shape_cast %0 : vector<1x2x5x32xbf16> to vector<2x5x32xbf16>
    %2 = arith.extf %1 : vector<2x5x32xbf16> to vector<2x5x32xf32>
    %3 = vector.shape_cast %2 : vector<2x5x32xf32> to vector<10x32xf32>
    %4 = arith.index_cast %arg0 : i32 to index
    %c0_3 = arith.constant 0 : index
    %c0_4 = arith.constant 0 : index
    %5 = vector.load %arg3[%4, %c0_3, %c0_4] : memref<2x1x32xf32, #tpu.memory_space<vmem>>, vector<1x1x32xf32>
    %6 = vector.shape_cast %5 : vector<1x1x32xf32> to vector<1x32xf32>
    %7 = arith.index_cast %arg0 : i32 to index
    %c0_5 = arith.constant 0 : index
    %c0_6 = arith.constant 0 : index
    %8 = vector.load %arg4[%7, %c0_5, %c0_6] : memref<2x1x32xf32, #tpu.memory_space<vmem>>, vector<1x1x32xf32>
    %9 = vector.shape_cast %8 : vector<1x1x32xf32> to vector<1x32xf32>
    %cst = arith.constant dense<0.000000e+00> : vector<10xf32>
    %10 = vector.multi_reduction <add>, %3, %cst [1] : vector<10x32xf32> to vector<10xf32>
    %11 = vector.shape_cast %10 : vector<10xf32> to vector<10x1xf32>
    %cst_7 = arith.constant 3.200000e+01 : f32
    %12 = vector.broadcast %cst_7 : f32 to vector<10x1xf32>
    %13 = arith.divf %11, %12 : vector<10x1xf32>
    %14 = vector.broadcast %13 : vector<10x1xf32> to vector<10x32xf32>
    %15 = arith.subf %3, %14 : vector<10x32xf32>
    %16 = arith.mulf %15, %15 : vector<10x32xf32>
    %cst_8 = arith.constant dense<0.000000e+00> : vector<10xf32>
    %17 = vector.multi_reduction <add>, %16, %cst_8 [1] : vector<10x32xf32> to vector<10xf32>
    %18 = vector.shape_cast %17 : vector<10xf32> to vector<10x1xf32>
    %cst_9 = arith.constant 3.200000e+01 : f32
    %19 = vector.broadcast %cst_9 : f32 to vector<10x1xf32>
    %20 = arith.divf %18, %19 : vector<10x1xf32>
    %21 = vector.broadcast %13 : vector<10x1xf32> to vector<10x32xf32>
    %22 = arith.subf %3, %21 : vector<10x32xf32>
    %cst_10 = arith.constant 9.99999996E-13 : f32
    %23 = vector.broadcast %cst_10 : f32 to vector<10x1xf32>
    %24 = arith.addf %20, %23 : vector<10x1xf32>
    %25 = math.rsqrt %24 : vector<10x1xf32>
    %26 = vector.broadcast %25 : vector<10x1xf32> to vector<10x32xf32>
    %27 = arith.mulf %22, %26 : vector<10x32xf32>
    %28 = vector.broadcast %6 : vector<1x32xf32> to vector<10x32xf32>
    %29 = arith.mulf %27, %28 : vector<10x32xf32>
    %30 = vector.broadcast %9 : vector<1x32xf32> to vector<10x32xf32>
    %31 = arith.addf %29, %30 : vector<10x32xf32>
    %32 = arith.truncf %31 : vector<10x32xf32> to vector<10x32xbf16>
    %33 = arith.index_cast %arg0 : i32 to index
    %c0_11 = arith.constant 0 : index
    %c0_12 = arith.constant 0 : index
    %34 = vector.load %arg5[%33, %c0_11, %c0_12] : memref<2x32x96xbf16, #tpu.memory_space<vmem>>, vector<1x32x96xbf16>
    %35 = vector.shape_cast %34 : vector<1x32x96xbf16> to vector<32x96xbf16>
    %cst_13 = arith.constant dense<0.000000e+00> : vector<10x96xf32>
    %36 = tpu.matmul %32, %35, %cst_13 {dimension_numbers = #tpu.dot_dimension_numbers<[1], [0], [0], [1], [0, 0, 1, 1], [], []>} : vector<10x32xbf16>, vector<32x96xbf16>, vector<10x96xf32> -> vector<10x96xf32>
    %37 = arith.index_cast %arg0 : i32 to index
    %c0_14 = arith.constant 0 : index
    %c0_15 = arith.constant 0 : index
    %38 = vector.load %arg6[%37, %c0_14, %c0_15] : memref<2x1x96xf32, #tpu.memory_space<vmem>>, vector<1x1x96xf32>
    %39 = vector.shape_cast %38 : vector<1x1x96xf32> to vector<1x96xf32>
    %40 = vector.broadcast %39 : vector<1x96xf32> to vector<10x96xf32>
    %41 = arith.addf %36, %40 : vector<10x96xf32>
    %42 = arith.truncf %41 : vector<10x96xf32> to vector<10x96xbf16>
    %43 = vector.extract_strided_slice %42 {offsets = [0, 0], sizes = [5, 96], strides = [1, 1]} : vector<10x96xbf16> to vector<5x96xbf16>
    %44 = vector.extract_strided_slice %43 {offsets = [0, 0], sizes = [5, 8], strides = [1, 1]} : vector<5x96xbf16> to vector<5x8xbf16>
    %45 = vector.extract_strided_slice %43 {offsets = [0, 32], sizes = [5, 8], strides = [1, 1]} : vector<5x96xbf16> to vector<5x8xbf16>
    %46 = vector.extract_strided_slice %43 {offsets = [0, 64], sizes = [5, 8], strides = [1, 1]} : vector<5x96xbf16> to vector<5x8xbf16>
    %cst_16 = arith.constant dense<0.000000e+00> : vector<5x5xf32>
    %47 = tpu.matmul %44, %45, %cst_16 {dimension_numbers = #tpu.dot_dimension_numbers<[1], [1], [0], [0], [0, 0, 1, 0], [], []>} : vector<5x8xbf16>, vector<5x8xbf16>, vector<5x5xf32> -> vector<5x5xf32>
    %cst_17 = arith.constant 0.353553385 : f32
    %48 = vector.broadcast %cst_17 : f32 to vector<5x5xf32>
    %49 = arith.mulf %47, %48 : vector<5x5xf32>
    %cst_18 = arith.constant dense<0xFF800000> : vector<5xf32>
    %50 = vector.multi_reduction <maximumf>, %49, %cst_18 [1] : vector<5x5xf32> to vector<5xf32>
    %51 = vector.shape_cast %50 : vector<5xf32> to vector<5x1xf32>
    %52 = vector.broadcast %51 : vector<5x1xf32> to vector<5x5xf32>
    %53 = arith.subf %49, %52 : vector<5x5xf32>
    %54 = math.exp %53 : vector<5x5xf32>
    %cst_19 = arith.constant dense<0.000000e+00> : vector<5xf32>
    %55 = vector.multi_reduction <add>, %54, %cst_19 [1] : vector<5x5xf32> to vector<5xf32>
    %56 = vector.shape_cast %55 : vector<5xf32> to vector<5x1xf32>
    %57 = tpu.reciprocal %56 {approx = true} : vector<5x1xf32> -> vector<5x1xf32>
    %58 = vector.broadcast %57 : vector<5x1xf32> to vector<5x5xf32>
    %59 = arith.mulf %54, %58 : vector<5x5xf32>
    %60 = arith.truncf %59 : vector<5x5xf32> to vector<5x5xbf16>
    %cst_20 = arith.constant dense<0.000000e+00> : vector<5x8xf32>
    %61 = tpu.matmul %60, %46, %cst_20 {dimension_numbers = #tpu.dot_dimension_numbers<[1], [0], [0], [1], [0, 0, 1, 1], [], []>} : vector<5x5xbf16>, vector<5x8xbf16>, vector<5x8xf32> -> vector<5x8xf32>
    %c0_21 = arith.constant 0 : index
    %c0_22 = arith.constant 0 : index
    %62 = vector.load %arg16[%c0_21, %c0_22] : memref<10x32xf32, #tpu.memory_space<vmem>>, vector<5x8xf32>
    tpu.vector_store %arg16[%c0_21, %c0_22], %61 {strides = array<i32>} : memref<10x32xf32, #tpu.memory_space<vmem>>, vector<5x8xf32>,
    %63 = vector.extract_strided_slice %43 {offsets = [0, 8], sizes = [5, 8], strides = [1, 1]} : vector<5x96xbf16> to vector<5x8xbf16>
    %64 = vector.extract_strided_slice %43 {offsets = [0, 40], sizes = [5, 8], strides = [1, 1]} : vector<5x96xbf16> to vector<5x8xbf16>
    %65 = vector.extract_strided_slice %43 {offsets = [0, 72], sizes = [5, 8], strides = [1, 1]} : vector<5x96xbf16> to vector<5x8xbf16>
    %cst_23 = arith.constant dense<0.000000e+00> : vector<5x5xf32>
    %66 = tpu.matmul %63, %64, %cst_23 {dimension_numbers = #tpu.dot_dimension_numbers<[1], [1], [0], [0], [0, 0, 1, 0], [], []>} : vector<5x8xbf16>, vector<5x8xbf16>, vector<5x5xf32> -> vector<5x5xf32>
    %cst_24 = arith.constant 0.353553385 : f32
    %67 = vector.broadcast %cst_24 : f32 to vector<5x5xf32>
    %68 = arith.mulf %66, %67 : vector<5x5xf32>
    %cst_25 = arith.constant dense<0xFF800000> : vector<5xf32>
    %69 = vector.multi_reduction <maximumf>, %68, %cst_25 [1] : vector<5x5xf32> to vector<5xf32>
    %70 = vector.shape_cast %69 : vector<5xf32> to vector<5x1xf32>
    %71 = vector.broadcast %70 : vector<5x1xf32> to vector<5x5xf32>
    %72 = arith.subf %68, %71 : vector<5x5xf32>
    %73 = math.exp %72 : vector<5x5xf32>
    %cst_26 = arith.constant dense<0.000000e+00> : vector<5xf32>
    %74 = vector.multi_reduction <add>, %73, %cst_26 [1] : vector<5x5xf32> to vector<5xf32>
    %75 = vector.shape_cast %74 : vector<5xf32> to vector<5x1xf32>
    %76 = tpu.reciprocal %75 {approx = true} : vector<5x1xf32> -> vector<5x1xf32>
    %77 = vector.broadcast %76 : vector<5x1xf32> to vector<5x5xf32>
    %78 = arith.mulf %73, %77 : vector<5x5xf32>
    %79 = arith.truncf %78 : vector<5x5xf32> to vector<5x5xbf16>
    %cst_27 = arith.constant dense<0.000000e+00> : vector<5x8xf32>
    %80 = tpu.matmul %79, %65, %cst_27 {dimension_numbers = #tpu.dot_dimension_numbers<[1], [0], [0], [1], [0, 0, 1, 1], [], []>} : vector<5x5xbf16>, vector<5x8xbf16>, vector<5x8xf32> -> vector<5x8xf32>
    %c0_28 = arith.constant 0 : index
    %c8 = arith.constant 8 : index
    %81 = vector.load %arg16[%c0_28, %c8] : memref<10x32xf32, #tpu.memory_space<vmem>>, vector<5x8xf32>
    tpu.vector_store %arg16[%c0_28, %c8], %80 {strides = array<i32>} : memref<10x32xf32, #tpu.memory_space<vmem>>, vector<5x8xf32>,
    %82 = vector.extract_strided_slice %43 {offsets = [0, 16], sizes = [5, 8], strides = [1, 1]} : vector<5x96xbf16> to vector<5x8xbf16>
    %83 = vector.extract_strided_slice %43 {offsets = [0, 48], sizes = [5, 8], strides = [1, 1]} : vector<5x96xbf16> to vector<5x8xbf16>
    %84 = vector.extract_strided_slice %43 {offsets = [0, 80], sizes = [5, 8], strides = [1, 1]} : vector<5x96xbf16> to vector<5x8xbf16>
    %cst_29 = arith.constant dense<0.000000e+00> : vector<5x5xf32>
    %85 = tpu.matmul %82, %83, %cst_29 {dimension_numbers = #tpu.dot_dimension_numbers<[1], [1], [0], [0], [0, 0, 1, 0], [], []>} : vector<5x8xbf16>, vector<5x8xbf16>, vector<5x5xf32> -> vector<5x5xf32>
    %cst_30 = arith.constant 0.353553385 : f32
    %86 = vector.broadcast %cst_30 : f32 to vector<5x5xf32>
    %87 = arith.mulf %85, %86 : vector<5x5xf32>
    %cst_31 = arith.constant dense<0xFF800000> : vector<5xf32>
    %88 = vector.multi_reduction <maximumf>, %87, %cst_31 [1] : vector<5x5xf32> to vector<5xf32>
    %89 = vector.shape_cast %88 : vector<5xf32> to vector<5x1xf32>
    %90 = vector.broadcast %89 : vector<5x1xf32> to vector<5x5xf32>
    %91 = arith.subf %87, %90 : vector<5x5xf32>
    %92 = math.exp %91 : vector<5x5xf32>
    %cst_32 = arith.constant dense<0.000000e+00> : vector<5xf32>
    %93 = vector.multi_reduction <add>, %92, %cst_32 [1] : vector<5x5xf32> to vector<5xf32>
    %94 = vector.shape_cast %93 : vector<5xf32> to vector<5x1xf32>
    %95 = tpu.reciprocal %94 {approx = true} : vector<5x1xf32> -> vector<5x1xf32>
    %96 = vector.broadcast %95 : vector<5x1xf32> to vector<5x5xf32>
    %97 = arith.mulf %92, %96 : vector<5x5xf32>
    %98 = arith.truncf %97 : vector<5x5xf32> to vector<5x5xbf16>
    %cst_33 = arith.constant dense<0.000000e+00> : vector<5x8xf32>
    %99 = tpu.matmul %98, %84, %cst_33 {dimension_numbers = #tpu.dot_dimension_numbers<[1], [0], [0], [1], [0, 0, 1, 1], [], []>} : vector<5x5xbf16>, vector<5x8xbf16>, vector<5x8xf32> -> vector<5x8xf32>
    %c0_34 = arith.constant 0 : index
    %c16 = arith.constant 16 : index
    %100 = vector.load %arg16[%c0_34, %c16] : memref<10x32xf32, #tpu.memory_space<vmem>>, vector<5x8xf32>
    tpu.vector_store %arg16[%c0_34, %c16], %99 {strides = array<i32>} : memref<10x32xf32, #tpu.memory_space<vmem>>, vector<5x8xf32>,
    %101 = vector.extract_strided_slice %43 {offsets = [0, 24], sizes = [5, 8], strides = [1, 1]} : vector<5x96xbf16> to vector<5x8xbf16>
    %102 = vector.extract_strided_slice %43 {offsets = [0, 56], sizes = [5, 8], strides = [1, 1]} : vector<5x96xbf16> to vector<5x8xbf16>
    %103 = vector.extract_strided_slice %43 {offsets = [0, 88], sizes = [5, 8], strides = [1, 1]} : vector<5x96xbf16> to vector<5x8xbf16>
    %cst_35 = arith.constant dense<0.000000e+00> : vector<5x5xf32>
    %104 = tpu.matmul %101, %102, %cst_35 {dimension_numbers = #tpu.dot_dimension_numbers<[1], [1], [0], [0], [0, 0, 1, 0], [], []>} : vector<5x8xbf16>, vector<5x8xbf16>, vector<5x5xf32> -> vector<5x5xf32>
    %cst_36 = arith.constant 0.353553385 : f32
    %105 = vector.broadcast %cst_36 : f32 to vector<5x5xf32>
    %106 = arith.mulf %104, %105 : vector<5x5xf32>
    %cst_37 = arith.constant dense<0xFF800000> : vector<5xf32>
    %107 = vector.multi_reduction <maximumf>, %106, %cst_37 [1] : vector<5x5xf32> to vector<5xf32>
    %108 = vector.shape_cast %107 : vector<5xf32> to vector<5x1xf32>
    %109 = vector.broadcast %108 : vector<5x1xf32> to vector<5x5xf32>
    %110 = arith.subf %106, %109 : vector<5x5xf32>
    %111 = math.exp %110 : vector<5x5xf32>
    %cst_38 = arith.constant dense<0.000000e+00> : vector<5xf32>
    %112 = vector.multi_reduction <add>, %111, %cst_38 [1] : vector<5x5xf32> to vector<5xf32>
    %113 = vector.shape_cast %112 : vector<5xf32> to vector<5x1xf32>
    %114 = tpu.reciprocal %113 {approx = true} : vector<5x1xf32> -> vector<5x1xf32>
    %115 = vector.broadcast %114 : vector<5x1xf32> to vector<5x5xf32>
    %116 = arith.mulf %111, %115 : vector<5x5xf32>
    %117 = arith.truncf %116 : vector<5x5xf32> to vector<5x5xbf16>
    %cst_39 = arith.constant dense<0.000000e+00> : vector<5x8xf32>
    %118 = tpu.matmul %117, %103, %cst_39 {dimension_numbers = #tpu.dot_dimension_numbers<[1], [0], [0], [1], [0, 0, 1, 1], [], []>} : vector<5x5xbf16>, vector<5x8xbf16>, vector<5x8xf32> -> vector<5x8xf32>
    %c0_40 = arith.constant 0 : index
    %c24 = arith.constant 24 : index
    %119 = vector.load %arg16[%c0_40, %c24] : memref<10x32xf32, #tpu.memory_space<vmem>>, vector<5x8xf32>
    tpu.vector_store %arg16[%c0_40, %c24], %118 {strides = array<i32>} : memref<10x32xf32, #tpu.memory_space<vmem>>, vector<5x8xf32>,
    %120 = vector.extract_strided_slice %42 {offsets = [5, 0], sizes = [5, 96], strides = [1, 1]} : vector<10x96xbf16> to vector<5x96xbf16>
    %121 = vector.extract_strided_slice %120 {offsets = [0, 0], sizes = [5, 8], strides = [1, 1]} : vector<5x96xbf16> to vector<5x8xbf16>
    %122 = vector.extract_strided_slice %120 {offsets = [0, 32], sizes = [5, 8], strides = [1, 1]} : vector<5x96xbf16> to vector<5x8xbf16>
    %123 = vector.extract_strided_slice %120 {offsets = [0, 64], sizes = [5, 8], strides = [1, 1]} : vector<5x96xbf16> to vector<5x8xbf16>
    %cst_41 = arith.constant dense<0.000000e+00> : vector<5x5xf32>
    %124 = tpu.matmul %121, %122, %cst_41 {dimension_numbers = #tpu.dot_dimension_numbers<[1], [1], [0], [0], [0, 0, 1, 0], [], []>} : vector<5x8xbf16>, vector<5x8xbf16>, vector<5x5xf32> -> vector<5x5xf32>
    %cst_42 = arith.constant 0.353553385 : f32
    %125 = vector.broadcast %cst_42 : f32 to vector<5x5xf32>
    %126 = arith.mulf %124, %125 : vector<5x5xf32>
    %cst_43 = arith.constant dense<0xFF800000> : vector<5xf32>
    %127 = vector.multi_reduction <maximumf>, %126, %cst_43 [1] : vector<5x5xf32> to vector<5xf32>
    %128 = vector.shape_cast %127 : vector<5xf32> to vector<5x1xf32>
    %129 = vector.broadcast %128 : vector<5x1xf32> to vector<5x5xf32>
    %130 = arith.subf %126, %129 : vector<5x5xf32>
    %131 = math.exp %130 : vector<5x5xf32>
    %cst_44 = arith.constant dense<0.000000e+00> : vector<5xf32>
    %132 = vector.multi_reduction <add>, %131, %cst_44 [1] : vector<5x5xf32> to vector<5xf32>
    %133 = vector.shape_cast %132 : vector<5xf32> to vector<5x1xf32>
    %134 = tpu.reciprocal %133 {approx = true} : vector<5x1xf32> -> vector<5x1xf32>
    %135 = vector.broadcast %134 : vector<5x1xf32> to vector<5x5xf32>
    %136 = arith.mulf %131, %135 : vector<5x5xf32>
    %137 = arith.truncf %136 : vector<5x5xf32> to vector<5x5xbf16>
    %cst_45 = arith.constant dense<0.000000e+00> : vector<5x8xf32>
    %138 = tpu.matmul %137, %123, %cst_45 {dimension_numbers = #tpu.dot_dimension_numbers<[1], [0], [0], [1], [0, 0, 1, 1], [], []>} : vector<5x5xbf16>, vector<5x8xbf16>, vector<5x8xf32> -> vector<5x8xf32>
    %c5 = arith.constant 5 : index
    %c0_46 = arith.constant 0 : index
    %139 = vector.load %arg16[%c5, %c0_46] : memref<10x32xf32, #tpu.memory_space<vmem>>, vector<5x8xf32>
    tpu.vector_store %arg16[%c5, %c0_46], %138 {strides = array<i32>} : memref<10x32xf32, #tpu.memory_space<vmem>>, vector<5x8xf32>,
    %140 = vector.extract_strided_slice %120 {offsets = [0, 8], sizes = [5, 8], strides = [1, 1]} : vector<5x96xbf16> to vector<5x8xbf16>
    %141 = vector.extract_strided_slice %120 {offsets = [0, 40], sizes = [5, 8], strides = [1, 1]} : vector<5x96xbf16> to vector<5x8xbf16>
    %142 = vector.extract_strided_slice %120 {offsets = [0, 72], sizes = [5, 8], strides = [1, 1]} : vector<5x96xbf16> to vector<5x8xbf16>
    %cst_47 = arith.constant dense<0.000000e+00> : vector<5x5xf32>
    %143 = tpu.matmul %140, %141, %cst_47 {dimension_numbers = #tpu.dot_dimension_numbers<[1], [1], [0], [0], [0, 0, 1, 0], [], []>} : vector<5x8xbf16>, vector<5x8xbf16>, vector<5x5xf32> -> vector<5x5xf32>
    %cst_48 = arith.constant 0.353553385 : f32
    %144 = vector.broadcast %cst_48 : f32 to vector<5x5xf32>
    %145 = arith.mulf %143, %144 : vector<5x5xf32>
    %cst_49 = arith.constant dense<0xFF800000> : vector<5xf32>
    %146 = vector.multi_reduction <maximumf>, %145, %cst_49 [1] : vector<5x5xf32> to vector<5xf32>
    %147 = vector.shape_cast %146 : vector<5xf32> to vector<5x1xf32>
    %148 = vector.broadcast %147 : vector<5x1xf32> to vector<5x5xf32>
    %149 = arith.subf %145, %148 : vector<5x5xf32>
    %150 = math.exp %149 : vector<5x5xf32>
    %cst_50 = arith.constant dense<0.000000e+00> : vector<5xf32>
    %151 = vector.multi_reduction <add>, %150, %cst_50 [1] : vector<5x5xf32> to vector<5xf32>
    %152 = vector.shape_cast %151 : vector<5xf32> to vector<5x1xf32>
    %153 = tpu.reciprocal %152 {approx = true} : vector<5x1xf32> -> vector<5x1xf32>
    %154 = vector.broadcast %153 : vector<5x1xf32> to vector<5x5xf32>
    %155 = arith.mulf %150, %154 : vector<5x5xf32>
    %156 = arith.truncf %155 : vector<5x5xf32> to vector<5x5xbf16>
    %cst_51 = arith.constant dense<0.000000e+00> : vector<5x8xf32>
    %157 = tpu.matmul %156, %142, %cst_51 {dimension_numbers = #tpu.dot_dimension_numbers<[1], [0], [0], [1], [0, 0, 1, 1], [], []>} : vector<5x5xbf16>, vector<5x8xbf16>, vector<5x8xf32> -> vector<5x8xf32>
    %c5_52 = arith.constant 5 : index
    %c8_53 = arith.constant 8 : index
    %158 = vector.load %arg16[%c5_52, %c8_53] : memref<10x32xf32, #tpu.memory_space<vmem>>, vector<5x8xf32>
    tpu.vector_store %arg16[%c5_52, %c8_53], %157 {strides = array<i32>} : memref<10x32xf32, #tpu.memory_space<vmem>>, vector<5x8xf32>,
    %159 = vector.extract_strided_slice %120 {offsets = [0, 16], sizes = [5, 8], strides = [1, 1]} : vector<5x96xbf16> to vector<5x8xbf16>
    %160 = vector.extract_strided_slice %120 {offsets = [0, 48], sizes = [5, 8], strides = [1, 1]} : vector<5x96xbf16> to vector<5x8xbf16>
    %161 = vector.extract_strided_slice %120 {offsets = [0, 80], sizes = [5, 8], strides = [1, 1]} : vector<5x96xbf16> to vector<5x8xbf16>
    %cst_54 = arith.constant dense<0.000000e+00> : vector<5x5xf32>
    %162 = tpu.matmul %159, %160, %cst_54 {dimension_numbers = #tpu.dot_dimension_numbers<[1], [1], [0], [0], [0, 0, 1, 0], [], []>} : vector<5x8xbf16>, vector<5x8xbf16>, vector<5x5xf32> -> vector<5x5xf32>
    %cst_55 = arith.constant 0.353553385 : f32
    %163 = vector.broadcast %cst_55 : f32 to vector<5x5xf32>
    %164 = arith.mulf %162, %163 : vector<5x5xf32>
    %cst_56 = arith.constant dense<0xFF800000> : vector<5xf32>
    %165 = vector.multi_reduction <maximumf>, %164, %cst_56 [1] : vector<5x5xf32> to vector<5xf32>
    %166 = vector.shape_cast %165 : vector<5xf32> to vector<5x1xf32>
    %167 = vector.broadcast %166 : vector<5x1xf32> to vector<5x5xf32>
    %168 = arith.subf %164, %167 : vector<5x5xf32>
    %169 = math.exp %168 : vector<5x5xf32>
    %cst_57 = arith.constant dense<0.000000e+00> : vector<5xf32>
    %170 = vector.multi_reduction <add>, %169, %cst_57 [1] : vector<5x5xf32> to vector<5xf32>
    %171 = vector.shape_cast %170 : vector<5xf32> to vector<5x1xf32>
    %172 = tpu.reciprocal %171 {approx = true} : vector<5x1xf32> -> vector<5x1xf32>
    %173 = vector.broadcast %172 : vector<5x1xf32> to vector<5x5xf32>
    %174 = arith.mulf %169, %173 : vector<5x5xf32>
    %175 = arith.truncf %174 : vector<5x5xf32> to vector<5x5xbf16>
    %cst_58 = arith.constant dense<0.000000e+00> : vector<5x8xf32>
    %176 = tpu.matmul %175, %161, %cst_58 {dimension_numbers = #tpu.dot_dimension_numbers<[1], [0], [0], [1], [0, 0, 1, 1], [], []>} : vector<5x5xbf16>, vector<5x8xbf16>, vector<5x8xf32> -> vector<5x8xf32>
    %c5_59 = arith.constant 5 : index
    %c16_60 = arith.constant 16 : index
    %177 = vector.load %arg16[%c5_59, %c16_60] : memref<10x32xf32, #tpu.memory_space<vmem>>, vector<5x8xf32>
    tpu.vector_store %arg16[%c5_59, %c16_60], %176 {strides = array<i32>} : memref<10x32xf32, #tpu.memory_space<vmem>>, vector<5x8xf32>,
    %178 = vector.extract_strided_slice %120 {offsets = [0, 24], sizes = [5, 8], strides = [1, 1]} : vector<5x96xbf16> to vector<5x8xbf16>
    %179 = vector.extract_strided_slice %120 {offsets = [0, 56], sizes = [5, 8], strides = [1, 1]} : vector<5x96xbf16> to vector<5x8xbf16>
    %180 = vector.extract_strided_slice %120 {offsets = [0, 88], sizes = [5, 8], strides = [1, 1]} : vector<5x96xbf16> to vector<5x8xbf16>
    %cst_61 = arith.constant dense<0.000000e+00> : vector<5x5xf32>
    %181 = tpu.matmul %178, %179, %cst_61 {dimension_numbers = #tpu.dot_dimension_numbers<[1], [1], [0], [0], [0, 0, 1, 0], [], []>} : vector<5x8xbf16>, vector<5x8xbf16>, vector<5x5xf32> -> vector<5x5xf32>
    %cst_62 = arith.constant 0.353553385 : f32
    %182 = vector.broadcast %cst_62 : f32 to vector<5x5xf32>
    %183 = arith.mulf %181, %182 : vector<5x5xf32>
    %cst_63 = arith.constant dense<0xFF800000> : vector<5xf32>
    %184 = vector.multi_reduction <maximumf>, %183, %cst_63 [1] : vector<5x5xf32> to vector<5xf32>
    %185 = vector.shape_cast %184 : vector<5xf32> to vector<5x1xf32>
    %186 = vector.broadcast %185 : vector<5x1xf32> to vector<5x5xf32>
    %187 = arith.subf %183, %186 : vector<5x5xf32>
    %188 = math.exp %187 : vector<5x5xf32>
    %cst_64 = arith.constant dense<0.000000e+00> : vector<5xf32>
    %189 = vector.multi_reduction <add>, %188, %cst_64 [1] : vector<5x5xf32> to vector<5xf32>
    %190 = vector.shape_cast %189 : vector<5xf32> to vector<5x1xf32>
    %191 = tpu.reciprocal %190 {approx = true} : vector<5x1xf32> -> vector<5x1xf32>
    %192 = vector.broadcast %191 : vector<5x1xf32> to vector<5x5xf32>
    %193 = arith.mulf %188, %192 : vector<5x5xf32>
    %194 = arith.truncf %193 : vector<5x5xf32> to vector<5x5xbf16>
    %cst_65 = arith.constant dense<0.000000e+00> : vector<5x8xf32>
    %195 = tpu.matmul %194, %180, %cst_65 {dimension_numbers = #tpu.dot_dimension_numbers<[1], [0], [0], [1], [0, 0, 1, 1], [], []>} : vector<5x5xbf16>, vector<5x8xbf16>, vector<5x8xf32> -> vector<5x8xf32>
    %c5_66 = arith.constant 5 : index
    %c24_67 = arith.constant 24 : index
    %196 = vector.load %arg16[%c5_66, %c24_67] : memref<10x32xf32, #tpu.memory_space<vmem>>, vector<5x8xf32>
    tpu.vector_store %arg16[%c5_66, %c24_67], %195 {strides = array<i32>} : memref<10x32xf32, #tpu.memory_space<vmem>>, vector<5x8xf32>,
    %c0_68 = arith.constant 0 : index
    %c0_69 = arith.constant 0 : index
    %197 = vector.load %arg16[%c0_68, %c0_69] : memref<10x32xf32, #tpu.memory_space<vmem>>, vector<10x32xf32>
    %198 = arith.truncf %197 : vector<10x32xf32> to vector<10x32xbf16>
    %199 = arith.index_cast %arg0 : i32 to index
    %c0_70 = arith.constant 0 : index
    %c0_71 = arith.constant 0 : index
    %200 = vector.load %arg7[%199, %c0_70, %c0_71] : memref<2x32x32xbf16, #tpu.memory_space<vmem>>, vector<1x32x32xbf16>
    %201 = vector.shape_cast %200 : vector<1x32x32xbf16> to vector<32x32xbf16>
    %cst_72 = arith.constant dense<0.000000e+00> : vector<10x32xf32>
    %202 = tpu.matmul %198, %201, %cst_72 {dimension_numbers = #tpu.dot_dimension_numbers<[1], [0], [0], [1], [0, 0, 1, 1], [], []>} : vector<10x32xbf16>, vector<32x32xbf16>, vector<10x32xf32> -> vector<10x32xf32>
    %203 = arith.index_cast %arg0 : i32 to index
    %c0_73 = arith.constant 0 : index
    %c0_74 = arith.constant 0 : index
    %204 = vector.load %arg8[%203, %c0_73, %c0_74] : memref<2x1x32xf32, #tpu.memory_space<vmem>>, vector<1x1x32xf32>
    %205 = vector.shape_cast %204 : vector<1x1x32xf32> to vector<1x32xf32>
    %206 = vector.broadcast %205 : vector<1x32xf32> to vector<10x32xf32>
    %207 = arith.addf %202, %206 : vector<10x32xf32>
    %208 = arith.addf %3, %207 : vector<10x32xf32>
    %209 = arith.index_cast %arg0 : i32 to index
    %c0_75 = arith.constant 0 : index
    %c0_76 = arith.constant 0 : index
    %210 = vector.load %arg9[%209, %c0_75, %c0_76] : memref<2x1x32xf32, #tpu.memory_space<vmem>>, vector<1x1x32xf32>
    %211 = vector.shape_cast %210 : vector<1x1x32xf32> to vector<1x32xf32>
    %212 = arith.index_cast %arg0 : i32 to index
    %c0_77 = arith.constant 0 : index
    %c0_78 = arith.constant 0 : index
    %213 = vector.load %arg10[%212, %c0_77, %c0_78] : memref<2x1x32xf32, #tpu.memory_space<vmem>>, vector<1x1x32xf32>
    %214 = vector.shape_cast %213 : vector<1x1x32xf32> to vector<1x32xf32>
    %cst_79 = arith.constant dense<0.000000e+00> : vector<10xf32>
    %215 = vector.multi_reduction <add>, %208, %cst_79 [1] : vector<10x32xf32> to vector<10xf32>
    %216 = vector.shape_cast %215 : vector<10xf32> to vector<10x1xf32>
    %cst_80 = arith.constant 3.200000e+01 : f32
    %217 = vector.broadcast %cst_80 : f32 to vector<10x1xf32>
    %218 = arith.divf %216, %217 : vector<10x1xf32>
    %219 = vector.broadcast %218 : vector<10x1xf32> to vector<10x32xf32>
    %220 = arith.subf %208, %219 : vector<10x32xf32>
    %221 = arith.mulf %220, %220 : vector<10x32xf32>
    %cst_81 = arith.constant dense<0.000000e+00> : vector<10xf32>
    %222 = vector.multi_reduction <add>, %221, %cst_81 [1] : vector<10x32xf32> to vector<10xf32>
    %223 = vector.shape_cast %222 : vector<10xf32> to vector<10x1xf32>
    %cst_82 = arith.constant 3.200000e+01 : f32
    %224 = vector.broadcast %cst_82 : f32 to vector<10x1xf32>
    %225 = arith.divf %223, %224 : vector<10x1xf32>
    %226 = vector.broadcast %218 : vector<10x1xf32> to vector<10x32xf32>
    %227 = arith.subf %208, %226 : vector<10x32xf32>
    %cst_83 = arith.constant 9.99999996E-13 : f32
    %228 = vector.broadcast %cst_83 : f32 to vector<10x1xf32>
    %229 = arith.addf %225, %228 : vector<10x1xf32>
    %230 = math.rsqrt %229 : vector<10x1xf32>
    %231 = vector.broadcast %230 : vector<10x1xf32> to vector<10x32xf32>
    %232 = arith.mulf %227, %231 : vector<10x32xf32>
    %233 = vector.broadcast %211 : vector<1x32xf32> to vector<10x32xf32>
    %234 = arith.mulf %232, %233 : vector<10x32xf32>
    %235 = vector.broadcast %214 : vector<1x32xf32> to vector<10x32xf32>
    %236 = arith.addf %234, %235 : vector<10x32xf32>
    %237 = arith.truncf %236 : vector<10x32xf32> to vector<10x32xbf16>
    %238 = arith.index_cast %arg0 : i32 to index
    %c0_84 = arith.constant 0 : index
    %c0_85 = arith.constant 0 : index
    %239 = vector.load %arg11[%238, %c0_84, %c0_85] : memref<2x32x64xbf16, #tpu.memory_space<vmem>>, vector<1x32x64xbf16>
    %240 = vector.shape_cast %239 : vector<1x32x64xbf16> to vector<32x64xbf16>
    %cst_86 = arith.constant dense<0.000000e+00> : vector<10x64xf32>
    %241 = tpu.matmul %237, %240, %cst_86 {dimension_numbers = #tpu.dot_dimension_numbers<[1], [0], [0], [1], [0, 0, 1, 1], [], []>} : vector<10x32xbf16>, vector<32x64xbf16>, vector<10x64xf32> -> vector<10x64xf32>
    %242 = arith.index_cast %arg0 : i32 to index
    %c0_87 = arith.constant 0 : index
    %c0_88 = arith.constant 0 : index
    %243 = vector.load %arg12[%242, %c0_87, %c0_88] : memref<2x1x64xf32, #tpu.memory_space<vmem>>, vector<1x1x64xf32>
    %244 = vector.shape_cast %243 : vector<1x1x64xf32> to vector<1x64xf32>
    %245 = vector.broadcast %244 : vector<1x64xf32> to vector<10x64xf32>
    %246 = arith.addf %241, %245 : vector<10x64xf32>
    %247 = arith.mulf %246, %246 : vector<10x64xf32>
    %248 = arith.mulf %246, %247 : vector<10x64xf32>
    %cst_89 = arith.constant 4.471500e-02 : f32
    %249 = vector.broadcast %cst_89 : f32 to vector<10x64xf32>
    %250 = arith.mulf %249, %248 : vector<10x64xf32>
    %251 = arith.addf %246, %250 : vector<10x64xf32>
    %cst_90 = arith.constant 0.797884583 : f32
    %252 = vector.broadcast %cst_90 : f32 to vector<10x64xf32>
    %253 = arith.mulf %252, %251 : vector<10x64xf32>
    %254 = math.tanh %253 : vector<10x64xf32>
    %cst_91 = arith.constant 1.000000e+00 : f32
    %255 = vector.broadcast %cst_91 : f32 to vector<10x64xf32>
    %256 = arith.addf %255, %254 : vector<10x64xf32>
    %cst_92 = arith.constant 5.000000e-01 : f32
    %257 = vector.broadcast %cst_92 : f32 to vector<10x64xf32>
    %258 = arith.mulf %257, %256 : vector<10x64xf32>
    %259 = arith.mulf %246, %258 : vector<10x64xf32>
    %260 = arith.truncf %259 : vector<10x64xf32> to vector<10x64xbf16>
    %261 = arith.index_cast %arg0 : i32 to index
    %c0_93 = arith.constant 0 : index
    %c0_94 = arith.constant 0 : index
    %262 = vector.load %arg13[%261, %c0_93, %c0_94] : memref<2x64x32xbf16, #tpu.memory_space<vmem>>, vector<1x64x32xbf16>
    %263 = vector.shape_cast %262 : vector<1x64x32xbf16> to vector<64x32xbf16>
    %cst_95 = arith.constant dense<0.000000e+00> : vector<10x32xf32>
    %264 = tpu.matmul %260, %263, %cst_95 {dimension_numbers = #tpu.dot_dimension_numbers<[1], [0], [0], [1], [0, 0, 1, 1], [], []>} : vector<10x64xbf16>, vector<64x32xbf16>, vector<10x32xf32> -> vector<10x32xf32>
    %265 = arith.index_cast %arg0 : i32 to index
    %c0_96 = arith.constant 0 : index
    %c0_97 = arith.constant 0 : index
    %266 = vector.load %arg14[%265, %c0_96, %c0_97] : memref<2x1x32xf32, #tpu.memory_space<vmem>>, vector<1x1x32xf32>
    %267 = vector.shape_cast %266 : vector<1x1x32xf32> to vector<1x32xf32>
    %268 = vector.broadcast %267 : vector<1x32xf32> to vector<10x32xf32>
    %269 = arith.addf %264, %268 : vector<10x32xf32>
    %270 = arith.addf %208, %269 : vector<10x32xf32>
    %271 = vector.shape_cast %270 : vector<10x32xf32> to vector<2x5x32xf32>
    %272 = arith.truncf %271 : vector<2x5x32xf32> to vector<2x5x32xbf16>
    %c0_98 = arith.constant 0 : index
    %c0_99 = arith.constant 0 : index
    %c0_100 = arith.constant 0 : index
    %c0_101 = arith.constant 0 : index
    %273 = vector.load %arg15[%c0_98, %c0_99, %c0_100, %c0_101] : memref<1x2x5x32xbf16, #tpu.memory_space<vmem>>, vector<1x2x5x32xbf16>
    %274 = vector.shape_cast %273 : vector<1x2x5x32xbf16> to vector<2x5x32xbf16>
    %275 = vector.shape_cast %272 : vector<2x5x32xbf16> to vector<1x2x5x32xbf16>
    tpu.vector_store %arg15[%c0_98, %c0_99, %c0_100, %c0_101], %275 {strides = array<i32>} : memref<1x2x5x32xbf16, #tpu.memory_space<vmem>>, vector<1x2x5x32xbf16>,
    return
  }
  func.func @transform_0(%arg0: i32, %arg1: i32) -> (i32, i32, i32, i32) {
    %c0_i32 = arith.constant 0 : i32
    %c0_i32_0 = arith.constant 0 : i32
    %c0_i32_1 = arith.constant 0 : i32
    return %arg0, %arg1, %c0_i32, %c0_i32_0 : i32, i32, i32, i32
  }
  func.func @transform_1(%arg0: i32, %arg1: i32) -> (i32, i32, i32) {
    %c0_i32 = arith.constant 0 : i32
    %c0_i32_0 = arith.constant 0 : i32
    %c0_i32_1 = arith.constant 0 : i32
    %c0_i32_2 = arith.constant 0 : i32
    return %c0_i32, %c0_i32_0, %c0_i32_1 : i32, i32, i32
  }
  func.func @transform_2(%arg0: i32, %arg1: i32) -> (i32, i32, i32) {
    %c0_i32 = arith.constant 0 : i32
    %c0_i32_0 = arith.constant 0 : i32
    %c0_i32_1 = arith.constant 0 : i32
    %c0_i32_2 = arith.constant 0 : i32
    return %c0_i32, %c0_i32_0, %c0_i32_1 : i32, i32, i32
  }
  func.func @transform_3(%arg0: i32, %arg1: i32) -> (i32, i32, i32) {
    %c0_i32 = arith.constant 0 : i32
    %c0_i32_0 = arith.constant 0 : i32
    %c0_i32_1 = arith.constant 0 : i32
    %c0_i32_2 = arith.constant 0 : i32
    return %c0_i32, %c0_i32_0, %c0_i32_1 : i32, i32, i32
  }
  func.func @transform_4(%arg0: i32, %arg1: i32) -> (i32, i32, i32) {
    %c0_i32 = arith.constant 0 : i32
    %c0_i32_0 = arith.constant 0 : i32
    %c0_i32_1 = arith.constant 0 : i32
    %c0_i32_2 = arith.constant 0 : i32
    return %c0_i32, %c0_i32_0, %c0_i32_1 : i32, i32, i32
  }
  func.func @transform_5(%arg0: i32, %arg1: i32) -> (i32, i32, i32) {
    %c0_i32 = arith.constant 0 : i32
    %c0_i32_0 = arith.constant 0 : i32
    %c0_i32_1 = arith.constant 0 : i32
    %c0_i32_2 = arith.constant 0 : i32
    return %c0_i32, %c0_i32_0, %c0_i32_1 : i32, i32, i32
  }
  func.func @transform_6(%arg0: i32, %arg1: i32) -> (i32, i32, i32) {
    %c0_i32 = arith.constant 0 : i32
    %c0_i32_0 = arith.constant 0 : i32
    %c0_i32_1 = arith.constant 0 : i32
    %c0_i32_2 = arith.constant 0 : i32
    return %c0_i32, %c0_i32_0, %c0_i32_1 : i32, i32, i32
  }
  func.func @transform_7(%arg0: i32, %arg1: i32) -> (i32, i32, i32) {
    %c0_i32 = arith.constant 0 : i32
    %c0_i32_0 = arith.constant 0 : i32
    %c0_i32_1 = arith.constant 0 : i32
    %c0_i32_2 = arith.constant 0 : i32
    return %c0_i32, %c0_i32_0, %c0_i32_1 : i32, i32, i32
  }
  func.func @transform_8(%arg0: i32, %arg1: i32) -> (i32, i32, i32) {
    %c0_i32 = arith.constant 0 : i32
    %c0_i32_0 = arith.constant 0 : i32
    %c0_i32_1 = arith.constant 0 : i32
    %c0_i32_2 = arith.constant 0 : i32
    return %c0_i32, %c0_i32_0, %c0_i32_1 : i32, i32, i32
  }
  func.func @transform_9(%arg0: i32, %arg1: i32) -> (i32, i32, i32) {
    %c0_i32 = arith.constant 0 : i32
    %c0_i32_0 = arith.constant 0 : i32
    %c0_i32_1 = arith.constant 0 : i32
    %c0_i32_2 = arith.constant 0 : i32
    return %c0_i32, %c0_i32_0, %c0_i32_1 : i32, i32, i32
  }
  func.func @transform_10(%arg0: i32, %arg1: i32) -> (i32, i32, i32) {
    %c0_i32 = arith.constant 0 : i32
    %c0_i32_0 = arith.constant 0 : i32
    %c0_i32_1 = arith.constant 0 : i32
    %c0_i32_2 = arith.constant 0 : i32
    return %c0_i32, %c0_i32_0, %c0_i32_1 : i32, i32, i32
  }
  func.func @transform_11(%arg0: i32, %arg1: i32) -> (i32, i32, i32) {
    %c0_i32 = arith.constant 0 : i32
    %c0_i32_0 = arith.constant 0 : i32
    %c0_i32_1 = arith.constant 0 : i32
    %c0_i32_2 = arith.constant 0 : i32
    return %c0_i32, %c0_i32_0, %c0_i32_1 : i32, i32, i32
  }
  func.func @transform_12(%arg0: i32, %arg1: i32) -> (i32, i32, i32) {
    %c0_i32 = arith.constant 0 : i32
    %c0_i32_0 = arith.constant 0 : i32
    %c0_i32_1 = arith.constant 0 : i32
    %c0_i32_2 = arith.constant 0 : i32
    return %c0_i32, %c0_i32_0, %c0_i32_1 : i32, i32, i32
  }
  func.func @transform_13(%arg0: i32, %arg1: i32) -> (i32, i32, i32, i32) {
    %c0_i32 = arith.constant 0 : i32
    %c0_i32_0 = arith.constant 0 : i32
    %c0_i32_1 = arith.constant 0 : i32
    return %arg0, %arg1, %c0_i32, %c0_i32_0 : i32, i32, i32, i32
  }
}

module attributes {stable_mosaic.version = 11 : i64} {
  func.func @_head_kernel(%arg0: memref<2x32xbf16, #tpu.memory_space<vmem>>, %arg1: memref<2x32xbf16, #tpu.memory_space<vmem>>, %arg2: memref<1x32xf32, #tpu.memory_space<vmem>>, %arg3: memref<1x32xf32, #tpu.memory_space<vmem>>, %arg4: memref<32x5xbf16, #tpu.memory_space<vmem>>, %arg5: memref<32x5xbf16, #tpu.memory_space<vmem>>, %arg6: memref<1x5xf32, #tpu.memory_space<vmem>>, %arg7: memref<32x10xbf16, #tpu.memory_space<vmem>>, %arg8: memref<1x10xf32, #tpu.memory_space<vmem>>, %arg9: memref<2x5xf32, #tpu.memory_space<vmem>>, %arg10: memref<2x10xf32, #tpu.memory_space<vmem>>) attributes {dimension_semantics = [], scalar_prefetch = 0 : i64, scratch_operands = 0 : i64, tpu.core_type = #tpu.core_type<tc>} {
    %c0 = arith.constant 0 : index
    %c0_0 = arith.constant 0 : index
    %0 = vector.load %arg2[%c0, %c0_0] : memref<1x32xf32, #tpu.memory_space<vmem>>, vector<1x32xf32>
    %c0_1 = arith.constant 0 : index
    %c0_2 = arith.constant 0 : index
    %1 = vector.load %arg3[%c0_1, %c0_2] : memref<1x32xf32, #tpu.memory_space<vmem>>, vector<1x32xf32>
    %c0_3 = arith.constant 0 : index
    %c0_4 = arith.constant 0 : index
    %2 = vector.load %arg0[%c0_3, %c0_4] : memref<2x32xbf16, #tpu.memory_space<vmem>>, vector<2x32xbf16>
    %3 = arith.extf %2 : vector<2x32xbf16> to vector<2x32xf32>
    %cst = arith.constant dense<0.000000e+00> : vector<2xf32>
    %4 = vector.multi_reduction <add>, %3, %cst [1] : vector<2x32xf32> to vector<2xf32>
    %5 = vector.shape_cast %4 : vector<2xf32> to vector<2x1xf32>
    %cst_5 = arith.constant 3.200000e+01 : f32
    %6 = vector.broadcast %cst_5 : f32 to vector<2x1xf32>
    %7 = arith.divf %5, %6 : vector<2x1xf32>
    %8 = vector.broadcast %7 : vector<2x1xf32> to vector<2x32xf32>
    %9 = arith.subf %3, %8 : vector<2x32xf32>
    %10 = arith.mulf %9, %9 : vector<2x32xf32>
    %cst_6 = arith.constant dense<0.000000e+00> : vector<2xf32>
    %11 = vector.multi_reduction <add>, %10, %cst_6 [1] : vector<2x32xf32> to vector<2xf32>
    %12 = vector.shape_cast %11 : vector<2xf32> to vector<2x1xf32>
    %cst_7 = arith.constant 3.200000e+01 : f32
    %13 = vector.broadcast %cst_7 : f32 to vector<2x1xf32>
    %14 = arith.divf %12, %13 : vector<2x1xf32>
    %15 = vector.broadcast %7 : vector<2x1xf32> to vector<2x32xf32>
    %16 = arith.subf %3, %15 : vector<2x32xf32>
    %cst_8 = arith.constant 9.99999996E-13 : f32
    %17 = vector.broadcast %cst_8 : f32 to vector<2x1xf32>
    %18 = arith.addf %14, %17 : vector<2x1xf32>
    %19 = math.rsqrt %18 : vector<2x1xf32>
    %20 = vector.broadcast %19 : vector<2x1xf32> to vector<2x32xf32>
    %21 = arith.mulf %16, %20 : vector<2x32xf32>
    %22 = vector.broadcast %0 : vector<1x32xf32> to vector<2x32xf32>
    %23 = arith.mulf %21, %22 : vector<2x32xf32>
    %24 = vector.broadcast %1 : vector<1x32xf32> to vector<2x32xf32>
    %25 = arith.addf %23, %24 : vector<2x32xf32>
    %c0_9 = arith.constant 0 : index
    %c0_10 = arith.constant 0 : index
    %26 = vector.load %arg1[%c0_9, %c0_10] : memref<2x32xbf16, #tpu.memory_space<vmem>>, vector<2x32xbf16>
    %27 = arith.extf %26 : vector<2x32xbf16> to vector<2x32xf32>
    %cst_11 = arith.constant dense<0.000000e+00> : vector<2xf32>
    %28 = vector.multi_reduction <add>, %27, %cst_11 [1] : vector<2x32xf32> to vector<2xf32>
    %29 = vector.shape_cast %28 : vector<2xf32> to vector<2x1xf32>
    %cst_12 = arith.constant 3.200000e+01 : f32
    %30 = vector.broadcast %cst_12 : f32 to vector<2x1xf32>
    %31 = arith.divf %29, %30 : vector<2x1xf32>
    %32 = vector.broadcast %31 : vector<2x1xf32> to vector<2x32xf32>
    %33 = arith.subf %27, %32 : vector<2x32xf32>
    %34 = arith.mulf %33, %33 : vector<2x32xf32>
    %cst_13 = arith.constant dense<0.000000e+00> : vector<2xf32>
    %35 = vector.multi_reduction <add>, %34, %cst_13 [1] : vector<2x32xf32> to vector<2xf32>
    %36 = vector.shape_cast %35 : vector<2xf32> to vector<2x1xf32>
    %cst_14 = arith.constant 3.200000e+01 : f32
    %37 = vector.broadcast %cst_14 : f32 to vector<2x1xf32>
    %38 = arith.divf %36, %37 : vector<2x1xf32>
    %39 = vector.broadcast %31 : vector<2x1xf32> to vector<2x32xf32>
    %40 = arith.subf %27, %39 : vector<2x32xf32>
    %cst_15 = arith.constant 9.99999996E-13 : f32
    %41 = vector.broadcast %cst_15 : f32 to vector<2x1xf32>
    %42 = arith.addf %38, %41 : vector<2x1xf32>
    %43 = math.rsqrt %42 : vector<2x1xf32>
    %44 = vector.broadcast %43 : vector<2x1xf32> to vector<2x32xf32>
    %45 = arith.mulf %40, %44 : vector<2x32xf32>
    %46 = vector.broadcast %0 : vector<1x32xf32> to vector<2x32xf32>
    %47 = arith.mulf %45, %46 : vector<2x32xf32>
    %48 = vector.broadcast %1 : vector<1x32xf32> to vector<2x32xf32>
    %49 = arith.addf %47, %48 : vector<2x32xf32>
    %50 = arith.truncf %25 : vector<2x32xf32> to vector<2x32xbf16>
    %c0_16 = arith.constant 0 : index
    %c0_17 = arith.constant 0 : index
    %51 = vector.load %arg4[%c0_16, %c0_17] : memref<32x5xbf16, #tpu.memory_space<vmem>>, vector<32x5xbf16>
    %cst_18 = arith.constant dense<0.000000e+00> : vector<2x5xf32>
    %52 = tpu.matmul %50, %51, %cst_18 {dimension_numbers = #tpu.dot_dimension_numbers<[1], [0], [0], [1], [0, 0, 1, 1], [], []>} : vector<2x32xbf16>, vector<32x5xbf16>, vector<2x5xf32> -> vector<2x5xf32>
    %53 = arith.truncf %49 : vector<2x32xf32> to vector<2x32xbf16>
    %c0_19 = arith.constant 0 : index
    %c0_20 = arith.constant 0 : index
    %54 = vector.load %arg5[%c0_19, %c0_20] : memref<32x5xbf16, #tpu.memory_space<vmem>>, vector<32x5xbf16>
    %cst_21 = arith.constant dense<0.000000e+00> : vector<2x5xf32>
    %55 = tpu.matmul %53, %54, %cst_21 {dimension_numbers = #tpu.dot_dimension_numbers<[1], [0], [0], [1], [0, 0, 1, 1], [], []>} : vector<2x32xbf16>, vector<32x5xbf16>, vector<2x5xf32> -> vector<2x5xf32>
    %56 = arith.addf %52, %55 : vector<2x5xf32>
    %c0_22 = arith.constant 0 : index
    %c0_23 = arith.constant 0 : index
    %57 = vector.load %arg6[%c0_22, %c0_23] : memref<1x5xf32, #tpu.memory_space<vmem>>, vector<1x5xf32>
    %58 = vector.broadcast %57 : vector<1x5xf32> to vector<2x5xf32>
    %59 = arith.addf %56, %58 : vector<2x5xf32>
    %c0_24 = arith.constant 0 : index
    %c0_25 = arith.constant 0 : index
    %60 = vector.load %arg9[%c0_24, %c0_25] : memref<2x5xf32, #tpu.memory_space<vmem>>, vector<2x5xf32>
    tpu.vector_store %arg9[%c0_24, %c0_25], %59 {strides = array<i32>} : memref<2x5xf32, #tpu.memory_space<vmem>>, vector<2x5xf32>,
    %61 = arith.truncf %49 : vector<2x32xf32> to vector<2x32xbf16>
    %c0_26 = arith.constant 0 : index
    %c0_27 = arith.constant 0 : index
    %62 = vector.load %arg7[%c0_26, %c0_27] : memref<32x10xbf16, #tpu.memory_space<vmem>>, vector<32x10xbf16>
    %cst_28 = arith.constant dense<0.000000e+00> : vector<2x10xf32>
    %63 = tpu.matmul %61, %62, %cst_28 {dimension_numbers = #tpu.dot_dimension_numbers<[1], [0], [0], [1], [0, 0, 1, 1], [], []>} : vector<2x32xbf16>, vector<32x10xbf16>, vector<2x10xf32> -> vector<2x10xf32>
    %c0_29 = arith.constant 0 : index
    %c0_30 = arith.constant 0 : index
    %64 = vector.load %arg8[%c0_29, %c0_30] : memref<1x10xf32, #tpu.memory_space<vmem>>, vector<1x10xf32>
    %65 = vector.broadcast %64 : vector<1x10xf32> to vector<2x10xf32>
    %66 = arith.addf %63, %65 : vector<2x10xf32>
    %c0_31 = arith.constant 0 : index
    %c0_32 = arith.constant 0 : index
    %67 = vector.load %arg10[%c0_31, %c0_32] : memref<2x10xf32, #tpu.memory_space<vmem>>, vector<2x10xf32>
    tpu.vector_store %arg10[%c0_31, %c0_32], %66 {strides = array<i32>} : memref<2x10xf32, #tpu.memory_space<vmem>>, vector<2x10xf32>,
    return
  }
}

</mosaic_0001>

<llo_original>
// kernel: vit_multitask_forward.6
$region0: #{vit_multitask_forward.6}
  #allocation0 [shape = 'u32[]', space=smem, size = 0x4, offset = 0x4, fixed_abs, tag = 'smem constant byte address 0x4 - core index']
  #allocation1 [shape = 'u32[144,128]{1,0:T(1,128)}', space=vmem, size = 0x12000, scoped, tag = 'internal scratch']
  %s0 = inlined_call_operand.vmem [shape: bf16[8,256], index: 0, kind: input, shape index: {}]
  %s1 = inlined_call_operand.vmem [shape: bf16[256,32], index: 1, kind: input, shape index: {}]
  %s2 = inlined_call_operand.vmem [shape: f32[1,32], index: 2, kind: input, shape index: {}]
  %s3 = inlined_call_operand.vmem [shape: f32[8,32], index: 3, kind: output, shape index: {}]
  %s4 = sld [smem:[#allocation0]]
  $region22: #{vit_multitask_forward.6} parent=0
    _
  %s6 = ssub.s32 1, %s4
  %s7 = scalar_select 0, %s6, %s4
  // Predicated region
  $region2: #{vit_multitask_forward.6} parent=0 // pred_check
    _
  $region3: #{vit_multitask_forward.6} parent=0 // pred_check_branch
    %9 = sbr.rel (0) target = $region5
  $region4: #{vit_multitask_forward.6} parent=0 // pred_region
    _
  $region5: #{vit_multitask_forward.6} parent=0 // pred_fallthru
    _
  // Predicated region
  $region6: #{vit_multitask_forward.6} parent=0 // pred_check
    _
  $region7: #{vit_multitask_forward.6} parent=0 // pred_check_branch
    %11 = sbr.rel (0) target = $region9
  $region8: #{vit_multitask_forward.6} parent=0 // pred_region
    _
  $region9: #{vit_multitask_forward.6} parent=0 // pred_fallthru
    _
  // Predicated region
  $region10: #{vit_multitask_forward.6} parent=0 // pred_check
    _
  $region11: #{vit_multitask_forward.6} parent=0 // pred_check_branch
    %13 = sbr.rel (0) target = $region13
  $region12: #{vit_multitask_forward.6} parent=0 // pred_region
    _
  $region13: #{vit_multitask_forward.6} parent=0 // pred_fallthru
    _
  %v15 = vld [vmem:[%s0] sm:$0xff]
  %v16 = vld [vmem:[%s1] sm:$0xf]
  %v17 = vld [vmem:[%s1 + $0x4] sm:$0xf]
  %v18 = vld [vmem:[%s1 + $0x8] sm:$0xf]
  %v19 = vld [vmem:[%s1 + $0xc] sm:$0xf]
  %v20 = vld [vmem:[%s1 + $0x10] sm:$0xf]
  %v21 = vld [vmem:[%s1 + $0x14] sm:$0xf]
  %v22 = vld [vmem:[%s1 + $0x18] sm:$0xf]
  %v23 = vld [vmem:[%s1 + $0x1c] sm:$0xf]
  %v24 = vld [vmem:[%s1 + $0x20] sm:$0xf]
  %v25 = vld [vmem:[%s1 + $0x24] sm:$0xf]
  %v26 = vld [vmem:[%s1 + $0x28] sm:$0xf]
  %v27 = vld [vmem:[%s1 + $0x2c] sm:$0xf]
  %v28 = vld [vmem:[%s1 + $0x30] sm:$0xf]
  %v29 = vld [vmem:[%s1 + $0x34] sm:$0xf]
  %v30 = vld [vmem:[%s1 + $0x38] sm:$0xf]
  %v31 = vld [vmem:[%s1 + $0x3c] sm:$0xf]
  %v32 = vld [vmem:[%s1 + $0x40] sm:$0xf]
  %v33 = vld [vmem:[%s1 + $0x44] sm:$0xf]
  %v34 = vld [vmem:[%s1 + $0x48] sm:$0xf]
  %v35 = vld [vmem:[%s1 + $0x4c] sm:$0xf]
  %v36 = vld [vmem:[%s1 + $0x50] sm:$0xf]
  %v37 = vld [vmem:[%s1 + $0x54] sm:$0xf]
  %v38 = vld [vmem:[%s1 + $0x58] sm:$0xf]
  %v39 = vld [vmem:[%s1 + $0x5c] sm:$0xf]
  %v40 = vld [vmem:[%s1 + $0x60] sm:$0xf]
  %v41 = vld [vmem:[%s1 + $0x64] sm:$0xf]
  %v42 = vld [vmem:[%s1 + $0x68] sm:$0xf]
  %v43 = vld [vmem:[%s1 + $0x6c] sm:$0xf]
  %v44 = vld [vmem:[%s1 + $0x70] sm:$0xf]
  %v45 = vld [vmem:[%s1 + $0x74] sm:$0xf]
  %v46 = vld [vmem:[%s1 + $0x78] sm:$0xf]
  %v47 = vld [vmem:[%s1 + $0x7c] sm:$0xf]
  %v48 = vld [vmem:[%s2] sm:$0x1]
  %v50 = vlaneseq
  %v51 = vshrl.u32 %v50, 7
  %v52 = vsub.s32 0, %v51
  %v53 = vrot.slane %v48, %v52
  %v56 = vunpack.c.l.b16 %v15
  %v57 = vunpack.c.h.b16 %v15
  %v58 = vpack.c.b16 %v56, %v56
  %v59 = vpack.c.b16 %v57, %v57
  %v94 = vunpack.c.l.b16 %v16
  %v95 = vunpack.c.l.b16 %v17
  %v96 = vunpack.c.l.b16 %v18
  %v97 = vunpack.c.l.b16 %v19
  %v98 = vunpack.c.l.b16 %v20
  %v99 = vunpack.c.l.b16 %v21
  %v100 = vunpack.c.l.b16 %v22
  %v101 = vunpack.c.l.b16 %v23
  %v102 = vunpack.c.l.b16 %v24
  %v103 = vunpack.c.l.b16 %v25
  %v104 = vunpack.c.l.b16 %v26
  %v105 = vunpack.c.l.b16 %v27
  %v106 = vunpack.c.l.b16 %v28
  %v107 = vunpack.c.l.b16 %v29
  %v108 = vunpack.c.l.b16 %v30
  %v109 = vunpack.c.l.b16 %v31
  %v110 = vunpack.c.l.b16 %v32
  %v111 = vunpack.c.l.b16 %v33
  %v112 = vunpack.c.l.b16 %v34
  %v113 = vunpack.c.l.b16 %v35
  %v114 = vunpack.c.l.b16 %v36
  %v115 = vunpack.c.l.b16 %v37
  %v116 = vunpack.c.l.b16 %v38
  %v117 = vunpack.c.l.b16 %v39
  %v118 = vunpack.c.l.b16 %v40
  %v119 = vunpack.c.l.b16 %v41
  %v120 = vunpack.c.l.b16 %v42
  %v121 = vunpack.c.l.b16 %v43
  %v122 = vunpack.c.l.b16 %v44
  %v123 = vunpack.c.l.b16 %v45
  %v124 = vunpack.c.l.b16 %v46
  %v125 = vunpack.c.l.b16 %v47
  %v126 = vpack.c.b16 %v95, %v94
  %v127 = vpack.c.b16 %v97, %v96
  %v128 = vpack.c.b16 %v99, %v98
  %v129 = vpack.c.b16 %v101, %v100
  %v130 = vpack.c.b16 %v103, %v102
  %v131 = vpack.c.b16 %v105, %v104
  %v132 = vpack.c.b16 %v107, %v106
  %v133 = vpack.c.b16 %v109, %v108
  %v134 = vpack.c.b16 %v111, %v110
  %v135 = vpack.c.b16 %v113, %v112
  %v136 = vpack.c.b16 %v115, %v114
  %v137 = vpack.c.b16 %v117, %v116
  %v138 = vpack.c.b16 %v119, %v118
  %v139 = vpack.c.b16 %v121, %v120
  %v140 = vpack.c.b16 %v123, %v122
  %v141 = vpack.c.b16 %v125, %v124
  %158 = vmatprep.subr.bf16.mxu0 0
  %159 = vmatpush1.bf16.msra.mxu0 %v133
  %160 = vmatprep.subr.bf16.mxu0 0
  %161 = vmatpush1.bf16.msra.mxu0 %v132
  %162 = vmatprep.subr.bf16.mxu0 0
  %163 = vmatpush1.bf16.msra.mxu0 %v131
  %164 = vmatprep.subr.bf16.mxu0 0
  %165 = vmatpush1.bf16.msra.mxu0 %v130
  %166 = vmatprep.subr.bf16.mxu0 0
  %167 = vmatpush1.bf16.msra.mxu0 %v129
  %168 = vmatprep.subr.bf16.mxu0 0
  %169 = vmatpush1.bf16.msra.mxu0 %v128
  %170 = vmatprep.subr.bf16.mxu0 0
  %171 = vmatpush1.bf16.msra.mxu0 %v127
  %172 = vmatprep.subr.bf16.mxu0 0
  %173 = vmatpush1.bf16.msra.mxu0 %v126
  %174 = vmatprep.subr.bf16.mxu0 0
  %175 = vmatpush2.bf16.msra.mxu0 %v141
  %176 = vmatprep.subr.bf16.mxu0 0
  %177 = vmatpush2.bf16.msra.mxu0 %v140
  %178 = vmatprep.subr.bf16.mxu0 0
  %179 = vmatpush2.bf16.msra.mxu0 %v139
  %180 = vmatprep.subr.bf16.mxu0 0
  %181 = vmatpush2.bf16.msra.mxu0 %v138
  %182 = vmatprep.subr.bf16.mxu0 0
  %183 = vmatpush2.bf16.msra.mxu0 %v137
  %184 = vmatprep.subr.bf16.mxu0 0
  %185 = vmatpush2.bf16.msra.mxu0 %v136
  %186 = vmatprep.subr.bf16.mxu0 0
  %187 = vmatpush2.bf16.msra.mxu0 %v135
  %188 = vmatprep.subr.bf16.mxu0 0
  %189 = vmatpush2.bf16.msra.mxu0 %v134
  %190 = vmatprep.mubr.bf16.mxu0 %v59
  %191 = vmatmul.mubr.bf16.gmra.mxu0 %v58
  %v192 = vpop.f32.mrf.mxu0
  %v193 = vadd.f32 %v53, %v192
  %v194 = vpop.f32.mrf.mxu0
  %v195 = vpop.f32.mrf.mxu0
  %v196 = vpop.f32.mrf.mxu0
  %197 = vdwg.mxu0
  %vm198 = vcmask 261120
  %199 = vst.msk [vmem:[%s3] sm:$0xff] %vm198, %v193
  // Predicated region
  $region14: #{vit_multitask_forward.6} parent=0 // pred_check
    _
  $region15: #{vit_multitask_forward.6} parent=0 // pred_check_branch
    %201 = sbr.rel (0) target = $region17
  $region16: #{vit_multitask_forward.6} parent=0 // pred_region
    _
  $region17: #{vit_multitask_forward.6} parent=0 // pred_fallthru
    _
  // Predicated region
  $region18: #{vit_multitask_forward.6} parent=0 // pred_check
    _
  $region19: #{vit_multitask_forward.6} parent=0 // pred_check_branch
    %203 = sbr.rel (0) target = $region21
  $region20: #{vit_multitask_forward.6} parent=0 // pred_region
    _
  $region21: #{vit_multitask_forward.6} parent=0 // pred_fallthru
    _

// kernel: vit_multitask_forward.11
$region0: #{vit_multitask_forward.11}
  #allocation0 [shape = 'u32[]', space=smem, size = 0x4, offset = 0x4, fixed_abs, tag = 'smem constant byte address 0x4 - core index']
  #allocation1 [shape = 'u32[144,128]{1,0:T(1,128)}', space=vmem, size = 0x12000, scoped, tag = 'internal scratch']
  %s0 = inlined_call_operand.vmem [shape: bf16[2,32], index: 0, kind: input, shape index: {}]
  %s1 = inlined_call_operand.vmem [shape: bf16[2,32], index: 1, kind: input, shape index: {}]
  %s2 = inlined_call_operand.vmem [shape: f32[1,32], index: 2, kind: input, shape index: {}]
  %s3 = inlined_call_operand.vmem [shape: f32[1,32], index: 3, kind: input, shape index: {}]
  %s4 = inlined_call_operand.vmem [shape: bf16[32,5], index: 4, kind: input, shape index: {}]
  %s5 = inlined_call_operand.vmem [shape: bf16[32,5], index: 5, kind: input, shape index: {}]
  %s6 = inlined_call_operand.vmem [shape: f32[1,5], index: 6, kind: input, shape index: {}]
  %s7 = inlined_call_operand.vmem [shape: bf16[32,10], index: 7, kind: input, shape index: {}]
  %s8 = inlined_call_operand.vmem [shape: f32[1,10], index: 8, kind: input, shape index: {}]
  %s9 = inlined_call_operand.vmem [shape: f32[2,5], index: 9, kind: output, shape index: {0}]
  %s10 = inlined_call_operand.vmem [shape: f32[2,10], index: 10, kind: output, shape index: {1}]
  %11 = xla_tuple %s9, %s10
  %s12 = sld [smem:[#allocation0]]
  $region54: #{vit_multitask_forward.11} parent=0
    _
  %s14 = ssub.s32 1, %s12
  %s15 = scalar_select 0, %s14, %s12
  // Predicated region
  $region2: #{vit_multitask_forward.11} parent=0 // pred_check
    _
  $region3: #{vit_multitask_forward.11} parent=0 // pred_check_branch
    %17 = sbr.rel (0) target = $region5
  $region4: #{vit_multitask_forward.11} parent=0 // pred_region
    _
  $region5: #{vit_multitask_forward.11} parent=0 // pred_fallthru
    _
  // Predicated region
  $region6: #{vit_multitask_forward.11} parent=0 // pred_check
    _
  $region7: #{vit_multitask_forward.11} parent=0 // pred_check_branch
    %19 = sbr.rel (0) target = $region9
  $region8: #{vit_multitask_forward.11} parent=0 // pred_region
    _
  $region9: #{vit_multitask_forward.11} parent=0 // pred_fallthru
    _
  // Predicated region
  $region10: #{vit_multitask_forward.11} parent=0 // pred_check
    _
  $region11: #{vit_multitask_forward.11} parent=0 // pred_check_branch
    %21 = sbr.rel (0) target = $region13
  $region12: #{vit_multitask_forward.11} parent=0 // pred_region
    _
  $region13: #{vit_multitask_forward.11} parent=0 // pred_fallthru
    _
  // Predicated region
  $region14: #{vit_multitask_forward.11} parent=0 // pred_check
    _
  $region15: #{vit_multitask_forward.11} parent=0 // pred_check_branch
    %23 = sbr.rel (0) target = $region17
  $region16: #{vit_multitask_forward.11} parent=0 // pred_region
    _
  $region17: #{vit_multitask_forward.11} parent=0 // pred_fallthru
    _
  // Predicated region
  $region18: #{vit_multitask_forward.11} parent=0 // pred_check
    _
  $region19: #{vit_multitask_forward.11} parent=0 // pred_check_branch
    %25 = sbr.rel (0) target = $region21
  $region20: #{vit_multitask_forward.11} parent=0 // pred_region
    _
  $region21: #{vit_multitask_forward.11} parent=0 // pred_fallthru
    _
  // Predicated region
  $region22: #{vit_multitask_forward.11} parent=0 // pred_check
    _
  $region23: #{vit_multitask_forward.11} parent=0 // pred_check_branch
    %27 = sbr.rel (0) target = $region25
  $region24: #{vit_multitask_forward.11} parent=0 // pred_region
    _
  $region25: #{vit_multitask_forward.11} parent=0 // pred_fallthru
    _
  // Predicated region
  $region26: #{vit_multitask_forward.11} parent=0 // pred_check
    _
  $region27: #{vit_multitask_forward.11} parent=0 // pred_check_branch
    %29 = sbr.rel (0) target = $region29
  $region28: #{vit_multitask_forward.11} parent=0 // pred_region
    _
  $region29: #{vit_multitask_forward.11} parent=0 // pred_fallthru
    _
  // Predicated region
  $region30: #{vit_multitask_forward.11} parent=0 // pred_check
    _
  $region31: #{vit_multitask_forward.11} parent=0 // pred_check_branch
    %31 = sbr.rel (0) target = $region33
  $region32: #{vit_multitask_forward.11} parent=0 // pred_region
    _
  $region33: #{vit_multitask_forward.11} parent=0 // pred_fallthru
    _
  // Predicated region
  $region34: #{vit_multitask_forward.11} parent=0 // pred_check
    _
  $region35: #{vit_multitask_forward.11} parent=0 // pred_check_branch
    %33 = sbr.rel (0) target = $region37
  $region36: #{vit_multitask_forward.11} parent=0 // pred_region
    _
  $region37: #{vit_multitask_forward.11} parent=0 // pred_fallthru
    _
  %v35 = vld [vmem:[%s2] sm:$0x1]
  %v36 = vld [vmem:[%s3] sm:$0x1]
  %v37 = vld [vmem:[%s0] sm:$0x1]
  %v38 = vunpack.c.l.bf16 %v37
  %vm39 = vcmask 254976
  %v40 = vsel %vm39, %v38, 0.0
  %41 = vadd.xlane.f32.xlu0 %v40
  %v42 = vpop.xlane.xlu0 %41
  %v43 = vrcp.pop 32.0
  %v44 = vmul.f32 %v42, %v43
  %v45 = vsub.f32 %v38, %v44
  %v46 = vmul.f32 %v45, %v45
  %v47 = vsel %vm39, %v46, 0.0
  %48 = vadd.xlane.f32.xlu0 %v47
  %v49 = vpop.xlane.xlu0 %48
  %v50 = vmul.f32 %v49, %v43
  %v51 = vadd.f32 %v50, 1e-12
  %v52 = vrsqrt.pop %v51
  %v53 = vmul.f32 %v45, %v52
  %v55 = vlaneseq
  %v56 = vshrl.u32 %v55, 7
  %v57 = vsub.s32 0, %v56
  %v58 = vrot.slane %v35, %v57
  %v60 = vmul.f32 %v53, %v58
  %v62 = vlaneseq
  %v63 = vshrl.u32 %v62, 7
  %v64 = vsub.s32 0, %v63
  %v65 = vrot.slane %v36, %v64
  %v67 = vadd.f32 %v60, %v65
  %v68 = vld [vmem:[%s1] sm:$0x1]
  %v69 = vunpack.c.l.bf16 %v68
  %v70 = vsel %vm39, %v69, 0.0
  %71 = vadd.xlane.f32.xlu0 %v70
  %v72 = vpop.xlane.xlu0 %71
  %v73 = vmul.f32 %v72, %v43
  %v74 = vsub.f32 %v69, %v73
  %v75 = vmul.f32 %v74, %v74
  %v76 = vsel %vm39, %v75, 0.0
  %77 = vadd.xlane.f32.xlu0 %v76
  %v78 = vpop.xlane.xlu0 %77
  %v79 = vmul.f32 %v78, %v43
  %v80 = vadd.f32 %v79, 1e-12
  %v81 = vrsqrt.pop %v80
  %v82 = vmul.f32 %v74, %v81
  %v83 = vmul.f32 %v82, %v58
  %v84 = vadd.f32 %v83, %v65
  %v85 = vpack.c.bf16 %v67, %v67
  %v86 = vld [vmem:[%s4] sm:$0xf]
  %v87 = vld [vmem:[%s4 + $0x4] sm:$0xf]
  %v88 = vld [vmem:[%s4 + $0x8] sm:$0xf]
  %v89 = vld [vmem:[%s4 + $0xc] sm:$0xf]
  %v90 = vpack.c.bf16 %v84, %v84
  %v91 = vld [vmem:[%s5] sm:$0xf]
  %v92 = vld [vmem:[%s5 + $0x4] sm:$0xf]
  %v93 = vld [vmem:[%s5 + $0x8] sm:$0xf]
  %v94 = vld [vmem:[%s5 + $0xc] sm:$0xf]
  %v99 = vunpack.c.l.b16 %v91
  %v100 = vunpack.c.l.b16 %v92
  %v101 = vunpack.c.l.b16 %v93
  %v102 = vunpack.c.l.b16 %v94
  %v103 = vpack.c.b16 %v100, %v99
  %v104 = vpack.c.b16 %v102, %v101
  %vm107 = vcmask 261120
  %v109 = vsel %vm107, %v90, 0
  %111 = vmatprep.subr.bf16.mxu0 0
  %112 = vmatpush1.bf16.msra.mxu0 0
  %113 = vmatprep.subr.bf16.mxu0 0
  %114 = vmatpush1.bf16.msra.mxu0 0
  %115 = vmatprep.subr.bf16.mxu0 0
  %116 = vmatpush1.bf16.msra.mxu0 0
  %117 = vmatprep.subr.bf16.mxu0 0
  %118 = vmatpush1.bf16.msra.mxu0 0
  %119 = vmatprep.subr.bf16.mxu0 0
  %120 = vmatpush1.bf16.msra.mxu0 0
  %121 = vmatprep.subr.bf16.mxu0 0
  %122 = vmatpush1.bf16.msra.mxu0 0
  %123 = vmatprep.subr.bf16.mxu0 0
  %124 = vmatpush1.bf16.msra.mxu0 %v104
  %125 = vmatprep.subr.bf16.mxu0 0
  %126 = vmatpush1.bf16.msra.mxu0 %v103
  %127 = vmatprep.subr.bf16.mxu0 0
  %128 = vmatpush2.bf16.msra.mxu0 0
  %129 = vmatprep.subr.bf16.mxu0 0
  %130 = vmatpush2.bf16.msra.mxu0 0
  %131 = vmatprep.subr.bf16.mxu0 0
  %132 = vmatpush2.bf16.msra.mxu0 0
  %133 = vmatprep.subr.bf16.mxu0 0
  %134 = vmatpush2.bf16.msra.mxu0 0
  %135 = vmatprep.subr.bf16.mxu0 0
  %136 = vmatpush2.bf16.msra.mxu0 0
  %137 = vmatprep.subr.bf16.mxu0 0
  %138 = vmatpush2.bf16.msra.mxu0 0
  %139 = vmatprep.subr.bf16.mxu0 0
  %140 = vmatpush2.bf16.msra.mxu0 0
  %141 = vmatprep.subr.bf16.mxu0 0
  %142 = vmatpush2.bf16.msra.mxu0 0
  %143 = vmatprep.mubr.bf16.mxu0 0
  %144 = vmatmul.mubr.bf16.gmra.mxu0 %v109
  %v145 = vpop.f32.mrf.mxu0
  %v146 = vadd.f32 0.0, %v145
  %v147 = vpop.f32.mrf.mxu0
  %v148 = vpop.f32.mrf.mxu0
  %v149 = vpop.f32.mrf.mxu0
  %150 = vdwg.mxu0
  %v155 = vunpack.c.l.b16 %v86
  %v156 = vunpack.c.l.b16 %v87
  %v157 = vunpack.c.l.b16 %v88
  %v158 = vunpack.c.l.b16 %v89
  %v159 = vpack.c.b16 %v156, %v155
  %v160 = vpack.c.b16 %v158, %v157
  %v164 = vsel %vm107, %v85, 0
  %166 = vmatprep.subr.bf16.mxu0 0
  %167 = vmatpush1.bf16.msra.mxu0 0
  %168 = vmatprep.subr.bf16.mxu0 0
  %169 = vmatpush1.bf16.msra.mxu0 0
  %170 = vmatprep.subr.bf16.mxu0 0
  %171 = vmatpush1.bf16.msra.mxu0 0
  %172 = vmatprep.subr.bf16.mxu0 0
  %173 = vmatpush1.bf16.msra.mxu0 0
  %174 = vmatprep.subr.bf16.mxu0 0
  %175 = vmatpush1.bf16.msra.mxu0 0
  %176 = vmatprep.subr.bf16.mxu0 0
  %177 = vmatpush1.bf16.msra.mxu0 0
  %178 = vmatprep.subr.bf16.mxu0 0
  %179 = vmatpush1.bf16.msra.mxu0 %v160
  %180 = vmatprep.subr.bf16.mxu0 0
  %181 = vmatpush1.bf16.msra.mxu0 %v159
  %182 = vmatprep.subr.bf16.mxu0 0
  %183 = vmatpush2.bf16.msra.mxu0 0
  %184 = vmatprep.subr.bf16.mxu0 0
  %185 = vmatpush2.bf16.msra.mxu0 0
  %186 = vmatprep.subr.bf16.mxu0 0
  %187 = vmatpush2.bf16.msra.mxu0 0
  %188 = vmatprep.subr.bf16.mxu0 0
  %189 = vmatpush2.bf16.msra.mxu0 0
  %190 = vmatprep.subr.bf16.mxu0 0
  %191 = vmatpush2.bf16.msra.mxu0 0
  %192 = vmatprep.subr.bf16.mxu0 0
  %193 = vmatpush2.bf16.msra.mxu0 0
  %194 = vmatprep.subr.bf16.mxu0 0
  %195 = vmatpush2.bf16.msra.mxu0 0
  %196 = vmatprep.subr.bf16.mxu0 0
  %197 = vmatpush2.bf16.msra.mxu0 0
  %198 = vmatprep.mubr.bf16.mxu0 0
  %199 = vmatmul.mubr.bf16.gmra.mxu0 %v164
  %v200 = vpop.f32.mrf.mxu0
  %v201 = vadd.f32 %v146, %v200
  %v202 = vpop.f32.mrf.mxu0
  %v203 = vpop.f32.mrf.mxu0
  %v204 = vpop.f32.mrf.mxu0
  %205 = vdwg.mxu0
  %v206 = vld [vmem:[%s6] sm:$0x1]
  %v208 = vlaneseq
  %v209 = vshrl.u32 %v208, 7
  %v210 = vsub.s32 0, %v209
  %v211 = vrot.slane %v206, %v210
  %v213 = vadd.f32 %v201, %v211
  %vm214 = vcmask 33792
  %215 = vst.msk [vmem:[%s9] sm:$0x3] %vm214, %v213
  %v216 = vld [vmem:[%s7] sm:$0xf]
  %v217 = vld [vmem:[%s7 + $0x4] sm:$0xf]
  %v218 = vld [vmem:[%s7 + $0x8] sm:$0xf]
  %v219 = vld [vmem:[%s7 + $0xc] sm:$0xf]
  %v220 = vld [vmem:[%s8] sm:$0x1]
  %v222 = vlaneseq
  %v223 = vshrl.u32 %v222, 7
  %v224 = vsub.s32 0, %v223
  %v225 = vrot.slane %v220, %v224
  %v231 = vunpack.c.l.b16 %v216
  %v232 = vunpack.c.l.b16 %v217
  %v233 = vunpack.c.l.b16 %v218
  %v234 = vunpack.c.l.b16 %v219
  %v235 = vpack.c.b16 %v232, %v231
  %v236 = vpack.c.b16 %v234, %v233
  %239 = vmatprep.subr.bf16.mxu0 0
  %240 = vmatpush1.bf16.msra.mxu0 0
  %241 = vmatprep.subr.bf16.mxu0 0
  %242 = vmatpush1.bf16.msra.mxu0 0
  %243 = vmatprep.subr.bf16.mxu0 0
  %244 = vmatpush1.bf16.msra.mxu0 0
  %245 = vmatprep.subr.bf16.mxu0 0
  %246 = vmatpush1.bf16.msra.mxu0 0
  %247 = vmatprep.subr.bf16.mxu0 0
  %248 = vmatpush1.bf16.msra.mxu0 0
  %249 = vmatprep.subr.bf16.mxu0 0
  %250 = vmatpush1.bf16.msra.mxu0 0
  %251 = vmatprep.subr.bf16.mxu0 0
  %252 = vmatpush1.bf16.msra.mxu0 %v236
  %253 = vmatprep.subr.bf16.mxu0 0
  %254 = vmatpush1.bf16.msra.mxu0 %v235
  %255 = vmatprep.subr.bf16.mxu0 0
  %256 = vmatpush2.bf16.msra.mxu0 0
  %257 = vmatprep.subr.bf16.mxu0 0
  %258 = vmatpush2.bf16.msra.mxu0 0
  %259 = vmatprep.subr.bf16.mxu0 0
  %260 = vmatpush2.bf16.msra.mxu0 0
  %261 = vmatprep.subr.bf16.mxu0 0
  %262 = vmatpush2.bf16.msra.mxu0 0
  %263 = vmatprep.subr.bf16.mxu0 0
  %264 = vmatpush2.bf16.msra.mxu0 0
  %265 = vmatprep.subr.bf16.mxu0 0
  %266 = vmatpush2.bf16.msra.mxu0 0
  %267 = vmatprep.subr.bf16.mxu0 0
  %268 = vmatpush2.bf16.msra.mxu0 0
  %269 = vmatprep.subr.bf16.mxu0 0
  %270 = vmatpush2.bf16.msra.mxu0 0
  %271 = vmatprep.mubr.bf16.mxu0 0
  %272 = vmatmul.mubr.bf16.gmra.mxu0 %v109
  %v273 = vpop.f32.mrf.mxu0
  %v274 = vadd.f32 %v225, %v273
  %v275 = vpop.f32.mrf.mxu0
  %v276 = vpop.f32.mrf.mxu0
  %v277 = vpop.f32.mrf.mxu0
  %278 = vdwg.mxu0
  %vm279 = vcmask 74752
  %280 = vst.msk [vmem:[%s10] sm:$0x3] %vm279, %v274
  // Predicated region
  $region38: #{vit_multitask_forward.11} parent=0 // pred_check
    _
  $region39: #{vit_multitask_forward.11} parent=0 // pred_check_branch
    %282 = sbr.rel (0) target = $region41
  $region40: #{vit_multitask_forward.11} parent=0 // pred_region
    _
  $region41: #{vit_multitask_forward.11} parent=0 // pred_fallthru
    _
  // Predicated region
  $region42: #{vit_multitask_forward.11} parent=0 // pred_check
    _
  $region43: #{vit_multitask_forward.11} parent=0 // pred_check_branch
    %284 = sbr.rel (0) target = $region45
  $region44: #{vit_multitask_forward.11} parent=0 // pred_region
    _
  $region45: #{vit_multitask_forward.11} parent=0 // pred_fallthru
    _
  // Predicated region
  $region46: #{vit_multitask_forward.11} parent=0 // pred_check
    _
  $region47: #{vit_multitask_forward.11} parent=0 // pred_check_branch
    %286 = sbr.rel (0) target = $region49
  $region48: #{vit_multitask_forward.11} parent=0 // pred_region
    _
  $region49: #{vit_multitask_forward.11} parent=0 // pred_fallthru
    _
  // Predicated region
  $region50: #{vit_multitask_forward.11} parent=0 // pred_check
    _
  $region51: #{vit_multitask_forward.11} parent=0 // pred_check_branch
    %288 = sbr.rel (0) target = $region53
  $region52: #{vit_multitask_forward.11} parent=0 // pred_region
    _
  $region53: #{vit_multitask_forward.11} parent=0 // pred_fallthru
    _

// kernel: vit_multitask_forward.7
$region0: #{vit_multitask_forward.7}
  #allocation0 [shape = 'u32[]', space=smem, size = 0x4, offset = 0x4, fixed_abs, tag = 'smem constant byte address 0x4 - core index']
  #allocation1 [shape = 'u32[144,128]{1,0:T(1,128)}', space=vmem, size = 0x12000, scoped, tag = 'internal scratch']
  #allocation2 [shape = 'f32[10,32]{1,0:T(8,128)}', space=vmem, size = 0x2000, scoped, tag = 'scratch operand']
  %s0 = inlined_call_operand.vmem [shape: bf16[1,2,5,32], index: 0, kind: input, shape index: {}]
  %s1 = inlined_call_operand.vmem [shape: f32[1,1,32], index: 1, kind: input, shape index: {}]
  %s2 = inlined_call_operand.vmem [shape: f32[1,1,32], index: 2, kind: input, shape index: {}]
  %s3 = inlined_call_operand.vmem [shape: bf16[1,32,96], index: 3, kind: input, shape index: {}]
  %s4 = inlined_call_operand.vmem [shape: f32[1,1,96], index: 4, kind: input, shape index: {}]
  %s5 = inlined_call_operand.vmem [shape: bf16[1,32,32], index: 5, kind: input, shape index: {}]
  %s6 = inlined_call_operand.vmem [shape: f32[1,1,32], index: 6, kind: input, shape index: {}]
  %s7 = inlined_call_operand.vmem [shape: f32[1,1,32], index: 7, kind: input, shape index: {}]
  %s8 = inlined_call_operand.vmem [shape: f32[1,1,32], index: 8, kind: input, shape index: {}]
  %s9 = inlined_call_operand.vmem [shape: bf16[1,32,64], index: 9, kind: input, shape index: {}]
  %s10 = inlined_call_operand.vmem [shape: f32[1,1,64], index: 10, kind: input, shape index: {}]
  %s11 = inlined_call_operand.vmem [shape: bf16[1,64,32], index: 11, kind: input, shape index: {}]
  %s12 = inlined_call_operand.vmem [shape: f32[1,1,32], index: 12, kind: input, shape index: {}]
  %s13 = inlined_call_operand.vmem [shape: bf16[1,2,5,32], index: 13, kind: output, shape index: {}]
  %s14 = sld [smem:[#allocation0]]
  $region62: #{vit_multitask_forward.7} parent=0
    _
  %s16 = ssub.s32 1, %s14
  %s17 = scalar_select 0, %s16, %s14
  // Predicated region
  $region2: #{vit_multitask_forward.7} parent=0 // pred_check
    _
  $region3: #{vit_multitask_forward.7} parent=0 // pred_check_branch
    %19 = sbr.rel (0) target = $region5
  $region4: #{vit_multitask_forward.7} parent=0 // pred_region
    _
  $region5: #{vit_multitask_forward.7} parent=0 // pred_fallthru
    _
  // Predicated region
  $region6: #{vit_multitask_forward.7} parent=0 // pred_check
    _
  $region7: #{vit_multitask_forward.7} parent=0 // pred_check_branch
    %21 = sbr.rel (0) target = $region9
  $region8: #{vit_multitask_forward.7} parent=0 // pred_region
    _
  $region9: #{vit_multitask_forward.7} parent=0 // pred_fallthru
    _
  // Predicated region
  $region10: #{vit_multitask_forward.7} parent=0 // pred_check
    _
  $region11: #{vit_multitask_forward.7} parent=0 // pred_check_branch
    %23 = sbr.rel (0) target = $region13
  $region12: #{vit_multitask_forward.7} parent=0 // pred_region
    _
  $region13: #{vit_multitask_forward.7} parent=0 // pred_fallthru
    _
  // Predicated region
  $region14: #{vit_multitask_forward.7} parent=0 // pred_check
    _
  $region15: #{vit_multitask_forward.7} parent=0 // pred_check_branch
    %25 = sbr.rel (0) target = $region17
  $region16: #{vit_multitask_forward.7} parent=0 // pred_region
    _
  $region17: #{vit_multitask_forward.7} parent=0 // pred_fallthru
    _
  // Predicated region
  $region18: #{vit_multitask_forward.7} parent=0 // pred_check
    _
  $region19: #{vit_multitask_forward.7} parent=0 // pred_check_branch
    %27 = sbr.rel (0) target = $region21
  $region20: #{vit_multitask_forward.7} parent=0 // pred_region
    _
  $region21: #{vit_multitask_forward.7} parent=0 // pred_fallthru
    _
  // Predicated region
  $region22: #{vit_multitask_forward.7} parent=0 // pred_check
    _
  $region23: #{vit_multitask_forward.7} parent=0 // pred_check_branch
    %29 = sbr.rel (0) target = $region25
  $region24: #{vit_multitask_forward.7} parent=0 // pred_region
    _
  $region25: #{vit_multitask_forward.7} parent=0 // pred_fallthru
    _
  // Predicated region
  $region26: #{vit_multitask_forward.7} parent=0 // pred_check
    _
  $region27: #{vit_multitask_forward.7} parent=0 // pred_check_branch
    %31 = sbr.rel (0) target = $region29
  $region28: #{vit_multitask_forward.7} parent=0 // pred_region
    _
  $region29: #{vit_multitask_forward.7} parent=0 // pred_fallthru
    _
  // Predicated region
  $region30: #{vit_multitask_forward.7} parent=0 // pred_check
    _
  $region31: #{vit_multitask_forward.7} parent=0 // pred_check_branch
    %33 = sbr.rel (0) target = $region33
  $region32: #{vit_multitask_forward.7} parent=0 // pred_region
    _
  $region33: #{vit_multitask_forward.7} parent=0 // pred_fallthru
    _
  // Predicated region
  $region34: #{vit_multitask_forward.7} parent=0 // pred_check
    _
  $region35: #{vit_multitask_forward.7} parent=0 // pred_check_branch
    %35 = sbr.rel (0) target = $region37
  $region36: #{vit_multitask_forward.7} parent=0 // pred_region
    _
  $region37: #{vit_multitask_forward.7} parent=0 // pred_fallthru
    _
  // Predicated region
  $region38: #{vit_multitask_forward.7} parent=0 // pred_check
    _
  $region39: #{vit_multitask_forward.7} parent=0 // pred_check_branch
    %37 = sbr.rel (0) target = $region41
  $region40: #{vit_multitask_forward.7} parent=0 // pred_region
    _
  $region41: #{vit_multitask_forward.7} parent=0 // pred_fallthru
    _
  // Predicated region
  $region42: #{vit_multitask_forward.7} parent=0 // pred_check
    _
  $region43: #{vit_multitask_forward.7} parent=0 // pred_check_branch
    %39 = sbr.rel (0) target = $region45
  $region44: #{vit_multitask_forward.7} parent=0 // pred_region
    _
  $region45: #{vit_multitask_forward.7} parent=0 // pred_fallthru
    _
  // Predicated region
  $region46: #{vit_multitask_forward.7} parent=0 // pred_check
    _
  $region47: #{vit_multitask_forward.7} parent=0 // pred_check_branch
    %41 = sbr.rel (0) target = $region49
  $region48: #{vit_multitask_forward.7} parent=0 // pred_region
    _
  $region49: #{vit_multitask_forward.7} parent=0 // pred_fallthru
    _
  // Predicated region
  $region50: #{vit_multitask_forward.7} parent=0 // pred_check
    _
  $region51: #{vit_multitask_forward.7} parent=0 // pred_check_branch
    %43 = sbr.rel (0) target = $region53
  $region52: #{vit_multitask_forward.7} parent=0 // pred_region
    _
  $region53: #{vit_multitask_forward.7} parent=0 // pred_fallthru
    _
  %v45 = vld [vmem:[%s0] sm:$0x7]
  %v46 = vld [vmem:[%s0 + $0x4] sm:$0x7]
  %v47 = vunpack.c.l.bf16 %v45
  %v48 = vunpack.c.l.bf16 %v46
  %v51 = vcombine.high %v47, %v47
  %v53 = vunpack.c.l.s4 1966171168
  %v54 = vunpack.c.0.s8 %v53
  %v55 = vlaneseq
  %v56 = vshrl.u32 %v55, 7
  %v57 = vsub.s32 %v54, %v56
  %v58 = vrot.slane %v47, %v57
  %v60 = vunpack.c.l.s4 1966171168
  %v61 = vunpack.c.0.s8 %v60
  %v62 = vlaneseq
  %v63 = vshrl.u32 %v62, 7
  %v64 = vsub.s32 %v61, %v63
  %v65 = vrot.slane %v51, %v64
  %v66 = vcombine.high %v58, %v58
  %v68 = vunpack.c.l.s4 1966171168
  %v69 = vunpack.c.0.s8 %v68
  %v70 = vlaneseq
  %v71 = vshrl.u32 %v70, 7
  %v72 = vsub.s32 %v69, %v71
  %v73 = vrot.slane %v58, %v72
  %v75 = vunpack.c.l.s4 1966171168
  %v76 = vunpack.c.0.s8 %v75
  %v77 = vlaneseq
  %v78 = vshrl.u32 %v77, 7
  %v79 = vsub.s32 %v76, %v78
  %v80 = vrot.slane %v65, %v79
  %v82 = vunpack.c.l.s4 1966171168
  %v83 = vunpack.c.0.s8 %v82
  %v84 = vlaneseq
  %v85 = vshrl.u32 %v84, 7
  %v86 = vsub.s32 %v83, %v85
  %v87 = vrot.slane %v66, %v86
  %v88 = vcombine.high %v73, %v73
  %v89 = vcombine.high %v87, %v87
  %v90 = vcombine.high %v48, %v48
  %v92 = vunpack.c.l.s4 1966171168
  %v93 = vunpack.c.0.s8 %v92
  %v94 = vlaneseq
  %v95 = vshrl.u32 %v94, 7
  %v96 = vsub.s32 %v93, %v95
  %v97 = vrot.slane %v48, %v96
  %v99 = vunpack.c.l.s4 1966171168
  %v100 = vunpack.c.0.s8 %v99
  %v101 = vlaneseq
  %v102 = vshrl.u32 %v101, 7
  %v103 = vsub.s32 %v100, %v102
  %v104 = vrot.slane %v90, %v103
  %v105 = vcombine.high %v97, %v97
  %v107 = vunpack.c.l.s4 1966171168
  %v108 = vunpack.c.0.s8 %v107
  %v109 = vlaneseq
  %v110 = vshrl.u32 %v109, 7
  %v111 = vsub.s32 %v108, %v110
  %v112 = vrot.slane %v97, %v111
  %v114 = vunpack.c.l.s4 1966171168
  %v115 = vunpack.c.0.s8 %v114
  %v116 = vlaneseq
  %v117 = vshrl.u32 %v116, 7
  %v118 = vsub.s32 %v115, %v117
  %v119 = vrot.slane %v104, %v118
  %v121 = vunpack.c.l.s4 1966171168
  %v122 = vunpack.c.0.s8 %v121
  %v123 = vlaneseq
  %v124 = vshrl.u32 %v123, 7
  %v125 = vsub.s32 %v122, %v124
  %v126 = vrot.slane %v105, %v125
  %v127 = vcombine.high %v112, %v112
  %v128 = vcombine.high %v126, %v126
  %v139 = vld [vmem:[%s1] sm:$0x1]
  %v140 = vld [vmem:[%s2] sm:$0x1]
  %v141 = vcombine.low %v73, %v87
  %v142 = vcombine.low %v88, %v89
  %v143 = vcombine.low %v80, %v112
  %v144 = vcombine.low %v126, %v127
  %v146 = vunpack.c.l.s4 1966171168
  %v147 = vunpack.c.0.s8 %v146
  %v148 = vlaneseq
  %v149 = vshrl.u32 %v148, 7
  %v150 = vsub.s32 %v147, %v149
  %v151 = vrot.slane %v141, %v150
  %v153 = vunpack.c.l.s4 1966171168
  %v154 = vunpack.c.0.s8 %v153
  %v155 = vlaneseq
  %v156 = vshrl.u32 %v155, 7
  %v157 = vsub.s32 %v154, %v156
  %v158 = vrot.slane %v142, %v157
  %v160 = vunpack.c.l.s4 1966171168
  %v161 = vunpack.c.0.s8 %v160
  %v162 = vlaneseq
  %v163 = vshrl.u32 %v162, 7
  %v164 = vsub.s32 %v161, %v163
  %v165 = vrot.slane %v143, %v164
  %v167 = vunpack.c.l.s4 1966171168
  %v168 = vunpack.c.0.s8 %v167
  %v169 = vlaneseq
  %v170 = vshrl.u32 %v169, 7
  %v171 = vsub.s32 %v168, %v170
  %v172 = vrot.slane %v144, %v171
  %v173 = vcombine.low %v151, %v158
  %v174 = vcombine.low %v165, %v172
  %v176 = vunpack.c.l.s4 1966171168
  %v177 = vunpack.c.0.s8 %v176
  %v178 = vlaneseq
  %v179 = vshrl.u32 %v178, 7
  %v180 = vsub.s32 %v177, %v179
  %v181 = vrot.slane %v173, %v180
  %v183 = vunpack.c.l.s4 1966171168
  %v184 = vunpack.c.0.s8 %v183
  %v185 = vlaneseq
  %v186 = vshrl.u32 %v185, 7
  %v187 = vsub.s32 %v184, %v186
  %v188 = vrot.slane %v174, %v187
  %v189 = vcombine.low %v181, %v188
  %v190 = vcombine.low %v128, %v119
  %v192 = vunpack.c.l.s4 1966171168
  %v193 = vunpack.c.0.s8 %v192
  %v194 = vlaneseq
  %v195 = vshrl.u32 %v194, 7
  %v196 = vsub.s32 %v193, %v195
  %v197 = vrot.slane %v190, %v196
  %v199 = vunpack.c.l.s4 1966171168
  %v200 = vunpack.c.0.s8 %v199
  %v201 = vlaneseq
  %v202 = vshrl.u32 %v201, 7
  %v203 = vsub.s32 %v200, %v202
  %v204 = vrot.slane %v197, %v203
  %vm207 = vcmask 261120
  %v208 = vsel %vm207, %v189, 0.0
  %209 = vadd.xlane.f32.xlu0 %v208
  %v210 = vpop.xlane.xlu0 %209
  %vm211 = vcmask 254976
  %v212 = vsel %vm211, %v204, 0.0
  %213 = vadd.xlane.f32.xlu0 %v212
  %v214 = vpop.xlane.xlu0 %213
  %v215 = vrcp.pop 32.0
  %v216 = vmul.f32 %v210, %v215
  %v217 = vmul.f32 %v214, %v215
  %v220 = vlaneseq
  %v221 = vshrl.u32 %v220, 7
  %v222 = vsub.s32 0, %v221
  %v223 = vrot.slane %v216, %v222
  %v224 = vlaneseq
  %v225 = vshrl.u32 %v224, 7
  %v226 = vsub.s32 1, %v225
  %v227 = vrot.slane %v216, %v226
  %v228 = vlaneseq
  %v229 = vshrl.u32 %v228, 7
  %v230 = vsub.s32 2, %v229
  %v231 = vrot.slane %v216, %v230
  %v232 = vlaneseq
  %v233 = vshrl.u32 %v232, 7
  %v234 = vsub.s32 3, %v233
  %v235 = vrot.slane %v216, %v234
  %v236 = vlaneseq
  %v237 = vshrl.u32 %v236, 7
  %v238 = vsub.s32 4, %v237
  %v239 = vrot.slane %v216, %v238
  %v240 = vlaneseq
  %v241 = vshrl.u32 %v240, 7
  %v242 = vsub.s32 5, %v241
  %v243 = vrot.slane %v216, %v242
  %v244 = vlaneseq
  %v245 = vshrl.u32 %v244, 7
  %v246 = vsub.s32 6, %v245
  %v247 = vrot.slane %v216, %v246
  %v248 = vlaneseq
  %v249 = vshrl.u32 %v248, 7
  %v250 = vsub.s32 7, %v249
  %v251 = vrot.slane %v216, %v250
  %v252 = vlaneseq
  %v253 = vshrl.u32 %v252, 7
  %v254 = vsub.s32 0, %v253
  %v255 = vrot.slane %v217, %v254
  %v256 = vlaneseq
  %v257 = vshrl.u32 %v256, 7
  %v258 = vsub.s32 1, %v257
  %v259 = vrot.slane %v217, %v258
  %v270 = vsub.f32 %v73, %v223
  %v271 = vsub.f32 %v87, %v227
  %v272 = vsub.f32 %v88, %v231
  %v273 = vsub.f32 %v89, %v235
  %v274 = vsub.f32 %v80, %v239
  %v275 = vsub.f32 %v112, %v243
  %v276 = vsub.f32 %v126, %v247
  %v277 = vsub.f32 %v127, %v251
  %v278 = vsub.f32 %v128, %v255
  %v279 = vsub.f32 %v119, %v259
  %v280 = vmul.f32 %v270, %v270
  %v281 = vmul.f32 %v271, %v271
  %v282 = vmul.f32 %v272, %v272
  %v283 = vmul.f32 %v273, %v273
  %v284 = vmul.f32 %v274, %v274
  %v285 = vmul.f32 %v275, %v275
  %v286 = vmul.f32 %v276, %v276
  %v287 = vmul.f32 %v277, %v277
  %v288 = vmul.f32 %v278, %v278
  %v289 = vmul.f32 %v279, %v279
  %v300 = vcombine.low %v280, %v281
  %v301 = vcombine.low %v282, %v283
  %v302 = vcombine.low %v284, %v285
  %v303 = vcombine.low %v286, %v287
  %v305 = vunpack.c.l.s4 1966171168
  %v306 = vunpack.c.0.s8 %v305
  %v307 = vlaneseq
  %v308 = vshrl.u32 %v307, 7
  %v309 = vsub.s32 %v306, %v308
  %v310 = vrot.slane %v300, %v309
  %v312 = vunpack.c.l.s4 1966171168
  %v313 = vunpack.c.0.s8 %v312
  %v314 = vlaneseq
  %v315 = vshrl.u32 %v314, 7
  %v316 = vsub.s32 %v313, %v315
  %v317 = vrot.slane %v301, %v316
  %v319 = vunpack.c.l.s4 1966171168
  %v320 = vunpack.c.0.s8 %v319
  %v321 = vlaneseq
  %v322 = vshrl.u32 %v321, 7
  %v323 = vsub.s32 %v320, %v322
  %v324 = vrot.slane %v302, %v323
  %v326 = vunpack.c.l.s4 1966171168
  %v327 = vunpack.c.0.s8 %v326
  %v328 = vlaneseq
  %v329 = vshrl.u32 %v328, 7
  %v330 = vsub.s32 %v327, %v329
  %v331 = vrot.slane %v303, %v330
  %v332 = vcombine.low %v310, %v317
  %v333 = vcombine.low %v324, %v331
  %v335 = vunpack.c.l.s4 1966171168
  %v336 = vunpack.c.0.s8 %v335
  %v337 = vlaneseq
  %v338 = vshrl.u32 %v337, 7
  %v339 = vsub.s32 %v336, %v338
  %v340 = vrot.slane %v332, %v339
  %v342 = vunpack.c.l.s4 1966171168
  %v343 = vunpack.c.0.s8 %v342
  %v344 = vlaneseq
  %v345 = vshrl.u32 %v344, 7
  %v346 = vsub.s32 %v343, %v345
  %v347 = vrot.slane %v333, %v346
  %v348 = vcombine.low %v340, %v347
  %v349 = vcombine.low %v288, %v289
  %v351 = vunpack.c.l.s4 1966171168
  %v352 = vunpack.c.0.s8 %v351
  %v353 = vlaneseq
  %v354 = vshrl.u32 %v353, 7
  %v355 = vsub.s32 %v352, %v354
  %v356 = vrot.slane %v349, %v355
  %v358 = vunpack.c.l.s4 1966171168
  %v359 = vunpack.c.0.s8 %v358
  %v360 = vlaneseq
  %v361 = vshrl.u32 %v360, 7
  %v362 = vsub.s32 %v359, %v361
  %v363 = vrot.slane %v356, %v362
  %v366 = vsel %vm207, %v348, 0.0
  %367 = vadd.xlane.f32.xlu0 %v366
  %v368 = vpop.xlane.xlu0 %367
  %v369 = vsel %vm211, %v363, 0.0
  %370 = vadd.xlane.f32.xlu0 %v369
  %v371 = vpop.xlane.xlu0 %370
  %v372 = vmul.f32 %v368, %v215
  %v373 = vmul.f32 %v371, %v215
  %v374 = vadd.f32 %v372, 1e-12
  %v375 = vadd.f32 %v373, 1e-12
  %v376 = vrsqrt.pop %v374
  %v377 = vrsqrt.pop %v375
  %v380 = vlaneseq
  %v381 = vshrl.u32 %v380, 7
  %v382 = vsub.s32 0, %v381
  %v383 = vrot.slane %v376, %v382
  %v384 = vlaneseq
  %v385 = vshrl.u32 %v384, 7
  %v386 = vsub.s32 1, %v385
  %v387 = vrot.slane %v376, %v386
  %v388 = vlaneseq
  %v389 = vshrl.u32 %v388, 7
  %v390 = vsub.s32 2, %v389
  %v391 = vrot.slane %v376, %v390
  %v392 = vlaneseq
  %v393 = vshrl.u32 %v392, 7
  %v394 = vsub.s32 3, %v393
  %v395 = vrot.slane %v376, %v394
  %v396 = vlaneseq
  %v397 = vshrl.u32 %v396, 7
  %v398 = vsub.s32 4, %v397
  %v399 = vrot.slane %v376, %v398
  %v400 = vlaneseq
  %v401 = vshrl.u32 %v400, 7
  %v402 = vsub.s32 5, %v401
  %v403 = vrot.slane %v376, %v402
  %v404 = vlaneseq
  %v405 = vshrl.u32 %v404, 7
  %v406 = vsub.s32 6, %v405
  %v407 = vrot.slane %v376, %v406
  %v408 = vlaneseq
  %v409 = vshrl.u32 %v408, 7
  %v410 = vsub.s32 7, %v409
  %v411 = vrot.slane %v376, %v410
  %v412 = vlaneseq
  %v413 = vshrl.u32 %v412, 7
  %v414 = vsub.s32 0, %v413
  %v415 = vrot.slane %v377, %v414
  %v416 = vlaneseq
  %v417 = vshrl.u32 %v416, 7
  %v418 = vsub.s32 1, %v417
  %v419 = vrot.slane %v377, %v418
  %v430 = vmul.f32 %v270, %v383
  %v431 = vmul.f32 %v271, %v387
  %v432 = vmul.f32 %v272, %v391
  %v433 = vmul.f32 %v273, %v395
  %v434 = vmul.f32 %v274, %v399
  %v435 = vmul.f32 %v275, %v403
  %v436 = vmul.f32 %v276, %v407
  %v437 = vmul.f32 %v277, %v411
  %v438 = vmul.f32 %v278, %v415
  %v439 = vmul.f32 %v279, %v419
  %v441 = vlaneseq
  %v442 = vshrl.u32 %v441, 7
  %v443 = vsub.s32 0, %v442
  %v444 = vrot.slane %v139, %v443
  %v445 = vcombine.high %v444, %v444
  %v447 = vunpack.c.l.s4 1966171168
  %v448 = vunpack.c.0.s8 %v447
  %v449 = vlaneseq
  %v450 = vshrl.u32 %v449, 7
  %v451 = vsub.s32 %v448, %v450
  %v452 = vrot.slane %v444, %v451
  %v454 = vunpack.c.l.s4 1966171168
  %v455 = vunpack.c.0.s8 %v454
  %v456 = vlaneseq
  %v457 = vshrl.u32 %v456, 7
  %v458 = vsub.s32 %v455, %v457
  %v459 = vrot.slane %v445, %v458
  %v460 = vcombine.high %v452, %v452
  %v461 = vcombine.high %v459, %v459
  %v463 = vunpack.c.l.s4 1966171168
  %v464 = vunpack.c.0.s8 %v463
  %v465 = vlaneseq
  %v466 = vshrl.u32 %v465, 7
  %v467 = vsub.s32 %v464, %v466
  %v468 = vrot.slane %v452, %v467
  %v470 = vunpack.c.l.s4 1966171168
  %v471 = vunpack.c.0.s8 %v470
  %v472 = vlaneseq
  %v473 = vshrl.u32 %v472, 7
  %v474 = vsub.s32 %v471, %v473
  %v475 = vrot.slane %v459, %v474
  %v477 = vunpack.c.l.s4 1966171168
  %v478 = vunpack.c.0.s8 %v477
  %v479 = vlaneseq
  %v480 = vshrl.u32 %v479, 7
  %v481 = vsub.s32 %v478, %v480
  %v482 = vrot.slane %v460, %v481
  %v484 = vunpack.c.l.s4 1966171168
  %v485 = vunpack.c.0.s8 %v484
  %v486 = vlaneseq
  %v487 = vshrl.u32 %v486, 7
  %v488 = vsub.s32 %v485, %v487
  %v489 = vrot.slane %v461, %v488
  %v490 = vcombine.high %v468, %v468
  %v491 = vcombine.high %v475, %v475
  %v492 = vcombine.high %v482, %v482
  %v493 = vcombine.high %v489, %v489
  %v502 = vmul.f32 %v430, %v468
  %v503 = vmul.f32 %v431, %v482
  %v504 = vmul.f32 %v432, %v490
  %v505 = vmul.f32 %v433, %v492
  %v506 = vmul.f32 %v434, %v475
  %v507 = vmul.f32 %v435, %v489
  %v508 = vmul.f32 %v436, %v491
  %v509 = vmul.f32 %v437, %v493
  %v510 = vmul.f32 %v438, %v468
  %v511 = vmul.f32 %v439, %v482
  %v513 = vlaneseq
  %v514 = vshrl.u32 %v513, 7
  %v515 = vsub.s32 0, %v514
  %v516 = vrot.slane %v140, %v515
  %v517 = vcombine.high %v516, %v516
  %v519 = vunpack.c.l.s4 1966171168
  %v520 = vunpack.c.0.s8 %v519
  %v521 = vlaneseq
  %v522 = vshrl.u32 %v521, 7
  %v523 = vsub.s32 %v520, %v522
  %v524 = vrot.slane %v516, %v523
  %v526 = vunpack.c.l.s4 1966171168
  %v527 = vunpack.c.0.s8 %v526
  %v528 = vlaneseq
  %v529 = vshrl.u32 %v528, 7
  %v530 = vsub.s32 %v527, %v529
  %v531 = vrot.slane %v517, %v530
  %v532 = vcombine.high %v524, %v524
  %v533 = vcombine.high %v531, %v531
  %v535 = vunpack.c.l.s4 1966171168
  %v536 = vunpack.c.0.s8 %v535
  %v537 = vlaneseq
  %v538 = vshrl.u32 %v537, 7
  %v539 = vsub.s32 %v536, %v538
  %v540 = vrot.slane %v524, %v539
  %v542 = vunpack.c.l.s4 1966171168
  %v543 = vunpack.c.0.s8 %v542
  %v544 = vlaneseq
  %v545 = vshrl.u32 %v544, 7
  %v546 = vsub.s32 %v543, %v545
  %v547 = vrot.slane %v531, %v546
  %v549 = vunpack.c.l.s4 1966171168
  %v550 = vunpack.c.0.s8 %v549
  %v551 = vlaneseq
  %v552 = vshrl.u32 %v551, 7
  %v553 = vsub.s32 %v550, %v552
  %v554 = vrot.slane %v532, %v553
  %v556 = vunpack.c.l.s4 1966171168
  %v557 = vunpack.c.0.s8 %v556
  %v558 = vlaneseq
  %v559 = vshrl.u32 %v558, 7
  %v560 = vsub.s32 %v557, %v559
  %v561 = vrot.slane %v533, %v560
  %v562 = vcombine.high %v540, %v540
  %v563 = vcombine.high %v547, %v547
  %v564 = vcombine.high %v554, %v554
  %v565 = vcombine.high %v561, %v561
  %v574 = vadd.f32 %v502, %v540
  %v575 = vadd.f32 %v503, %v554
  %v576 = vadd.f32 %v504, %v562
  %v577 = vadd.f32 %v505, %v564
  %v578 = vadd.f32 %v506, %v547
  %v579 = vadd.f32 %v507, %v561
  %v580 = vadd.f32 %v508, %v563
  %v581 = vadd.f32 %v509, %v565
  %v582 = vadd.f32 %v510, %v540
  %v583 = vadd.f32 %v511, %v554
  %v594 = vcombine.low %v574, %v575
  %v595 = vcombine.low %v576, %v577
  %v596 = vcombine.low %v578, %v579
  %v597 = vcombine.low %v580, %v581
  %v599 = vunpack.c.l.s4 1966171168
  %v600 = vunpack.c.0.s8 %v599
  %v601 = vlaneseq
  %v602 = vshrl.u32 %v601, 7
  %v603 = vsub.s32 %v600, %v602
  %v604 = vrot.slane %v594, %v603
  %v606 = vunpack.c.l.s4 1966171168
  %v607 = vunpack.c.0.s8 %v606
  %v608 = vlaneseq
  %v609 = vshrl.u32 %v608, 7
  %v610 = vsub.s32 %v607, %v609
  %v611 = vrot.slane %v595, %v610
  %v613 = vunpack.c.l.s4 1966171168
  %v614 = vunpack.c.0.s8 %v613
  %v615 = vlaneseq
  %v616 = vshrl.u32 %v615, 7
  %v617 = vsub.s32 %v614, %v616
  %v618 = vrot.slane %v596, %v617
  %v620 = vunpack.c.l.s4 1966171168
  %v621 = vunpack.c.0.s8 %v620
  %v622 = vlaneseq
  %v623 = vshrl.u32 %v622, 7
  %v624 = vsub.s32 %v621, %v623
  %v625 = vrot.slane %v597, %v624
  %v626 = vcombine.low %v604, %v611
  %v627 = vcombine.low %v618, %v625
  %v629 = vunpack.c.l.s4 1966171168
  %v630 = vunpack.c.0.s8 %v629
  %v631 = vlaneseq
  %v632 = vshrl.u32 %v631, 7
  %v633 = vsub.s32 %v630, %v632
  %v634 = vrot.slane %v626, %v633
  %v636 = vunpack.c.l.s4 1966171168
  %v637 = vunpack.c.0.s8 %v636
  %v638 = vlaneseq
  %v639 = vshrl.u32 %v638, 7
  %v640 = vsub.s32 %v637, %v639
  %v641 = vrot.slane %v627, %v640
  %v642 = vcombine.low %v634, %v641
  %v643 = vcombine.low %v582, %v583
  %v645 = vunpack.c.l.s4 1966171168
  %v646 = vunpack.c.0.s8 %v645
  %v647 = vlaneseq
  %v648 = vshrl.u32 %v647, 7
  %v649 = vsub.s32 %v646, %v648
  %v650 = vrot.slane %v643, %v649
  %v652 = vunpack.c.l.s4 1966171168
  %v653 = vunpack.c.0.s8 %v652
  %v654 = vlaneseq
  %v655 = vshrl.u32 %v654, 7
  %v656 = vsub.s32 %v653, %v655
  %v657 = vrot.slane %v650, %v656
  %v660 = vpack.c.bf16 %v657, %v642
  %s661 = smul.u32 0, 4
  %s662 = smul.addr %s661, 4
  %s663 = scalar_lea.vmem %s3, %s662
  %v664 = vld [vmem:[%s663] sm:$0xf]
  %v665 = vld [vmem:[%s663 + $0x4] sm:$0xf]
  %v666 = vld [vmem:[%s663 + $0x8] sm:$0xf]
  %v667 = vld [vmem:[%s663 + $0xc] sm:$0xf]
  %v668 = vld [vmem:[%s4] sm:$0x1]
  %v670 = vlaneseq
  %v671 = vshrl.u32 %v670, 7
  %v672 = vsub.s32 0, %v671
  %v673 = vrot.slane %v668, %v672
  %v679 = vunpack.c.l.b16 %v664
  %v680 = vunpack.c.l.b16 %v665
  %v681 = vunpack.c.l.b16 %v666
  %v682 = vunpack.c.l.b16 %v667
  %v683 = vpack.c.b16 %v680, %v679
  %v684 = vpack.c.b16 %v682, %v681
  %v688 = vsel %vm207, %v660, 0
  %690 = vmatprep.subr.bf16.mxu0 0
  %691 = vmatpush1.bf16.msra.mxu0 0
  %692 = vmatprep.subr.bf16.mxu0 0
  %693 = vmatpush1.bf16.msra.mxu0 0
  %694 = vmatprep.subr.bf16.mxu0 0
  %695 = vmatpush1.bf16.msra.mxu0 0
  %696 = vmatprep.subr.bf16.mxu0 0
  %697 = vmatpush1.bf16.msra.mxu0 0
  %698 = vmatprep.subr.bf16.mxu0 0
  %699 = vmatpush1.bf16.msra.mxu0 0
  %700 = vmatprep.subr.bf16.mxu0 0
  %701 = vmatpush1.bf16.msra.mxu0 0
  %702 = vmatprep.subr.bf16.mxu0 0
  %703 = vmatpush1.bf16.msra.mxu0 %v684
  %704 = vmatprep.subr.bf16.mxu0 0
  %705 = vmatpush1.bf16.msra.mxu0 %v683
  %706 = vmatprep.subr.bf16.mxu0 0
  %707 = vmatpush2.bf16.msra.mxu0 0
  %708 = vmatprep.subr.bf16.mxu0 0
  %709 = vmatpush2.bf16.msra.mxu0 0
  %710 = vmatprep.subr.bf16.mxu0 0
  %711 = vmatpush2.bf16.msra.mxu0 0
  %712 = vmatprep.subr.bf16.mxu0 0
  %713 = vmatpush2.bf16.msra.mxu0 0
  %714 = vmatprep.subr.bf16.mxu0 0
  %715 = vmatpush2.bf16.msra.mxu0 0
  %716 = vmatprep.subr.bf16.mxu0 0
  %717 = vmatpush2.bf16.msra.mxu0 0
  %718 = vmatprep.subr.bf16.mxu0 0
  %719 = vmatpush2.bf16.msra.mxu0 0
  %720 = vmatprep.subr.bf16.mxu0 0
  %721 = vmatpush2.bf16.msra.mxu0 0
  %722 = vmatprep.mubr.bf16.mxu0 0
  %723 = vmatmul.mubr.bf16.gmra.mxu0 %v688
  %v724 = vpop.f32.mrf.mxu0
  %v725 = vadd.f32 %v673, %v724
  %v726 = vpop.f32.mrf.mxu0
  %v727 = vpop.f32.mrf.mxu0
  %v728 = vadd.f32 %v673, %v727
  %v729 = vpop.f32.mrf.mxu0
  %730 = vdwg.mxu0
  %v731 = vpack.c.bf16 %v728, %v725
  %733 = vrot.lane.b32.xlu0 %v731, 96
  %v734 = vpop.permute.xlu0 %733
  %vm735 = vcmask 64512
  %v737 = vsel %vm735, %v731, 0
  %v740 = vsel %vm735, %v734, 0
  %742 = vmatprep.subr.bf16.mxu0 0
  %743 = vmatpush1.bf16.xpose.msra.mxu0 0
  %744 = vmatprep.subr.bf16.mxu0 0
  %745 = vmatpush1.bf16.xpose.msra.mxu0 0
  %746 = vmatprep.subr.bf16.mxu0 0
  %747 = vmatpush1.bf16.xpose.msra.mxu0 0
  %748 = vmatprep.subr.bf16.mxu0 0
  %749 = vmatpush1.bf16.xpose.msra.mxu0 0
  %750 = vmatprep.subr.bf16.mxu0 0
  %751 = vmatpush1.bf16.xpose.msra.mxu0 0
  %752 = vmatprep.subr.bf16.mxu0 0
  %753 = vmatpush1.bf16.xpose.msra.mxu0 0
  %754 = vmatprep.subr.bf16.mxu0 0
  %755 = vmatpush1.bf16.xpose.msra.mxu0 0
  %756 = vmatprep.subr.bf16.mxu0 0
  %757 = vmatpush1.bf16.xpose.msra.mxu0 %v740
  %758 = vmatprep.subr.bf16.mxu0 0
  %759 = vmatpush2.bf16.xpose.msra.mxu0 0
  %760 = vmatprep.subr.bf16.mxu0 0
  %761 = vmatpush2.bf16.xpose.msra.mxu0 0
  %762 = vmatprep.subr.bf16.mxu0 0
  %763 = vmatpush2.bf16.xpose.msra.mxu0 0
  %764 = vmatprep.subr.bf16.mxu0 0
  %765 = vmatpush2.bf16.xpose.msra.mxu0 0
  %766 = vmatprep.subr.bf16.mxu0 0
  %767 = vmatpush2.bf16.xpose.msra.mxu0 0
  %768 = vmatprep.subr.bf16.mxu0 0
  %769 = vmatpush2.bf16.xpose.msra.mxu0 0
  %770 = vmatprep.subr.bf16.mxu0 0
  %771 = vmatpush2.bf16.xpose.msra.mxu0 0
  %772 = vmatprep.subr.bf16.mxu0 0
  %773 = vmatpush2.bf16.xpose.msra.mxu0 0
  %774 = vmatprep.mubr.bf16.mxu0 0
  %775 = vmatmul.mubr.bf16.gmra.mxu0 %v737
  %v776 = vpop.f32.mrf.mxu0
  %v777 = vadd.f32 0.0, %v776
  %v778 = vpop.f32.mrf.mxu0
  %v779 = vpop.f32.mrf.mxu0
  %v780 = vpop.f32.mrf.mxu0
  %781 = vdwg.mxu0
  %v782 = vmul.f32 %v777, 0.35355338
  %vm783 = vcmask 36864
  %v784 = vsel %vm783, %v782, -inf
  %785 = vmax.xlane.f32.xlu0 %v784
  %v786 = vpop.xlane.xlu0 %785
  %v787 = vsub.f32 %v782, %v786
  %v788 = vmul.f32 %v787, 1.442695
  %v789 = vpow.pop %v788
  %v790 = vsel %vm783, %v789, 0.0
  %791 = vadd.xlane.f32.xlu0 %v790
  %v792 = vpop.xlane.xlu0 %791
  %v793 = vrcp.pop %v792
  %v794 = vmul.f32 %v789, %v793
  %v795 = vpack.c.bf16 %v794, %v794
  %796 = vrot.lane.b32.xlu0 %v731, 64
  %v797 = vpop.permute.xlu0 %796
  %vm798 = vcmask 39936
  %v800 = vsel %vm798, %v795, 0
  %vm802 = vcmask 1041408
  %vm803 = vcmask 1042432
  %v804 = vsel %vm802, 4294967295, 65535
  %v805 = vsel %vm803, %v804, 0
  %v807 = vand.u32 %v797, %v805
  %809 = vmatprep.subr.bf16.mxu0 0
  %810 = vmatpush1.bf16.msra.mxu0 0
  %811 = vmatprep.subr.bf16.mxu0 0
  %812 = vmatpush1.bf16.msra.mxu0 0
  %813 = vmatprep.subr.bf16.mxu0 0
  %814 = vmatpush1.bf16.msra.mxu0 0
  %815 = vmatprep.subr.bf16.mxu0 0
  %816 = vmatpush1.bf16.msra.mxu0 0
  %817 = vmatprep.subr.bf16.mxu0 0
  %818 = vmatpush1.bf16.msra.mxu0 0
  %819 = vmatprep.subr.bf16.mxu0 0
  %820 = vmatpush1.bf16.msra.mxu0 0
  %821 = vmatprep.subr.bf16.mxu0 0
  %822 = vmatpush1.bf16.msra.mxu0 0
  %823 = vmatprep.subr.bf16.mxu0 0
  %824 = vmatpush1.bf16.msra.mxu0 %v807
  %825 = vmatprep.subr.bf16.mxu0 0
  %826 = vmatpush2.bf16.msra.mxu0 0
  %827 = vmatprep.subr.bf16.mxu0 0
  %828 = vmatpush2.bf16.msra.mxu0 0
  %829 = vmatprep.subr.bf16.mxu0 0
  %830 = vmatpush2.bf16.msra.mxu0 0
  %831 = vmatprep.subr.bf16.mxu0 0
  %832 = vmatpush2.bf16.msra.mxu0 0
  %833 = vmatprep.subr.bf16.mxu0 0
  %834 = vmatpush2.bf16.msra.mxu0 0
  %835 = vmatprep.subr.bf16.mxu0 0
  %836 = vmatpush2.bf16.msra.mxu0 0
  %837 = vmatprep.subr.bf16.mxu0 0
  %838 = vmatpush2.bf16.msra.mxu0 0
  %839 = vmatprep.subr.bf16.mxu0 0
  %840 = vmatpush2.bf16.msra.mxu0 0
  %841 = vmatprep.mubr.bf16.mxu0 0
  %842 = vmatmul.mubr.bf16.gmra.mxu0 %v800
  %v843 = vpop.f32.mrf.mxu0
  %v844 = vadd.f32 0.0, %v843
  %v845 = vpop.f32.mrf.mxu0
  %v846 = vpop.f32.mrf.mxu0
  %v847 = vpop.f32.mrf.mxu0
  %848 = vdwg.mxu0
  %vm849 = vcmask 61440
  %850 = vst.msk [vmem:[#allocation2] sm:$0x1f] %vm849, %v844
  %851 = vrot.lane.b32.xlu0 %v731, 120
  %v852 = vpop.permute.xlu0 %851
  %853 = vrot.lane.b32.xlu0 %v731, 88
  %v854 = vpop.permute.xlu0 %853
  %v856 = vsel %vm735, %v852, 0
  %v859 = vsel %vm735, %v854, 0
  %861 = vmatprep.subr.bf16.mxu0 0
  %862 = vmatpush1.bf16.xpose.msra.mxu0 0
  %863 = vmatprep.subr.bf16.mxu0 0
  %864 = vmatpush1.bf16.xpose.msra.mxu0 0
  %865 = vmatprep.subr.bf16.mxu0 0
  %866 = vmatpush1.bf16.xpose.msra.mxu0 0
  %867 = vmatprep.subr.bf16.mxu0 0
  %868 = vmatpush1.bf16.xpose.msra.mxu0 0
  %869 = vmatprep.subr.bf16.mxu0 0
  %870 = vmatpush1.bf16.xpose.msra.mxu0 0
  %871 = vmatprep.subr.bf16.mxu0 0
  %872 = vmatpush1.bf16.xpose.msra.mxu0 0
  %873 = vmatprep.subr.bf16.mxu0 0
  %874 = vmatpush1.bf16.xpose.msra.mxu0 0
  %875 = vmatprep.subr.bf16.mxu0 0
  %876 = vmatpush1.bf16.xpose.msra.mxu0 %v859
  %877 = vmatprep.subr.bf16.mxu0 0
  %878 = vmatpush2.bf16.xpose.msra.mxu0 0
  %879 = vmatprep.subr.bf16.mxu0 0
  %880 = vmatpush2.bf16.xpose.msra.mxu0 0
  %881 = vmatprep.subr.bf16.mxu0 0
  %882 = vmatpush2.bf16.xpose.msra.mxu0 0
  %883 = vmatprep.subr.bf16.mxu0 0
  %884 = vmatpush2.bf16.xpose.msra.mxu0 0
  %885 = vmatprep.subr.bf16.mxu0 0
  %886 = vmatpush2.bf16.xpose.msra.mxu0 0
  %887 = vmatprep.subr.bf16.mxu0 0
  %888 = vmatpush2.bf16.xpose.msra.mxu0 0
  %889 = vmatprep.subr.bf16.mxu0 0
  %890 = vmatpush2.bf16.xpose.msra.mxu0 0
  %891 = vmatprep.subr.bf16.mxu0 0
  %892 = vmatpush2.bf16.xpose.msra.mxu0 0
  %893 = vmatprep.mubr.bf16.mxu0 0
  %894 = vmatmul.mubr.bf16.gmra.mxu0 %v856
  %v895 = vpop.f32.mrf.mxu0
  %v896 = vadd.f32 0.0, %v895
  %v897 = vpop.f32.mrf.mxu0
  %v898 = vpop.f32.mrf.mxu0
  %v899 = vpop.f32.mrf.mxu0
  %900 = vdwg.mxu0
  %v901 = vmul.f32 %v896, 0.35355338
  %v902 = vsel %vm783, %v901, -inf
  %903 = vmax.xlane.f32.xlu0 %v902
  %v904 = vpop.xlane.xlu0 %903
  %v905 = vsub.f32 %v901, %v904
  %v906 = vmul.f32 %v905, 1.442695
  %v907 = vpow.pop %v906
  %v908 = vsel %vm783, %v907, 0.0
  %909 = vadd.xlane.f32.xlu0 %v908
  %v910 = vpop.xlane.xlu0 %909
  %v911 = vrcp.pop %v910
  %v912 = vmul.f32 %v907, %v911
  %v913 = vpack.c.bf16 %v912, %v912
  %914 = vrot.lane.b32.xlu0 %v731, 56
  %v915 = vpop.permute.xlu0 %914
  %v917 = vsel %vm798, %v913, 0
  %v920 = vand.u32 %v915, %v805
  %922 = vmatprep.subr.bf16.mxu0 0
  %923 = vmatpush1.bf16.msra.mxu0 0
  %924 = vmatprep.subr.bf16.mxu0 0
  %925 = vmatpush1.bf16.msra.mxu0 0
  %926 = vmatprep.subr.bf16.mxu0 0
  %927 = vmatpush1.bf16.msra.mxu0 0
  %928 = vmatprep.subr.bf16.mxu0 0
  %929 = vmatpush1.bf16.msra.mxu0 0
  %930 = vmatprep.subr.bf16.mxu0 0
  %931 = vmatpush1.bf16.msra.mxu0 0
  %932 = vmatprep.subr.bf16.mxu0 0
  %933 = vmatpush1.bf16.msra.mxu0 0
  %934 = vmatprep.subr.bf16.mxu0 0
  %935 = vmatpush1.bf16.msra.mxu0 0
  %936 = vmatprep.subr.bf16.mxu0 0
  %937 = vmatpush1.bf16.msra.mxu0 %v920
  %938 = vmatprep.subr.bf16.mxu0 0
  %939 = vmatpush2.bf16.msra.mxu0 0
  %940 = vmatprep.subr.bf16.mxu0 0
  %941 = vmatpush2.bf16.msra.mxu0 0
  %942 = vmatprep.subr.bf16.mxu0 0
  %943 = vmatpush2.bf16.msra.mxu0 0
  %944 = vmatprep.subr.bf16.mxu0 0
  %945 = vmatpush2.bf16.msra.mxu0 0
  %946 = vmatprep.subr.bf16.mxu0 0
  %947 = vmatpush2.bf16.msra.mxu0 0
  %948 = vmatprep.subr.bf16.mxu0 0
  %949 = vmatpush2.bf16.msra.mxu0 0
  %950 = vmatprep.subr.bf16.mxu0 0
  %951 = vmatpush2.bf16.msra.mxu0 0
  %952 = vmatprep.subr.bf16.mxu0 0
  %953 = vmatpush2.bf16.msra.mxu0 0
  %954 = vmatprep.mubr.bf16.mxu0 0
  %955 = vmatmul.mubr.bf16.gmra.mxu0 %v917
  %v956 = vpop.f32.mrf.mxu0
  %v957 = vadd.f32 0.0, %v956
  %v958 = vpop.f32.mrf.mxu0
  %v959 = vpop.f32.mrf.mxu0
  %v960 = vpop.f32.mrf.mxu0
  %961 = vdwg.mxu0
  %963 = vrot.lane.b32.xlu0 %v957, 8
  %v964 = vpop.permute.xlu0 %963
  %vm966 = vcmask 127040
  %967 = vst.msk [vmem:[#allocation2] sm:$0x1f] %vm966, %v964
  %968 = vrot.lane.b32.xlu0 %v731, 112
  %v969 = vpop.permute.xlu0 %968
  %970 = vrot.lane.b32.xlu0 %v731, 80
  %v971 = vpop.permute.xlu0 %970
  %v973 = vsel %vm735, %v969, 0
  %v976 = vsel %vm735, %v971, 0
  %978 = vmatprep.subr.bf16.mxu0 0
  %979 = vmatpush1.bf16.xpose.msra.mxu0 0
  %980 = vmatprep.subr.bf16.mxu0 0
  %981 = vmatpush1.bf16.xpose.msra.mxu0 0
  %982 = vmatprep.subr.bf16.mxu0 0
  %983 = vmatpush1.bf16.xpose.msra.mxu0 0
  %984 = vmatprep.subr.bf16.mxu0 0
  %985 = vmatpush1.bf16.xpose.msra.mxu0 0
  %986 = vmatprep.subr.bf16.mxu0 0
  %987 = vmatpush1.bf16.xpose.msra.mxu0 0
  %988 = vmatprep.subr.bf16.mxu0 0
  %989 = vmatpush1.bf16.xpose.msra.mxu0 0
  %990 = vmatprep.subr.bf16.mxu0 0
  %991 = vmatpush1.bf16.xpose.msra.mxu0 0
  %992 = vmatprep.subr.bf16.mxu0 0
  %993 = vmatpush1.bf16.xpose.msra.mxu0 %v976
  %994 = vmatprep.subr.bf16.mxu0 0
  %995 = vmatpush2.bf16.xpose.msra.mxu0 0
  %996 = vmatprep.subr.bf16.mxu0 0
  %997 = vmatpush2.bf16.xpose.msra.mxu0 0
  %998 = vmatprep.subr.bf16.mxu0 0
  %999 = vmatpush2.bf16.xpose.msra.mxu0 0
  %1000 = vmatprep.subr.bf16.mxu0 0
  %1001 = vmatpush2.bf16.xpose.msra.mxu0 0
  %1002 = vmatprep.subr.bf16.mxu0 0
  %1003 = vmatpush2.bf16.xpose.msra.mxu0 0
  %1004 = vmatprep.subr.bf16.mxu0 0
  %1005 = vmatpush2.bf16.xpose.msra.mxu0 0
  %1006 = vmatprep.subr.bf16.mxu0 0
  %1007 = vmatpush2.bf16.xpose.msra.mxu0 0
  %1008 = vmatprep.subr.bf16.mxu0 0
  %1009 = vmatpush2.bf16.xpose.msra.mxu0 0
  %1010 = vmatprep.mubr.bf16.mxu0 0
  %1011 = vmatmul.mubr.bf16.gmra.mxu0 %v973
  %v1012 = vpop.f32.mrf.mxu0
  %v1013 = vadd.f32 0.0, %v1012
  %v1014 = vpop.f32.mrf.mxu0
  %v1015 = vpop.f32.mrf.mxu0
  %v1016 = vpop.f32.mrf.mxu0
  %1017 = vdwg.mxu0
  %v1018 = vmul.f32 %v1013, 0.35355338
  %v1019 = vsel %vm783, %v1018, -inf
  %1020 = vmax.xlane.f32.xlu0 %v1019
  %v1021 = vpop.xlane.xlu0 %1020
  %v1022 = vsub.f32 %v1018, %v1021
  %v1023 = vmul.f32 %v1022, 1.442695
  %v1024 = vpow.pop %v1023
  %v1025 = vsel %vm783, %v1024, 0.0
  %1026 = vadd.xlane.f32.xlu0 %v1025
  %v1027 = vpop.xlane.xlu0 %1026
  %v1028 = vrcp.pop %v1027
  %v1029 = vmul.f32 %v1024, %v1028
  %v1030 = vpack.c.bf16 %v1029, %v1029
  %1031 = vrot.lane.b32.xlu0 %v731, 48
  %v1032 = vpop.permute.xlu0 %1031
  %v1034 = vsel %vm798, %v1030, 0
  %v1037 = vand.u32 %v1032, %v805
  %1039 = vmatprep.subr.bf16.mxu0 0
  %1040 = vmatpush1.bf16.msra.mxu0 0
  %1041 = vmatprep.subr.bf16.mxu0 0
  %1042 = vmatpush1.bf16.msra.mxu0 0
  %1043 = vmatprep.subr.bf16.mxu0 0
  %1044 = vmatpush1.bf16.msra.mxu0 0
  %1045 = vmatprep.subr.bf16.mxu0 0
  %1046 = vmatpush1.bf16.msra.mxu0 0
  %1047 = vmatprep.subr.bf16.mxu0 0
  %1048 = vmatpush1.bf16.msra.mxu0 0
  %1049 = vmatprep.subr.bf16.mxu0 0
  %1050 = vmatpush1.bf16.msra.mxu0 0
  %1051 = vmatprep.subr.bf16.mxu0 0
  %1052 = vmatpush1.bf16.msra.mxu0 0
  %1053 = vmatprep.subr.bf16.mxu0 0
  %1054 = vmatpush1.bf16.msra.mxu0 %v1037
  %1055 = vmatprep.subr.bf16.mxu0 0
  %1056 = vmatpush2.bf16.msra.mxu0 0
  %1057 = vmatprep.subr.bf16.mxu0 0
  %1058 = vmatpush2.bf16.msra.mxu0 0
  %1059 = vmatprep.subr.bf16.mxu0 0
  %1060 = vmatpush2.bf16.msra.mxu0 0
  %1061 = vmatprep.subr.bf16.mxu0 0
  %1062 = vmatpush2.bf16.msra.mxu0 0
  %1063 = vmatprep.subr.bf16.mxu0 0
  %1064 = vmatpush2.bf16.msra.mxu0 0
  %1065 = vmatprep.subr.bf16.mxu0 0
  %1066 = vmatpush2.bf16.msra.mxu0 0
  %1067 = vmatprep.subr.bf16.mxu0 0
  %1068 = vmatpush2.bf16.msra.mxu0 0
  %1069 = vmatprep.subr.bf16.mxu0 0
  %1070 = vmatpush2.bf16.msra.mxu0 0
  %1071 = vmatprep.mubr.bf16.mxu0 0
  %1072 = vmatmul.mubr.bf16.gmra.mxu0 %v1034
  %v1073 = vpop.f32.mrf.mxu0
  %v1074 = vadd.f32 0.0, %v1073
  %v1075 = vpop.f32.mrf.mxu0
  %v1076 = vpop.f32.mrf.mxu0
  %v1077 = vpop.f32.mrf.mxu0
  %1078 = vdwg.mxu0
  %1080 = vrot.lane.b32.xlu0 %v1074, 16
  %v1081 = vpop.permute.xlu0 %1080
  %vm1083 = vcmask 192640
  %1084 = vst.msk [vmem:[#allocation2] sm:$0x1f] %vm1083, %v1081
  %1085 = vrot.lane.b32.xlu0 %v731, 104
  %v1086 = vpop.permute.xlu0 %1085
  %1087 = vrot.lane.b32.xlu0 %v731, 72
  %v1088 = vpop.permute.xlu0 %1087
  %v1090 = vsel %vm735, %v1086, 0
  %v1093 = vsel %vm735, %v1088, 0
  %1095 = vmatprep.subr.bf16.mxu0 0
  %1096 = vmatpush1.bf16.xpose.msra.mxu0 0
  %1097 = vmatprep.subr.bf16.mxu0 0
  %1098 = vmatpush1.bf16.xpose.msra.mxu0 0
  %1099 = vmatprep.subr.bf16.mxu0 0
  %1100 = vmatpush1.bf16.xpose.msra.mxu0 0
  %1101 = vmatprep.subr.bf16.mxu0 0
  %1102 = vmatpush1.bf16.xpose.msra.mxu0 0
  %1103 = vmatprep.subr.bf16.mxu0 0
  %1104 = vmatpush1.bf16.xpose.msra.mxu0 0
  %1105 = vmatprep.subr.bf16.mxu0 0
  %1106 = vmatpush1.bf16.xpose.msra.mxu0 0
  %1107 = vmatprep.subr.bf16.mxu0 0
  %1108 = vmatpush1.bf16.xpose.msra.mxu0 0
  %1109 = vmatprep.subr.bf16.mxu0 0
  %1110 = vmatpush1.bf16.xpose.msra.mxu0 %v1093
  %1111 = vmatprep.subr.bf16.mxu0 0
  %1112 = vmatpush2.bf16.xpose.msra.mxu0 0
  %1113 = vmatprep.subr.bf16.mxu0 0
  %1114 = vmatpush2.bf16.xpose.msra.mxu0 0
  %1115 = vmatprep.subr.bf16.mxu0 0
  %1116 = vmatpush2.bf16.xpose.msra.mxu0 0
  %1117 = vmatprep.subr.bf16.mxu0 0
  %1118 = vmatpush2.bf16.xpose.msra.mxu0 0
  %1119 = vmatprep.subr.bf16.mxu0 0
  %1120 = vmatpush2.bf16.xpose.msra.mxu0 0
  %1121 = vmatprep.subr.bf16.mxu0 0
  %1122 = vmatpush2.bf16.xpose.msra.mxu0 0
  %1123 = vmatprep.subr.bf16.mxu0 0
  %1124 = vmatpush2.bf16.xpose.msra.mxu0 0
  %1125 = vmatprep.subr.bf16.mxu0 0
  %1126 = vmatpush2.bf16.xpose.msra.mxu0 0
  %1127 = vmatprep.mubr.bf16.mxu0 0
  %1128 = vmatmul.mubr.bf16.gmra.mxu0 %v1090
  %v1129 = vpop.f32.mrf.mxu0
  %v1130 = vadd.f32 0.0, %v1129
  %v1131 = vpop.f32.mrf.mxu0
  %v1132 = vpop.f32.mrf.mxu0
  %v1133 = vpop.f32.mrf.mxu0
  %1134 = vdwg.mxu0
  %v1135 = vmul.f32 %v1130, 0.35355338
  %v1136 = vsel %vm783, %v1135, -inf
  %1137 = vmax.xlane.f32.xlu0 %v1136
  %v1138 = vpop.xlane.xlu0 %1137
  %v1139 = vsub.f32 %v1135, %v1138
  %v1140 = vmul.f32 %v1139, 1.442695
  %v1141 = vpow.pop %v1140
  %v1142 = vsel %vm783, %v1141, 0.0
  %1143 = vadd.xlane.f32.xlu0 %v1142
  %v1144 = vpop.xlane.xlu0 %1143
  %v1145 = vrcp.pop %v1144
  %v1146 = vmul.f32 %v1141, %v1145
  %v1147 = vpack.c.bf16 %v1146, %v1146
  %1148 = vrot.lane.b32.xlu0 %v731, 40
  %v1149 = vpop.permute.xlu0 %1148
  %v1151 = vsel %vm798, %v1147, 0
  %v1154 = vand.u32 %v1149, %v805
  %1156 = vmatprep.subr.bf16.mxu0 0
  %1157 = vmatpush1.bf16.msra.mxu0 0
  %1158 = vmatprep.subr.bf16.mxu0 0
  %1159 = vmatpush1.bf16.msra.mxu0 0
  %1160 = vmatprep.subr.bf16.mxu0 0
  %1161 = vmatpush1.bf16.msra.mxu0 0
  %1162 = vmatprep.subr.bf16.mxu0 0
  %1163 = vmatpush1.bf16.msra.mxu0 0
  %1164 = vmatprep.subr.bf16.mxu0 0
  %1165 = vmatpush1.bf16.msra.mxu0 0
  %1166 = vmatprep.subr.bf16.mxu0 0
  %1167 = vmatpush1.bf16.msra.mxu0 0
  %1168 = vmatprep.subr.bf16.mxu0 0
  %1169 = vmatpush1.bf16.msra.mxu0 0
  %1170 = vmatprep.subr.bf16.mxu0 0
  %1171 = vmatpush1.bf16.msra.mxu0 %v1154
  %1172 = vmatprep.subr.bf16.mxu0 0
  %1173 = vmatpush2.bf16.msra.mxu0 0
  %1174 = vmatprep.subr.bf16.mxu0 0
  %1175 = vmatpush2.bf16.msra.mxu0 0
  %1176 = vmatprep.subr.bf16.mxu0 0
  %1177 = vmatpush2.bf16.msra.mxu0 0
  %1178 = vmatprep.subr.bf16.mxu0 0
  %1179 = vmatpush2.bf16.msra.mxu0 0
  %1180 = vmatprep.subr.bf16.mxu0 0
  %1181 = vmatpush2.bf16.msra.mxu0 0
  %1182 = vmatprep.subr.bf16.mxu0 0
  %1183 = vmatpush2.bf16.msra.mxu0 0
  %1184 = vmatprep.subr.bf16.mxu0 0
  %1185 = vmatpush2.bf16.msra.mxu0 0
  %1186 = vmatprep.subr.bf16.mxu0 0
  %1187 = vmatpush2.bf16.msra.mxu0 0
  %1188 = vmatprep.mubr.bf16.mxu0 0
  %1189 = vmatmul.mubr.bf16.gmra.mxu0 %v1151
  %v1190 = vpop.f32.mrf.mxu0
  %v1191 = vadd.f32 0.0, %v1190
  %v1192 = vpop.f32.mrf.mxu0
  %v1193 = vpop.f32.mrf.mxu0
  %v1194 = vpop.f32.mrf.mxu0
  %1195 = vdwg.mxu0
  %1197 = vrot.lane.b32.xlu0 %v1191, 24
  %v1198 = vpop.permute.xlu0 %1197
  %vm1200 = vcmask 258240
  %1201 = vst.msk [vmem:[#allocation2] sm:$0x1f] %vm1200, %v1198
  %v1202 = vshrl.u32 %v731, 16
  %v1204 = vrot.slane %v1202, 2
  %v1205 = vshll.u32 %v731, 16
  %v1207 = vrot.slane %v1205, 3
  %v1208 = vor.u32 %v1204, %v1207
  %1209 = vrot.lane.b32.xlu0 %v1208, 96
  %v1210 = vpop.permute.xlu0 %1209
  %v1212 = vsel %vm735, %v1208, 0
  %v1215 = vsel %vm735, %v1210, 0
  %1217 = vmatprep.subr.bf16.mxu0 0
  %1218 = vmatpush1.bf16.xpose.msra.mxu0 0
  %1219 = vmatprep.subr.bf16.mxu0 0
  %1220 = vmatpush1.bf16.xpose.msra.mxu0 0
  %1221 = vmatprep.subr.bf16.mxu0 0
  %1222 = vmatpush1.bf16.xpose.msra.mxu0 0
  %1223 = vmatprep.subr.bf16.mxu0 0
  %1224 = vmatpush1.bf16.xpose.msra.mxu0 0
  %1225 = vmatprep.subr.bf16.mxu0 0
  %1226 = vmatpush1.bf16.xpose.msra.mxu0 0
  %1227 = vmatprep.subr.bf16.mxu0 0
  %1228 = vmatpush1.bf16.xpose.msra.mxu0 0
  %1229 = vmatprep.subr.bf16.mxu0 0
  %1230 = vmatpush1.bf16.xpose.msra.mxu0 0
  %1231 = vmatprep.subr.bf16.mxu0 0
  %1232 = vmatpush1.bf16.xpose.msra.mxu0 %v1215
  %1233 = vmatprep.subr.bf16.mxu0 0
  %1234 = vmatpush2.bf16.xpose.msra.mxu0 0
  %1235 = vmatprep.subr.bf16.mxu0 0
  %1236 = vmatpush2.bf16.xpose.msra.mxu0 0
  %1237 = vmatprep.subr.bf16.mxu0 0
  %1238 = vmatpush2.bf16.xpose.msra.mxu0 0
  %1239 = vmatprep.subr.bf16.mxu0 0
  %1240 = vmatpush2.bf16.xpose.msra.mxu0 0
  %1241 = vmatprep.subr.bf16.mxu0 0
  %1242 = vmatpush2.bf16.xpose.msra.mxu0 0
  %1243 = vmatprep.subr.bf16.mxu0 0
  %1244 = vmatpush2.bf16.xpose.msra.mxu0 0
  %1245 = vmatprep.subr.bf16.mxu0 0
  %1246 = vmatpush2.bf16.xpose.msra.mxu0 0
  %1247 = vmatprep.subr.bf16.mxu0 0
  %1248 = vmatpush2.bf16.xpose.msra.mxu0 0
  %1249 = vmatprep.mubr.bf16.mxu0 0
  %1250 = vmatmul.mubr.bf16.gmra.mxu0 %v1212
  %v1251 = vpop.f32.mrf.mxu0
  %v1252 = vadd.f32 0.0, %v1251
  %v1253 = vpop.f32.mrf.mxu0
  %v1254 = vpop.f32.mrf.mxu0
  %v1255 = vpop.f32.mrf.mxu0
  %1256 = vdwg.mxu0
  %v1257 = vmul.f32 %v1252, 0.35355338
  %v1258 = vsel %vm783, %v1257, -inf
  %1259 = vmax.xlane.f32.xlu0 %v1258
  %v1260 = vpop.xlane.xlu0 %1259
  %v1261 = vsub.f32 %v1257, %v1260
  %v1262 = vmul.f32 %v1261, 1.442695
  %v1263 = vpow.pop %v1262
  %v1264 = vsel %vm783, %v1263, 0.0
  %1265 = vadd.xlane.f32.xlu0 %v1264
  %v1266 = vpop.xlane.xlu0 %1265
  %v1267 = vrcp.pop %v1266
  %v1268 = vmul.f32 %v1263, %v1267
  %v1269 = vpack.c.bf16 %v1268, %v1268
  %1270 = vrot.lane.b32.xlu0 %v1208, 64
  %v1271 = vpop.permute.xlu0 %1270
  %v1273 = vsel %vm798, %v1269, 0
  %v1276 = vand.u32 %v1271, %v805
  %1278 = vmatprep.subr.bf16.mxu0 0
  %1279 = vmatpush1.bf16.msra.mxu0 0
  %1280 = vmatprep.subr.bf16.mxu0 0
  %1281 = vmatpush1.bf16.msra.mxu0 0
  %1282 = vmatprep.subr.bf16.mxu0 0
  %1283 = vmatpush1.bf16.msra.mxu0 0
  %1284 = vmatprep.subr.bf16.mxu0 0
  %1285 = vmatpush1.bf16.msra.mxu0 0
  %1286 = vmatprep.subr.bf16.mxu0 0
  %1287 = vmatpush1.bf16.msra.mxu0 0
  %1288 = vmatprep.subr.bf16.mxu0 0
  %1289 = vmatpush1.bf16.msra.mxu0 0
  %1290 = vmatprep.subr.bf16.mxu0 0
  %1291 = vmatpush1.bf16.msra.mxu0 0
  %1292 = vmatprep.subr.bf16.mxu0 0
  %1293 = vmatpush1.bf16.msra.mxu0 %v1276
  %1294 = vmatprep.subr.bf16.mxu0 0
  %1295 = vmatpush2.bf16.msra.mxu0 0
  %1296 = vmatprep.subr.bf16.mxu0 0
  %1297 = vmatpush2.bf16.msra.mxu0 0
  %1298 = vmatprep.subr.bf16.mxu0 0
  %1299 = vmatpush2.bf16.msra.mxu0 0
  %1300 = vmatprep.subr.bf16.mxu0 0
  %1301 = vmatpush2.bf16.msra.mxu0 0
  %1302 = vmatprep.subr.bf16.mxu0 0
  %1303 = vmatpush2.bf16.msra.mxu0 0
  %1304 = vmatprep.subr.bf16.mxu0 0
  %1305 = vmatpush2.bf16.msra.mxu0 0
  %1306 = vmatprep.subr.bf16.mxu0 0
  %1307 = vmatpush2.bf16.msra.mxu0 0
  %1308 = vmatprep.subr.bf16.mxu0 0
  %1309 = vmatpush2.bf16.msra.mxu0 0
  %1310 = vmatprep.mubr.bf16.mxu0 0
  %1311 = vmatmul.mubr.bf16.gmra.mxu0 %v1273
  %v1312 = vpop.f32.mrf.mxu0
  %v1313 = vadd.f32 0.0, %v1312
  %v1314 = vpop.f32.mrf.mxu0
  %v1315 = vpop.f32.mrf.mxu0
  %v1316 = vpop.f32.mrf.mxu0
  %1317 = vdwg.mxu0
  %1318 = vst.msk [vmem:[#allocation2 + $0x5] sm:$0x1f] %vm849, %v1313
  %1319 = vrot.lane.b32.xlu0 %v1208, 120
  %v1320 = vpop.permute.xlu0 %1319
  %1321 = vrot.lane.b32.xlu0 %v1208, 88
  %v1322 = vpop.permute.xlu0 %1321
  %v1324 = vsel %vm735, %v1320, 0
  %v1327 = vsel %vm735, %v1322, 0
  %1329 = vmatprep.subr.bf16.mxu0 0
  %1330 = vmatpush1.bf16.xpose.msra.mxu0 0
  %1331 = vmatprep.subr.bf16.mxu0 0
  %1332 = vmatpush1.bf16.xpose.msra.mxu0 0
  %1333 = vmatprep.subr.bf16.mxu0 0
  %1334 = vmatpush1.bf16.xpose.msra.mxu0 0
  %1335 = vmatprep.subr.bf16.mxu0 0
  %1336 = vmatpush1.bf16.xpose.msra.mxu0 0
  %1337 = vmatprep.subr.bf16.mxu0 0
  %1338 = vmatpush1.bf16.xpose.msra.mxu0 0
  %1339 = vmatprep.subr.bf16.mxu0 0
  %1340 = vmatpush1.bf16.xpose.msra.mxu0 0
  %1341 = vmatprep.subr.bf16.mxu0 0
  %1342 = vmatpush1.bf16.xpose.msra.mxu0 0
  %1343 = vmatprep.subr.bf16.mxu0 0
  %1344 = vmatpush1.bf16.xpose.msra.mxu0 %v1327
  %1345 = vmatprep.subr.bf16.mxu0 0
  %1346 = vmatpush2.bf16.xpose.msra.mxu0 0
  %1347 = vmatprep.subr.bf16.mxu0 0
  %1348 = vmatpush2.bf16.xpose.msra.mxu0 0
  %1349 = vmatprep.subr.bf16.mxu0 0
  %1350 = vmatpush2.bf16.xpose.msra.mxu0 0
  %1351 = vmatprep.subr.bf16.mxu0 0
  %1352 = vmatpush2.bf16.xpose.msra.mxu0 0
  %1353 = vmatprep.subr.bf16.mxu0 0
  %1354 = vmatpush2.bf16.xpose.msra.mxu0 0
  %1355 = vmatprep.subr.bf16.mxu0 0
  %1356 = vmatpush2.bf16.xpose.msra.mxu0 0
  %1357 = vmatprep.subr.bf16.mxu0 0
  %1358 = vmatpush2.bf16.xpose.msra.mxu0 0
  %1359 = vmatprep.subr.bf16.mxu0 0
  %1360 = vmatpush2.bf16.xpose.msra.mxu0 0
  %1361 = vmatprep.mubr.bf16.mxu0 0
  %1362 = vmatmul.mubr.bf16.gmra.mxu0 %v1324
  %v1363 = vpop.f32.mrf.mxu0
  %v1364 = vadd.f32 0.0, %v1363
  %v1365 = vpop.f32.mrf.mxu0
  %v1366 = vpop.f32.mrf.mxu0
  %v1367 = vpop.f32.mrf.mxu0
  %1368 = vdwg.mxu0
  %v1369 = vmul.f32 %v1364, 0.35355338
  %v1370 = vsel %vm783, %v1369, -inf
  %1371 = vmax.xlane.f32.xlu0 %v1370
  %v1372 = vpop.xlane.xlu0 %1371
  %v1373 = vsub.f32 %v1369, %v1372
  %v1374 = vmul.f32 %v1373, 1.442695
  %v1375 = vpow.pop %v1374
  %v1376 = vsel %vm783, %v1375, 0.0
  %1377 = vadd.xlane.f32.xlu0 %v1376
  %v1378 = vpop.xlane.xlu0 %1377
  %v1379 = vrcp.pop %v1378
  %v1380 = vmul.f32 %v1375, %v1379
  %v1381 = vpack.c.bf16 %v1380, %v1380
  %1382 = vrot.lane.b32.xlu0 %v1208, 56
  %v1383 = vpop.permute.xlu0 %1382
  %v1385 = vsel %vm798, %v1381, 0
  %v1388 = vand.u32 %v1383, %v805
  %1390 = vmatprep.subr.bf16.mxu0 0
  %1391 = vmatpush1.bf16.msra.mxu0 0
  %1392 = vmatprep.subr.bf16.mxu0 0
  %1393 = vmatpush1.bf16.msra.mxu0 0
  %1394 = vmatprep.subr.bf16.mxu0 0
  %1395 = vmatpush1.bf16.msra.mxu0 0
  %1396 = vmatprep.subr.bf16.mxu0 0
  %1397 = vmatpush1.bf16.msra.mxu0 0
  %1398 = vmatprep.subr.bf16.mxu0 0
  %1399 = vmatpush1.bf16.msra.mxu0 0
  %1400 = vmatprep.subr.bf16.mxu0 0
  %1401 = vmatpush1.bf16.msra.mxu0 0
  %1402 = vmatprep.subr.bf16.mxu0 0
  %1403 = vmatpush1.bf16.msra.mxu0 0
  %1404 = vmatprep.subr.bf16.mxu0 0
  %1405 = vmatpush1.bf16.msra.mxu0 %v1388
  %1406 = vmatprep.subr.bf16.mxu0 0
  %1407 = vmatpush2.bf16.msra.mxu0 0
  %1408 = vmatprep.subr.bf16.mxu0 0
  %1409 = vmatpush2.bf16.msra.mxu0 0
  %1410 = vmatprep.subr.bf16.mxu0 0
  %1411 = vmatpush2.bf16.msra.mxu0 0
  %1412 = vmatprep.subr.bf16.mxu0 0
  %1413 = vmatpush2.bf16.msra.mxu0 0
  %1414 = vmatprep.subr.bf16.mxu0 0
  %1415 = vmatpush2.bf16.msra.mxu0 0
  %1416 = vmatprep.subr.bf16.mxu0 0
  %1417 = vmatpush2.bf16.msra.mxu0 0
  %1418 = vmatprep.subr.bf16.mxu0 0
  %1419 = vmatpush2.bf16.msra.mxu0 0
  %1420 = vmatprep.subr.bf16.mxu0 0
  %1421 = vmatpush2.bf16.msra.mxu0 0
  %1422 = vmatprep.mubr.bf16.mxu0 0
  %1423 = vmatmul.mubr.bf16.gmra.mxu0 %v1385
  %v1424 = vpop.f32.mrf.mxu0
  %v1425 = vadd.f32 0.0, %v1424
  %v1426 = vpop.f32.mrf.mxu0
  %v1427 = vpop.f32.mrf.mxu0
  %v1428 = vpop.f32.mrf.mxu0
  %1429 = vdwg.mxu0
  %1431 = vrot.lane.b32.xlu0 %v1425, 8
  %v1432 = vpop.permute.xlu0 %1431
  %1434 = vst.msk [vmem:[#allocation2 + $0x5] sm:$0x1f] %vm966, %v1432
  %1435 = vrot.lane.b32.xlu0 %v1208, 112
  %v1436 = vpop.permute.xlu0 %1435
  %1437 = vrot.lane.b32.xlu0 %v1208, 80
  %v1438 = vpop.permute.xlu0 %1437
  %v1440 = vsel %vm735, %v1436, 0
  %v1443 = vsel %vm735, %v1438, 0
  %1445 = vmatprep.subr.bf16.mxu0 0
  %1446 = vmatpush1.bf16.xpose.msra.mxu0 0
  %1447 = vmatprep.subr.bf16.mxu0 0
  %1448 = vmatpush1.bf16.xpose.msra.mxu0 0
  %1449 = vmatprep.subr.bf16.mxu0 0
  %1450 = vmatpush1.bf16.xpose.msra.mxu0 0
  %1451 = vmatprep.subr.bf16.mxu0 0
  %1452 = vmatpush1.bf16.xpose.msra.mxu0 0
  %1453 = vmatprep.subr.bf16.mxu0 0
  %1454 = vmatpush1.bf16.xpose.msra.mxu0 0
  %1455 = vmatprep.subr.bf16.mxu0 0
  %1456 = vmatpush1.bf16.xpose.msra.mxu0 0
  %1457 = vmatprep.subr.bf16.mxu0 0
  %1458 = vmatpush1.bf16.xpose.msra.mxu0 0
  %1459 = vmatprep.subr.bf16.mxu0 0
  %1460 = vmatpush1.bf16.xpose.msra.mxu0 %v1443
  %1461 = vmatprep.subr.bf16.mxu0 0
  %1462 = vmatpush2.bf16.xpose.msra.mxu0 0
  %1463 = vmatprep.subr.bf16.mxu0 0
  %1464 = vmatpush2.bf16.xpose.msra.mxu0 0
  %1465 = vmatprep.subr.bf16.mxu0 0
  %1466 = vmatpush2.bf16.xpose.msra.mxu0 0
  %1467 = vmatprep.subr.bf16.mxu0 0
  %1468 = vmatpush2.bf16.xpose.msra.mxu0 0
  %1469 = vmatprep.subr.bf16.mxu0 0
  %1470 = vmatpush2.bf16.xpose.msra.mxu0 0
  %1471 = vmatprep.subr.bf16.mxu0 0
  %1472 = vmatpush2.bf16.xpose.msra.mxu0 0
  %1473 = vmatprep.subr.bf16.mxu0 0
  %1474 = vmatpush2.bf16.xpose.msra.mxu0 0
  %1475 = vmatprep.subr.bf16.mxu0 0
  %1476 = vmatpush2.bf16.xpose.msra.mxu0 0
  %1477 = vmatprep.mubr.bf16.mxu0 0
  %1478 = vmatmul.mubr.bf16.gmra.mxu0 %v1440
  %v1479 = vpop.f32.mrf.mxu0
  %v1480 = vadd.f32 0.0, %v1479
  %v1481 = vpop.f32.mrf.mxu0
  %v1482 = vpop.f32.mrf.mxu0
  %v1483 = vpop.f32.mrf.mxu0
  %1484 = vdwg.mxu0
  %v1485 = vmul.f32 %v1480, 0.35355338
  %v1486 = vsel %vm783, %v1485, -inf
  %1487 = vmax.xlane.f32.xlu0 %v1486
  %v1488 = vpop.xlane.xlu0 %1487
  %v1489 = vsub.f32 %v1485, %v1488
  %v1490 = vmul.f32 %v1489, 1.442695
  %v1491 = vpow.pop %v1490
  %v1492 = vsel %vm783, %v1491, 0.0
  %1493 = vadd.xlane.f32.xlu0 %v1492
  %v1494 = vpop.xlane.xlu0 %1493
  %v1495 = vrcp.pop %v1494
  %v1496 = vmul.f32 %v1491, %v1495
  %v1497 = vpack.c.bf16 %v1496, %v1496
  %1498 = vrot.lane.b32.xlu0 %v1208, 48
  %v1499 = vpop.permute.xlu0 %1498
  %v1501 = vsel %vm798, %v1497, 0
  %v1504 = vand.u32 %v1499, %v805
  %1506 = vmatprep.subr.bf16.mxu0 0
  %1507 = vmatpush1.bf16.msra.mxu0 0
  %1508 = vmatprep.subr.bf16.mxu0 0
  %1509 = vmatpush1.bf16.msra.mxu0 0
  %1510 = vmatprep.subr.bf16.mxu0 0
  %1511 = vmatpush1.bf16.msra.mxu0 0
  %1512 = vmatprep.subr.bf16.mxu0 0
  %1513 = vmatpush1.bf16.msra.mxu0 0
  %1514 = vmatprep.subr.bf16.mxu0 0
  %1515 = vmatpush1.bf16.msra.mxu0 0
  %1516 = vmatprep.subr.bf16.mxu0 0
  %1517 = vmatpush1.bf16.msra.mxu0 0
  %1518 = vmatprep.subr.bf16.mxu0 0
  %1519 = vmatpush1.bf16.msra.mxu0 0
  %1520 = vmatprep.subr.bf16.mxu0 0
  %1521 = vmatpush1.bf16.msra.mxu0 %v1504
  %1522 = vmatprep.subr.bf16.mxu0 0
  %1523 = vmatpush2.bf16.msra.mxu0 0
  %1524 = vmatprep.subr.bf16.mxu0 0
  %1525 = vmatpush2.bf16.msra.mxu0 0
  %1526 = vmatprep.subr.bf16.mxu0 0
  %1527 = vmatpush2.bf16.msra.mxu0 0
  %1528 = vmatprep.subr.bf16.mxu0 0
  %1529 = vmatpush2.bf16.msra.mxu0 0
  %1530 = vmatprep.subr.bf16.mxu0 0
  %1531 = vmatpush2.bf16.msra.mxu0 0
  %1532 = vmatprep.subr.bf16.mxu0 0
  %1533 = vmatpush2.bf16.msra.mxu0 0
  %1534 = vmatprep.subr.bf16.mxu0 0
  %1535 = vmatpush2.bf16.msra.mxu0 0
  %1536 = vmatprep.subr.bf16.mxu0 0
  %1537 = vmatpush2.bf16.msra.mxu0 0
  %1538 = vmatprep.mubr.bf16.mxu0 0
  %1539 = vmatmul.mubr.bf16.gmra.mxu0 %v1501
  %v1540 = vpop.f32.mrf.mxu0
  %v1541 = vadd.f32 0.0, %v1540
  %v1542 = vpop.f32.mrf.mxu0
  %v1543 = vpop.f32.mrf.mxu0
  %v1544 = vpop.f32.mrf.mxu0
  %1545 = vdwg.mxu0
  %1547 = vrot.lane.b32.xlu0 %v1541, 16
  %v1548 = vpop.permute.xlu0 %1547
  %1550 = vst.msk [vmem:[#allocation2 + $0x5] sm:$0x1f] %vm1083, %v1548
  %1551 = vrot.lane.b32.xlu0 %v1208, 104
  %v1552 = vpop.permute.xlu0 %1551
  %1553 = vrot.lane.b32.xlu0 %v1208, 72
  %v1554 = vpop.permute.xlu0 %1553
  %v1556 = vsel %vm735, %v1552, 0
  %v1559 = vsel %vm735, %v1554, 0
  %1561 = vmatprep.subr.bf16.mxu0 0
  %1562 = vmatpush1.bf16.xpose.msra.mxu0 0
  %1563 = vmatprep.subr.bf16.mxu0 0
  %1564 = vmatpush1.bf16.xpose.msra.mxu0 0
  %1565 = vmatprep.subr.bf16.mxu0 0
  %1566 = vmatpush1.bf16.xpose.msra.mxu0 0
  %1567 = vmatprep.subr.bf16.mxu0 0
  %1568 = vmatpush1.bf16.xpose.msra.mxu0 0
  %1569 = vmatprep.subr.bf16.mxu0 0
  %1570 = vmatpush1.bf16.xpose.msra.mxu0 0
  %1571 = vmatprep.subr.bf16.mxu0 0
  %1572 = vmatpush1.bf16.xpose.msra.mxu0 0
  %1573 = vmatprep.subr.bf16.mxu0 0
  %1574 = vmatpush1.bf16.xpose.msra.mxu0 0
  %1575 = vmatprep.subr.bf16.mxu0 0
  %1576 = vmatpush1.bf16.xpose.msra.mxu0 %v1559
  %1577 = vmatprep.subr.bf16.mxu0 0
  %1578 = vmatpush2.bf16.xpose.msra.mxu0 0
  %1579 = vmatprep.subr.bf16.mxu0 0
  %1580 = vmatpush2.bf16.xpose.msra.mxu0 0
  %1581 = vmatprep.subr.bf16.mxu0 0
  %1582 = vmatpush2.bf16.xpose.msra.mxu0 0
  %1583 = vmatprep.subr.bf16.mxu0 0
  %1584 = vmatpush2.bf16.xpose.msra.mxu0 0
  %1585 = vmatprep.subr.bf16.mxu0 0
  %1586 = vmatpush2.bf16.xpose.msra.mxu0 0
  %1587 = vmatprep.subr.bf16.mxu0 0
  %1588 = vmatpush2.bf16.xpose.msra.mxu0 0
  %1589 = vmatprep.subr.bf16.mxu0 0
  %1590 = vmatpush2.bf16.xpose.msra.mxu0 0
  %1591 = vmatprep.subr.bf16.mxu0 0
  %1592 = vmatpush2.bf16.xpose.msra.mxu0 0
  %1593 = vmatprep.mubr.bf16.mxu0 0
  %1594 = vmatmul.mubr.bf16.gmra.mxu0 %v1556
  %v1595 = vpop.f32.mrf.mxu0
  %v1596 = vadd.f32 0.0, %v1595
  %v1597 = vpop.f32.mrf.mxu0
  %v1598 = vpop.f32.mrf.mxu0
  %v1599 = vpop.f32.mrf.mxu0
  %1600 = vdwg.mxu0
  %v1601 = vmul.f32 %v1596, 0.35355338
  %v1602 = vsel %vm783, %v1601, -inf
  %1603 = vmax.xlane.f32.xlu0 %v1602
  %v1604 = vpop.xlane.xlu0 %1603
  %v1605 = vsub.f32 %v1601, %v1604
  %v1606 = vmul.f32 %v1605, 1.442695
  %v1607 = vpow.pop %v1606
  %v1608 = vsel %vm783, %v1607, 0.0
  %1609 = vadd.xlane.f32.xlu0 %v1608
  %v1610 = vpop.xlane.xlu0 %1609
  %v1611 = vrcp.pop %v1610
  %v1612 = vmul.f32 %v1607, %v1611
  %v1613 = vpack.c.bf16 %v1612, %v1612
  %1614 = vrot.lane.b32.xlu0 %v1208, 40
  %v1615 = vpop.permute.xlu0 %1614
  %v1617 = vsel %vm798, %v1613, 0
  %v1620 = vand.u32 %v1615, %v805
  %1622 = vmatprep.subr.bf16.mxu0 0
  %1623 = vmatpush1.bf16.msra.mxu0 0
  %1624 = vmatprep.subr.bf16.mxu0 0
  %1625 = vmatpush1.bf16.msra.mxu0 0
  %1626 = vmatprep.subr.bf16.mxu0 0
  %1627 = vmatpush1.bf16.msra.mxu0 0
  %1628 = vmatprep.subr.bf16.mxu0 0
  %1629 = vmatpush1.bf16.msra.mxu0 0
  %1630 = vmatprep.subr.bf16.mxu0 0
  %1631 = vmatpush1.bf16.msra.mxu0 0
  %1632 = vmatprep.subr.bf16.mxu0 0
  %1633 = vmatpush1.bf16.msra.mxu0 0
  %1634 = vmatprep.subr.bf16.mxu0 0
  %1635 = vmatpush1.bf16.msra.mxu0 0
  %1636 = vmatprep.subr.bf16.mxu0 0
  %1637 = vmatpush1.bf16.msra.mxu0 %v1620
  %1638 = vmatprep.subr.bf16.mxu0 0
  %1639 = vmatpush2.bf16.msra.mxu0 0
  %1640 = vmatprep.subr.bf16.mxu0 0
  %1641 = vmatpush2.bf16.msra.mxu0 0
  %1642 = vmatprep.subr.bf16.mxu0 0
  %1643 = vmatpush2.bf16.msra.mxu0 0
  %1644 = vmatprep.subr.bf16.mxu0 0
  %1645 = vmatpush2.bf16.msra.mxu0 0
  %1646 = vmatprep.subr.bf16.mxu0 0
  %1647 = vmatpush2.bf16.msra.mxu0 0
  %1648 = vmatprep.subr.bf16.mxu0 0
  %1649 = vmatpush2.bf16.msra.mxu0 0
  %1650 = vmatprep.subr.bf16.mxu0 0
  %1651 = vmatpush2.bf16.msra.mxu0 0
  %1652 = vmatprep.subr.bf16.mxu0 0
  %1653 = vmatpush2.bf16.msra.mxu0 0
  %1654 = vmatprep.mubr.bf16.mxu0 0
  %1655 = vmatmul.mubr.bf16.gmra.mxu0 %v1617
  %v1656 = vpop.f32.mrf.mxu0
  %v1657 = vadd.f32 0.0, %v1656
  %v1658 = vpop.f32.mrf.mxu0
  %v1659 = vpop.f32.mrf.mxu0
  %v1660 = vpop.f32.mrf.mxu0
  %1661 = vdwg.mxu0
  %1663 = vrot.lane.b32.xlu0 %v1657, 24
  %v1664 = vpop.permute.xlu0 %1663
  %1666 = vst.msk [vmem:[#allocation2 + $0x5] sm:$0x1f] %vm1200, %v1664
  %v1667 = vld [vmem:[#allocation2] sm:$0xff]
  %v1668 = vld [vmem:[#allocation2 + $0x8] sm:$0x3]
  %v1669 = vpack.c.bf16 %v1668, %v1667
  %s1670 = smul.addr %s661, 4
  %s1671 = scalar_lea.vmem %s5, %s1670
  %v1672 = vld [vmem:[%s1671] sm:$0xf]
  %v1673 = vld [vmem:[%s1671 + $0x4] sm:$0xf]
  %v1674 = vld [vmem:[%s1671 + $0x8] sm:$0xf]
  %v1675 = vld [vmem:[%s1671 + $0xc] sm:$0xf]
  %v1676 = vld [vmem:[%s6] sm:$0x1]
  %v1678 = vlaneseq
  %v1679 = vshrl.u32 %v1678, 7
  %v1680 = vsub.s32 0, %v1679
  %v1681 = vrot.slane %v1676, %v1680
  %v1687 = vunpack.c.l.b16 %v1672
  %v1688 = vunpack.c.l.b16 %v1673
  %v1689 = vunpack.c.l.b16 %v1674
  %v1690 = vunpack.c.l.b16 %v1675
  %v1691 = vpack.c.b16 %v1688, %v1687
  %v1692 = vpack.c.b16 %v1690, %v1689
  %v1696 = vsel %vm207, %v1669, 0
  %1698 = vmatprep.subr.bf16.mxu0 0
  %1699 = vmatpush1.bf16.msra.mxu0 0
  %1700 = vmatprep.subr.bf16.mxu0 0
  %1701 = vmatpush1.bf16.msra.mxu0 0
  %1702 = vmatprep.subr.bf16.mxu0 0
  %1703 = vmatpush1.bf16.msra.mxu0 0
  %1704 = vmatprep.subr.bf16.mxu0 0
  %1705 = vmatpush1.bf16.msra.mxu0 0
  %1706 = vmatprep.subr.bf16.mxu0 0
  %1707 = vmatpush1.bf16.msra.mxu0 0
  %1708 = vmatprep.subr.bf16.mxu0 0
  %1709 = vmatpush1.bf16.msra.mxu0 0
  %1710 = vmatprep.subr.bf16.mxu0 0
  %1711 = vmatpush1.bf16.msra.mxu0 %v1692
  %1712 = vmatprep.subr.bf16.mxu0 0
  %1713 = vmatpush1.bf16.msra.mxu0 %v1691
  %1714 = vmatprep.subr.bf16.mxu0 0
  %1715 = vmatpush2.bf16.msra.mxu0 0
  %1716 = vmatprep.subr.bf16.mxu0 0
  %1717 = vmatpush2.bf16.msra.mxu0 0
  %1718 = vmatprep.subr.bf16.mxu0 0
  %1719 = vmatpush2.bf16.msra.mxu0 0
  %1720 = vmatprep.subr.bf16.mxu0 0
  %1721 = vmatpush2.bf16.msra.mxu0 0
  %1722 = vmatprep.subr.bf16.mxu0 0
  %1723 = vmatpush2.bf16.msra.mxu0 0
  %1724 = vmatprep.subr.bf16.mxu0 0
  %1725 = vmatpush2.bf16.msra.mxu0 0
  %1726 = vmatprep.subr.bf16.mxu0 0
  %1727 = vmatpush2.bf16.msra.mxu0 0
  %1728 = vmatprep.subr.bf16.mxu0 0
  %1729 = vmatpush2.bf16.msra.mxu0 0
  %1730 = vmatprep.mubr.bf16.mxu0 0
  %1731 = vmatmul.mubr.bf16.gmra.mxu0 %v1696
  %v1732 = vpop.f32.mrf.mxu0
  %v1733 = vadd.f32 %v1681, %v1732
  %v1734 = vpop.f32.mrf.mxu0
  %v1735 = vpop.f32.mrf.mxu0
  %v1736 = vadd.f32 %v1681, %v1735
  %v1737 = vpop.f32.mrf.mxu0
  %1738 = vdwg.mxu0
  %v1741 = vcombine.high %v1733, %v1733
  %v1743 = vunpack.c.l.s4 1966171168
  %v1744 = vunpack.c.0.s8 %v1743
  %v1745 = vlaneseq
  %v1746 = vshrl.u32 %v1745, 7
  %v1747 = vsub.s32 %v1744, %v1746
  %v1748 = vrot.slane %v1733, %v1747
  %v1750 = vunpack.c.l.s4 1966171168
  %v1751 = vunpack.c.0.s8 %v1750
  %v1752 = vlaneseq
  %v1753 = vshrl.u32 %v1752, 7
  %v1754 = vsub.s32 %v1751, %v1753
  %v1755 = vrot.slane %v1741, %v1754
  %v1756 = vcombine.high %v1748, %v1748
  %v1757 = vcombine.high %v1755, %v1755
  %v1759 = vunpack.c.l.s4 1966171168
  %v1760 = vunpack.c.0.s8 %v1759
  %v1761 = vlaneseq
  %v1762 = vshrl.u32 %v1761, 7
  %v1763 = vsub.s32 %v1760, %v1762
  %v1764 = vrot.slane %v1748, %v1763
  %v1766 = vunpack.c.l.s4 1966171168
  %v1767 = vunpack.c.0.s8 %v1766
  %v1768 = vlaneseq
  %v1769 = vshrl.u32 %v1768, 7
  %v1770 = vsub.s32 %v1767, %v1769
  %v1771 = vrot.slane %v1755, %v1770
  %v1773 = vunpack.c.l.s4 1966171168
  %v1774 = vunpack.c.0.s8 %v1773
  %v1775 = vlaneseq
  %v1776 = vshrl.u32 %v1775, 7
  %v1777 = vsub.s32 %v1774, %v1776
  %v1778 = vrot.slane %v1756, %v1777
  %v1780 = vunpack.c.l.s4 1966171168
  %v1781 = vunpack.c.0.s8 %v1780
  %v1782 = vlaneseq
  %v1783 = vshrl.u32 %v1782, 7
  %v1784 = vsub.s32 %v1781, %v1783
  %v1785 = vrot.slane %v1757, %v1784
  %v1786 = vcombine.high %v1764, %v1764
  %v1787 = vcombine.high %v1771, %v1771
  %v1788 = vcombine.high %v1778, %v1778
  %v1789 = vcombine.high %v1785, %v1785
  %v1791 = vunpack.c.l.s4 1966171168
  %v1792 = vunpack.c.0.s8 %v1791
  %v1793 = vlaneseq
  %v1794 = vshrl.u32 %v1793, 7
  %v1795 = vsub.s32 %v1792, %v1794
  %v1796 = vrot.slane %v1736, %v1795
  %v1797 = vcombine.high %v1796, %v1796
  %v1799 = vunpack.c.l.s4 1966171168
  %v1800 = vunpack.c.0.s8 %v1799
  %v1801 = vlaneseq
  %v1802 = vshrl.u32 %v1801, 7
  %v1803 = vsub.s32 %v1800, %v1802
  %v1804 = vrot.slane %v1796, %v1803
  %v1806 = vunpack.c.l.s4 1966171168
  %v1807 = vunpack.c.0.s8 %v1806
  %v1808 = vlaneseq
  %v1809 = vshrl.u32 %v1808, 7
  %v1810 = vsub.s32 %v1807, %v1809
  %v1811 = vrot.slane %v1797, %v1810
  %v1822 = vadd.f32 %v73, %v1764
  %v1823 = vadd.f32 %v87, %v1778
  %v1824 = vadd.f32 %v88, %v1786
  %v1825 = vadd.f32 %v89, %v1788
  %v1826 = vadd.f32 %v80, %v1771
  %v1827 = vadd.f32 %v112, %v1785
  %v1828 = vadd.f32 %v126, %v1787
  %v1829 = vadd.f32 %v127, %v1789
  %v1830 = vadd.f32 %v128, %v1804
  %v1831 = vadd.f32 %v119, %v1811
  %v1832 = vld [vmem:[%s7] sm:$0x1]
  %v1833 = vld [vmem:[%s8] sm:$0x1]
  %v1844 = vcombine.low %v1822, %v1823
  %v1845 = vcombine.low %v1824, %v1825
  %v1846 = vcombine.low %v1826, %v1827
  %v1847 = vcombine.low %v1828, %v1829
  %v1849 = vunpack.c.l.s4 1966171168
  %v1850 = vunpack.c.0.s8 %v1849
  %v1851 = vlaneseq
  %v1852 = vshrl.u32 %v1851, 7
  %v1853 = vsub.s32 %v1850, %v1852
  %v1854 = vrot.slane %v1844, %v1853
  %v1856 = vunpack.c.l.s4 1966171168
  %v1857 = vunpack.c.0.s8 %v1856
  %v1858 = vlaneseq
  %v1859 = vshrl.u32 %v1858, 7
  %v1860 = vsub.s32 %v1857, %v1859
  %v1861 = vrot.slane %v1845, %v1860
  %v1863 = vunpack.c.l.s4 1966171168
  %v1864 = vunpack.c.0.s8 %v1863
  %v1865 = vlaneseq
  %v1866 = vshrl.u32 %v1865, 7
  %v1867 = vsub.s32 %v1864, %v1866
  %v1868 = vrot.slane %v1846, %v1867
  %v1870 = vunpack.c.l.s4 1966171168
  %v1871 = vunpack.c.0.s8 %v1870
  %v1872 = vlaneseq
  %v1873 = vshrl.u32 %v1872, 7
  %v1874 = vsub.s32 %v1871, %v1873
  %v1875 = vrot.slane %v1847, %v1874
  %v1876 = vcombine.low %v1854, %v1861
  %v1877 = vcombine.low %v1868, %v1875
  %v1879 = vunpack.c.l.s4 1966171168
  %v1880 = vunpack.c.0.s8 %v1879
  %v1881 = vlaneseq
  %v1882 = vshrl.u32 %v1881, 7
  %v1883 = vsub.s32 %v1880, %v1882
  %v1884 = vrot.slane %v1876, %v1883
  %v1886 = vunpack.c.l.s4 1966171168
  %v1887 = vunpack.c.0.s8 %v1886
  %v1888 = vlaneseq
  %v1889 = vshrl.u32 %v1888, 7
  %v1890 = vsub.s32 %v1887, %v1889
  %v1891 = vrot.slane %v1877, %v1890
  %v1892 = vcombine.low %v1884, %v1891
  %v1893 = vcombine.low %v1830, %v1831
  %v1895 = vunpack.c.l.s4 1966171168
  %v1896 = vunpack.c.0.s8 %v1895
  %v1897 = vlaneseq
  %v1898 = vshrl.u32 %v1897, 7
  %v1899 = vsub.s32 %v1896, %v1898
  %v1900 = vrot.slane %v1893, %v1899
  %v1902 = vunpack.c.l.s4 1966171168
  %v1903 = vunpack.c.0.s8 %v1902
  %v1904 = vlaneseq
  %v1905 = vshrl.u32 %v1904, 7
  %v1906 = vsub.s32 %v1903, %v1905
  %v1907 = vrot.slane %v1900, %v1906
  %v1910 = vsel %vm207, %v1892, 0.0
  %1911 = vadd.xlane.f32.xlu0 %v1910
  %v1912 = vpop.xlane.xlu0 %1911
  %v1913 = vsel %vm211, %v1907, 0.0
  %1914 = vadd.xlane.f32.xlu0 %v1913
  %v1915 = vpop.xlane.xlu0 %1914
  %v1916 = vmul.f32 %v1912, %v215
  %v1917 = vmul.f32 %v1915, %v215
  %v1920 = vlaneseq
  %v1921 = vshrl.u32 %v1920, 7
  %v1922 = vsub.s32 0, %v1921
  %v1923 = vrot.slane %v1916, %v1922
  %v1924 = vlaneseq
  %v1925 = vshrl.u32 %v1924, 7
  %v1926 = vsub.s32 1, %v1925
  %v1927 = vrot.slane %v1916, %v1926
  %v1928 = vlaneseq
  %v1929 = vshrl.u32 %v1928, 7
  %v1930 = vsub.s32 2, %v1929
  %v1931 = vrot.slane %v1916, %v1930
  %v1932 = vlaneseq
  %v1933 = vshrl.u32 %v1932, 7
  %v1934 = vsub.s32 3, %v1933
  %v1935 = vrot.slane %v1916, %v1934
  %v1936 = vlaneseq
  %v1937 = vshrl.u32 %v1936, 7
  %v1938 = vsub.s32 4, %v1937
  %v1939 = vrot.slane %v1916, %v1938
  %v1940 = vlaneseq
  %v1941 = vshrl.u32 %v1940, 7
  %v1942 = vsub.s32 5, %v1941
  %v1943 = vrot.slane %v1916, %v1942
  %v1944 = vlaneseq
  %v1945 = vshrl.u32 %v1944, 7
  %v1946 = vsub.s32 6, %v1945
  %v1947 = vrot.slane %v1916, %v1946
  %v1948 = vlaneseq
  %v1949 = vshrl.u32 %v1948, 7
  %v1950 = vsub.s32 7, %v1949
  %v1951 = vrot.slane %v1916, %v1950
  %v1952 = vlaneseq
  %v1953 = vshrl.u32 %v1952, 7
  %v1954 = vsub.s32 0, %v1953
  %v1955 = vrot.slane %v1917, %v1954
  %v1956 = vlaneseq
  %v1957 = vshrl.u32 %v1956, 7
  %v1958 = vsub.s32 1, %v1957
  %v1959 = vrot.slane %v1917, %v1958
  %v1970 = vsub.f32 %v1822, %v1923
  %v1971 = vsub.f32 %v1823, %v1927
  %v1972 = vsub.f32 %v1824, %v1931
  %v1973 = vsub.f32 %v1825, %v1935
  %v1974 = vsub.f32 %v1826, %v1939
  %v1975 = vsub.f32 %v1827, %v1943
  %v1976 = vsub.f32 %v1828, %v1947
  %v1977 = vsub.f32 %v1829, %v1951
  %v1978 = vsub.f32 %v1830, %v1955
  %v1979 = vsub.f32 %v1831, %v1959
  %v1980 = vmul.f32 %v1970, %v1970
  %v1981 = vmul.f32 %v1971, %v1971
  %v1982 = vmul.f32 %v1972, %v1972
  %v1983 = vmul.f32 %v1973, %v1973
  %v1984 = vmul.f32 %v1974, %v1974
  %v1985 = vmul.f32 %v1975, %v1975
  %v1986 = vmul.f32 %v1976, %v1976
  %v1987 = vmul.f32 %v1977, %v1977
  %v1988 = vmul.f32 %v1978, %v1978
  %v1989 = vmul.f32 %v1979, %v1979
  %v2000 = vcombine.low %v1980, %v1981
  %v2001 = vcombine.low %v1982, %v1983
  %v2002 = vcombine.low %v1984, %v1985
  %v2003 = vcombine.low %v1986, %v1987
  %v2005 = vunpack.c.l.s4 1966171168
  %v2006 = vunpack.c.0.s8 %v2005
  %v2007 = vlaneseq
  %v2008 = vshrl.u32 %v2007, 7
  %v2009 = vsub.s32 %v2006, %v2008
  %v2010 = vrot.slane %v2000, %v2009
  %v2012 = vunpack.c.l.s4 1966171168
  %v2013 = vunpack.c.0.s8 %v2012
  %v2014 = vlaneseq
  %v2015 = vshrl.u32 %v2014, 7
  %v2016 = vsub.s32 %v2013, %v2015
  %v2017 = vrot.slane %v2001, %v2016
  %v2019 = vunpack.c.l.s4 1966171168
  %v2020 = vunpack.c.0.s8 %v2019
  %v2021 = vlaneseq
  %v2022 = vshrl.u32 %v2021, 7
  %v2023 = vsub.s32 %v2020, %v2022
  %v2024 = vrot.slane %v2002, %v2023
  %v2026 = vunpack.c.l.s4 1966171168
  %v2027 = vunpack.c.0.s8 %v2026
  %v2028 = vlaneseq
  %v2029 = vshrl.u32 %v2028, 7
  %v2030 = vsub.s32 %v2027, %v2029
  %v2031 = vrot.slane %v2003, %v2030
  %v2032 = vcombine.low %v2010, %v2017
  %v2033 = vcombine.low %v2024, %v2031
  %v2035 = vunpack.c.l.s4 1966171168
  %v2036 = vunpack.c.0.s8 %v2035
  %v2037 = vlaneseq
  %v2038 = vshrl.u32 %v2037, 7
  %v2039 = vsub.s32 %v2036, %v2038
  %v2040 = vrot.slane %v2032, %v2039
  %v2042 = vunpack.c.l.s4 1966171168
  %v2043 = vunpack.c.0.s8 %v2042
  %v2044 = vlaneseq
  %v2045 = vshrl.u32 %v2044, 7
  %v2046 = vsub.s32 %v2043, %v2045
  %v2047 = vrot.slane %v2033, %v2046
  %v2048 = vcombine.low %v2040, %v2047
  %v2049 = vcombine.low %v1988, %v1989
  %v2051 = vunpack.c.l.s4 1966171168
  %v2052 = vunpack.c.0.s8 %v2051
  %v2053 = vlaneseq
  %v2054 = vshrl.u32 %v2053, 7
  %v2055 = vsub.s32 %v2052, %v2054
  %v2056 = vrot.slane %v2049, %v2055
  %v2058 = vunpack.c.l.s4 1966171168
  %v2059 = vunpack.c.0.s8 %v2058
  %v2060 = vlaneseq
  %v2061 = vshrl.u32 %v2060, 7
  %v2062 = vsub.s32 %v2059, %v2061
  %v2063 = vrot.slane %v2056, %v2062
  %v2066 = vsel %vm207, %v2048, 0.0
  %2067 = vadd.xlane.f32.xlu0 %v2066
  %v2068 = vpop.xlane.xlu0 %2067
  %v2069 = vsel %vm211, %v2063, 0.0
  %2070 = vadd.xlane.f32.xlu0 %v2069
  %v2071 = vpop.xlane.xlu0 %2070
  %v2072 = vmul.f32 %v2068, %v215
  %v2073 = vmul.f32 %v2071, %v215
  %v2074 = vadd.f32 %v2072, 1e-12
  %v2075 = vadd.f32 %v2073, 1e-12
  %v2076 = vrsqrt.pop %v2074
  %v2077 = vrsqrt.pop %v2075
  %v2080 = vlaneseq
  %v2081 = vshrl.u32 %v2080, 7
  %v2082 = vsub.s32 0, %v2081
  %v2083 = vrot.slane %v2076, %v2082
  %v2084 = vlaneseq
  %v2085 = vshrl.u32 %v2084, 7
  %v2086 = vsub.s32 1, %v2085
  %v2087 = vrot.slane %v2076, %v2086
  %v2088 = vlaneseq
  %v2089 = vshrl.u32 %v2088, 7
  %v2090 = vsub.s32 2, %v2089
  %v2091 = vrot.slane %v2076, %v2090
  %v2092 = vlaneseq
  %v2093 = vshrl.u32 %v2092, 7
  %v2094 = vsub.s32 3, %v2093
  %v2095 = vrot.slane %v2076, %v2094
  %v2096 = vlaneseq
  %v2097 = vshrl.u32 %v2096, 7
  %v2098 = vsub.s32 4, %v2097
  %v2099 = vrot.slane %v2076, %v2098
  %v2100 = vlaneseq
  %v2101 = vshrl.u32 %v2100, 7
  %v2102 = vsub.s32 5, %v2101
  %v2103 = vrot.slane %v2076, %v2102
  %v2104 = vlaneseq
  %v2105 = vshrl.u32 %v2104, 7
  %v2106 = vsub.s32 6, %v2105
  %v2107 = vrot.slane %v2076, %v2106
  %v2108 = vlaneseq
  %v2109 = vshrl.u32 %v2108, 7
  %v2110 = vsub.s32 7, %v2109
  %v2111 = vrot.slane %v2076, %v2110
  %v2112 = vlaneseq
  %v2113 = vshrl.u32 %v2112, 7
  %v2114 = vsub.s32 0, %v2113
  %v2115 = vrot.slane %v2077, %v2114
  %v2116 = vlaneseq
  %v2117 = vshrl.u32 %v2116, 7
  %v2118 = vsub.s32 1, %v2117
  %v2119 = vrot.slane %v2077, %v2118
  %v2130 = vmul.f32 %v1970, %v2083
  %v2131 = vmul.f32 %v1971, %v2087
  %v2132 = vmul.f32 %v1972, %v2091
  %v2133 = vmul.f32 %v1973, %v2095
  %v2134 = vmul.f32 %v1974, %v2099
  %v2135 = vmul.f32 %v1975, %v2103
  %v2136 = vmul.f32 %v1976, %v2107
  %v2137 = vmul.f32 %v1977, %v2111
  %v2138 = vmul.f32 %v1978, %v2115
  %v2139 = vmul.f32 %v1979, %v2119
  %v2141 = vlaneseq
  %v2142 = vshrl.u32 %v2141, 7
  %v2143 = vsub.s32 0, %v2142
  %v2144 = vrot.slane %v1832, %v2143
  %v2145 = vcombine.high %v2144, %v2144
  %v2147 = vunpack.c.l.s4 1966171168
  %v2148 = vunpack.c.0.s8 %v2147
  %v2149 = vlaneseq
  %v2150 = vshrl.u32 %v2149, 7
  %v2151 = vsub.s32 %v2148, %v2150
  %v2152 = vrot.slane %v2144, %v2151
  %v2154 = vunpack.c.l.s4 1966171168
  %v2155 = vunpack.c.0.s8 %v2154
  %v2156 = vlaneseq
  %v2157 = vshrl.u32 %v2156, 7
  %v2158 = vsub.s32 %v2155, %v2157
  %v2159 = vrot.slane %v2145, %v2158
  %v2160 = vcombine.high %v2152, %v2152
  %v2161 = vcombine.high %v2159, %v2159
  %v2163 = vunpack.c.l.s4 1966171168
  %v2164 = vunpack.c.0.s8 %v2163
  %v2165 = vlaneseq
  %v2166 = vshrl.u32 %v2165, 7
  %v2167 = vsub.s32 %v2164, %v2166
  %v2168 = vrot.slane %v2152, %v2167
  %v2170 = vunpack.c.l.s4 1966171168
  %v2171 = vunpack.c.0.s8 %v2170
  %v2172 = vlaneseq
  %v2173 = vshrl.u32 %v2172, 7
  %v2174 = vsub.s32 %v2171, %v2173
  %v2175 = vrot.slane %v2159, %v2174
  %v2177 = vunpack.c.l.s4 1966171168
  %v2178 = vunpack.c.0.s8 %v2177
  %v2179 = vlaneseq
  %v2180 = vshrl.u32 %v2179, 7
  %v2181 = vsub.s32 %v2178, %v2180
  %v2182 = vrot.slane %v2160, %v2181
  %v2184 = vunpack.c.l.s4 1966171168
  %v2185 = vunpack.c.0.s8 %v2184
  %v2186 = vlaneseq
  %v2187 = vshrl.u32 %v2186, 7
  %v2188 = vsub.s32 %v2185, %v2187
  %v2189 = vrot.slane %v2161, %v2188
  %v2190 = vcombine.high %v2168, %v2168
  %v2191 = vcombine.high %v2175, %v2175
  %v2192 = vcombine.high %v2182, %v2182
  %v2193 = vcombine.high %v2189, %v2189
  %v2202 = vmul.f32 %v2130, %v2168
  %v2203 = vmul.f32 %v2131, %v2182
  %v2204 = vmul.f32 %v2132, %v2190
  %v2205 = vmul.f32 %v2133, %v2192
  %v2206 = vmul.f32 %v2134, %v2175
  %v2207 = vmul.f32 %v2135, %v2189
  %v2208 = vmul.f32 %v2136, %v2191
  %v2209 = vmul.f32 %v2137, %v2193
  %v2210 = vmul.f32 %v2138, %v2168
  %v2211 = vmul.f32 %v2139, %v2182
  %v2213 = vlaneseq
  %v2214 = vshrl.u32 %v2213, 7
  %v2215 = vsub.s32 0, %v2214
  %v2216 = vrot.slane %v1833, %v2215
  %v2217 = vcombine.high %v2216, %v2216
  %v2219 = vunpack.c.l.s4 1966171168
  %v2220 = vunpack.c.0.s8 %v2219
  %v2221 = vlaneseq
  %v2222 = vshrl.u32 %v2221, 7
  %v2223 = vsub.s32 %v2220, %v2222
  %v2224 = vrot.slane %v2216, %v2223
  %v2226 = vunpack.c.l.s4 1966171168
  %v2227 = vunpack.c.0.s8 %v2226
  %v2228 = vlaneseq
  %v2229 = vshrl.u32 %v2228, 7
  %v2230 = vsub.s32 %v2227, %v2229
  %v2231 = vrot.slane %v2217, %v2230
  %v2232 = vcombine.high %v2224, %v2224
  %v2233 = vcombine.high %v2231, %v2231
  %v2235 = vunpack.c.l.s4 1966171168
  %v2236 = vunpack.c.0.s8 %v2235
  %v2237 = vlaneseq
  %v2238 = vshrl.u32 %v2237, 7
  %v2239 = vsub.s32 %v2236, %v2238
  %v2240 = vrot.slane %v2224, %v2239
  %v2242 = vunpack.c.l.s4 1966171168
  %v2243 = vunpack.c.0.s8 %v2242
  %v2244 = vlaneseq
  %v2245 = vshrl.u32 %v2244, 7
  %v2246 = vsub.s32 %v2243, %v2245
  %v2247 = vrot.slane %v2231, %v2246
  %v2249 = vunpack.c.l.s4 1966171168
  %v2250 = vunpack.c.0.s8 %v2249
  %v2251 = vlaneseq
  %v2252 = vshrl.u32 %v2251, 7
  %v2253 = vsub.s32 %v2250, %v2252
  %v2254 = vrot.slane %v2232, %v2253
  %v2256 = vunpack.c.l.s4 1966171168
  %v2257 = vunpack.c.0.s8 %v2256
  %v2258 = vlaneseq
  %v2259 = vshrl.u32 %v2258, 7
  %v2260 = vsub.s32 %v2257, %v2259
  %v2261 = vrot.slane %v2233, %v2260
  %v2262 = vcombine.high %v2240, %v2240
  %v2263 = vcombine.high %v2247, %v2247
  %v2264 = vcombine.high %v2254, %v2254
  %v2265 = vcombine.high %v2261, %v2261
  %v2274 = vadd.f32 %v2202, %v2240
  %v2275 = vadd.f32 %v2203, %v2254
  %v2276 = vadd.f32 %v2204, %v2262
  %v2277 = vadd.f32 %v2205, %v2264
  %v2278 = vadd.f32 %v2206, %v2247
  %v2279 = vadd.f32 %v2207, %v2261
  %v2280 = vadd.f32 %v2208, %v2263
  %v2281 = vadd.f32 %v2209, %v2265
  %v2282 = vadd.f32 %v2210, %v2240
  %v2283 = vadd.f32 %v2211, %v2254
  %v2294 = vcombine.low %v2274, %v2275
  %v2295 = vcombine.low %v2276, %v2277
  %v2296 = vcombine.low %v2278, %v2279
  %v2297 = vcombine.low %v2280, %v2281
  %v2299 = vunpack.c.l.s4 1966171168
  %v2300 = vunpack.c.0.s8 %v2299
  %v2301 = vlaneseq
  %v2302 = vshrl.u32 %v2301, 7
  %v2303 = vsub.s32 %v2300, %v2302
  %v2304 = vrot.slane %v2294, %v2303
  %v2306 = vunpack.c.l.s4 1966171168
  %v2307 = vunpack.c.0.s8 %v2306
  %v2308 = vlaneseq
  %v2309 = vshrl.u32 %v2308, 7
  %v2310 = vsub.s32 %v2307, %v2309
  %v2311 = vrot.slane %v2295, %v2310
  %v2313 = vunpack.c.l.s4 1966171168
  %v2314 = vunpack.c.0.s8 %v2313
  %v2315 = vlaneseq
  %v2316 = vshrl.u32 %v2315, 7
  %v2317 = vsub.s32 %v2314, %v2316
  %v2318 = vrot.slane %v2296, %v2317
  %v2320 = vunpack.c.l.s4 1966171168
  %v2321 = vunpack.c.0.s8 %v2320
  %v2322 = vlaneseq
  %v2323 = vshrl.u32 %v2322, 7
  %v2324 = vsub.s32 %v2321, %v2323
  %v2325 = vrot.slane %v2297, %v2324
  %v2326 = vcombine.low %v2304, %v2311
  %v2327 = vcombine.low %v2318, %v2325
  %v2329 = vunpack.c.l.s4 1966171168
  %v2330 = vunpack.c.0.s8 %v2329
  %v2331 = vlaneseq
  %v2332 = vshrl.u32 %v2331, 7
  %v2333 = vsub.s32 %v2330, %v2332
  %v2334 = vrot.slane %v2326, %v2333
  %v2336 = vunpack.c.l.s4 1966171168
  %v2337 = vunpack.c.0.s8 %v2336
  %v2338 = vlaneseq
  %v2339 = vshrl.u32 %v2338, 7
  %v2340 = vsub.s32 %v2337, %v2339
  %v2341 = vrot.slane %v2327, %v2340
  %v2342 = vcombine.low %v2334, %v2341
  %v2343 = vcombine.low %v2282, %v2283
  %v2345 = vunpack.c.l.s4 1966171168
  %v2346 = vunpack.c.0.s8 %v2345
  %v2347 = vlaneseq
  %v2348 = vshrl.u32 %v2347, 7
  %v2349 = vsub.s32 %v2346, %v2348
  %v2350 = vrot.slane %v2343, %v2349
  %v2352 = vunpack.c.l.s4 1966171168
  %v2353 = vunpack.c.0.s8 %v2352
  %v2354 = vlaneseq
  %v2355 = vshrl.u32 %v2354, 7
  %v2356 = vsub.s32 %v2353, %v2355
  %v2357 = vrot.slane %v2350, %v2356
  %v2360 = vpack.c.bf16 %v2357, %v2342
  %s2361 = smul.addr %s661, 4
  %s2362 = scalar_lea.vmem %s9, %s2361
  %v2363 = vld [vmem:[%s2362] sm:$0xf]
  %v2364 = vld [vmem:[%s2362 + $0x4] sm:$0xf]
  %v2365 = vld [vmem:[%s2362 + $0x8] sm:$0xf]
  %v2366 = vld [vmem:[%s2362 + $0xc] sm:$0xf]
  %v2367 = vld [vmem:[%s10] sm:$0x1]
  %v2369 = vlaneseq
  %v2370 = vshrl.u32 %v2369, 7
  %v2371 = vsub.s32 0, %v2370
  %v2372 = vrot.slane %v2367, %v2371
  %v2378 = vunpack.c.l.b16 %v2363
  %v2379 = vunpack.c.l.b16 %v2364
  %v2380 = vunpack.c.l.b16 %v2365
  %v2381 = vunpack.c.l.b16 %v2366
  %v2382 = vpack.c.b16 %v2379, %v2378
  %v2383 = vpack.c.b16 %v2381, %v2380
  %v2387 = vsel %vm207, %v2360, 0
  %2389 = vmatprep.subr.bf16.mxu0 0
  %2390 = vmatpush1.bf16.msra.mxu0 0
  %2391 = vmatprep.subr.bf16.mxu0 0
  %2392 = vmatpush1.bf16.msra.mxu0 0
  %2393 = vmatprep.subr.bf16.mxu0 0
  %2394 = vmatpush1.bf16.msra.mxu0 0
  %2395 = vmatprep.subr.bf16.mxu0 0
  %2396 = vmatpush1.bf16.msra.mxu0 0
  %2397 = vmatprep.subr.bf16.mxu0 0
  %2398 = vmatpush1.bf16.msra.mxu0 0
  %2399 = vmatprep.subr.bf16.mxu0 0
  %2400 = vmatpush1.bf16.msra.mxu0 0
  %2401 = vmatprep.subr.bf16.mxu0 0
  %2402 = vmatpush1.bf16.msra.mxu0 %v2383
  %2403 = vmatprep.subr.bf16.mxu0 0
  %2404 = vmatpush1.bf16.msra.mxu0 %v2382
  %2405 = vmatprep.subr.bf16.mxu0 0
  %2406 = vmatpush2.bf16.msra.mxu0 0
  %2407 = vmatprep.subr.bf16.mxu0 0
  %2408 = vmatpush2.bf16.msra.mxu0 0
  %2409 = vmatprep.subr.bf16.mxu0 0
  %2410 = vmatpush2.bf16.msra.mxu0 0
  %2411 = vmatprep.subr.bf16.mxu0 0
  %2412 = vmatpush2.bf16.msra.mxu0 0
  %2413 = vmatprep.subr.bf16.mxu0 0
  %2414 = vmatpush2.bf16.msra.mxu0 0
  %2415 = vmatprep.subr.bf16.mxu0 0
  %2416 = vmatpush2.bf16.msra.mxu0 0
  %2417 = vmatprep.subr.bf16.mxu0 0
  %2418 = vmatpush2.bf16.msra.mxu0 0
  %2419 = vmatprep.subr.bf16.mxu0 0
  %2420 = vmatpush2.bf16.msra.mxu0 0
  %2421 = vmatprep.mubr.bf16.mxu0 0
  %2422 = vmatmul.mubr.bf16.gmra.mxu0 %v2387
  %v2423 = vpop.f32.mrf.mxu0
  %v2424 = vadd.f32 %v2372, %v2423
  %v2425 = vpop.f32.mrf.mxu0
  %v2426 = vpop.f32.mrf.mxu0
  %v2427 = vadd.f32 %v2372, %v2426
  %v2428 = vpop.f32.mrf.mxu0
  %2429 = vdwg.mxu0
  %v2430 = vmul.f32 %v2424, %v2424
  %v2431 = vmul.f32 %v2427, %v2427
  %v2432 = vmul.f32 %v2424, %v2430
  %v2433 = vmul.f32 %v2427, %v2431
  %v2434 = vmul.f32 %v2432, 0.044715
  %v2435 = vmul.f32 %v2433, 0.044715
  %v2436 = vadd.f32 %v2424, %v2434
  %v2437 = vadd.f32 %v2427, %v2435
  %v2438 = vmul.f32 %v2436, 0.7978846
  %v2439 = vmul.f32 %v2437, 0.7978846
  %v2440 = vtanh.pop %v2438
  %v2441 = vtanh.pop %v2439
  %v2442 = vadd.f32 %v2440, 1.0
  %v2443 = vadd.f32 %v2441, 1.0
  %v2444 = vmul.f32 %v2442, 0.5
  %v2445 = vmul.f32 %v2443, 0.5
  %v2446 = vmul.f32 %v2424, %v2444
  %v2447 = vmul.f32 %v2427, %v2445
  %v2448 = vpack.c.bf16 %v2447, %v2446
  %s2449 = smul.u32 0, 8
  %s2450 = smul.addr %s2449, 4
  %s2451 = scalar_lea.vmem %s11, %s2450
  %v2452 = vld [vmem:[%s2451] sm:$0xf]
  %v2453 = vld [vmem:[%s2451 + $0x4] sm:$0xf]
  %v2454 = vld [vmem:[%s2451 + $0x8] sm:$0xf]
  %v2455 = vld [vmem:[%s2451 + $0xc] sm:$0xf]
  %v2456 = vld [vmem:[%s2451 + $0x10] sm:$0xf]
  %v2457 = vld [vmem:[%s2451 + $0x14] sm:$0xf]
  %v2458 = vld [vmem:[%s2451 + $0x18] sm:$0xf]
  %v2459 = vld [vmem:[%s2451 + $0x1c] sm:$0xf]
  %v2460 = vld [vmem:[%s12] sm:$0x1]
  %v2462 = vlaneseq
  %v2463 = vshrl.u32 %v2462, 7
  %v2464 = vsub.s32 0, %v2463
  %v2465 = vrot.slane %v2460, %v2464
  %v2475 = vunpack.c.l.b16 %v2452
  %v2476 = vunpack.c.l.b16 %v2453
  %v2477 = vunpack.c.l.b16 %v2454
  %v2478 = vunpack.c.l.b16 %v2455
  %v2479 = vunpack.c.l.b16 %v2456
  %v2480 = vunpack.c.l.b16 %v2457
  %v2481 = vunpack.c.l.b16 %v2458
  %v2482 = vunpack.c.l.b16 %v2459
  %v2483 = vpack.c.b16 %v2476, %v2475
  %v2484 = vpack.c.b16 %v2478, %v2477
  %v2485 = vpack.c.b16 %v2480, %v2479
  %v2486 = vpack.c.b16 %v2482, %v2481
  %vm2491 = vcmask 523264
  %v2493 = vsel %vm2491, %v2448, 0
  %2495 = vmatprep.subr.bf16.mxu0 0
  %2496 = vmatpush1.bf16.msra.mxu0 0
  %2497 = vmatprep.subr.bf16.mxu0 0
  %2498 = vmatpush1.bf16.msra.mxu0 0
  %2499 = vmatprep.subr.bf16.mxu0 0
  %2500 = vmatpush1.bf16.msra.mxu0 0
  %2501 = vmatprep.subr.bf16.mxu0 0
  %2502 = vmatpush1.bf16.msra.mxu0 0
  %2503 = vmatprep.subr.bf16.mxu0 0
  %2504 = vmatpush1.bf16.msra.mxu0 %v2486
  %2505 = vmatprep.subr.bf16.mxu0 0
  %2506 = vmatpush1.bf16.msra.mxu0 %v2485
  %2507 = vmatprep.subr.bf16.mxu0 0
  %2508 = vmatpush1.bf16.msra.mxu0 %v2484
  %2509 = vmatprep.subr.bf16.mxu0 0
  %2510 = vmatpush1.bf16.msra.mxu0 %v2483
  %2511 = vmatprep.subr.bf16.mxu0 0
  %2512 = vmatpush2.bf16.msra.mxu0 0
  %2513 = vmatprep.subr.bf16.mxu0 0
  %2514 = vmatpush2.bf16.msra.mxu0 0
  %2515 = vmatprep.subr.bf16.mxu0 0
  %2516 = vmatpush2.bf16.msra.mxu0 0
  %2517 = vmatprep.subr.bf16.mxu0 0
  %2518 = vmatpush2.bf16.msra.mxu0 0
  %2519 = vmatprep.subr.bf16.mxu0 0
  %2520 = vmatpush2.bf16.msra.mxu0 0
  %2521 = vmatprep.subr.bf16.mxu0 0
  %2522 = vmatpush2.bf16.msra.mxu0 0
  %2523 = vmatprep.subr.bf16.mxu0 0
  %2524 = vmatpush2.bf16.msra.mxu0 0
  %2525 = vmatprep.subr.bf16.mxu0 0
  %2526 = vmatpush2.bf16.msra.mxu0 0
  %2527 = vmatprep.mubr.bf16.mxu0 0
  %2528 = vmatmul.mubr.bf16.gmra.mxu0 %v2493
  %v2529 = vpop.f32.mrf.mxu0
  %v2530 = vadd.f32 %v2465, %v2529
  %v2531 = vpop.f32.mrf.mxu0
  %v2532 = vpop.f32.mrf.mxu0
  %v2533 = vadd.f32 %v2465, %v2532
  %v2534 = vpop.f32.mrf.mxu0
  %2535 = vdwg.mxu0
  %v2538 = vcombine.high %v2530, %v2530
  %v2540 = vunpack.c.l.s4 1966171168
  %v2541 = vunpack.c.0.s8 %v2540
  %v2542 = vlaneseq
  %v2543 = vshrl.u32 %v2542, 7
  %v2544 = vsub.s32 %v2541, %v2543
  %v2545 = vrot.slane %v2530, %v2544
  %v2547 = vunpack.c.l.s4 1966171168
  %v2548 = vunpack.c.0.s8 %v2547
  %v2549 = vlaneseq
  %v2550 = vshrl.u32 %v2549, 7
  %v2551 = vsub.s32 %v2548, %v2550
  %v2552 = vrot.slane %v2538, %v2551
  %v2553 = vcombine.high %v2545, %v2545
  %v2554 = vcombine.high %v2552, %v2552
  %v2556 = vunpack.c.l.s4 1966171168
  %v2557 = vunpack.c.0.s8 %v2556
  %v2558 = vlaneseq
  %v2559 = vshrl.u32 %v2558, 7
  %v2560 = vsub.s32 %v2557, %v2559
  %v2561 = vrot.slane %v2545, %v2560
  %v2563 = vunpack.c.l.s4 1966171168
  %v2564 = vunpack.c.0.s8 %v2563
  %v2565 = vlaneseq
  %v2566 = vshrl.u32 %v2565, 7
  %v2567 = vsub.s32 %v2564, %v2566
  %v2568 = vrot.slane %v2552, %v2567
  %v2570 = vunpack.c.l.s4 1966171168
  %v2571 = vunpack.c.0.s8 %v2570
  %v2572 = vlaneseq
  %v2573 = vshrl.u32 %v2572, 7
  %v2574 = vsub.s32 %v2571, %v2573
  %v2575 = vrot.slane %v2553, %v2574
  %v2577 = vunpack.c.l.s4 1966171168
  %v2578 = vunpack.c.0.s8 %v2577
  %v2579 = vlaneseq
  %v2580 = vshrl.u32 %v2579, 7
  %v2581 = vsub.s32 %v2578, %v2580
  %v2582 = vrot.slane %v2554, %v2581
  %v2583 = vcombine.high %v2561, %v2561
  %v2584 = vcombine.high %v2568, %v2568
  %v2585 = vcombine.high %v2575, %v2575
  %v2586 = vcombine.high %v2582, %v2582
  %v2588 = vunpack.c.l.s4 1966171168
  %v2589 = vunpack.c.0.s8 %v2588
  %v2590 = vlaneseq
  %v2591 = vshrl.u32 %v2590, 7
  %v2592 = vsub.s32 %v2589, %v2591
  %v2593 = vrot.slane %v2533, %v2592
  %v2594 = vcombine.high %v2593, %v2593
  %v2596 = vunpack.c.l.s4 1966171168
  %v2597 = vunpack.c.0.s8 %v2596
  %v2598 = vlaneseq
  %v2599 = vshrl.u32 %v2598, 7
  %v2600 = vsub.s32 %v2597, %v2599
  %v2601 = vrot.slane %v2593, %v2600
  %v2603 = vunpack.c.l.s4 1966171168
  %v2604 = vunpack.c.0.s8 %v2603
  %v2605 = vlaneseq
  %v2606 = vshrl.u32 %v2605, 7
  %v2607 = vsub.s32 %v2604, %v2606
  %v2608 = vrot.slane %v2594, %v2607
  %v2619 = vadd.f32 %v1822, %v2561
  %v2620 = vadd.f32 %v1823, %v2575
  %v2621 = vadd.f32 %v1824, %v2583
  %v2622 = vadd.f32 %v1825, %v2585
  %v2623 = vadd.f32 %v1826, %v2568
  %v2624 = vadd.f32 %v1827, %v2582
  %v2625 = vadd.f32 %v1828, %v2584
  %v2626 = vadd.f32 %v1829, %v2586
  %v2627 = vadd.f32 %v1830, %v2601
  %v2628 = vadd.f32 %v1831, %v2608
  %v2639 = vcombine.low %v2619, %v2620
  %v2640 = vcombine.low %v2621, %v2622
  %v2642 = vunpack.c.l.s4 1966171168
  %v2643 = vunpack.c.0.s8 %v2642
  %v2644 = vlaneseq
  %v2645 = vshrl.u32 %v2644, 7
  %v2646 = vsub.s32 %v2643, %v2645
  %v2647 = vrot.slane %v2639, %v2646
  %v2649 = vunpack.c.l.s4 1966171168
  %v2650 = vunpack.c.0.s8 %v2649
  %v2651 = vlaneseq
  %v2652 = vshrl.u32 %v2651, 7
  %v2653 = vsub.s32 %v2650, %v2652
  %v2654 = vrot.slane %v2640, %v2653
  %v2656 = vunpack.c.l.s4 1966171168
  %v2657 = vunpack.c.0.s8 %v2656
  %v2658 = vlaneseq
  %v2659 = vshrl.u32 %v2658, 7
  %v2660 = vsub.s32 %v2657, %v2659
  %v2661 = vrot.slane %v2623, %v2660
  %v2662 = vcombine.low %v2647, %v2654
  %v2664 = vunpack.c.l.s4 1966171168
  %v2665 = vunpack.c.0.s8 %v2664
  %v2666 = vlaneseq
  %v2667 = vshrl.u32 %v2666, 7
  %v2668 = vsub.s32 %v2665, %v2667
  %v2669 = vrot.slane %v2662, %v2668
  %v2671 = vunpack.c.l.s4 1966171168
  %v2672 = vunpack.c.0.s8 %v2671
  %v2673 = vlaneseq
  %v2674 = vshrl.u32 %v2673, 7
  %v2675 = vsub.s32 %v2672, %v2674
  %v2676 = vrot.slane %v2661, %v2675
  %v2677 = vcombine.low %v2669, %v2676
  %v2678 = vcombine.low %v2624, %v2625
  %v2679 = vcombine.low %v2626, %v2627
  %v2681 = vunpack.c.l.s4 1966171168
  %v2682 = vunpack.c.0.s8 %v2681
  %v2683 = vlaneseq
  %v2684 = vshrl.u32 %v2683, 7
  %v2685 = vsub.s32 %v2682, %v2684
  %v2686 = vrot.slane %v2678, %v2685
  %v2688 = vunpack.c.l.s4 1966171168
  %v2689 = vunpack.c.0.s8 %v2688
  %v2690 = vlaneseq
  %v2691 = vshrl.u32 %v2690, 7
  %v2692 = vsub.s32 %v2689, %v2691
  %v2693 = vrot.slane %v2679, %v2692
  %v2695 = vunpack.c.l.s4 1966171168
  %v2696 = vunpack.c.0.s8 %v2695
  %v2697 = vlaneseq
  %v2698 = vshrl.u32 %v2697, 7
  %v2699 = vsub.s32 %v2696, %v2698
  %v2700 = vrot.slane %v2628, %v2699
  %v2701 = vcombine.low %v2686, %v2693
  %v2703 = vunpack.c.l.s4 1966171168
  %v2704 = vunpack.c.0.s8 %v2703
  %v2705 = vlaneseq
  %v2706 = vshrl.u32 %v2705, 7
  %v2707 = vsub.s32 %v2704, %v2706
  %v2708 = vrot.slane %v2701, %v2707
  %v2710 = vunpack.c.l.s4 1966171168
  %v2711 = vunpack.c.0.s8 %v2710
  %v2712 = vlaneseq
  %v2713 = vshrl.u32 %v2712, 7
  %v2714 = vsub.s32 %v2711, %v2713
  %v2715 = vrot.slane %v2700, %v2714
  %v2716 = vcombine.low %v2708, %v2715
  %v2719 = vpack.c.bf16 %v2677, %v2677
  %v2720 = vpack.c.bf16 %v2716, %v2716
  %vm2721 = vcmask 256000
  %vm2722 = vsmask.f32 2304
  %vm2723 = vmand %vm2721, %vm2722
  %v2724 = vld [vmem:[%s13] sm:$0x7]
  %v2725 = vsel %vm2723, %v2719, %v2724
  %2726 = vst [vmem:[%s13] sm:$0x7] %v2725
  %v2727 = vld [vmem:[%s13 + $0x4] sm:$0x7]
  %v2728 = vsel %vm2723, %v2720, %v2727
  %2729 = vst [vmem:[%s13 + $0x4] sm:$0x7] %v2728
  // Predicated region
  $region54: #{vit_multitask_forward.7} parent=0 // pred_check
    _
  $region55: #{vit_multitask_forward.7} parent=0 // pred_check_branch
    %2731 = sbr.rel (0) target = $region57
  $region56: #{vit_multitask_forward.7} parent=0 // pred_region
    _
  $region57: #{vit_multitask_forward.7} parent=0 // pred_fallthru
    _
  // Predicated region
  $region58: #{vit_multitask_forward.7} parent=0 // pred_check
    _
  $region59: #{vit_multitask_forward.7} parent=0 // pred_check_branch
    %2733 = sbr.rel (0) target = $region61
  $region60: #{vit_multitask_forward.7} parent=0 // pred_region
    _
  $region61: #{vit_multitask_forward.7} parent=0 // pred_fallthru
    _

// kernel: vit_multitask_forward.9
$region0: #{vit_multitask_forward.9}
  #allocation0 [shape = 'u32[]', space=smem, size = 0x4, offset = 0x4, fixed_abs, tag = 'smem constant byte address 0x4 - core index']
  #allocation1 [shape = 'u32[144,128]{1,0:T(1,128)}', space=vmem, size = 0x12000, scoped, tag = 'internal scratch']
  #allocation2 [shape = 'f32[10,32]{1,0:T(8,128)}', space=vmem, size = 0x2000, scoped, tag = 'scratch operand']
  %s0 = inlined_call_operand.vmem [shape: bf16[2,2,5,32], index: 0, kind: input, shape index: {}]
  %s1 = inlined_call_operand.vmem [shape: f32[2,1,32], index: 1, kind: input, shape index: {}]
  %s2 = inlined_call_operand.vmem [shape: f32[2,1,32], index: 2, kind: input, shape index: {}]
  %s3 = inlined_call_operand.vmem [shape: bf16[2,32,96], index: 3, kind: input, shape index: {}]
  %s4 = inlined_call_operand.vmem [shape: f32[2,1,96], index: 4, kind: input, shape index: {}]
  %s5 = inlined_call_operand.vmem [shape: bf16[2,32,32], index: 5, kind: input, shape index: {}]
  %s6 = inlined_call_operand.vmem [shape: f32[2,1,32], index: 6, kind: input, shape index: {}]
  %s7 = inlined_call_operand.vmem [shape: f32[2,1,32], index: 7, kind: input, shape index: {}]
  %s8 = inlined_call_operand.vmem [shape: f32[2,1,32], index: 8, kind: input, shape index: {}]
  %s9 = inlined_call_operand.vmem [shape: bf16[2,32,64], index: 9, kind: input, shape index: {}]
  %s10 = inlined_call_operand.vmem [shape: f32[2,1,64], index: 10, kind: input, shape index: {}]
  %s11 = inlined_call_operand.vmem [shape: bf16[2,64,32], index: 11, kind: input, shape index: {}]
  %s12 = inlined_call_operand.vmem [shape: f32[2,1,32], index: 12, kind: input, shape index: {}]
  %s13 = inlined_call_operand.vmem [shape: bf16[2,2,5,32], index: 13, kind: output, shape index: {}]
  %s14 = sld [smem:[#allocation0]]
  $region85: #{vit_multitask_forward.9} parent=0
    _
  %s16 = ssub.s32 1, %s14
  %s17 = scalar_select 0, %s16, %s14
  loop: start=0, step=1, limit=4
  $region2: #{vit_multitask_forward.9} parent=0 // loop_pre_header
    _
  $region3: #{vit_multitask_forward.9} parent=0 // loop_header
    %s19 = sphi 0, %s23
    %p20 = scmp.ge.s32.totalorder %s19, 4
    %s26 = sphi 0, %s38
    %s27 = sphi 0, %s34
    %s28 = sphi 0, %s26
    %s29 = sphi 0, %s27
    %s30 = sphi 0, %s28
    %s31 = sphi 0, %s29
    %s43 = sphi 0, %s45
    %s46 = sphi 0, %s43
    %s47 = sphi 0, %s46
    %s63 = sphi 0, %s47
    %s67 = sphi 0, %s67
    %s69 = sphi 0, %s67
    %s70 = sphi 0, %s69
    %s84 = sphi 0, %s70
    %s88 = sphi 0, %s88
    %s90 = sphi 0, %s88
    %s91 = sphi 0, %s90
    %s105 = sphi 0, %s91
    %s109 = sphi 0, %s109
    %s111 = sphi 0, %s109
    %s112 = sphi 0, %s111
    %s126 = sphi 0, %s112
    %s130 = sphi 0, %s130
    %s132 = sphi 0, %s130
    %s133 = sphi 0, %s132
    %s147 = sphi 0, %s133
    %s151 = sphi 0, %s151
    %s153 = sphi 0, %s151
    %s154 = sphi 0, %s153
    %s168 = sphi 0, %s154
    %s172 = sphi 0, %s172
    %s174 = sphi 0, %s172
    %s175 = sphi 0, %s174
    %s189 = sphi 0, %s175
    %s193 = sphi 0, %s193
    %s195 = sphi 0, %s193
    %s196 = sphi 0, %s195
    %s210 = sphi 0, %s196
    %s214 = sphi 0, %s214
    %s216 = sphi 0, %s214
    %s217 = sphi 0, %s216
    %s231 = sphi 0, %s217
    %s235 = sphi 0, %s235
    %s237 = sphi 0, %s235
    %s238 = sphi 0, %s237
    %s252 = sphi 0, %s238
    %s256 = sphi 0, %s256
    %s258 = sphi 0, %s256
    %s259 = sphi 0, %s258
    %s273 = sphi 0, %s259
    %s277 = sphi 0, %s277
    %s279 = sphi 0, %s277
    %s280 = sphi 0, %s279
    %s294 = sphi 0, %s280
    %s298 = sphi 0, %s298
    %s300 = sphi 0, %s298
    %s301 = sphi 0, %s300
    %s315 = sphi 0, %s301
    %s323 = sphi 0, %s325
    %s326 = sphi 0, %s323
    %s327 = sphi 0, %s326
    %s343 = sphi 0, %s327
  $region4: #{vit_multitask_forward.9} parent=0 // loop_header_branch
    %22 = sbr.rel (%p20) target = $region8
  $region5: #{vit_multitask_forward.9} parent=0 // loop_body
    %s24 = ssub.s32 %s19, 1
    %s25 = ssub.s32 %s19, 2
    %s32 = sadd.s32 1, %s27
    %p33 = scmp.ge.s32.totalorder %s32, 1
    %s34 = scalar_select %p33, 0, %s32
    %s35 = sadd.s32 1, %s26
    %s36 = scalar_select %p33, %s35, %s26
    %p37 = scmp.ge.s32.totalorder %s36, 2
    %s38 = scalar_select %p37, 0, %s36
    %s39 = ssub.s32 %s26, %s38
    %s40 = ssub.s32 %s27, %s34
    %s41 = sor.u32 %s39, %s40
    %p42 = scmp.eq.s32.totalorder %s41, 0
    %s44 = sadd.s32 %s43, 1
    %s45 = scalar_select %p42, %s43, %s44
    %p48 = pneg %p42
    %p49 = scmp.eq.s32.totalorder %s19, 1
    %p50 = por %p48, %p49
    %p51 = scmp.ne.s32.totalorder %s43, %s46
    %p52 = scmp.eq.s32.totalorder %s19, 0
    %p53 = por %p51, %p52
    %p54 = scmp.ne.s32.totalorder %s43, %s46
    %p55 = scmp.eq.s32.totalorder %s24, 1
    %p56 = por %p54, %p55
    %p57 = scmp.ne.s32.totalorder %s46, %s47
    %p58 = scmp.eq.s32.totalorder %s24, 0
    %p59 = por %p57, %p58
    %p60 = scmp.ne.s32.totalorder %s46, %s47
    %p61 = scmp.eq.s32.totalorder %s25, 1
    %p62 = por %p60, %p61
    %p64 = scmp.ne.s32.totalorder %s47, %s63
    %p65 = scmp.eq.s32.totalorder %s25, 0
    %p66 = por %p64, %p65
    %s68 = sadd.s32 %s67, 1
    %p71 = scmp.eq.s32.totalorder %s19, 1
    %p72 = scmp.ne.s32.totalorder %s67, %s69
    %p73 = scmp.eq.s32.totalorder %s19, 0
    %p74 = por %p72, %p73
    %p75 = scmp.ne.s32.totalorder %s67, %s69
    %p76 = scmp.eq.s32.totalorder %s24, 1
    %p77 = por %p75, %p76
    %p78 = scmp.ne.s32.totalorder %s69, %s70
    %p79 = scmp.eq.s32.totalorder %s24, 0
    %p80 = por %p78, %p79
    %p81 = scmp.ne.s32.totalorder %s69, %s70
    %p82 = scmp.eq.s32.totalorder %s25, 1
    %p83 = por %p81, %p82
    %p85 = scmp.ne.s32.totalorder %s70, %s84
    %p86 = scmp.eq.s32.totalorder %s25, 0
    %p87 = por %p85, %p86
    %s89 = sadd.s32 %s88, 1
    %p92 = scmp.eq.s32.totalorder %s19, 1
    %p93 = scmp.ne.s32.totalorder %s88, %s90
    %p94 = scmp.eq.s32.totalorder %s19, 0
    %p95 = por %p93, %p94
    %p96 = scmp.ne.s32.totalorder %s88, %s90
    %p97 = scmp.eq.s32.totalorder %s24, 1
    %p98 = por %p96, %p97
    %p99 = scmp.ne.s32.totalorder %s90, %s91
    %p100 = scmp.eq.s32.totalorder %s24, 0
    %p101 = por %p99, %p100
    %p102 = scmp.ne.s32.totalorder %s90, %s91
    %p103 = scmp.eq.s32.totalorder %s25, 1
    %p104 = por %p102, %p103
    %p106 = scmp.ne.s32.totalorder %s91, %s105
    %p107 = scmp.eq.s32.totalorder %s25, 0
    %p108 = por %p106, %p107
    %s110 = sadd.s32 %s109, 1
    %p113 = scmp.eq.s32.totalorder %s19, 1
    %p114 = scmp.ne.s32.totalorder %s109, %s111
    %p115 = scmp.eq.s32.totalorder %s19, 0
    %p116 = por %p114, %p115
    %p117 = scmp.ne.s32.totalorder %s109, %s111
    %p118 = scmp.eq.s32.totalorder %s24, 1
    %p119 = por %p117, %p118
    %p120 = scmp.ne.s32.totalorder %s111, %s112
    %p121 = scmp.eq.s32.totalorder %s24, 0
    %p122 = por %p120, %p121
    %p123 = scmp.ne.s32.totalorder %s111, %s112
    %p124 = scmp.eq.s32.totalorder %s25, 1
    %p125 = por %p123, %p124
    %p127 = scmp.ne.s32.totalorder %s112, %s126
    %p128 = scmp.eq.s32.totalorder %s25, 0
    %p129 = por %p127, %p128
    %s131 = sadd.s32 %s130, 1
    %p134 = scmp.eq.s32.totalorder %s19, 1
    %p135 = scmp.ne.s32.totalorder %s130, %s132
    %p136 = scmp.eq.s32.totalorder %s19, 0
    %p137 = por %p135, %p136
    %p138 = scmp.ne.s32.totalorder %s130, %s132
    %p139 = scmp.eq.s32.totalorder %s24, 1
    %p140 = por %p138, %p139
    %p141 = scmp.ne.s32.totalorder %s132, %s133
    %p142 = scmp.eq.s32.totalorder %s24, 0
    %p143 = por %p141, %p142
    %p144 = scmp.ne.s32.totalorder %s132, %s133
    %p145 = scmp.eq.s32.totalorder %s25, 1
    %p146 = por %p144, %p145
    %p148 = scmp.ne.s32.totalorder %s133, %s147
    %p149 = scmp.eq.s32.totalorder %s25, 0
    %p150 = por %p148, %p149
    %s152 = sadd.s32 %s151, 1
    %p155 = scmp.eq.s32.totalorder %s19, 1
    %p156 = scmp.ne.s32.totalorder %s151, %s153
    %p157 = scmp.eq.s32.totalorder %s19, 0
    %p158 = por %p156, %p157
    %p159 = scmp.ne.s32.totalorder %s151, %s153
    %p160 = scmp.eq.s32.totalorder %s24, 1
    %p161 = por %p159, %p160
    %p162 = scmp.ne.s32.totalorder %s153, %s154
    %p163 = scmp.eq.s32.totalorder %s24, 0
    %p164 = por %p162, %p163
    %p165 = scmp.ne.s32.totalorder %s153, %s154
    %p166 = scmp.eq.s32.totalorder %s25, 1
    %p167 = por %p165, %p166
    %p169 = scmp.ne.s32.totalorder %s154, %s168
    %p170 = scmp.eq.s32.totalorder %s25, 0
    %p171 = por %p169, %p170
    %s173 = sadd.s32 %s172, 1
    %p176 = scmp.eq.s32.totalorder %s19, 1
    %p177 = scmp.ne.s32.totalorder %s172, %s174
    %p178 = scmp.eq.s32.totalorder %s19, 0
    %p179 = por %p177, %p178
    %p180 = scmp.ne.s32.totalorder %s172, %s174
    %p181 = scmp.eq.s32.totalorder %s24, 1
    %p182 = por %p180, %p181
    %p183 = scmp.ne.s32.totalorder %s174, %s175
    %p184 = scmp.eq.s32.totalorder %s24, 0
    %p185 = por %p183, %p184
    %p186 = scmp.ne.s32.totalorder %s174, %s175
    %p187 = scmp.eq.s32.totalorder %s25, 1
    %p188 = por %p186, %p187
    %p190 = scmp.ne.s32.totalorder %s175, %s189
    %p191 = scmp.eq.s32.totalorder %s25, 0
    %p192 = por %p190, %p191
    %s194 = sadd.s32 %s193, 1
    %p197 = scmp.eq.s32.totalorder %s19, 1
    %p198 = scmp.ne.s32.totalorder %s193, %s195
    %p199 = scmp.eq.s32.totalorder %s19, 0
    %p200 = por %p198, %p199
    %p201 = scmp.ne.s32.totalorder %s193, %s195
    %p202 = scmp.eq.s32.totalorder %s24, 1
    %p203 = por %p201, %p202
    %p204 = scmp.ne.s32.totalorder %s195, %s196
    %p205 = scmp.eq.s32.totalorder %s24, 0
    %p206 = por %p204, %p205
    %p207 = scmp.ne.s32.totalorder %s195, %s196
    %p208 = scmp.eq.s32.totalorder %s25, 1
    %p209 = por %p207, %p208
    %p211 = scmp.ne.s32.totalorder %s196, %s210
    %p212 = scmp.eq.s32.totalorder %s25, 0
    %p213 = por %p211, %p212
    %s215 = sadd.s32 %s214, 1
    %p218 = scmp.eq.s32.totalorder %s19, 1
    %p219 = scmp.ne.s32.totalorder %s214, %s216
    %p220 = scmp.eq.s32.totalorder %s19, 0
    %p221 = por %p219, %p220
    %p222 = scmp.ne.s32.totalorder %s214, %s216
    %p223 = scmp.eq.s32.totalorder %s24, 1
    %p224 = por %p222, %p223
    %p225 = scmp.ne.s32.totalorder %s216, %s217
    %p226 = scmp.eq.s32.totalorder %s24, 0
    %p227 = por %p225, %p226
    %p228 = scmp.ne.s32.totalorder %s216, %s217
    %p229 = scmp.eq.s32.totalorder %s25, 1
    %p230 = por %p228, %p229
    %p232 = scmp.ne.s32.totalorder %s217, %s231
    %p233 = scmp.eq.s32.totalorder %s25, 0
    %p234 = por %p232, %p233
    %s236 = sadd.s32 %s235, 1
    %p239 = scmp.eq.s32.totalorder %s19, 1
    %p240 = scmp.ne.s32.totalorder %s235, %s237
    %p241 = scmp.eq.s32.totalorder %s19, 0
    %p242 = por %p240, %p241
    %p243 = scmp.ne.s32.totalorder %s235, %s237
    %p244 = scmp.eq.s32.totalorder %s24, 1
    %p245 = por %p243, %p244
    %p246 = scmp.ne.s32.totalorder %s237, %s238
    %p247 = scmp.eq.s32.totalorder %s24, 0
    %p248 = por %p246, %p247
    %p249 = scmp.ne.s32.totalorder %s237, %s238
    %p250 = scmp.eq.s32.totalorder %s25, 1
    %p251 = por %p249, %p250
    %p253 = scmp.ne.s32.totalorder %s238, %s252
    %p254 = scmp.eq.s32.totalorder %s25, 0
    %p255 = por %p253, %p254
    %s257 = sadd.s32 %s256, 1
    %p260 = scmp.eq.s32.totalorder %s19, 1
    %p261 = scmp.ne.s32.totalorder %s256, %s258
    %p262 = scmp.eq.s32.totalorder %s19, 0
    %p263 = por %p261, %p262
    %p264 = scmp.ne.s32.totalorder %s256, %s258
    %p265 = scmp.eq.s32.totalorder %s24, 1
    %p266 = por %p264, %p265
    %p267 = scmp.ne.s32.totalorder %s258, %s259
    %p268 = scmp.eq.s32.totalorder %s24, 0
    %p269 = por %p267, %p268
    %p270 = scmp.ne.s32.totalorder %s258, %s259
    %p271 = scmp.eq.s32.totalorder %s25, 1
    %p272 = por %p270, %p271
    %p274 = scmp.ne.s32.totalorder %s259, %s273
    %p275 = scmp.eq.s32.totalorder %s25, 0
    %p276 = por %p274, %p275
    %s278 = sadd.s32 %s277, 1
    %p281 = scmp.eq.s32.totalorder %s19, 1
    %p282 = scmp.ne.s32.totalorder %s277, %s279
    %p283 = scmp.eq.s32.totalorder %s19, 0
    %p284 = por %p282, %p283
    %p285 = scmp.ne.s32.totalorder %s277, %s279
    %p286 = scmp.eq.s32.totalorder %s24, 1
    %p287 = por %p285, %p286
    %p288 = scmp.ne.s32.totalorder %s279, %s280
    %p289 = scmp.eq.s32.totalorder %s24, 0
    %p290 = por %p288, %p289
    %p291 = scmp.ne.s32.totalorder %s279, %s280
    %p292 = scmp.eq.s32.totalorder %s25, 1
    %p293 = por %p291, %p292
    %p295 = scmp.ne.s32.totalorder %s280, %s294
    %p296 = scmp.eq.s32.totalorder %s25, 0
    %p297 = por %p295, %p296
    %s299 = sadd.s32 %s298, 1
    %p302 = scmp.eq.s32.totalorder %s19, 1
    %p303 = scmp.ne.s32.totalorder %s298, %s300
    %p304 = scmp.eq.s32.totalorder %s19, 0
    %p305 = por %p303, %p304
    %p306 = scmp.ne.s32.totalorder %s298, %s300
    %p307 = scmp.eq.s32.totalorder %s24, 1
    %p308 = por %p306, %p307
    %p309 = scmp.ne.s32.totalorder %s300, %s301
    %p310 = scmp.eq.s32.totalorder %s24, 0
    %p311 = por %p309, %p310
    %p312 = scmp.ne.s32.totalorder %s300, %s301
    %p313 = scmp.eq.s32.totalorder %s25, 1
    %p314 = por %p312, %p313
    %p316 = scmp.ne.s32.totalorder %s301, %s315
    %p317 = scmp.eq.s32.totalorder %s25, 0
    %p318 = por %p316, %p317
    %s319 = ssub.s32 %s26, %s38
    %s320 = ssub.s32 %s27, %s34
    %s321 = sor.u32 %s319, %s320
    %p322 = scmp.eq.s32.totalorder %s321, 0
    %s324 = sadd.s32 %s323, 1
    %s325 = scalar_select %p322, %s323, %s324
    %p328 = pneg %p322
    %p329 = scmp.eq.s32.totalorder %s19, 1
    %p330 = por %p328, %p329
    %p331 = scmp.ne.s32.totalorder %s323, %s326
    %p332 = scmp.eq.s32.totalorder %s19, 0
    %p333 = por %p331, %p332
    %p334 = scmp.ne.s32.totalorder %s323, %s326
    %p335 = scmp.eq.s32.totalorder %s24, 1
    %p336 = por %p334, %p335
    %p337 = scmp.ne.s32.totalorder %s326, %s327
    %p338 = scmp.eq.s32.totalorder %s24, 0
    %p339 = por %p337, %p338
    %p340 = scmp.ne.s32.totalorder %s326, %s327
    %p341 = scmp.eq.s32.totalorder %s25, 1
    %p342 = por %p340, %p341
    %p344 = scmp.ne.s32.totalorder %s327, %s343
    %p345 = scmp.eq.s32.totalorder %s25, 0
    %p346 = por %p344, %p345
    %p347 = scmp.le.s32.totalorder 1, %s19
    %p348 = scmp.lt.s32.totalorder %s19, 3
    %p349 = pnand %p347, %p348
    %p350 = pneg %p349
    // Predicated region
    $region9: #{vit_multitask_forward.9} parent=5 // pred_check
      _
    $region10: #{vit_multitask_forward.9} parent=5 // pred_check_branch
      %352 = sbr.rel (%p349) target = $region12
    $region11: #{vit_multitask_forward.9} parent=5 // pred_region
      %s353 = ssub.s32 %s19, 1
      // Predicated region
      $region13: #{vit_multitask_forward.9} parent=11 // pred_check
        %p354 = pneg %p80
      $region14: #{vit_multitask_forward.9} parent=11 // pred_check_branch
        %356 = sbr.rel (%p354) target = $region16
      $region15: #{vit_multitask_forward.9} parent=11 // pred_region
        _
      $region16: #{vit_multitask_forward.9} parent=11 // pred_fallthru
        _
      // Predicated region
      $region17: #{vit_multitask_forward.9} parent=11 // pred_check
        %p357 = pneg %p101
      $region18: #{vit_multitask_forward.9} parent=11 // pred_check_branch
        %359 = sbr.rel (%p357) target = $region20
      $region19: #{vit_multitask_forward.9} parent=11 // pred_region
        _
      $region20: #{vit_multitask_forward.9} parent=11 // pred_fallthru
        _
      // Predicated region
      $region21: #{vit_multitask_forward.9} parent=11 // pred_check
        %p360 = pneg %p122
      $region22: #{vit_multitask_forward.9} parent=11 // pred_check_branch
        %362 = sbr.rel (%p360) target = $region24
      $region23: #{vit_multitask_forward.9} parent=11 // pred_region
        _
      $region24: #{vit_multitask_forward.9} parent=11 // pred_fallthru
        _
      // Predicated region
      $region25: #{vit_multitask_forward.9} parent=11 // pred_check
        %p363 = pneg %p143
      $region26: #{vit_multitask_forward.9} parent=11 // pred_check_branch
        %365 = sbr.rel (%p363) target = $region28
      $region27: #{vit_multitask_forward.9} parent=11 // pred_region
        _
      $region28: #{vit_multitask_forward.9} parent=11 // pred_fallthru
        _
      // Predicated region
      $region29: #{vit_multitask_forward.9} parent=11 // pred_check
        %p366 = pneg %p164
      $region30: #{vit_multitask_forward.9} parent=11 // pred_check_branch
        %368 = sbr.rel (%p366) target = $region32
      $region31: #{vit_multitask_forward.9} parent=11 // pred_region
        _
      $region32: #{vit_multitask_forward.9} parent=11 // pred_fallthru
        _
      // Predicated region
      $region33: #{vit_multitask_forward.9} parent=11 // pred_check
        %p369 = pneg %p185
      $region34: #{vit_multitask_forward.9} parent=11 // pred_check_branch
        %371 = sbr.rel (%p369) target = $region36
      $region35: #{vit_multitask_forward.9} parent=11 // pred_region
        _
      $region36: #{vit_multitask_forward.9} parent=11 // pred_fallthru
        _
      // Predicated region
      $region37: #{vit_multitask_forward.9} parent=11 // pred_check
        %p372 = pneg %p206
      $region38: #{vit_multitask_forward.9} parent=11 // pred_check_branch
        %374 = sbr.rel (%p372) target = $region40
      $region39: #{vit_multitask_forward.9} parent=11 // pred_region
        _
      $region40: #{vit_multitask_forward.9} parent=11 // pred_fallthru
        _
      // Predicated region
      $region41: #{vit_multitask_forward.9} parent=11 // pred_check
        %p375 = pneg %p227
      $region42: #{vit_multitask_forward.9} parent=11 // pred_check_branch
        %377 = sbr.rel (%p375) target = $region44
      $region43: #{vit_multitask_forward.9} parent=11 // pred_region
        _
      $region44: #{vit_multitask_forward.9} parent=11 // pred_fallthru
        _
      // Predicated region
      $region45: #{vit_multitask_forward.9} parent=11 // pred_check
        %p378 = pneg %p248
      $region46: #{vit_multitask_forward.9} parent=11 // pred_check_branch
        %380 = sbr.rel (%p378) target = $region48
      $region47: #{vit_multitask_forward.9} parent=11 // pred_region
        _
      $region48: #{vit_multitask_forward.9} parent=11 // pred_fallthru
        _
      // Predicated region
      $region49: #{vit_multitask_forward.9} parent=11 // pred_check
        %p381 = pneg %p269
      $region50: #{vit_multitask_forward.9} parent=11 // pred_check_branch
        %383 = sbr.rel (%p381) target = $region52
      $region51: #{vit_multitask_forward.9} parent=11 // pred_region
        _
      $region52: #{vit_multitask_forward.9} parent=11 // pred_fallthru
        _
      // Predicated region
      $region53: #{vit_multitask_forward.9} parent=11 // pred_check
        %p384 = pneg %p290
      $region54: #{vit_multitask_forward.9} parent=11 // pred_check_branch
        %386 = sbr.rel (%p384) target = $region56
      $region55: #{vit_multitask_forward.9} parent=11 // pred_region
        _
      $region56: #{vit_multitask_forward.9} parent=11 // pred_fallthru
        _
      // Predicated region
      $region57: #{vit_multitask_forward.9} parent=11 // pred_check
        %p387 = pneg %p311
      $region58: #{vit_multitask_forward.9} parent=11 // pred_check_branch
        %389 = sbr.rel (%p387) target = $region60
      $region59: #{vit_multitask_forward.9} parent=11 // pred_region
        _
      $region60: #{vit_multitask_forward.9} parent=11 // pred_fallthru
        _
    $region12: #{vit_multitask_forward.9} parent=5 // pred_fallthru
      _
    %p390 = scmp.lt.s32.totalorder %s19, 2
    // Predicated region
    $region61: #{vit_multitask_forward.9} parent=5 // pred_check
      %p391 = pneg %p390
    $region62: #{vit_multitask_forward.9} parent=5 // pred_check_branch
      %393 = sbr.rel (%p391) target = $region64
    $region63: #{vit_multitask_forward.9} parent=5 // pred_region
      // Predicated region
      $region65: #{vit_multitask_forward.9} parent=63 // pred_check
        %p394 = pneg %p53
      $region66: #{vit_multitask_forward.9} parent=63 // pred_check_branch
        %396 = sbr.rel (%p394) target = $region68
      $region67: #{vit_multitask_forward.9} parent=63 // pred_region
        %s397 = smul.u32 2, %s27
        %p398 = scmp.lt.s32.totalorder %s26, 1
        %s399 = scalar_select %p398, %s26, 1
        %p400 = scmp.lt.s32.totalorder %s397, 1
        %s401 = scalar_select %p400, %s397, 1
        %s402 = smul.addr %s399, 2
        %s403 = sadd.s32 %s401, %s402
        %s404 = smul.addr %s403, 4
        %s405 = scalar_lea.vmem %s0, %s404
        %s406 = smul.u32 2, %s27
      $region68: #{vit_multitask_forward.9} parent=63 // pred_fallthru
        _
    $region64: #{vit_multitask_forward.9} parent=5 // pred_fallthru
      _
    %p407 = scmp.le.s32.totalorder 1, %s19
    %p408 = scmp.lt.s32.totalorder %s19, 3
    %p409 = pnand %p407, %p408
    %p410 = pneg %p409
    // Predicated region
    $region69: #{vit_multitask_forward.9} parent=5 // pred_check
      _
    $region70: #{vit_multitask_forward.9} parent=5 // pred_check_branch
      %412 = sbr.rel (%p409) target = $region72
    $region71: #{vit_multitask_forward.9} parent=5 // pred_region
      %s413 = ssub.s32 %s19, 1
      %s414 = smul.u32 2, %s29
      %p415 = scmp.lt.s32.totalorder %s28, 1
      %s416 = scalar_select %p415, %s28, 1
      %p417 = scmp.lt.s32.totalorder %s414, 1
      %s418 = scalar_select %p417, %s414, 1
      %s419 = smul.addr %s416, 2
      %s420 = sadd.s32 %s418, %s419
      %s421 = smul.addr %s420, 4
      %s422 = scalar_lea.vmem %s0, %s421
      %p423 = pneg %p59
      %p424 = pneg %p56
      %p425 = pneg %p80
      %p426 = pneg %p77
      %p427 = pneg %p101
      %p428 = pneg %p98
      %p429 = pneg %p122
      %p430 = pneg %p119
      %p431 = pneg %p143
      %p432 = pneg %p140
      %p433 = pneg %p164
      %p434 = pneg %p161
      %p435 = pneg %p185
      %p436 = pneg %p182
      %p437 = pneg %p206
      %p438 = pneg %p203
      %p439 = pneg %p227
      %p440 = pneg %p224
      %p441 = pneg %p248
      %p442 = pneg %p245
      %p443 = pneg %p269
      %p444 = pneg %p266
      %p445 = pneg %p290
      %p446 = pneg %p287
      %p447 = pneg %p311
      %p448 = pneg %p308
      %p449 = pneg %p339
      %p450 = pneg %p336
      %s451 = smul.u32 2, %s29
      %p452 = scmp.lt.s32.totalorder %s28, 1
      %s453 = scalar_select %p452, %s28, 1
      %p454 = scmp.lt.s32.totalorder %s451, 1
      %s455 = scalar_select %p454, %s451, 1
      %s456 = smul.addr %s453, 2
      %s457 = sadd.s32 %s455, %s456
      %s458 = smul.addr %s457, 4
      %s459 = scalar_lea.vmem %s13, %s458
      %s460 = smul.u32 2, %s29
      %p461 = scmp.lt.s32.totalorder %s28, 1
      %s462 = scalar_select %p461, %s28, 1
      %p463 = scmp.lt.s32.totalorder %s460, 1
      %s464 = scalar_select %p463, %s460, 1
      %s465 = smul.addr %s462, 2
      %s466 = sadd.s32 %s464, %s465
      %s467 = smul.addr %s466, 4
      %s468 = scalar_lea.vmem %s0, %s467
      %s469 = smul.u32 2, %s29
      %s470 = smul.u32 2, %s29
      %p471 = scmp.lt.s32.totalorder %s28, 1
      %s472 = scalar_select %p471, %s28, 1
      %p473 = scmp.lt.s32.totalorder %s470, 1
      %s474 = scalar_select %p473, %s470, 1
      %s475 = smul.addr %s472, 2
      %s476 = sadd.s32 %s474, %s475
      %s477 = smul.addr %s476, 4
      %s478 = scalar_lea.vmem %s13, %s477
      %s479 = smul.u32 2, %s29
      %v481 = vld [vmem:[%s468] sm:$0x7]
      %v482 = vld [vmem:[%s468 + $0x4] sm:$0x7]
      %v483 = vunpack.c.l.bf16 %v481
      %v484 = vunpack.c.l.bf16 %v482
      %v487 = vcombine.high %v483, %v483
      %v489 = vunpack.c.l.s4 1966171168
      %v490 = vunpack.c.0.s8 %v489
      %v491 = vlaneseq
      %v492 = vshrl.u32 %v491, 7
      %v493 = vsub.s32 %v490, %v492
      %v494 = vrot.slane %v483, %v493
      %v496 = vunpack.c.l.s4 1966171168
      %v497 = vunpack.c.0.s8 %v496
      %v498 = vlaneseq
      %v499 = vshrl.u32 %v498, 7
      %v500 = vsub.s32 %v497, %v499
      %v501 = vrot.slane %v487, %v500
      %v502 = vcombine.high %v494, %v494
      %v504 = vunpack.c.l.s4 1966171168
      %v505 = vunpack.c.0.s8 %v504
      %v506 = vlaneseq
      %v507 = vshrl.u32 %v506, 7
      %v508 = vsub.s32 %v505, %v507
      %v509 = vrot.slane %v494, %v508
      %v511 = vunpack.c.l.s4 1966171168
      %v512 = vunpack.c.0.s8 %v511
      %v513 = vlaneseq
      %v514 = vshrl.u32 %v513, 7
      %v515 = vsub.s32 %v512, %v514
      %v516 = vrot.slane %v501, %v515
      %v518 = vunpack.c.l.s4 1966171168
      %v519 = vunpack.c.0.s8 %v518
      %v520 = vlaneseq
      %v521 = vshrl.u32 %v520, 7
      %v522 = vsub.s32 %v519, %v521
      %v523 = vrot.slane %v502, %v522
      %v524 = vcombine.high %v509, %v509
      %v525 = vcombine.high %v523, %v523
      %v526 = vcombine.high %v484, %v484
      %v528 = vunpack.c.l.s4 1966171168
      %v529 = vunpack.c.0.s8 %v528
      %v530 = vlaneseq
      %v531 = vshrl.u32 %v530, 7
      %v532 = vsub.s32 %v529, %v531
      %v533 = vrot.slane %v484, %v532
      %v535 = vunpack.c.l.s4 1966171168
      %v536 = vunpack.c.0.s8 %v535
      %v537 = vlaneseq
      %v538 = vshrl.u32 %v537, 7
      %v539 = vsub.s32 %v536, %v538
      %v540 = vrot.slane %v526, %v539
      %v541 = vcombine.high %v533, %v533
      %v543 = vunpack.c.l.s4 1966171168
      %v544 = vunpack.c.0.s8 %v543
      %v545 = vlaneseq
      %v546 = vshrl.u32 %v545, 7
      %v547 = vsub.s32 %v544, %v546
      %v548 = vrot.slane %v533, %v547
      %v550 = vunpack.c.l.s4 1966171168
      %v551 = vunpack.c.0.s8 %v550
      %v552 = vlaneseq
      %v553 = vshrl.u32 %v552, 7
      %v554 = vsub.s32 %v551, %v553
      %v555 = vrot.slane %v540, %v554
      %v557 = vunpack.c.l.s4 1966171168
      %v558 = vunpack.c.0.s8 %v557
      %v559 = vlaneseq
      %v560 = vshrl.u32 %v559, 7
      %v561 = vsub.s32 %v558, %v560
      %v562 = vrot.slane %v541, %v561
      %v563 = vcombine.high %v548, %v548
      %v564 = vcombine.high %v562, %v562
      %s575 = scalar_lea.vmem %s1, %s28
      %v576 = vld [vmem:[%s575] sm:$0x1]
      %s577 = scalar_lea.vmem %s2, %s28
      %v578 = vld [vmem:[%s577] sm:$0x1]
      %v579 = vcombine.low %v509, %v523
      %v580 = vcombine.low %v524, %v525
      %v581 = vcombine.low %v516, %v548
      %v582 = vcombine.low %v562, %v563
      %v584 = vunpack.c.l.s4 1966171168
      %v585 = vunpack.c.0.s8 %v584
      %v586 = vlaneseq
      %v587 = vshrl.u32 %v586, 7
      %v588 = vsub.s32 %v585, %v587
      %v589 = vrot.slane %v579, %v588
      %v591 = vunpack.c.l.s4 1966171168
      %v592 = vunpack.c.0.s8 %v591
      %v593 = vlaneseq
      %v594 = vshrl.u32 %v593, 7
      %v595 = vsub.s32 %v592, %v594
      %v596 = vrot.slane %v580, %v595
      %v598 = vunpack.c.l.s4 1966171168
      %v599 = vunpack.c.0.s8 %v598
      %v600 = vlaneseq
      %v601 = vshrl.u32 %v600, 7
      %v602 = vsub.s32 %v599, %v601
      %v603 = vrot.slane %v581, %v602
      %v605 = vunpack.c.l.s4 1966171168
      %v606 = vunpack.c.0.s8 %v605
      %v607 = vlaneseq
      %v608 = vshrl.u32 %v607, 7
      %v609 = vsub.s32 %v606, %v608
      %v610 = vrot.slane %v582, %v609
      %v611 = vcombine.low %v589, %v596
      %v612 = vcombine.low %v603, %v610
      %v614 = vunpack.c.l.s4 1966171168
      %v615 = vunpack.c.0.s8 %v614
      %v616 = vlaneseq
      %v617 = vshrl.u32 %v616, 7
      %v618 = vsub.s32 %v615, %v617
      %v619 = vrot.slane %v611, %v618
      %v621 = vunpack.c.l.s4 1966171168
      %v622 = vunpack.c.0.s8 %v621
      %v623 = vlaneseq
      %v624 = vshrl.u32 %v623, 7
      %v625 = vsub.s32 %v622, %v624
      %v626 = vrot.slane %v612, %v625
      %v627 = vcombine.low %v619, %v626
      %v628 = vcombine.low %v564, %v555
      %v630 = vunpack.c.l.s4 1966171168
      %v631 = vunpack.c.0.s8 %v630
      %v632 = vlaneseq
      %v633 = vshrl.u32 %v632, 7
      %v634 = vsub.s32 %v631, %v633
      %v635 = vrot.slane %v628, %v634
      %v637 = vunpack.c.l.s4 1966171168
      %v638 = vunpack.c.0.s8 %v637
      %v639 = vlaneseq
      %v640 = vshrl.u32 %v639, 7
      %v641 = vsub.s32 %v638, %v640
      %v642 = vrot.slane %v635, %v641
      %vm645 = vcmask 261120
      %v646 = vsel %vm645, %v627, 0.0
      %647 = vadd.xlane.f32.xlu0 %v646
      %v648 = vpop.xlane.xlu0 %647
      %vm649 = vcmask 254976
      %v650 = vsel %vm649, %v642, 0.0
      %651 = vadd.xlane.f32.xlu0 %v650
      %v652 = vpop.xlane.xlu0 %651
      %v653 = vrcp.pop 32.0
      %v654 = vmul.f32 %v648, %v653
      %v655 = vmul.f32 %v652, %v653
      %v658 = vlaneseq
      %v659 = vshrl.u32 %v658, 7
      %v660 = vsub.s32 0, %v659
      %v661 = vrot.slane %v654, %v660
      %v662 = vlaneseq
      %v663 = vshrl.u32 %v662, 7
      %v664 = vsub.s32 1, %v663
      %v665 = vrot.slane %v654, %v664
      %v666 = vlaneseq
      %v667 = vshrl.u32 %v666, 7
      %v668 = vsub.s32 2, %v667
      %v669 = vrot.slane %v654, %v668
      %v670 = vlaneseq
      %v671 = vshrl.u32 %v670, 7
      %v672 = vsub.s32 3, %v671
      %v673 = vrot.slane %v654, %v672
      %v674 = vlaneseq
      %v675 = vshrl.u32 %v674, 7
      %v676 = vsub.s32 4, %v675
      %v677 = vrot.slane %v654, %v676
      %v678 = vlaneseq
      %v679 = vshrl.u32 %v678, 7
      %v680 = vsub.s32 5, %v679
      %v681 = vrot.slane %v654, %v680
      %v682 = vlaneseq
      %v683 = vshrl.u32 %v682, 7
      %v684 = vsub.s32 6, %v683
      %v685 = vrot.slane %v654, %v684
      %v686 = vlaneseq
      %v687 = vshrl.u32 %v686, 7
      %v688 = vsub.s32 7, %v687
      %v689 = vrot.slane %v654, %v688
      %v690 = vlaneseq
      %v691 = vshrl.u32 %v690, 7
      %v692 = vsub.s32 0, %v691
      %v693 = vrot.slane %v655, %v692
      %v694 = vlaneseq
      %v695 = vshrl.u32 %v694, 7
      %v696 = vsub.s32 1, %v695
      %v697 = vrot.slane %v655, %v696
      %v708 = vsub.f32 %v509, %v661
      %v709 = vsub.f32 %v523, %v665
      %v710 = vsub.f32 %v524, %v669
      %v711 = vsub.f32 %v525, %v673
      %v712 = vsub.f32 %v516, %v677
      %v713 = vsub.f32 %v548, %v681
      %v714 = vsub.f32 %v562, %v685
      %v715 = vsub.f32 %v563, %v689
      %v716 = vsub.f32 %v564, %v693
      %v717 = vsub.f32 %v555, %v697
      %v718 = vmul.f32 %v708, %v708
      %v719 = vmul.f32 %v709, %v709
      %v720 = vmul.f32 %v710, %v710
      %v721 = vmul.f32 %v711, %v711
      %v722 = vmul.f32 %v712, %v712
      %v723 = vmul.f32 %v713, %v713
      %v724 = vmul.f32 %v714, %v714
      %v725 = vmul.f32 %v715, %v715
      %v726 = vmul.f32 %v716, %v716
      %v727 = vmul.f32 %v717, %v717
      %v738 = vcombine.low %v718, %v719
      %v739 = vcombine.low %v720, %v721
      %v740 = vcombine.low %v722, %v723
      %v741 = vcombine.low %v724, %v725
      %v743 = vunpack.c.l.s4 1966171168
      %v744 = vunpack.c.0.s8 %v743
      %v745 = vlaneseq
      %v746 = vshrl.u32 %v745, 7
      %v747 = vsub.s32 %v744, %v746
      %v748 = vrot.slane %v738, %v747
      %v750 = vunpack.c.l.s4 1966171168
      %v751 = vunpack.c.0.s8 %v750
      %v752 = vlaneseq
      %v753 = vshrl.u32 %v752, 7
      %v754 = vsub.s32 %v751, %v753
      %v755 = vrot.slane %v739, %v754
      %v757 = vunpack.c.l.s4 1966171168
      %v758 = vunpack.c.0.s8 %v757
      %v759 = vlaneseq
      %v760 = vshrl.u32 %v759, 7
      %v761 = vsub.s32 %v758, %v760
      %v762 = vrot.slane %v740, %v761
      %v764 = vunpack.c.l.s4 1966171168
      %v765 = vunpack.c.0.s8 %v764
      %v766 = vlaneseq
      %v767 = vshrl.u32 %v766, 7
      %v768 = vsub.s32 %v765, %v767
      %v769 = vrot.slane %v741, %v768
      %v770 = vcombine.low %v748, %v755
      %v771 = vcombine.low %v762, %v769
      %v773 = vunpack.c.l.s4 1966171168
      %v774 = vunpack.c.0.s8 %v773
      %v775 = vlaneseq
      %v776 = vshrl.u32 %v775, 7
      %v777 = vsub.s32 %v774, %v776
      %v778 = vrot.slane %v770, %v777
      %v780 = vunpack.c.l.s4 1966171168
      %v781 = vunpack.c.0.s8 %v780
      %v782 = vlaneseq
      %v783 = vshrl.u32 %v782, 7
      %v784 = vsub.s32 %v781, %v783
      %v785 = vrot.slane %v771, %v784
      %v786 = vcombine.low %v778, %v785
      %v787 = vcombine.low %v726, %v727
      %v789 = vunpack.c.l.s4 1966171168
      %v790 = vunpack.c.0.s8 %v789
      %v791 = vlaneseq
      %v792 = vshrl.u32 %v791, 7
      %v793 = vsub.s32 %v790, %v792
      %v794 = vrot.slane %v787, %v793
      %v796 = vunpack.c.l.s4 1966171168
      %v797 = vunpack.c.0.s8 %v796
      %v798 = vlaneseq
      %v799 = vshrl.u32 %v798, 7
      %v800 = vsub.s32 %v797, %v799
      %v801 = vrot.slane %v794, %v800
      %v804 = vsel %vm645, %v786, 0.0
      %805 = vadd.xlane.f32.xlu0 %v804
      %v806 = vpop.xlane.xlu0 %805
      %v807 = vsel %vm649, %v801, 0.0
      %808 = vadd.xlane.f32.xlu0 %v807
      %v809 = vpop.xlane.xlu0 %808
      %v810 = vmul.f32 %v806, %v653
      %v811 = vmul.f32 %v809, %v653
      %v812 = vadd.f32 %v810, 1e-12
      %v813 = vadd.f32 %v811, 1e-12
      %v814 = vrsqrt.pop %v812
      %v815 = vrsqrt.pop %v813
      %v818 = vlaneseq
      %v819 = vshrl.u32 %v818, 7
      %v820 = vsub.s32 0, %v819
      %v821 = vrot.slane %v814, %v820
      %v822 = vlaneseq
      %v823 = vshrl.u32 %v822, 7
      %v824 = vsub.s32 1, %v823
      %v825 = vrot.slane %v814, %v824
      %v826 = vlaneseq
      %v827 = vshrl.u32 %v826, 7
      %v828 = vsub.s32 2, %v827
      %v829 = vrot.slane %v814, %v828
      %v830 = vlaneseq
      %v831 = vshrl.u32 %v830, 7
      %v832 = vsub.s32 3, %v831
      %v833 = vrot.slane %v814, %v832
      %v834 = vlaneseq
      %v835 = vshrl.u32 %v834, 7
      %v836 = vsub.s32 4, %v835
      %v837 = vrot.slane %v814, %v836
      %v838 = vlaneseq
      %v839 = vshrl.u32 %v838, 7
      %v840 = vsub.s32 5, %v839
      %v841 = vrot.slane %v814, %v840
      %v842 = vlaneseq
      %v843 = vshrl.u32 %v842, 7
      %v844 = vsub.s32 6, %v843
      %v845 = vrot.slane %v814, %v844
      %v846 = vlaneseq
      %v847 = vshrl.u32 %v846, 7
      %v848 = vsub.s32 7, %v847
      %v849 = vrot.slane %v814, %v848
      %v850 = vlaneseq
      %v851 = vshrl.u32 %v850, 7
      %v852 = vsub.s32 0, %v851
      %v853 = vrot.slane %v815, %v852
      %v854 = vlaneseq
      %v855 = vshrl.u32 %v854, 7
      %v856 = vsub.s32 1, %v855
      %v857 = vrot.slane %v815, %v856
      %v868 = vmul.f32 %v708, %v821
      %v869 = vmul.f32 %v709, %v825
      %v870 = vmul.f32 %v710, %v829
      %v871 = vmul.f32 %v711, %v833
      %v872 = vmul.f32 %v712, %v837
      %v873 = vmul.f32 %v713, %v841
      %v874 = vmul.f32 %v714, %v845
      %v875 = vmul.f32 %v715, %v849
      %v876 = vmul.f32 %v716, %v853
      %v877 = vmul.f32 %v717, %v857
      %v879 = vlaneseq
      %v880 = vshrl.u32 %v879, 7
      %v881 = vsub.s32 0, %v880
      %v882 = vrot.slane %v576, %v881
      %v883 = vcombine.high %v882, %v882
      %v885 = vunpack.c.l.s4 1966171168
      %v886 = vunpack.c.0.s8 %v885
      %v887 = vlaneseq
      %v888 = vshrl.u32 %v887, 7
      %v889 = vsub.s32 %v886, %v888
      %v890 = vrot.slane %v882, %v889
      %v892 = vunpack.c.l.s4 1966171168
      %v893 = vunpack.c.0.s8 %v892
      %v894 = vlaneseq
      %v895 = vshrl.u32 %v894, 7
      %v896 = vsub.s32 %v893, %v895
      %v897 = vrot.slane %v883, %v896
      %v898 = vcombine.high %v890, %v890
      %v899 = vcombine.high %v897, %v897
      %v901 = vunpack.c.l.s4 1966171168
      %v902 = vunpack.c.0.s8 %v901
      %v903 = vlaneseq
      %v904 = vshrl.u32 %v903, 7
      %v905 = vsub.s32 %v902, %v904
      %v906 = vrot.slane %v890, %v905
      %v908 = vunpack.c.l.s4 1966171168
      %v909 = vunpack.c.0.s8 %v908
      %v910 = vlaneseq
      %v911 = vshrl.u32 %v910, 7
      %v912 = vsub.s32 %v909, %v911
      %v913 = vrot.slane %v897, %v912
      %v915 = vunpack.c.l.s4 1966171168
      %v916 = vunpack.c.0.s8 %v915
      %v917 = vlaneseq
      %v918 = vshrl.u32 %v917, 7
      %v919 = vsub.s32 %v916, %v918
      %v920 = vrot.slane %v898, %v919
      %v922 = vunpack.c.l.s4 1966171168
      %v923 = vunpack.c.0.s8 %v922
      %v924 = vlaneseq
      %v925 = vshrl.u32 %v924, 7
      %v926 = vsub.s32 %v923, %v925
      %v927 = vrot.slane %v899, %v926
      %v928 = vcombine.high %v906, %v906
      %v929 = vcombine.high %v913, %v913
      %v930 = vcombine.high %v920, %v920
      %v931 = vcombine.high %v927, %v927
      %v940 = vmul.f32 %v868, %v906
      %v941 = vmul.f32 %v869, %v920
      %v942 = vmul.f32 %v870, %v928
      %v943 = vmul.f32 %v871, %v930
      %v944 = vmul.f32 %v872, %v913
      %v945 = vmul.f32 %v873, %v927
      %v946 = vmul.f32 %v874, %v929
      %v947 = vmul.f32 %v875, %v931
      %v948 = vmul.f32 %v876, %v906
      %v949 = vmul.f32 %v877, %v920
      %v951 = vlaneseq
      %v952 = vshrl.u32 %v951, 7
      %v953 = vsub.s32 0, %v952
      %v954 = vrot.slane %v578, %v953
      %v955 = vcombine.high %v954, %v954
      %v957 = vunpack.c.l.s4 1966171168
      %v958 = vunpack.c.0.s8 %v957
      %v959 = vlaneseq
      %v960 = vshrl.u32 %v959, 7
      %v961 = vsub.s32 %v958, %v960
      %v962 = vrot.slane %v954, %v961
      %v964 = vunpack.c.l.s4 1966171168
      %v965 = vunpack.c.0.s8 %v964
      %v966 = vlaneseq
      %v967 = vshrl.u32 %v966, 7
      %v968 = vsub.s32 %v965, %v967
      %v969 = vrot.slane %v955, %v968
      %v970 = vcombine.high %v962, %v962
      %v971 = vcombine.high %v969, %v969
      %v973 = vunpack.c.l.s4 1966171168
      %v974 = vunpack.c.0.s8 %v973
      %v975 = vlaneseq
      %v976 = vshrl.u32 %v975, 7
      %v977 = vsub.s32 %v974, %v976
      %v978 = vrot.slane %v962, %v977
      %v980 = vunpack.c.l.s4 1966171168
      %v981 = vunpack.c.0.s8 %v980
      %v982 = vlaneseq
      %v983 = vshrl.u32 %v982, 7
      %v984 = vsub.s32 %v981, %v983
      %v985 = vrot.slane %v969, %v984
      %v987 = vunpack.c.l.s4 1966171168
      %v988 = vunpack.c.0.s8 %v987
      %v989 = vlaneseq
      %v990 = vshrl.u32 %v989, 7
      %v991 = vsub.s32 %v988, %v990
      %v992 = vrot.slane %v970, %v991
      %v994 = vunpack.c.l.s4 1966171168
      %v995 = vunpack.c.0.s8 %v994
      %v996 = vlaneseq
      %v997 = vshrl.u32 %v996, 7
      %v998 = vsub.s32 %v995, %v997
      %v999 = vrot.slane %v971, %v998
      %v1000 = vcombine.high %v978, %v978
      %v1001 = vcombine.high %v985, %v985
      %v1002 = vcombine.high %v992, %v992
      %v1003 = vcombine.high %v999, %v999
      %v1012 = vadd.f32 %v940, %v978
      %v1013 = vadd.f32 %v941, %v992
      %v1014 = vadd.f32 %v942, %v1000
      %v1015 = vadd.f32 %v943, %v1002
      %v1016 = vadd.f32 %v944, %v985
      %v1017 = vadd.f32 %v945, %v999
      %v1018 = vadd.f32 %v946, %v1001
      %v1019 = vadd.f32 %v947, %v1003
      %v1020 = vadd.f32 %v948, %v978
      %v1021 = vadd.f32 %v949, %v992
      %v1032 = vcombine.low %v1012, %v1013
      %v1033 = vcombine.low %v1014, %v1015
      %v1034 = vcombine.low %v1016, %v1017
      %v1035 = vcombine.low %v1018, %v1019
      %v1037 = vunpack.c.l.s4 1966171168
      %v1038 = vunpack.c.0.s8 %v1037
      %v1039 = vlaneseq
      %v1040 = vshrl.u32 %v1039, 7
      %v1041 = vsub.s32 %v1038, %v1040
      %v1042 = vrot.slane %v1032, %v1041
      %v1044 = vunpack.c.l.s4 1966171168
      %v1045 = vunpack.c.0.s8 %v1044
      %v1046 = vlaneseq
      %v1047 = vshrl.u32 %v1046, 7
      %v1048 = vsub.s32 %v1045, %v1047
      %v1049 = vrot.slane %v1033, %v1048
      %v1051 = vunpack.c.l.s4 1966171168
      %v1052 = vunpack.c.0.s8 %v1051
      %v1053 = vlaneseq
      %v1054 = vshrl.u32 %v1053, 7
      %v1055 = vsub.s32 %v1052, %v1054
      %v1056 = vrot.slane %v1034, %v1055
      %v1058 = vunpack.c.l.s4 1966171168
      %v1059 = vunpack.c.0.s8 %v1058
      %v1060 = vlaneseq
      %v1061 = vshrl.u32 %v1060, 7
      %v1062 = vsub.s32 %v1059, %v1061
      %v1063 = vrot.slane %v1035, %v1062
      %v1064 = vcombine.low %v1042, %v1049
      %v1065 = vcombine.low %v1056, %v1063
      %v1067 = vunpack.c.l.s4 1966171168
      %v1068 = vunpack.c.0.s8 %v1067
      %v1069 = vlaneseq
      %v1070 = vshrl.u32 %v1069, 7
      %v1071 = vsub.s32 %v1068, %v1070
      %v1072 = vrot.slane %v1064, %v1071
      %v1074 = vunpack.c.l.s4 1966171168
      %v1075 = vunpack.c.0.s8 %v1074
      %v1076 = vlaneseq
      %v1077 = vshrl.u32 %v1076, 7
      %v1078 = vsub.s32 %v1075, %v1077
      %v1079 = vrot.slane %v1065, %v1078
      %v1080 = vcombine.low %v1072, %v1079
      %v1081 = vcombine.low %v1020, %v1021
      %v1083 = vunpack.c.l.s4 1966171168
      %v1084 = vunpack.c.0.s8 %v1083
      %v1085 = vlaneseq
      %v1086 = vshrl.u32 %v1085, 7
      %v1087 = vsub.s32 %v1084, %v1086
      %v1088 = vrot.slane %v1081, %v1087
      %v1090 = vunpack.c.l.s4 1966171168
      %v1091 = vunpack.c.0.s8 %v1090
      %v1092 = vlaneseq
      %v1093 = vshrl.u32 %v1092, 7
      %v1094 = vsub.s32 %v1091, %v1093
      %v1095 = vrot.slane %v1088, %v1094
      %v1098 = vpack.c.bf16 %v1095, %v1080
      %s1099 = smul.u32 %s28, 4
      %s1100 = smul.addr %s1099, 4
      %s1101 = scalar_lea.vmem %s3, %s1100
      %v1102 = vld [vmem:[%s1101] sm:$0xf]
      %v1103 = vld [vmem:[%s1101 + $0x4] sm:$0xf]
      %v1104 = vld [vmem:[%s1101 + $0x8] sm:$0xf]
      %v1105 = vld [vmem:[%s1101 + $0xc] sm:$0xf]
      %s1106 = scalar_lea.vmem %s4, %s28
      %v1107 = vld [vmem:[%s1106] sm:$0x1]
      %v1109 = vlaneseq
      %v1110 = vshrl.u32 %v1109, 7
      %v1111 = vsub.s32 0, %v1110
      %v1112 = vrot.slane %v1107, %v1111
      %v1118 = vunpack.c.l.b16 %v1102
      %v1119 = vunpack.c.l.b16 %v1103
      %v1120 = vunpack.c.l.b16 %v1104
      %v1121 = vunpack.c.l.b16 %v1105
      %v1122 = vpack.c.b16 %v1119, %v1118
      %v1123 = vpack.c.b16 %v1121, %v1120
      %v1127 = vsel %vm645, %v1098, 0
      %1129 = vmatprep.subr.bf16.mxu0 0
      %1130 = vmatpush1.bf16.msra.mxu0 0
      %1131 = vmatprep.subr.bf16.mxu0 0
      %1132 = vmatpush1.bf16.msra.mxu0 0
      %1133 = vmatprep.subr.bf16.mxu0 0
      %1134 = vmatpush1.bf16.msra.mxu0 0
      %1135 = vmatprep.subr.bf16.mxu0 0
      %1136 = vmatpush1.bf16.msra.mxu0 0
      %1137 = vmatprep.subr.bf16.mxu0 0
      %1138 = vmatpush1.bf16.msra.mxu0 0
      %1139 = vmatprep.subr.bf16.mxu0 0
      %1140 = vmatpush1.bf16.msra.mxu0 0
      %1141 = vmatprep.subr.bf16.mxu0 0
      %1142 = vmatpush1.bf16.msra.mxu0 %v1123
      %1143 = vmatprep.subr.bf16.mxu0 0
      %1144 = vmatpush1.bf16.msra.mxu0 %v1122
      %1145 = vmatprep.subr.bf16.mxu0 0
      %1146 = vmatpush2.bf16.msra.mxu0 0
      %1147 = vmatprep.subr.bf16.mxu0 0
      %1148 = vmatpush2.bf16.msra.mxu0 0
      %1149 = vmatprep.subr.bf16.mxu0 0
      %1150 = vmatpush2.bf16.msra.mxu0 0
      %1151 = vmatprep.subr.bf16.mxu0 0
      %1152 = vmatpush2.bf16.msra.mxu0 0
      %1153 = vmatprep.subr.bf16.mxu0 0
      %1154 = vmatpush2.bf16.msra.mxu0 0
      %1155 = vmatprep.subr.bf16.mxu0 0
      %1156 = vmatpush2.bf16.msra.mxu0 0
      %1157 = vmatprep.subr.bf16.mxu0 0
      %1158 = vmatpush2.bf16.msra.mxu0 0
      %1159 = vmatprep.subr.bf16.mxu0 0
      %1160 = vmatpush2.bf16.msra.mxu0 0
      %1161 = vmatprep.mubr.bf16.mxu0 0
      %1162 = vmatmul.mubr.bf16.gmra.mxu0 %v1127
      %v1163 = vpop.f32.mrf.mxu0
      %v1164 = vadd.f32 %v1112, %v1163
      %v1165 = vpop.f32.mrf.mxu0
      %v1166 = vpop.f32.mrf.mxu0
      %v1167 = vadd.f32 %v1112, %v1166
      %v1168 = vpop.f32.mrf.mxu0
      %1169 = vdwg.mxu0
      %v1170 = vpack.c.bf16 %v1167, %v1164
      %1172 = vrot.lane.b32.xlu0 %v1170, 96
      %v1173 = vpop.permute.xlu0 %1172
      %vm1174 = vcmask 64512
      %v1176 = vsel %vm1174, %v1170, 0
      %v1179 = vsel %vm1174, %v1173, 0
      %1181 = vmatprep.subr.bf16.mxu0 0
      %1182 = vmatpush1.bf16.xpose.msra.mxu0 0
      %1183 = vmatprep.subr.bf16.mxu0 0
      %1184 = vmatpush1.bf16.xpose.msra.mxu0 0
      %1185 = vmatprep.subr.bf16.mxu0 0
      %1186 = vmatpush1.bf16.xpose.msra.mxu0 0
      %1187 = vmatprep.subr.bf16.mxu0 0
      %1188 = vmatpush1.bf16.xpose.msra.mxu0 0
      %1189 = vmatprep.subr.bf16.mxu0 0
      %1190 = vmatpush1.bf16.xpose.msra.mxu0 0
      %1191 = vmatprep.subr.bf16.mxu0 0
      %1192 = vmatpush1.bf16.xpose.msra.mxu0 0
      %1193 = vmatprep.subr.bf16.mxu0 0
      %1194 = vmatpush1.bf16.xpose.msra.mxu0 0
      %1195 = vmatprep.subr.bf16.mxu0 0
      %1196 = vmatpush1.bf16.xpose.msra.mxu0 %v1179
      %1197 = vmatprep.subr.bf16.mxu0 0
      %1198 = vmatpush2.bf16.xpose.msra.mxu0 0
      %1199 = vmatprep.subr.bf16.mxu0 0
      %1200 = vmatpush2.bf16.xpose.msra.mxu0 0
      %1201 = vmatprep.subr.bf16.mxu0 0
      %1202 = vmatpush2.bf16.xpose.msra.mxu0 0
      %1203 = vmatprep.subr.bf16.mxu0 0
      %1204 = vmatpush2.bf16.xpose.msra.mxu0 0
      %1205 = vmatprep.subr.bf16.mxu0 0
      %1206 = vmatpush2.bf16.xpose.msra.mxu0 0
      %1207 = vmatprep.subr.bf16.mxu0 0
      %1208 = vmatpush2.bf16.xpose.msra.mxu0 0
      %1209 = vmatprep.subr.bf16.mxu0 0
      %1210 = vmatpush2.bf16.xpose.msra.mxu0 0
      %1211 = vmatprep.subr.bf16.mxu0 0
      %1212 = vmatpush2.bf16.xpose.msra.mxu0 0
      %1213 = vmatprep.mubr.bf16.mxu0 0
      %1214 = vmatmul.mubr.bf16.gmra.mxu0 %v1176
      %v1215 = vpop.f32.mrf.mxu0
      %v1216 = vadd.f32 0.0, %v1215
      %v1217 = vpop.f32.mrf.mxu0
      %v1218 = vpop.f32.mrf.mxu0
      %v1219 = vpop.f32.mrf.mxu0
      %1220 = vdwg.mxu0
      %v1221 = vmul.f32 %v1216, 0.35355338
      %vm1222 = vcmask 36864
      %v1223 = vsel %vm1222, %v1221, -inf
      %1224 = vmax.xlane.f32.xlu0 %v1223
      %v1225 = vpop.xlane.xlu0 %1224
      %v1226 = vsub.f32 %v1221, %v1225
      %v1227 = vmul.f32 %v1226, 1.442695
      %v1228 = vpow.pop %v1227
      %v1229 = vsel %vm1222, %v1228, 0.0
      %1230 = vadd.xlane.f32.xlu0 %v1229
      %v1231 = vpop.xlane.xlu0 %1230
      %v1232 = vrcp.pop %v1231
      %v1233 = vmul.f32 %v1228, %v1232
      %v1234 = vpack.c.bf16 %v1233, %v1233
      %1235 = vrot.lane.b32.xlu0 %v1170, 64
      %v1236 = vpop.permute.xlu0 %1235
      %vm1237 = vcmask 39936
      %v1239 = vsel %vm1237, %v1234, 0
      %vm1241 = vcmask 1041408
      %vm1242 = vcmask 1042432
      %v1243 = vsel %vm1241, 4294967295, 65535
      %v1244 = vsel %vm1242, %v1243, 0
      %v1246 = vand.u32 %v1236, %v1244
      %1248 = vmatprep.subr.bf16.mxu0 0
      %1249 = vmatpush1.bf16.msra.mxu0 0
      %1250 = vmatprep.subr.bf16.mxu0 0
      %1251 = vmatpush1.bf16.msra.mxu0 0
      %1252 = vmatprep.subr.bf16.mxu0 0
      %1253 = vmatpush1.bf16.msra.mxu0 0
      %1254 = vmatprep.subr.bf16.mxu0 0
      %1255 = vmatpush1.bf16.msra.mxu0 0
      %1256 = vmatprep.subr.bf16.mxu0 0
      %1257 = vmatpush1.bf16.msra.mxu0 0
      %1258 = vmatprep.subr.bf16.mxu0 0
      %1259 = vmatpush1.bf16.msra.mxu0 0
      %1260 = vmatprep.subr.bf16.mxu0 0
      %1261 = vmatpush1.bf16.msra.mxu0 0
      %1262 = vmatprep.subr.bf16.mxu0 0
      %1263 = vmatpush1.bf16.msra.mxu0 %v1246
      %1264 = vmatprep.subr.bf16.mxu0 0
      %1265 = vmatpush2.bf16.msra.mxu0 0
      %1266 = vmatprep.subr.bf16.mxu0 0
      %1267 = vmatpush2.bf16.msra.mxu0 0
      %1268 = vmatprep.subr.bf16.mxu0 0
      %1269 = vmatpush2.bf16.msra.mxu0 0
      %1270 = vmatprep.subr.bf16.mxu0 0
      %1271 = vmatpush2.bf16.msra.mxu0 0
      %1272 = vmatprep.subr.bf16.mxu0 0
      %1273 = vmatpush2.bf16.msra.mxu0 0
      %1274 = vmatprep.subr.bf16.mxu0 0
      %1275 = vmatpush2.bf16.msra.mxu0 0
      %1276 = vmatprep.subr.bf16.mxu0 0
      %1277 = vmatpush2.bf16.msra.mxu0 0
      %1278 = vmatprep.subr.bf16.mxu0 0
      %1279 = vmatpush2.bf16.msra.mxu0 0
      %1280 = vmatprep.mubr.bf16.mxu0 0
      %1281 = vmatmul.mubr.bf16.gmra.mxu0 %v1239
      %v1282 = vpop.f32.mrf.mxu0
      %v1283 = vadd.f32 0.0, %v1282
      %v1284 = vpop.f32.mrf.mxu0
      %v1285 = vpop.f32.mrf.mxu0
      %v1286 = vpop.f32.mrf.mxu0
      %1287 = vdwg.mxu0
      %vm1288 = vcmask 61440
      %1289 = vst.msk [vmem:[#allocation2] sm:$0x1f] %vm1288, %v1283
      %1290 = vrot.lane.b32.xlu0 %v1170, 120
      %v1291 = vpop.permute.xlu0 %1290
      %1292 = vrot.lane.b32.xlu0 %v1170, 88
      %v1293 = vpop.permute.xlu0 %1292
      %v1295 = vsel %vm1174, %v1291, 0
      %v1298 = vsel %vm1174, %v1293, 0
      %1300 = vmatprep.subr.bf16.mxu0 0
      %1301 = vmatpush1.bf16.xpose.msra.mxu0 0
      %1302 = vmatprep.subr.bf16.mxu0 0
      %1303 = vmatpush1.bf16.xpose.msra.mxu0 0
      %1304 = vmatprep.subr.bf16.mxu0 0
      %1305 = vmatpush1.bf16.xpose.msra.mxu0 0
      %1306 = vmatprep.subr.bf16.mxu0 0
      %1307 = vmatpush1.bf16.xpose.msra.mxu0 0
      %1308 = vmatprep.subr.bf16.mxu0 0
      %1309 = vmatpush1.bf16.xpose.msra.mxu0 0
      %1310 = vmatprep.subr.bf16.mxu0 0
      %1311 = vmatpush1.bf16.xpose.msra.mxu0 0
      %1312 = vmatprep.subr.bf16.mxu0 0
      %1313 = vmatpush1.bf16.xpose.msra.mxu0 0
      %1314 = vmatprep.subr.bf16.mxu0 0
      %1315 = vmatpush1.bf16.xpose.msra.mxu0 %v1298
      %1316 = vmatprep.subr.bf16.mxu0 0
      %1317 = vmatpush2.bf16.xpose.msra.mxu0 0
      %1318 = vmatprep.subr.bf16.mxu0 0
      %1319 = vmatpush2.bf16.xpose.msra.mxu0 0
      %1320 = vmatprep.subr.bf16.mxu0 0
      %1321 = vmatpush2.bf16.xpose.msra.mxu0 0
      %1322 = vmatprep.subr.bf16.mxu0 0
      %1323 = vmatpush2.bf16.xpose.msra.mxu0 0
      %1324 = vmatprep.subr.bf16.mxu0 0
      %1325 = vmatpush2.bf16.xpose.msra.mxu0 0
      %1326 = vmatprep.subr.bf16.mxu0 0
      %1327 = vmatpush2.bf16.xpose.msra.mxu0 0
      %1328 = vmatprep.subr.bf16.mxu0 0
      %1329 = vmatpush2.bf16.xpose.msra.mxu0 0
      %1330 = vmatprep.subr.bf16.mxu0 0
      %1331 = vmatpush2.bf16.xpose.msra.mxu0 0
      %1332 = vmatprep.mubr.bf16.mxu0 0
      %1333 = vmatmul.mubr.bf16.gmra.mxu0 %v1295
      %v1334 = vpop.f32.mrf.mxu0
      %v1335 = vadd.f32 0.0, %v1334
      %v1336 = vpop.f32.mrf.mxu0
      %v1337 = vpop.f32.mrf.mxu0
      %v1338 = vpop.f32.mrf.mxu0
      %1339 = vdwg.mxu0
      %v1340 = vmul.f32 %v1335, 0.35355338
      %v1341 = vsel %vm1222, %v1340, -inf
      %1342 = vmax.xlane.f32.xlu0 %v1341
      %v1343 = vpop.xlane.xlu0 %1342
      %v1344 = vsub.f32 %v1340, %v1343
      %v1345 = vmul.f32 %v1344, 1.442695
      %v1346 = vpow.pop %v1345
      %v1347 = vsel %vm1222, %v1346, 0.0
      %1348 = vadd.xlane.f32.xlu0 %v1347
      %v1349 = vpop.xlane.xlu0 %1348
      %v1350 = vrcp.pop %v1349
      %v1351 = vmul.f32 %v1346, %v1350
      %v1352 = vpack.c.bf16 %v1351, %v1351
      %1353 = vrot.lane.b32.xlu0 %v1170, 56
      %v1354 = vpop.permute.xlu0 %1353
      %v1356 = vsel %vm1237, %v1352, 0
      %v1359 = vand.u32 %v1354, %v1244
      %1361 = vmatprep.subr.bf16.mxu0 0
      %1362 = vmatpush1.bf16.msra.mxu0 0
      %1363 = vmatprep.subr.bf16.mxu0 0
      %1364 = vmatpush1.bf16.msra.mxu0 0
      %1365 = vmatprep.subr.bf16.mxu0 0
      %1366 = vmatpush1.bf16.msra.mxu0 0
      %1367 = vmatprep.subr.bf16.mxu0 0
      %1368 = vmatpush1.bf16.msra.mxu0 0
      %1369 = vmatprep.subr.bf16.mxu0 0
      %1370 = vmatpush1.bf16.msra.mxu0 0
      %1371 = vmatprep.subr.bf16.mxu0 0
      %1372 = vmatpush1.bf16.msra.mxu0 0
      %1373 = vmatprep.subr.bf16.mxu0 0
      %1374 = vmatpush1.bf16.msra.mxu0 0
      %1375 = vmatprep.subr.bf16.mxu0 0
      %1376 = vmatpush1.bf16.msra.mxu0 %v1359
      %1377 = vmatprep.subr.bf16.mxu0 0
      %1378 = vmatpush2.bf16.msra.mxu0 0
      %1379 = vmatprep.subr.bf16.mxu0 0
      %1380 = vmatpush2.bf16.msra.mxu0 0
      %1381 = vmatprep.subr.bf16.mxu0 0
      %1382 = vmatpush2.bf16.msra.mxu0 0
      %1383 = vmatprep.subr.bf16.mxu0 0
      %1384 = vmatpush2.bf16.msra.mxu0 0
      %1385 = vmatprep.subr.bf16.mxu0 0
      %1386 = vmatpush2.bf16.msra.mxu0 0
      %1387 = vmatprep.subr.bf16.mxu0 0
      %1388 = vmatpush2.bf16.msra.mxu0 0
      %1389 = vmatprep.subr.bf16.mxu0 0
      %1390 = vmatpush2.bf16.msra.mxu0 0
      %1391 = vmatprep.subr.bf16.mxu0 0
      %1392 = vmatpush2.bf16.msra.mxu0 0
      %1393 = vmatprep.mubr.bf16.mxu0 0
      %1394 = vmatmul.mubr.bf16.gmra.mxu0 %v1356
      %v1395 = vpop.f32.mrf.mxu0
      %v1396 = vadd.f32 0.0, %v1395
      %v1397 = vpop.f32.mrf.mxu0
      %v1398 = vpop.f32.mrf.mxu0
      %v1399 = vpop.f32.mrf.mxu0
      %1400 = vdwg.mxu0
      %1402 = vrot.lane.b32.xlu0 %v1396, 8
      %v1403 = vpop.permute.xlu0 %1402
      %vm1405 = vcmask 127040
      %1406 = vst.msk [vmem:[#allocation2] sm:$0x1f] %vm1405, %v1403
      %1407 = vrot.lane.b32.xlu0 %v1170, 112
      %v1408 = vpop.permute.xlu0 %1407
      %1409 = vrot.lane.b32.xlu0 %v1170, 80
      %v1410 = vpop.permute.xlu0 %1409
      %v1412 = vsel %vm1174, %v1408, 0
      %v1415 = vsel %vm1174, %v1410, 0
      %1417 = vmatprep.subr.bf16.mxu0 0
      %1418 = vmatpush1.bf16.xpose.msra.mxu0 0
      %1419 = vmatprep.subr.bf16.mxu0 0
      %1420 = vmatpush1.bf16.xpose.msra.mxu0 0
      %1421 = vmatprep.subr.bf16.mxu0 0
      %1422 = vmatpush1.bf16.xpose.msra.mxu0 0
      %1423 = vmatprep.subr.bf16.mxu0 0
      %1424 = vmatpush1.bf16.xpose.msra.mxu0 0
      %1425 = vmatprep.subr.bf16.mxu0 0
      %1426 = vmatpush1.bf16.xpose.msra.mxu0 0
      %1427 = vmatprep.subr.bf16.mxu0 0
      %1428 = vmatpush1.bf16.xpose.msra.mxu0 0
      %1429 = vmatprep.subr.bf16.mxu0 0
      %1430 = vmatpush1.bf16.xpose.msra.mxu0 0
      %1431 = vmatprep.subr.bf16.mxu0 0
      %1432 = vmatpush1.bf16.xpose.msra.mxu0 %v1415
      %1433 = vmatprep.subr.bf16.mxu0 0
      %1434 = vmatpush2.bf16.xpose.msra.mxu0 0
      %1435 = vmatprep.subr.bf16.mxu0 0
      %1436 = vmatpush2.bf16.xpose.msra.mxu0 0
      %1437 = vmatprep.subr.bf16.mxu0 0
      %1438 = vmatpush2.bf16.xpose.msra.mxu0 0
      %1439 = vmatprep.subr.bf16.mxu0 0
      %1440 = vmatpush2.bf16.xpose.msra.mxu0 0
      %1441 = vmatprep.subr.bf16.mxu0 0
      %1442 = vmatpush2.bf16.xpose.msra.mxu0 0
      %1443 = vmatprep.subr.bf16.mxu0 0
      %1444 = vmatpush2.bf16.xpose.msra.mxu0 0
      %1445 = vmatprep.subr.bf16.mxu0 0
      %1446 = vmatpush2.bf16.xpose.msra.mxu0 0
      %1447 = vmatprep.subr.bf16.mxu0 0
      %1448 = vmatpush2.bf16.xpose.msra.mxu0 0
      %1449 = vmatprep.mubr.bf16.mxu0 0
      %1450 = vmatmul.mubr.bf16.gmra.mxu0 %v1412
      %v1451 = vpop.f32.mrf.mxu0
      %v1452 = vadd.f32 0.0, %v1451
      %v1453 = vpop.f32.mrf.mxu0
      %v1454 = vpop.f32.mrf.mxu0
      %v1455 = vpop.f32.mrf.mxu0
      %1456 = vdwg.mxu0
      %v1457 = vmul.f32 %v1452, 0.35355338
      %v1458 = vsel %vm1222, %v1457, -inf
      %1459 = vmax.xlane.f32.xlu0 %v1458
      %v1460 = vpop.xlane.xlu0 %1459
      %v1461 = vsub.f32 %v1457, %v1460
      %v1462 = vmul.f32 %v1461, 1.442695
      %v1463 = vpow.pop %v1462
      %v1464 = vsel %vm1222, %v1463, 0.0
      %1465 = vadd.xlane.f32.xlu0 %v1464
      %v1466 = vpop.xlane.xlu0 %1465
      %v1467 = vrcp.pop %v1466
      %v1468 = vmul.f32 %v1463, %v1467
      %v1469 = vpack.c.bf16 %v1468, %v1468
      %1470 = vrot.lane.b32.xlu0 %v1170, 48
      %v1471 = vpop.permute.xlu0 %1470
      %v1473 = vsel %vm1237, %v1469, 0
      %v1476 = vand.u32 %v1471, %v1244
      %1478 = vmatprep.subr.bf16.mxu0 0
      %1479 = vmatpush1.bf16.msra.mxu0 0
      %1480 = vmatprep.subr.bf16.mxu0 0
      %1481 = vmatpush1.bf16.msra.mxu0 0
      %1482 = vmatprep.subr.bf16.mxu0 0
      %1483 = vmatpush1.bf16.msra.mxu0 0
      %1484 = vmatprep.subr.bf16.mxu0 0
      %1485 = vmatpush1.bf16.msra.mxu0 0
      %1486 = vmatprep.subr.bf16.mxu0 0
      %1487 = vmatpush1.bf16.msra.mxu0 0
      %1488 = vmatprep.subr.bf16.mxu0 0
      %1489 = vmatpush1.bf16.msra.mxu0 0
      %1490 = vmatprep.subr.bf16.mxu0 0
      %1491 = vmatpush1.bf16.msra.mxu0 0
      %1492 = vmatprep.subr.bf16.mxu0 0
      %1493 = vmatpush1.bf16.msra.mxu0 %v1476
      %1494 = vmatprep.subr.bf16.mxu0 0
      %1495 = vmatpush2.bf16.msra.mxu0 0
      %1496 = vmatprep.subr.bf16.mxu0 0
      %1497 = vmatpush2.bf16.msra.mxu0 0
      %1498 = vmatprep.subr.bf16.mxu0 0
      %1499 = vmatpush2.bf16.msra.mxu0 0
      %1500 = vmatprep.subr.bf16.mxu0 0
      %1501 = vmatpush2.bf16.msra.mxu0 0
      %1502 = vmatprep.subr.bf16.mxu0 0
      %1503 = vmatpush2.bf16.msra.mxu0 0
      %1504 = vmatprep.subr.bf16.mxu0 0
      %1505 = vmatpush2.bf16.msra.mxu0 0
      %1506 = vmatprep.subr.bf16.mxu0 0
      %1507 = vmatpush2.bf16.msra.mxu0 0
      %1508 = vmatprep.subr.bf16.mxu0 0
      %1509 = vmatpush2.bf16.msra.mxu0 0
      %1510 = vmatprep.mubr.bf16.mxu0 0
      %1511 = vmatmul.mubr.bf16.gmra.mxu0 %v1473
      %v1512 = vpop.f32.mrf.mxu0
      %v1513 = vadd.f32 0.0, %v1512
      %v1514 = vpop.f32.mrf.mxu0
      %v1515 = vpop.f32.mrf.mxu0
      %v1516 = vpop.f32.mrf.mxu0
      %1517 = vdwg.mxu0
      %1519 = vrot.lane.b32.xlu0 %v1513, 16
      %v1520 = vpop.permute.xlu0 %1519
      %vm1522 = vcmask 192640
      %1523 = vst.msk [vmem:[#allocation2] sm:$0x1f] %vm1522, %v1520
      %1524 = vrot.lane.b32.xlu0 %v1170, 104
      %v1525 = vpop.permute.xlu0 %1524
      %1526 = vrot.lane.b32.xlu0 %v1170, 72
      %v1527 = vpop.permute.xlu0 %1526
      %v1529 = vsel %vm1174, %v1525, 0
      %v1532 = vsel %vm1174, %v1527, 0
      %1534 = vmatprep.subr.bf16.mxu0 0
      %1535 = vmatpush1.bf16.xpose.msra.mxu0 0
      %1536 = vmatprep.subr.bf16.mxu0 0
      %1537 = vmatpush1.bf16.xpose.msra.mxu0 0
      %1538 = vmatprep.subr.bf16.mxu0 0
      %1539 = vmatpush1.bf16.xpose.msra.mxu0 0
      %1540 = vmatprep.subr.bf16.mxu0 0
      %1541 = vmatpush1.bf16.xpose.msra.mxu0 0
      %1542 = vmatprep.subr.bf16.mxu0 0
      %1543 = vmatpush1.bf16.xpose.msra.mxu0 0
      %1544 = vmatprep.subr.bf16.mxu0 0
      %1545 = vmatpush1.bf16.xpose.msra.mxu0 0
      %1546 = vmatprep.subr.bf16.mxu0 0
      %1547 = vmatpush1.bf16.xpose.msra.mxu0 0
      %1548 = vmatprep.subr.bf16.mxu0 0
      %1549 = vmatpush1.bf16.xpose.msra.mxu0 %v1532
      %1550 = vmatprep.subr.bf16.mxu0 0
      %1551 = vmatpush2.bf16.xpose.msra.mxu0 0
      %1552 = vmatprep.subr.bf16.mxu0 0
      %1553 = vmatpush2.bf16.xpose.msra.mxu0 0
      %1554 = vmatprep.subr.bf16.mxu0 0
      %1555 = vmatpush2.bf16.xpose.msra.mxu0 0
      %1556 = vmatprep.subr.bf16.mxu0 0
      %1557 = vmatpush2.bf16.xpose.msra.mxu0 0
      %1558 = vmatprep.subr.bf16.mxu0 0
      %1559 = vmatpush2.bf16.xpose.msra.mxu0 0
      %1560 = vmatprep.subr.bf16.mxu0 0
      %1561 = vmatpush2.bf16.xpose.msra.mxu0 0
      %1562 = vmatprep.subr.bf16.mxu0 0
      %1563 = vmatpush2.bf16.xpose.msra.mxu0 0
      %1564 = vmatprep.subr.bf16.mxu0 0
      %1565 = vmatpush2.bf16.xpose.msra.mxu0 0
      %1566 = vmatprep.mubr.bf16.mxu0 0
      %1567 = vmatmul.mubr.bf16.gmra.mxu0 %v1529
      %v1568 = vpop.f32.mrf.mxu0
      %v1569 = vadd.f32 0.0, %v1568
      %v1570 = vpop.f32.mrf.mxu0
      %v1571 = vpop.f32.mrf.mxu0
      %v1572 = vpop.f32.mrf.mxu0
      %1573 = vdwg.mxu0
      %v1574 = vmul.f32 %v1569, 0.35355338
      %v1575 = vsel %vm1222, %v1574, -inf
      %1576 = vmax.xlane.f32.xlu0 %v1575
      %v1577 = vpop.xlane.xlu0 %1576
      %v1578 = vsub.f32 %v1574, %v1577
      %v1579 = vmul.f32 %v1578, 1.442695
      %v1580 = vpow.pop %v1579
      %v1581 = vsel %vm1222, %v1580, 0.0
      %1582 = vadd.xlane.f32.xlu0 %v1581
      %v1583 = vpop.xlane.xlu0 %1582
      %v1584 = vrcp.pop %v1583
      %v1585 = vmul.f32 %v1580, %v1584
      %v1586 = vpack.c.bf16 %v1585, %v1585
      %1587 = vrot.lane.b32.xlu0 %v1170, 40
      %v1588 = vpop.permute.xlu0 %1587
      %v1590 = vsel %vm1237, %v1586, 0
      %v1593 = vand.u32 %v1588, %v1244
      %1595 = vmatprep.subr.bf16.mxu0 0
      %1596 = vmatpush1.bf16.msra.mxu0 0
      %1597 = vmatprep.subr.bf16.mxu0 0
      %1598 = vmatpush1.bf16.msra.mxu0 0
      %1599 = vmatprep.subr.bf16.mxu0 0
      %1600 = vmatpush1.bf16.msra.mxu0 0
      %1601 = vmatprep.subr.bf16.mxu0 0
      %1602 = vmatpush1.bf16.msra.mxu0 0
      %1603 = vmatprep.subr.bf16.mxu0 0
      %1604 = vmatpush1.bf16.msra.mxu0 0
      %1605 = vmatprep.subr.bf16.mxu0 0
      %1606 = vmatpush1.bf16.msra.mxu0 0
      %1607 = vmatprep.subr.bf16.mxu0 0
      %1608 = vmatpush1.bf16.msra.mxu0 0
      %1609 = vmatprep.subr.bf16.mxu0 0
      %1610 = vmatpush1.bf16.msra.mxu0 %v1593
      %1611 = vmatprep.subr.bf16.mxu0 0
      %1612 = vmatpush2.bf16.msra.mxu0 0
      %1613 = vmatprep.subr.bf16.mxu0 0
      %1614 = vmatpush2.bf16.msra.mxu0 0
      %1615 = vmatprep.subr.bf16.mxu0 0
      %1616 = vmatpush2.bf16.msra.mxu0 0
      %1617 = vmatprep.subr.bf16.mxu0 0
      %1618 = vmatpush2.bf16.msra.mxu0 0
      %1619 = vmatprep.subr.bf16.mxu0 0
      %1620 = vmatpush2.bf16.msra.mxu0 0
      %1621 = vmatprep.subr.bf16.mxu0 0
      %1622 = vmatpush2.bf16.msra.mxu0 0
      %1623 = vmatprep.subr.bf16.mxu0 0
      %1624 = vmatpush2.bf16.msra.mxu0 0
      %1625 = vmatprep.subr.bf16.mxu0 0
      %1626 = vmatpush2.bf16.msra.mxu0 0
      %1627 = vmatprep.mubr.bf16.mxu0 0
      %1628 = vmatmul.mubr.bf16.gmra.mxu0 %v1590
      %v1629 = vpop.f32.mrf.mxu0
      %v1630 = vadd.f32 0.0, %v1629
      %v1631 = vpop.f32.mrf.mxu0
      %v1632 = vpop.f32.mrf.mxu0
      %v1633 = vpop.f32.mrf.mxu0
      %1634 = vdwg.mxu0
      %1636 = vrot.lane.b32.xlu0 %v1630, 24
      %v1637 = vpop.permute.xlu0 %1636
      %vm1639 = vcmask 258240
      %1640 = vst.msk [vmem:[#allocation2] sm:$0x1f] %vm1639, %v1637
      %v1641 = vshrl.u32 %v1170, 16
      %v1643 = vrot.slane %v1641, 2
      %v1644 = vshll.u32 %v1170, 16
      %v1646 = vrot.slane %v1644, 3
      %v1647 = vor.u32 %v1643, %v1646
      %1648 = vrot.lane.b32.xlu0 %v1647, 96
      %v1649 = vpop.permute.xlu0 %1648
      %v1651 = vsel %vm1174, %v1647, 0
      %v1654 = vsel %vm1174, %v1649, 0
      %1656 = vmatprep.subr.bf16.mxu0 0
      %1657 = vmatpush1.bf16.xpose.msra.mxu0 0
      %1658 = vmatprep.subr.bf16.mxu0 0
      %1659 = vmatpush1.bf16.xpose.msra.mxu0 0
      %1660 = vmatprep.subr.bf16.mxu0 0
      %1661 = vmatpush1.bf16.xpose.msra.mxu0 0
      %1662 = vmatprep.subr.bf16.mxu0 0
      %1663 = vmatpush1.bf16.xpose.msra.mxu0 0
      %1664 = vmatprep.subr.bf16.mxu0 0
      %1665 = vmatpush1.bf16.xpose.msra.mxu0 0
      %1666 = vmatprep.subr.bf16.mxu0 0
      %1667 = vmatpush1.bf16.xpose.msra.mxu0 0
      %1668 = vmatprep.subr.bf16.mxu0 0
      %1669 = vmatpush1.bf16.xpose.msra.mxu0 0
      %1670 = vmatprep.subr.bf16.mxu0 0
      %1671 = vmatpush1.bf16.xpose.msra.mxu0 %v1654
      %1672 = vmatprep.subr.bf16.mxu0 0
      %1673 = vmatpush2.bf16.xpose.msra.mxu0 0
      %1674 = vmatprep.subr.bf16.mxu0 0
      %1675 = vmatpush2.bf16.xpose.msra.mxu0 0
      %1676 = vmatprep.subr.bf16.mxu0 0
      %1677 = vmatpush2.bf16.xpose.msra.mxu0 0
      %1678 = vmatprep.subr.bf16.mxu0 0
      %1679 = vmatpush2.bf16.xpose.msra.mxu0 0
      %1680 = vmatprep.subr.bf16.mxu0 0
      %1681 = vmatpush2.bf16.xpose.msra.mxu0 0
      %1682 = vmatprep.subr.bf16.mxu0 0
      %1683 = vmatpush2.bf16.xpose.msra.mxu0 0
      %1684 = vmatprep.subr.bf16.mxu0 0
      %1685 = vmatpush2.bf16.xpose.msra.mxu0 0
      %1686 = vmatprep.subr.bf16.mxu0 0
      %1687 = vmatpush2.bf16.xpose.msra.mxu0 0
      %1688 = vmatprep.mubr.bf16.mxu0 0
      %1689 = vmatmul.mubr.bf16.gmra.mxu0 %v1651
      %v1690 = vpop.f32.mrf.mxu0
      %v1691 = vadd.f32 0.0, %v1690
      %v1692 = vpop.f32.mrf.mxu0
      %v1693 = vpop.f32.mrf.mxu0
      %v1694 = vpop.f32.mrf.mxu0
      %1695 = vdwg.mxu0
      %v1696 = vmul.f32 %v1691, 0.35355338
      %v1697 = vsel %vm1222, %v1696, -inf
      %1698 = vmax.xlane.f32.xlu0 %v1697
      %v1699 = vpop.xlane.xlu0 %1698
      %v1700 = vsub.f32 %v1696, %v1699
      %v1701 = vmul.f32 %v1700, 1.442695
      %v1702 = vpow.pop %v1701
      %v1703 = vsel %vm1222, %v1702, 0.0
      %1704 = vadd.xlane.f32.xlu0 %v1703
      %v1705 = vpop.xlane.xlu0 %1704
      %v1706 = vrcp.pop %v1705
      %v1707 = vmul.f32 %v1702, %v1706
      %v1708 = vpack.c.bf16 %v1707, %v1707
      %1709 = vrot.lane.b32.xlu0 %v1647, 64
      %v1710 = vpop.permute.xlu0 %1709
      %v1712 = vsel %vm1237, %v1708, 0
      %v1715 = vand.u32 %v1710, %v1244
      %1717 = vmatprep.subr.bf16.mxu0 0
      %1718 = vmatpush1.bf16.msra.mxu0 0
      %1719 = vmatprep.subr.bf16.mxu0 0
      %1720 = vmatpush1.bf16.msra.mxu0 0
      %1721 = vmatprep.subr.bf16.mxu0 0
      %1722 = vmatpush1.bf16.msra.mxu0 0
      %1723 = vmatprep.subr.bf16.mxu0 0
      %1724 = vmatpush1.bf16.msra.mxu0 0
      %1725 = vmatprep.subr.bf16.mxu0 0
      %1726 = vmatpush1.bf16.msra.mxu0 0
      %1727 = vmatprep.subr.bf16.mxu0 0
      %1728 = vmatpush1.bf16.msra.mxu0 0
      %1729 = vmatprep.subr.bf16.mxu0 0
      %1730 = vmatpush1.bf16.msra.mxu0 0
      %1731 = vmatprep.subr.bf16.mxu0 0
      %1732 = vmatpush1.bf16.msra.mxu0 %v1715
      %1733 = vmatprep.subr.bf16.mxu0 0
      %1734 = vmatpush2.bf16.msra.mxu0 0
      %1735 = vmatprep.subr.bf16.mxu0 0
      %1736 = vmatpush2.bf16.msra.mxu0 0
      %1737 = vmatprep.subr.bf16.mxu0 0
      %1738 = vmatpush2.bf16.msra.mxu0 0
      %1739 = vmatprep.subr.bf16.mxu0 0
      %1740 = vmatpush2.bf16.msra.mxu0 0
      %1741 = vmatprep.subr.bf16.mxu0 0
      %1742 = vmatpush2.bf16.msra.mxu0 0
      %1743 = vmatprep.subr.bf16.mxu0 0
      %1744 = vmatpush2.bf16.msra.mxu0 0
      %1745 = vmatprep.subr.bf16.mxu0 0
      %1746 = vmatpush2.bf16.msra.mxu0 0
      %1747 = vmatprep.subr.bf16.mxu0 0
      %1748 = vmatpush2.bf16.msra.mxu0 0
      %1749 = vmatprep.mubr.bf16.mxu0 0
      %1750 = vmatmul.mubr.bf16.gmra.mxu0 %v1712
      %v1751 = vpop.f32.mrf.mxu0
      %v1752 = vadd.f32 0.0, %v1751
      %v1753 = vpop.f32.mrf.mxu0
      %v1754 = vpop.f32.mrf.mxu0
      %v1755 = vpop.f32.mrf.mxu0
      %1756 = vdwg.mxu0
      %1757 = vst.msk [vmem:[#allocation2 + $0x5] sm:$0x1f] %vm1288, %v1752
      %1758 = vrot.lane.b32.xlu0 %v1647, 120
      %v1759 = vpop.permute.xlu0 %1758
      %1760 = vrot.lane.b32.xlu0 %v1647, 88
      %v1761 = vpop.permute.xlu0 %1760
      %v1763 = vsel %vm1174, %v1759, 0
      %v1766 = vsel %vm1174, %v1761, 0
      %1768 = vmatprep.subr.bf16.mxu0 0
      %1769 = vmatpush1.bf16.xpose.msra.mxu0 0
      %1770 = vmatprep.subr.bf16.mxu0 0
      %1771 = vmatpush1.bf16.xpose.msra.mxu0 0
      %1772 = vmatprep.subr.bf16.mxu0 0
      %1773 = vmatpush1.bf16.xpose.msra.mxu0 0
      %1774 = vmatprep.subr.bf16.mxu0 0
      %1775 = vmatpush1.bf16.xpose.msra.mxu0 0
      %1776 = vmatprep.subr.bf16.mxu0 0
      %1777 = vmatpush1.bf16.xpose.msra.mxu0 0
      %1778 = vmatprep.subr.bf16.mxu0 0
      %1779 = vmatpush1.bf16.xpose.msra.mxu0 0
      %1780 = vmatprep.subr.bf16.mxu0 0
      %1781 = vmatpush1.bf16.xpose.msra.mxu0 0
      %1782 = vmatprep.subr.bf16.mxu0 0
      %1783 = vmatpush1.bf16.xpose.msra.mxu0 %v1766
      %1784 = vmatprep.subr.bf16.mxu0 0
      %1785 = vmatpush2.bf16.xpose.msra.mxu0 0
      %1786 = vmatprep.subr.bf16.mxu0 0
      %1787 = vmatpush2.bf16.xpose.msra.mxu0 0
      %1788 = vmatprep.subr.bf16.mxu0 0
      %1789 = vmatpush2.bf16.xpose.msra.mxu0 0
      %1790 = vmatprep.subr.bf16.mxu0 0
      %1791 = vmatpush2.bf16.xpose.msra.mxu0 0
      %1792 = vmatprep.subr.bf16.mxu0 0
      %1793 = vmatpush2.bf16.xpose.msra.mxu0 0
      %1794 = vmatprep.subr.bf16.mxu0 0
      %1795 = vmatpush2.bf16.xpose.msra.mxu0 0
      %1796 = vmatprep.subr.bf16.mxu0 0
      %1797 = vmatpush2.bf16.xpose.msra.mxu0 0
      %1798 = vmatprep.subr.bf16.mxu0 0
      %1799 = vmatpush2.bf16.xpose.msra.mxu0 0
      %1800 = vmatprep.mubr.bf16.mxu0 0
      %1801 = vmatmul.mubr.bf16.gmra.mxu0 %v1763
      %v1802 = vpop.f32.mrf.mxu0
      %v1803 = vadd.f32 0.0, %v1802
      %v1804 = vpop.f32.mrf.mxu0
      %v1805 = vpop.f32.mrf.mxu0
      %v1806 = vpop.f32.mrf.mxu0
      %1807 = vdwg.mxu0
      %v1808 = vmul.f32 %v1803, 0.35355338
      %v1809 = vsel %vm1222, %v1808, -inf
      %1810 = vmax.xlane.f32.xlu0 %v1809
      %v1811 = vpop.xlane.xlu0 %1810
      %v1812 = vsub.f32 %v1808, %v1811
      %v1813 = vmul.f32 %v1812, 1.442695
      %v1814 = vpow.pop %v1813
      %v1815 = vsel %vm1222, %v1814, 0.0
      %1816 = vadd.xlane.f32.xlu0 %v1815
      %v1817 = vpop.xlane.xlu0 %1816
      %v1818 = vrcp.pop %v1817
      %v1819 = vmul.f32 %v1814, %v1818
      %v1820 = vpack.c.bf16 %v1819, %v1819
      %1821 = vrot.lane.b32.xlu0 %v1647, 56
      %v1822 = vpop.permute.xlu0 %1821
      %v1824 = vsel %vm1237, %v1820, 0
      %v1827 = vand.u32 %v1822, %v1244
      %1829 = vmatprep.subr.bf16.mxu0 0
      %1830 = vmatpush1.bf16.msra.mxu0 0
      %1831 = vmatprep.subr.bf16.mxu0 0
      %1832 = vmatpush1.bf16.msra.mxu0 0
      %1833 = vmatprep.subr.bf16.mxu0 0
      %1834 = vmatpush1.bf16.msra.mxu0 0
      %1835 = vmatprep.subr.bf16.mxu0 0
      %1836 = vmatpush1.bf16.msra.mxu0 0
      %1837 = vmatprep.subr.bf16.mxu0 0
      %1838 = vmatpush1.bf16.msra.mxu0 0
      %1839 = vmatprep.subr.bf16.mxu0 0
      %1840 = vmatpush1.bf16.msra.mxu0 0
      %1841 = vmatprep.subr.bf16.mxu0 0
      %1842 = vmatpush1.bf16.msra.mxu0 0
      %1843 = vmatprep.subr.bf16.mxu0 0
      %1844 = vmatpush1.bf16.msra.mxu0 %v1827
      %1845 = vmatprep.subr.bf16.mxu0 0
      %1846 = vmatpush2.bf16.msra.mxu0 0
      %1847 = vmatprep.subr.bf16.mxu0 0
      %1848 = vmatpush2.bf16.msra.mxu0 0
      %1849 = vmatprep.subr.bf16.mxu0 0
      %1850 = vmatpush2.bf16.msra.mxu0 0
      %1851 = vmatprep.subr.bf16.mxu0 0
      %1852 = vmatpush2.bf16.msra.mxu0 0
      %1853 = vmatprep.subr.bf16.mxu0 0
      %1854 = vmatpush2.bf16.msra.mxu0 0
      %1855 = vmatprep.subr.bf16.mxu0 0
      %1856 = vmatpush2.bf16.msra.mxu0 0
      %1857 = vmatprep.subr.bf16.mxu0 0
      %1858 = vmatpush2.bf16.msra.mxu0 0
      %1859 = vmatprep.subr.bf16.mxu0 0
      %1860 = vmatpush2.bf16.msra.mxu0 0
      %1861 = vmatprep.mubr.bf16.mxu0 0
      %1862 = vmatmul.mubr.bf16.gmra.mxu0 %v1824
      %v1863 = vpop.f32.mrf.mxu0
      %v1864 = vadd.f32 0.0, %v1863
      %v1865 = vpop.f32.mrf.mxu0
      %v1866 = vpop.f32.mrf.mxu0
      %v1867 = vpop.f32.mrf.mxu0
      %1868 = vdwg.mxu0
      %1870 = vrot.lane.b32.xlu0 %v1864, 8
      %v1871 = vpop.permute.xlu0 %1870
      %1873 = vst.msk [vmem:[#allocation2 + $0x5] sm:$0x1f] %vm1405, %v1871
      %1874 = vrot.lane.b32.xlu0 %v1647, 112
      %v1875 = vpop.permute.xlu0 %1874
      %1876 = vrot.lane.b32.xlu0 %v1647, 80
      %v1877 = vpop.permute.xlu0 %1876
      %v1879 = vsel %vm1174, %v1875, 0
      %v1882 = vsel %vm1174, %v1877, 0
      %1884 = vmatprep.subr.bf16.mxu0 0
      %1885 = vmatpush1.bf16.xpose.msra.mxu0 0
      %1886 = vmatprep.subr.bf16.mxu0 0
      %1887 = vmatpush1.bf16.xpose.msra.mxu0 0
      %1888 = vmatprep.subr.bf16.mxu0 0
      %1889 = vmatpush1.bf16.xpose.msra.mxu0 0
      %1890 = vmatprep.subr.bf16.mxu0 0
      %1891 = vmatpush1.bf16.xpose.msra.mxu0 0
      %1892 = vmatprep.subr.bf16.mxu0 0
      %1893 = vmatpush1.bf16.xpose.msra.mxu0 0
      %1894 = vmatprep.subr.bf16.mxu0 0
      %1895 = vmatpush1.bf16.xpose.msra.mxu0 0
      %1896 = vmatprep.subr.bf16.mxu0 0
      %1897 = vmatpush1.bf16.xpose.msra.mxu0 0
      %1898 = vmatprep.subr.bf16.mxu0 0
      %1899 = vmatpush1.bf16.xpose.msra.mxu0 %v1882
      %1900 = vmatprep.subr.bf16.mxu0 0
      %1901 = vmatpush2.bf16.xpose.msra.mxu0 0
      %1902 = vmatprep.subr.bf16.mxu0 0
      %1903 = vmatpush2.bf16.xpose.msra.mxu0 0
      %1904 = vmatprep.subr.bf16.mxu0 0
      %1905 = vmatpush2.bf16.xpose.msra.mxu0 0
      %1906 = vmatprep.subr.bf16.mxu0 0
      %1907 = vmatpush2.bf16.xpose.msra.mxu0 0
      %1908 = vmatprep.subr.bf16.mxu0 0
      %1909 = vmatpush2.bf16.xpose.msra.mxu0 0
      %1910 = vmatprep.subr.bf16.mxu0 0
      %1911 = vmatpush2.bf16.xpose.msra.mxu0 0
      %1912 = vmatprep.subr.bf16.mxu0 0
      %1913 = vmatpush2.bf16.xpose.msra.mxu0 0
      %1914 = vmatprep.subr.bf16.mxu0 0
      %1915 = vmatpush2.bf16.xpose.msra.mxu0 0
      %1916 = vmatprep.mubr.bf16.mxu0 0
      %1917 = vmatmul.mubr.bf16.gmra.mxu0 %v1879
      %v1918 = vpop.f32.mrf.mxu0
      %v1919 = vadd.f32 0.0, %v1918
      %v1920 = vpop.f32.mrf.mxu0
      %v1921 = vpop.f32.mrf.mxu0
      %v1922 = vpop.f32.mrf.mxu0
      %1923 = vdwg.mxu0
      %v1924 = vmul.f32 %v1919, 0.35355338
      %v1925 = vsel %vm1222, %v1924, -inf
      %1926 = vmax.xlane.f32.xlu0 %v1925
      %v1927 = vpop.xlane.xlu0 %1926
      %v1928 = vsub.f32 %v1924, %v1927
      %v1929 = vmul.f32 %v1928, 1.442695
      %v1930 = vpow.pop %v1929
      %v1931 = vsel %vm1222, %v1930, 0.0
      %1932 = vadd.xlane.f32.xlu0 %v1931
      %v1933 = vpop.xlane.xlu0 %1932
      %v1934 = vrcp.pop %v1933
      %v1935 = vmul.f32 %v1930, %v1934
      %v1936 = vpack.c.bf16 %v1935, %v1935
      %1937 = vrot.lane.b32.xlu0 %v1647, 48
      %v1938 = vpop.permute.xlu0 %1937
      %v1940 = vsel %vm1237, %v1936, 0
      %v1943 = vand.u32 %v1938, %v1244
      %1945 = vmatprep.subr.bf16.mxu0 0
      %1946 = vmatpush1.bf16.msra.mxu0 0
      %1947 = vmatprep.subr.bf16.mxu0 0
      %1948 = vmatpush1.bf16.msra.mxu0 0
      %1949 = vmatprep.subr.bf16.mxu0 0
      %1950 = vmatpush1.bf16.msra.mxu0 0
      %1951 = vmatprep.subr.bf16.mxu0 0
      %1952 = vmatpush1.bf16.msra.mxu0 0
      %1953 = vmatprep.subr.bf16.mxu0 0
      %1954 = vmatpush1.bf16.msra.mxu0 0
      %1955 = vmatprep.subr.bf16.mxu0 0
      %1956 = vmatpush1.bf16.msra.mxu0 0
      %1957 = vmatprep.subr.bf16.mxu0 0
      %1958 = vmatpush1.bf16.msra.mxu0 0
      %1959 = vmatprep.subr.bf16.mxu0 0
      %1960 = vmatpush1.bf16.msra.mxu0 %v1943
      %1961 = vmatprep.subr.bf16.mxu0 0
      %1962 = vmatpush2.bf16.msra.mxu0 0
      %1963 = vmatprep.subr.bf16.mxu0 0
      %1964 = vmatpush2.bf16.msra.mxu0 0
      %1965 = vmatprep.subr.bf16.mxu0 0
      %1966 = vmatpush2.bf16.msra.mxu0 0
      %1967 = vmatprep.subr.bf16.mxu0 0
      %1968 = vmatpush2.bf16.msra.mxu0 0
      %1969 = vmatprep.subr.bf16.mxu0 0
      %1970 = vmatpush2.bf16.msra.mxu0 0
      %1971 = vmatprep.subr.bf16.mxu0 0
      %1972 = vmatpush2.bf16.msra.mxu0 0
      %1973 = vmatprep.subr.bf16.mxu0 0
      %1974 = vmatpush2.bf16.msra.mxu0 0
      %1975 = vmatprep.subr.bf16.mxu0 0
      %1976 = vmatpush2.bf16.msra.mxu0 0
      %1977 = vmatprep.mubr.bf16.mxu0 0
      %1978 = vmatmul.mubr.bf16.gmra.mxu0 %v1940
      %v1979 = vpop.f32.mrf.mxu0
      %v1980 = vadd.f32 0.0, %v1979
      %v1981 = vpop.f32.mrf.mxu0
      %v1982 = vpop.f32.mrf.mxu0
      %v1983 = vpop.f32.mrf.mxu0
      %1984 = vdwg.mxu0
      %1986 = vrot.lane.b32.xlu0 %v1980, 16
      %v1987 = vpop.permute.xlu0 %1986
      %1989 = vst.msk [vmem:[#allocation2 + $0x5] sm:$0x1f] %vm1522, %v1987
      %1990 = vrot.lane.b32.xlu0 %v1647, 104
      %v1991 = vpop.permute.xlu0 %1990
      %1992 = vrot.lane.b32.xlu0 %v1647, 72
      %v1993 = vpop.permute.xlu0 %1992
      %v1995 = vsel %vm1174, %v1991, 0
      %v1998 = vsel %vm1174, %v1993, 0
      %2000 = vmatprep.subr.bf16.mxu0 0
      %2001 = vmatpush1.bf16.xpose.msra.mxu0 0
      %2002 = vmatprep.subr.bf16.mxu0 0
      %2003 = vmatpush1.bf16.xpose.msra.mxu0 0
      %2004 = vmatprep.subr.bf16.mxu0 0
      %2005 = vmatpush1.bf16.xpose.msra.mxu0 0
      %2006 = vmatprep.subr.bf16.mxu0 0
      %2007 = vmatpush1.bf16.xpose.msra.mxu0 0
      %2008 = vmatprep.subr.bf16.mxu0 0
      %2009 = vmatpush1.bf16.xpose.msra.mxu0 0
      %2010 = vmatprep.subr.bf16.mxu0 0
      %2011 = vmatpush1.bf16.xpose.msra.mxu0 0
      %2012 = vmatprep.subr.bf16.mxu0 0
      %2013 = vmatpush1.bf16.xpose.msra.mxu0 0
      %2014 = vmatprep.subr.bf16.mxu0 0
      %2015 = vmatpush1.bf16.xpose.msra.mxu0 %v1998
      %2016 = vmatprep.subr.bf16.mxu0 0
      %2017 = vmatpush2.bf16.xpose.msra.mxu0 0
      %2018 = vmatprep.subr.bf16.mxu0 0
      %2019 = vmatpush2.bf16.xpose.msra.mxu0 0
      %2020 = vmatprep.subr.bf16.mxu0 0
      %2021 = vmatpush2.bf16.xpose.msra.mxu0 0
      %2022 = vmatprep.subr.bf16.mxu0 0
      %2023 = vmatpush2.bf16.xpose.msra.mxu0 0
      %2024 = vmatprep.subr.bf16.mxu0 0
      %2025 = vmatpush2.bf16.xpose.msra.mxu0 0
      %2026 = vmatprep.subr.bf16.mxu0 0
      %2027 = vmatpush2.bf16.xpose.msra.mxu0 0
      %2028 = vmatprep.subr.bf16.mxu0 0
      %2029 = vmatpush2.bf16.xpose.msra.mxu0 0
      %2030 = vmatprep.subr.bf16.mxu0 0
      %2031 = vmatpush2.bf16.xpose.msra.mxu0 0
      %2032 = vmatprep.mubr.bf16.mxu0 0
      %2033 = vmatmul.mubr.bf16.gmra.mxu0 %v1995
      %v2034 = vpop.f32.mrf.mxu0
      %v2035 = vadd.f32 0.0, %v2034
      %v2036 = vpop.f32.mrf.mxu0
      %v2037 = vpop.f32.mrf.mxu0
      %v2038 = vpop.f32.mrf.mxu0
      %2039 = vdwg.mxu0
      %v2040 = vmul.f32 %v2035, 0.35355338
      %v2041 = vsel %vm1222, %v2040, -inf
      %2042 = vmax.xlane.f32.xlu0 %v2041
      %v2043 = vpop.xlane.xlu0 %2042
      %v2044 = vsub.f32 %v2040, %v2043
      %v2045 = vmul.f32 %v2044, 1.442695
      %v2046 = vpow.pop %v2045
      %v2047 = vsel %vm1222, %v2046, 0.0
      %2048 = vadd.xlane.f32.xlu0 %v2047
      %v2049 = vpop.xlane.xlu0 %2048
      %v2050 = vrcp.pop %v2049
      %v2051 = vmul.f32 %v2046, %v2050
      %v2052 = vpack.c.bf16 %v2051, %v2051
      %2053 = vrot.lane.b32.xlu0 %v1647, 40
      %v2054 = vpop.permute.xlu0 %2053
      %v2056 = vsel %vm1237, %v2052, 0
      %v2059 = vand.u32 %v2054, %v1244
      %2061 = vmatprep.subr.bf16.mxu0 0
      %2062 = vmatpush1.bf16.msra.mxu0 0
      %2063 = vmatprep.subr.bf16.mxu0 0
      %2064 = vmatpush1.bf16.msra.mxu0 0
      %2065 = vmatprep.subr.bf16.mxu0 0
      %2066 = vmatpush1.bf16.msra.mxu0 0
      %2067 = vmatprep.subr.bf16.mxu0 0
      %2068 = vmatpush1.bf16.msra.mxu0 0
      %2069 = vmatprep.subr.bf16.mxu0 0
      %2070 = vmatpush1.bf16.msra.mxu0 0
      %2071 = vmatprep.subr.bf16.mxu0 0
      %2072 = vmatpush1.bf16.msra.mxu0 0
      %2073 = vmatprep.subr.bf16.mxu0 0
      %2074 = vmatpush1.bf16.msra.mxu0 0
      %2075 = vmatprep.subr.bf16.mxu0 0
      %2076 = vmatpush1.bf16.msra.mxu0 %v2059
      %2077 = vmatprep.subr.bf16.mxu0 0
      %2078 = vmatpush2.bf16.msra.mxu0 0
      %2079 = vmatprep.subr.bf16.mxu0 0
      %2080 = vmatpush2.bf16.msra.mxu0 0
      %2081 = vmatprep.subr.bf16.mxu0 0
      %2082 = vmatpush2.bf16.msra.mxu0 0
      %2083 = vmatprep.subr.bf16.mxu0 0
      %2084 = vmatpush2.bf16.msra.mxu0 0
      %2085 = vmatprep.subr.bf16.mxu0 0
      %2086 = vmatpush2.bf16.msra.mxu0 0
      %2087 = vmatprep.subr.bf16.mxu0 0
      %2088 = vmatpush2.bf16.msra.mxu0 0
      %2089 = vmatprep.subr.bf16.mxu0 0
      %2090 = vmatpush2.bf16.msra.mxu0 0
      %2091 = vmatprep.subr.bf16.mxu0 0
      %2092 = vmatpush2.bf16.msra.mxu0 0
      %2093 = vmatprep.mubr.bf16.mxu0 0
      %2094 = vmatmul.mubr.bf16.gmra.mxu0 %v2056
      %v2095 = vpop.f32.mrf.mxu0
      %v2096 = vadd.f32 0.0, %v2095
      %v2097 = vpop.f32.mrf.mxu0
      %v2098 = vpop.f32.mrf.mxu0
      %v2099 = vpop.f32.mrf.mxu0
      %2100 = vdwg.mxu0
      %2102 = vrot.lane.b32.xlu0 %v2096, 24
      %v2103 = vpop.permute.xlu0 %2102
      %2105 = vst.msk [vmem:[#allocation2 + $0x5] sm:$0x1f] %vm1639, %v2103
      %v2106 = vld [vmem:[#allocation2] sm:$0xff]
      %v2107 = vld [vmem:[#allocation2 + $0x8] sm:$0x3]
      %v2108 = vpack.c.bf16 %v2107, %v2106
      %s2109 = smul.addr %s1099, 4
      %s2110 = scalar_lea.vmem %s5, %s2109
      %v2111 = vld [vmem:[%s2110] sm:$0xf]
      %v2112 = vld [vmem:[%s2110 + $0x4] sm:$0xf]
      %v2113 = vld [vmem:[%s2110 + $0x8] sm:$0xf]
      %v2114 = vld [vmem:[%s2110 + $0xc] sm:$0xf]
      %s2115 = scalar_lea.vmem %s6, %s28
      %v2116 = vld [vmem:[%s2115] sm:$0x1]
      %v2118 = vlaneseq
      %v2119 = vshrl.u32 %v2118, 7
      %v2120 = vsub.s32 0, %v2119
      %v2121 = vrot.slane %v2116, %v2120
      %v2127 = vunpack.c.l.b16 %v2111
      %v2128 = vunpack.c.l.b16 %v2112
      %v2129 = vunpack.c.l.b16 %v2113
      %v2130 = vunpack.c.l.b16 %v2114
      %v2131 = vpack.c.b16 %v2128, %v2127
      %v2132 = vpack.c.b16 %v2130, %v2129
      %v2136 = vsel %vm645, %v2108, 0
      %2138 = vmatprep.subr.bf16.mxu0 0
      %2139 = vmatpush1.bf16.msra.mxu0 0
      %2140 = vmatprep.subr.bf16.mxu0 0
      %2141 = vmatpush1.bf16.msra.mxu0 0
      %2142 = vmatprep.subr.bf16.mxu0 0
      %2143 = vmatpush1.bf16.msra.mxu0 0
      %2144 = vmatprep.subr.bf16.mxu0 0
      %2145 = vmatpush1.bf16.msra.mxu0 0
      %2146 = vmatprep.subr.bf16.mxu0 0
      %2147 = vmatpush1.bf16.msra.mxu0 0
      %2148 = vmatprep.subr.bf16.mxu0 0
      %2149 = vmatpush1.bf16.msra.mxu0 0
      %2150 = vmatprep.subr.bf16.mxu0 0
      %2151 = vmatpush1.bf16.msra.mxu0 %v2132
      %2152 = vmatprep.subr.bf16.mxu0 0
      %2153 = vmatpush1.bf16.msra.mxu0 %v2131
      %2154 = vmatprep.subr.bf16.mxu0 0
      %2155 = vmatpush2.bf16.msra.mxu0 0
      %2156 = vmatprep.subr.bf16.mxu0 0
      %2157 = vmatpush2.bf16.msra.mxu0 0
      %2158 = vmatprep.subr.bf16.mxu0 0
      %2159 = vmatpush2.bf16.msra.mxu0 0
      %2160 = vmatprep.subr.bf16.mxu0 0
      %2161 = vmatpush2.bf16.msra.mxu0 0
      %2162 = vmatprep.subr.bf16.mxu0 0
      %2163 = vmatpush2.bf16.msra.mxu0 0
      %2164 = vmatprep.subr.bf16.mxu0 0
      %2165 = vmatpush2.bf16.msra.mxu0 0
      %2166 = vmatprep.subr.bf16.mxu0 0
      %2167 = vmatpush2.bf16.msra.mxu0 0
      %2168 = vmatprep.subr.bf16.mxu0 0
      %2169 = vmatpush2.bf16.msra.mxu0 0
      %2170 = vmatprep.mubr.bf16.mxu0 0
      %2171 = vmatmul.mubr.bf16.gmra.mxu0 %v2136
      %v2172 = vpop.f32.mrf.mxu0
      %v2173 = vadd.f32 %v2121, %v2172
      %v2174 = vpop.f32.mrf.mxu0
      %v2175 = vpop.f32.mrf.mxu0
      %v2176 = vadd.f32 %v2121, %v2175
      %v2177 = vpop.f32.mrf.mxu0
      %2178 = vdwg.mxu0
      %v2181 = vcombine.high %v2173, %v2173
      %v2183 = vunpack.c.l.s4 1966171168
      %v2184 = vunpack.c.0.s8 %v2183
      %v2185 = vlaneseq
      %v2186 = vshrl.u32 %v2185, 7
      %v2187 = vsub.s32 %v2184, %v2186
      %v2188 = vrot.slane %v2173, %v2187
      %v2190 = vunpack.c.l.s4 1966171168
      %v2191 = vunpack.c.0.s8 %v2190
      %v2192 = vlaneseq
      %v2193 = vshrl.u32 %v2192, 7
      %v2194 = vsub.s32 %v2191, %v2193
      %v2195 = vrot.slane %v2181, %v2194
      %v2196 = vcombine.high %v2188, %v2188
      %v2197 = vcombine.high %v2195, %v2195
      %v2199 = vunpack.c.l.s4 1966171168
      %v2200 = vunpack.c.0.s8 %v2199
      %v2201 = vlaneseq
      %v2202 = vshrl.u32 %v2201, 7
      %v2203 = vsub.s32 %v2200, %v2202
      %v2204 = vrot.slane %v2188, %v2203
      %v2206 = vunpack.c.l.s4 1966171168
      %v2207 = vunpack.c.0.s8 %v2206
      %v2208 = vlaneseq
      %v2209 = vshrl.u32 %v2208, 7
      %v2210 = vsub.s32 %v2207, %v2209
      %v2211 = vrot.slane %v2195, %v2210
      %v2213 = vunpack.c.l.s4 1966171168
      %v2214 = vunpack.c.0.s8 %v2213
      %v2215 = vlaneseq
      %v2216 = vshrl.u32 %v2215, 7
      %v2217 = vsub.s32 %v2214, %v2216
      %v2218 = vrot.slane %v2196, %v2217
      %v2220 = vunpack.c.l.s4 1966171168
      %v2221 = vunpack.c.0.s8 %v2220
      %v2222 = vlaneseq
      %v2223 = vshrl.u32 %v2222, 7
      %v2224 = vsub.s32 %v2221, %v2223
      %v2225 = vrot.slane %v2197, %v2224
      %v2226 = vcombine.high %v2204, %v2204
      %v2227 = vcombine.high %v2211, %v2211
      %v2228 = vcombine.high %v2218, %v2218
      %v2229 = vcombine.high %v2225, %v2225
      %v2231 = vunpack.c.l.s4 1966171168
      %v2232 = vunpack.c.0.s8 %v2231
      %v2233 = vlaneseq
      %v2234 = vshrl.u32 %v2233, 7
      %v2235 = vsub.s32 %v2232, %v2234
      %v2236 = vrot.slane %v2176, %v2235
      %v2237 = vcombine.high %v2236, %v2236
      %v2239 = vunpack.c.l.s4 1966171168
      %v2240 = vunpack.c.0.s8 %v2239
      %v2241 = vlaneseq
      %v2242 = vshrl.u32 %v2241, 7
      %v2243 = vsub.s32 %v2240, %v2242
      %v2244 = vrot.slane %v2236, %v2243
      %v2246 = vunpack.c.l.s4 1966171168
      %v2247 = vunpack.c.0.s8 %v2246
      %v2248 = vlaneseq
      %v2249 = vshrl.u32 %v2248, 7
      %v2250 = vsub.s32 %v2247, %v2249
      %v2251 = vrot.slane %v2237, %v2250
      %v2262 = vadd.f32 %v509, %v2204
      %v2263 = vadd.f32 %v523, %v2218
      %v2264 = vadd.f32 %v524, %v2226
      %v2265 = vadd.f32 %v525, %v2228
      %v2266 = vadd.f32 %v516, %v2211
      %v2267 = vadd.f32 %v548, %v2225
      %v2268 = vadd.f32 %v562, %v2227
      %v2269 = vadd.f32 %v563, %v2229
      %v2270 = vadd.f32 %v564, %v2244
      %v2271 = vadd.f32 %v555, %v2251
      %s2272 = scalar_lea.vmem %s7, %s28
      %v2273 = vld [vmem:[%s2272] sm:$0x1]
      %s2274 = scalar_lea.vmem %s8, %s28
      %v2275 = vld [vmem:[%s2274] sm:$0x1]
      %v2286 = vcombine.low %v2262, %v2263
      %v2287 = vcombine.low %v2264, %v2265
      %v2288 = vcombine.low %v2266, %v2267
      %v2289 = vcombine.low %v2268, %v2269
      %v2291 = vunpack.c.l.s4 1966171168
      %v2292 = vunpack.c.0.s8 %v2291
      %v2293 = vlaneseq
      %v2294 = vshrl.u32 %v2293, 7
      %v2295 = vsub.s32 %v2292, %v2294
      %v2296 = vrot.slane %v2286, %v2295
      %v2298 = vunpack.c.l.s4 1966171168
      %v2299 = vunpack.c.0.s8 %v2298
      %v2300 = vlaneseq
      %v2301 = vshrl.u32 %v2300, 7
      %v2302 = vsub.s32 %v2299, %v2301
      %v2303 = vrot.slane %v2287, %v2302
      %v2305 = vunpack.c.l.s4 1966171168
      %v2306 = vunpack.c.0.s8 %v2305
      %v2307 = vlaneseq
      %v2308 = vshrl.u32 %v2307, 7
      %v2309 = vsub.s32 %v2306, %v2308
      %v2310 = vrot.slane %v2288, %v2309
      %v2312 = vunpack.c.l.s4 1966171168
      %v2313 = vunpack.c.0.s8 %v2312
      %v2314 = vlaneseq
      %v2315 = vshrl.u32 %v2314, 7
      %v2316 = vsub.s32 %v2313, %v2315
      %v2317 = vrot.slane %v2289, %v2316
      %v2318 = vcombine.low %v2296, %v2303
      %v2319 = vcombine.low %v2310, %v2317
      %v2321 = vunpack.c.l.s4 1966171168
      %v2322 = vunpack.c.0.s8 %v2321
      %v2323 = vlaneseq
      %v2324 = vshrl.u32 %v2323, 7
      %v2325 = vsub.s32 %v2322, %v2324
      %v2326 = vrot.slane %v2318, %v2325
      %v2328 = vunpack.c.l.s4 1966171168
      %v2329 = vunpack.c.0.s8 %v2328
      %v2330 = vlaneseq
      %v2331 = vshrl.u32 %v2330, 7
      %v2332 = vsub.s32 %v2329, %v2331
      %v2333 = vrot.slane %v2319, %v2332
      %v2334 = vcombine.low %v2326, %v2333
      %v2335 = vcombine.low %v2270, %v2271
      %v2337 = vunpack.c.l.s4 1966171168
      %v2338 = vunpack.c.0.s8 %v2337
      %v2339 = vlaneseq
      %v2340 = vshrl.u32 %v2339, 7
      %v2341 = vsub.s32 %v2338, %v2340
      %v2342 = vrot.slane %v2335, %v2341
      %v2344 = vunpack.c.l.s4 1966171168
      %v2345 = vunpack.c.0.s8 %v2344
      %v2346 = vlaneseq
      %v2347 = vshrl.u32 %v2346, 7
      %v2348 = vsub.s32 %v2345, %v2347
      %v2349 = vrot.slane %v2342, %v2348
      %v2352 = vsel %vm645, %v2334, 0.0
      %2353 = vadd.xlane.f32.xlu0 %v2352
      %v2354 = vpop.xlane.xlu0 %2353
      %v2355 = vsel %vm649, %v2349, 0.0
      %2356 = vadd.xlane.f32.xlu0 %v2355
      %v2357 = vpop.xlane.xlu0 %2356
      %v2358 = vmul.f32 %v2354, %v653
      %v2359 = vmul.f32 %v2357, %v653
      %v2362 = vlaneseq
      %v2363 = vshrl.u32 %v2362, 7
      %v2364 = vsub.s32 0, %v2363
      %v2365 = vrot.slane %v2358, %v2364
      %v2366 = vlaneseq
      %v2367 = vshrl.u32 %v2366, 7
      %v2368 = vsub.s32 1, %v2367
      %v2369 = vrot.slane %v2358, %v2368
      %v2370 = vlaneseq
      %v2371 = vshrl.u32 %v2370, 7
      %v2372 = vsub.s32 2, %v2371
      %v2373 = vrot.slane %v2358, %v2372
      %v2374 = vlaneseq
      %v2375 = vshrl.u32 %v2374, 7
      %v2376 = vsub.s32 3, %v2375
      %v2377 = vrot.slane %v2358, %v2376
      %v2378 = vlaneseq
      %v2379 = vshrl.u32 %v2378, 7
      %v2380 = vsub.s32 4, %v2379
      %v2381 = vrot.slane %v2358, %v2380
      %v2382 = vlaneseq
      %v2383 = vshrl.u32 %v2382, 7
      %v2384 = vsub.s32 5, %v2383
      %v2385 = vrot.slane %v2358, %v2384
      %v2386 = vlaneseq
      %v2387 = vshrl.u32 %v2386, 7
      %v2388 = vsub.s32 6, %v2387
      %v2389 = vrot.slane %v2358, %v2388
      %v2390 = vlaneseq
      %v2391 = vshrl.u32 %v2390, 7
      %v2392 = vsub.s32 7, %v2391
      %v2393 = vrot.slane %v2358, %v2392
      %v2394 = vlaneseq
      %v2395 = vshrl.u32 %v2394, 7
      %v2396 = vsub.s32 0, %v2395
      %v2397 = vrot.slane %v2359, %v2396
      %v2398 = vlaneseq
      %v2399 = vshrl.u32 %v2398, 7
      %v2400 = vsub.s32 1, %v2399
      %v2401 = vrot.slane %v2359, %v2400
      %v2412 = vsub.f32 %v2262, %v2365
      %v2413 = vsub.f32 %v2263, %v2369
      %v2414 = vsub.f32 %v2264, %v2373
      %v2415 = vsub.f32 %v2265, %v2377
      %v2416 = vsub.f32 %v2266, %v2381
      %v2417 = vsub.f32 %v2267, %v2385
      %v2418 = vsub.f32 %v2268, %v2389
      %v2419 = vsub.f32 %v2269, %v2393
      %v2420 = vsub.f32 %v2270, %v2397
      %v2421 = vsub.f32 %v2271, %v2401
      %v2422 = vmul.f32 %v2412, %v2412
      %v2423 = vmul.f32 %v2413, %v2413
      %v2424 = vmul.f32 %v2414, %v2414
      %v2425 = vmul.f32 %v2415, %v2415
      %v2426 = vmul.f32 %v2416, %v2416
      %v2427 = vmul.f32 %v2417, %v2417
      %v2428 = vmul.f32 %v2418, %v2418
      %v2429 = vmul.f32 %v2419, %v2419
      %v2430 = vmul.f32 %v2420, %v2420
      %v2431 = vmul.f32 %v2421, %v2421
      %v2442 = vcombine.low %v2422, %v2423
      %v2443 = vcombine.low %v2424, %v2425
      %v2444 = vcombine.low %v2426, %v2427
      %v2445 = vcombine.low %v2428, %v2429
      %v2447 = vunpack.c.l.s4 1966171168
      %v2448 = vunpack.c.0.s8 %v2447
      %v2449 = vlaneseq
      %v2450 = vshrl.u32 %v2449, 7
      %v2451 = vsub.s32 %v2448, %v2450
      %v2452 = vrot.slane %v2442, %v2451
      %v2454 = vunpack.c.l.s4 1966171168
      %v2455 = vunpack.c.0.s8 %v2454
      %v2456 = vlaneseq
      %v2457 = vshrl.u32 %v2456, 7
      %v2458 = vsub.s32 %v2455, %v2457
      %v2459 = vrot.slane %v2443, %v2458
      %v2461 = vunpack.c.l.s4 1966171168
      %v2462 = vunpack.c.0.s8 %v2461
      %v2463 = vlaneseq
      %v2464 = vshrl.u32 %v2463, 7
      %v2465 = vsub.s32 %v2462, %v2464
      %v2466 = vrot.slane %v2444, %v2465
      %v2468 = vunpack.c.l.s4 1966171168
      %v2469 = vunpack.c.0.s8 %v2468
      %v2470 = vlaneseq
      %v2471 = vshrl.u32 %v2470, 7
      %v2472 = vsub.s32 %v2469, %v2471
      %v2473 = vrot.slane %v2445, %v2472
      %v2474 = vcombine.low %v2452, %v2459
      %v2475 = vcombine.low %v2466, %v2473
      %v2477 = vunpack.c.l.s4 1966171168
      %v2478 = vunpack.c.0.s8 %v2477
      %v2479 = vlaneseq
      %v2480 = vshrl.u32 %v2479, 7
      %v2481 = vsub.s32 %v2478, %v2480
      %v2482 = vrot.slane %v2474, %v2481
      %v2484 = vunpack.c.l.s4 1966171168
      %v2485 = vunpack.c.0.s8 %v2484
      %v2486 = vlaneseq
      %v2487 = vshrl.u32 %v2486, 7
      %v2488 = vsub.s32 %v2485, %v2487
      %v2489 = vrot.slane %v2475, %v2488
      %v2490 = vcombine.low %v2482, %v2489
      %v2491 = vcombine.low %v2430, %v2431
      %v2493 = vunpack.c.l.s4 1966171168
      %v2494 = vunpack.c.0.s8 %v2493
      %v2495 = vlaneseq
      %v2496 = vshrl.u32 %v2495, 7
      %v2497 = vsub.s32 %v2494, %v2496
      %v2498 = vrot.slane %v2491, %v2497
      %v2500 = vunpack.c.l.s4 1966171168
      %v2501 = vunpack.c.0.s8 %v2500
      %v2502 = vlaneseq
      %v2503 = vshrl.u32 %v2502, 7
      %v2504 = vsub.s32 %v2501, %v2503
      %v2505 = vrot.slane %v2498, %v2504
      %v2508 = vsel %vm645, %v2490, 0.0
      %2509 = vadd.xlane.f32.xlu0 %v2508
      %v2510 = vpop.xlane.xlu0 %2509
      %v2511 = vsel %vm649, %v2505, 0.0
      %2512 = vadd.xlane.f32.xlu0 %v2511
      %v2513 = vpop.xlane.xlu0 %2512
      %v2514 = vmul.f32 %v2510, %v653
      %v2515 = vmul.f32 %v2513, %v653
      %v2516 = vadd.f32 %v2514, 1e-12
      %v2517 = vadd.f32 %v2515, 1e-12
      %v2518 = vrsqrt.pop %v2516
      %v2519 = vrsqrt.pop %v2517
      %v2522 = vlaneseq
      %v2523 = vshrl.u32 %v2522, 7
      %v2524 = vsub.s32 0, %v2523
      %v2525 = vrot.slane %v2518, %v2524
      %v2526 = vlaneseq
      %v2527 = vshrl.u32 %v2526, 7
      %v2528 = vsub.s32 1, %v2527
      %v2529 = vrot.slane %v2518, %v2528
      %v2530 = vlaneseq
      %v2531 = vshrl.u32 %v2530, 7
      %v2532 = vsub.s32 2, %v2531
      %v2533 = vrot.slane %v2518, %v2532
      %v2534 = vlaneseq
      %v2535 = vshrl.u32 %v2534, 7
      %v2536 = vsub.s32 3, %v2535
      %v2537 = vrot.slane %v2518, %v2536
      %v2538 = vlaneseq
      %v2539 = vshrl.u32 %v2538, 7
      %v2540 = vsub.s32 4, %v2539
      %v2541 = vrot.slane %v2518, %v2540
      %v2542 = vlaneseq
      %v2543 = vshrl.u32 %v2542, 7
      %v2544 = vsub.s32 5, %v2543
      %v2545 = vrot.slane %v2518, %v2544
      %v2546 = vlaneseq
      %v2547 = vshrl.u32 %v2546, 7
      %v2548 = vsub.s32 6, %v2547
      %v2549 = vrot.slane %v2518, %v2548
      %v2550 = vlaneseq
      %v2551 = vshrl.u32 %v2550, 7
      %v2552 = vsub.s32 7, %v2551
      %v2553 = vrot.slane %v2518, %v2552
      %v2554 = vlaneseq
      %v2555 = vshrl.u32 %v2554, 7
      %v2556 = vsub.s32 0, %v2555
      %v2557 = vrot.slane %v2519, %v2556
      %v2558 = vlaneseq
      %v2559 = vshrl.u32 %v2558, 7
      %v2560 = vsub.s32 1, %v2559
      %v2561 = vrot.slane %v2519, %v2560
      %v2572 = vmul.f32 %v2412, %v2525
      %v2573 = vmul.f32 %v2413, %v2529
      %v2574 = vmul.f32 %v2414, %v2533
      %v2575 = vmul.f32 %v2415, %v2537
      %v2576 = vmul.f32 %v2416, %v2541
      %v2577 = vmul.f32 %v2417, %v2545
      %v2578 = vmul.f32 %v2418, %v2549
      %v2579 = vmul.f32 %v2419, %v2553
      %v2580 = vmul.f32 %v2420, %v2557
      %v2581 = vmul.f32 %v2421, %v2561
      %v2583 = vlaneseq
      %v2584 = vshrl.u32 %v2583, 7
      %v2585 = vsub.s32 0, %v2584
      %v2586 = vrot.slane %v2273, %v2585
      %v2587 = vcombine.high %v2586, %v2586
      %v2589 = vunpack.c.l.s4 1966171168
      %v2590 = vunpack.c.0.s8 %v2589
      %v2591 = vlaneseq
      %v2592 = vshrl.u32 %v2591, 7
      %v2593 = vsub.s32 %v2590, %v2592
      %v2594 = vrot.slane %v2586, %v2593
      %v2596 = vunpack.c.l.s4 1966171168
      %v2597 = vunpack.c.0.s8 %v2596
      %v2598 = vlaneseq
      %v2599 = vshrl.u32 %v2598, 7
      %v2600 = vsub.s32 %v2597, %v2599
      %v2601 = vrot.slane %v2587, %v2600
      %v2602 = vcombine.high %v2594, %v2594
      %v2603 = vcombine.high %v2601, %v2601
      %v2605 = vunpack.c.l.s4 1966171168
      %v2606 = vunpack.c.0.s8 %v2605
      %v2607 = vlaneseq
      %v2608 = vshrl.u32 %v2607, 7
      %v2609 = vsub.s32 %v2606, %v2608
      %v2610 = vrot.slane %v2594, %v2609
      %v2612 = vunpack.c.l.s4 1966171168
      %v2613 = vunpack.c.0.s8 %v2612
      %v2614 = vlaneseq
      %v2615 = vshrl.u32 %v2614, 7
      %v2616 = vsub.s32 %v2613, %v2615
      %v2617 = vrot.slane %v2601, %v2616
      %v2619 = vunpack.c.l.s4 1966171168
      %v2620 = vunpack.c.0.s8 %v2619
      %v2621 = vlaneseq
      %v2622 = vshrl.u32 %v2621, 7
      %v2623 = vsub.s32 %v2620, %v2622
      %v2624 = vrot.slane %v2602, %v2623
      %v2626 = vunpack.c.l.s4 1966171168
      %v2627 = vunpack.c.0.s8 %v2626
      %v2628 = vlaneseq
      %v2629 = vshrl.u32 %v2628, 7
      %v2630 = vsub.s32 %v2627, %v2629
      %v2631 = vrot.slane %v2603, %v2630
      %v2632 = vcombine.high %v2610, %v2610
      %v2633 = vcombine.high %v2617, %v2617
      %v2634 = vcombine.high %v2624, %v2624
      %v2635 = vcombine.high %v2631, %v2631
      %v2644 = vmul.f32 %v2572, %v2610
      %v2645 = vmul.f32 %v2573, %v2624
      %v2646 = vmul.f32 %v2574, %v2632
      %v2647 = vmul.f32 %v2575, %v2634
      %v2648 = vmul.f32 %v2576, %v2617
      %v2649 = vmul.f32 %v2577, %v2631
      %v2650 = vmul.f32 %v2578, %v2633
      %v2651 = vmul.f32 %v2579, %v2635
      %v2652 = vmul.f32 %v2580, %v2610
      %v2653 = vmul.f32 %v2581, %v2624
      %v2655 = vlaneseq
      %v2656 = vshrl.u32 %v2655, 7
      %v2657 = vsub.s32 0, %v2656
      %v2658 = vrot.slane %v2275, %v2657
      %v2659 = vcombine.high %v2658, %v2658
      %v2661 = vunpack.c.l.s4 1966171168
      %v2662 = vunpack.c.0.s8 %v2661
      %v2663 = vlaneseq
      %v2664 = vshrl.u32 %v2663, 7
      %v2665 = vsub.s32 %v2662, %v2664
      %v2666 = vrot.slane %v2658, %v2665
      %v2668 = vunpack.c.l.s4 1966171168
      %v2669 = vunpack.c.0.s8 %v2668
      %v2670 = vlaneseq
      %v2671 = vshrl.u32 %v2670, 7
      %v2672 = vsub.s32 %v2669, %v2671
      %v2673 = vrot.slane %v2659, %v2672
      %v2674 = vcombine.high %v2666, %v2666
      %v2675 = vcombine.high %v2673, %v2673
      %v2677 = vunpack.c.l.s4 1966171168
      %v2678 = vunpack.c.0.s8 %v2677
      %v2679 = vlaneseq
      %v2680 = vshrl.u32 %v2679, 7
      %v2681 = vsub.s32 %v2678, %v2680
      %v2682 = vrot.slane %v2666, %v2681
      %v2684 = vunpack.c.l.s4 1966171168
      %v2685 = vunpack.c.0.s8 %v2684
      %v2686 = vlaneseq
      %v2687 = vshrl.u32 %v2686, 7
      %v2688 = vsub.s32 %v2685, %v2687
      %v2689 = vrot.slane %v2673, %v2688
      %v2691 = vunpack.c.l.s4 1966171168
      %v2692 = vunpack.c.0.s8 %v2691
      %v2693 = vlaneseq
      %v2694 = vshrl.u32 %v2693, 7
      %v2695 = vsub.s32 %v2692, %v2694
      %v2696 = vrot.slane %v2674, %v2695
      %v2698 = vunpack.c.l.s4 1966171168
      %v2699 = vunpack.c.0.s8 %v2698
      %v2700 = vlaneseq
      %v2701 = vshrl.u32 %v2700, 7
      %v2702 = vsub.s32 %v2699, %v2701
      %v2703 = vrot.slane %v2675, %v2702
      %v2704 = vcombine.high %v2682, %v2682
      %v2705 = vcombine.high %v2689, %v2689
      %v2706 = vcombine.high %v2696, %v2696
      %v2707 = vcombine.high %v2703, %v2703
      %v2716 = vadd.f32 %v2644, %v2682
      %v2717 = vadd.f32 %v2645, %v2696
      %v2718 = vadd.f32 %v2646, %v2704
      %v2719 = vadd.f32 %v2647, %v2706
      %v2720 = vadd.f32 %v2648, %v2689
      %v2721 = vadd.f32 %v2649, %v2703
      %v2722 = vadd.f32 %v2650, %v2705
      %v2723 = vadd.f32 %v2651, %v2707
      %v2724 = vadd.f32 %v2652, %v2682
      %v2725 = vadd.f32 %v2653, %v2696
      %v2736 = vcombine.low %v2716, %v2717
      %v2737 = vcombine.low %v2718, %v2719
      %v2738 = vcombine.low %v2720, %v2721
      %v2739 = vcombine.low %v2722, %v2723
      %v2741 = vunpack.c.l.s4 1966171168
      %v2742 = vunpack.c.0.s8 %v2741
      %v2743 = vlaneseq
      %v2744 = vshrl.u32 %v2743, 7
      %v2745 = vsub.s32 %v2742, %v2744
      %v2746 = vrot.slane %v2736, %v2745
      %v2748 = vunpack.c.l.s4 1966171168
      %v2749 = vunpack.c.0.s8 %v2748
      %v2750 = vlaneseq
      %v2751 = vshrl.u32 %v2750, 7
      %v2752 = vsub.s32 %v2749, %v2751
      %v2753 = vrot.slane %v2737, %v2752
      %v2755 = vunpack.c.l.s4 1966171168
      %v2756 = vunpack.c.0.s8 %v2755
      %v2757 = vlaneseq
      %v2758 = vshrl.u32 %v2757, 7
      %v2759 = vsub.s32 %v2756, %v2758
      %v2760 = vrot.slane %v2738, %v2759
      %v2762 = vunpack.c.l.s4 1966171168
      %v2763 = vunpack.c.0.s8 %v2762
      %v2764 = vlaneseq
      %v2765 = vshrl.u32 %v2764, 7
      %v2766 = vsub.s32 %v2763, %v2765
      %v2767 = vrot.slane %v2739, %v2766
      %v2768 = vcombine.low %v2746, %v2753
      %v2769 = vcombine.low %v2760, %v2767
      %v2771 = vunpack.c.l.s4 1966171168
      %v2772 = vunpack.c.0.s8 %v2771
      %v2773 = vlaneseq
      %v2774 = vshrl.u32 %v2773, 7
      %v2775 = vsub.s32 %v2772, %v2774
      %v2776 = vrot.slane %v2768, %v2775
      %v2778 = vunpack.c.l.s4 1966171168
      %v2779 = vunpack.c.0.s8 %v2778
      %v2780 = vlaneseq
      %v2781 = vshrl.u32 %v2780, 7
      %v2782 = vsub.s32 %v2779, %v2781
      %v2783 = vrot.slane %v2769, %v2782
      %v2784 = vcombine.low %v2776, %v2783
      %v2785 = vcombine.low %v2724, %v2725
      %v2787 = vunpack.c.l.s4 1966171168
      %v2788 = vunpack.c.0.s8 %v2787
      %v2789 = vlaneseq
      %v2790 = vshrl.u32 %v2789, 7
      %v2791 = vsub.s32 %v2788, %v2790
      %v2792 = vrot.slane %v2785, %v2791
      %v2794 = vunpack.c.l.s4 1966171168
      %v2795 = vunpack.c.0.s8 %v2794
      %v2796 = vlaneseq
      %v2797 = vshrl.u32 %v2796, 7
      %v2798 = vsub.s32 %v2795, %v2797
      %v2799 = vrot.slane %v2792, %v2798
      %v2802 = vpack.c.bf16 %v2799, %v2784
      %s2803 = smul.addr %s1099, 4
      %s2804 = scalar_lea.vmem %s9, %s2803
      %v2805 = vld [vmem:[%s2804] sm:$0xf]
      %v2806 = vld [vmem:[%s2804 + $0x4] sm:$0xf]
      %v2807 = vld [vmem:[%s2804 + $0x8] sm:$0xf]
      %v2808 = vld [vmem:[%s2804 + $0xc] sm:$0xf]
      %s2809 = scalar_lea.vmem %s10, %s28
      %v2810 = vld [vmem:[%s2809] sm:$0x1]
      %v2812 = vlaneseq
      %v2813 = vshrl.u32 %v2812, 7
      %v2814 = vsub.s32 0, %v2813
      %v2815 = vrot.slane %v2810, %v2814
      %v2821 = vunpack.c.l.b16 %v2805
      %v2822 = vunpack.c.l.b16 %v2806
      %v2823 = vunpack.c.l.b16 %v2807
      %v2824 = vunpack.c.l.b16 %v2808
      %v2825 = vpack.c.b16 %v2822, %v2821
      %v2826 = vpack.c.b16 %v2824, %v2823
      %v2830 = vsel %vm645, %v2802, 0
      %2832 = vmatprep.subr.bf16.mxu0 0
      %2833 = vmatpush1.bf16.msra.mxu0 0
      %2834 = vmatprep.subr.bf16.mxu0 0
      %2835 = vmatpush1.bf16.msra.mxu0 0
      %2836 = vmatprep.subr.bf16.mxu0 0
      %2837 = vmatpush1.bf16.msra.mxu0 0
      %2838 = vmatprep.subr.bf16.mxu0 0
      %2839 = vmatpush1.bf16.msra.mxu0 0
      %2840 = vmatprep.subr.bf16.mxu0 0
      %2841 = vmatpush1.bf16.msra.mxu0 0
      %2842 = vmatprep.subr.bf16.mxu0 0
      %2843 = vmatpush1.bf16.msra.mxu0 0
      %2844 = vmatprep.subr.bf16.mxu0 0
      %2845 = vmatpush1.bf16.msra.mxu0 %v2826
      %2846 = vmatprep.subr.bf16.mxu0 0
      %2847 = vmatpush1.bf16.msra.mxu0 %v2825
      %2848 = vmatprep.subr.bf16.mxu0 0
      %2849 = vmatpush2.bf16.msra.mxu0 0
      %2850 = vmatprep.subr.bf16.mxu0 0
      %2851 = vmatpush2.bf16.msra.mxu0 0
      %2852 = vmatprep.subr.bf16.mxu0 0
      %2853 = vmatpush2.bf16.msra.mxu0 0
      %2854 = vmatprep.subr.bf16.mxu0 0
      %2855 = vmatpush2.bf16.msra.mxu0 0
      %2856 = vmatprep.subr.bf16.mxu0 0
      %2857 = vmatpush2.bf16.msra.mxu0 0
      %2858 = vmatprep.subr.bf16.mxu0 0
      %2859 = vmatpush2.bf16.msra.mxu0 0
      %2860 = vmatprep.subr.bf16.mxu0 0
      %2861 = vmatpush2.bf16.msra.mxu0 0
      %2862 = vmatprep.subr.bf16.mxu0 0
      %2863 = vmatpush2.bf16.msra.mxu0 0
      %2864 = vmatprep.mubr.bf16.mxu0 0
      %2865 = vmatmul.mubr.bf16.gmra.mxu0 %v2830
      %v2866 = vpop.f32.mrf.mxu0
      %v2867 = vadd.f32 %v2815, %v2866
      %v2868 = vpop.f32.mrf.mxu0
      %v2869 = vpop.f32.mrf.mxu0
      %v2870 = vadd.f32 %v2815, %v2869
      %v2871 = vpop.f32.mrf.mxu0
      %2872 = vdwg.mxu0
      %v2873 = vmul.f32 %v2867, %v2867
      %v2874 = vmul.f32 %v2870, %v2870
      %v2875 = vmul.f32 %v2867, %v2873
      %v2876 = vmul.f32 %v2870, %v2874
      %v2877 = vmul.f32 %v2875, 0.044715
      %v2878 = vmul.f32 %v2876, 0.044715
      %v2879 = vadd.f32 %v2867, %v2877
      %v2880 = vadd.f32 %v2870, %v2878
      %v2881 = vmul.f32 %v2879, 0.7978846
      %v2882 = vmul.f32 %v2880, 0.7978846
      %v2883 = vtanh.pop %v2881
      %v2884 = vtanh.pop %v2882
      %v2885 = vadd.f32 %v2883, 1.0
      %v2886 = vadd.f32 %v2884, 1.0
      %v2887 = vmul.f32 %v2885, 0.5
      %v2888 = vmul.f32 %v2886, 0.5
      %v2889 = vmul.f32 %v2867, %v2887
      %v2890 = vmul.f32 %v2870, %v2888
      %v2891 = vpack.c.bf16 %v2890, %v2889
      %s2892 = smul.u32 %s28, 8
      %s2893 = smul.addr %s2892, 4
      %s2894 = scalar_lea.vmem %s11, %s2893
      %v2895 = vld [vmem:[%s2894] sm:$0xf]
      %v2896 = vld [vmem:[%s2894 + $0x4] sm:$0xf]
      %v2897 = vld [vmem:[%s2894 + $0x8] sm:$0xf]
      %v2898 = vld [vmem:[%s2894 + $0xc] sm:$0xf]
      %v2899 = vld [vmem:[%s2894 + $0x10] sm:$0xf]
      %v2900 = vld [vmem:[%s2894 + $0x14] sm:$0xf]
      %v2901 = vld [vmem:[%s2894 + $0x18] sm:$0xf]
      %v2902 = vld [vmem:[%s2894 + $0x1c] sm:$0xf]
      %s2903 = scalar_lea.vmem %s12, %s28
      %v2904 = vld [vmem:[%s2903] sm:$0x1]
      %v2906 = vlaneseq
      %v2907 = vshrl.u32 %v2906, 7
      %v2908 = vsub.s32 0, %v2907
      %v2909 = vrot.slane %v2904, %v2908
      %v2919 = vunpack.c.l.b16 %v2895
      %v2920 = vunpack.c.l.b16 %v2896
      %v2921 = vunpack.c.l.b16 %v2897
      %v2922 = vunpack.c.l.b16 %v2898
      %v2923 = vunpack.c.l.b16 %v2899
      %v2924 = vunpack.c.l.b16 %v2900
      %v2925 = vunpack.c.l.b16 %v2901
      %v2926 = vunpack.c.l.b16 %v2902
      %v2927 = vpack.c.b16 %v2920, %v2919
      %v2928 = vpack.c.b16 %v2922, %v2921
      %v2929 = vpack.c.b16 %v2924, %v2923
      %v2930 = vpack.c.b16 %v2926, %v2925
      %vm2935 = vcmask 523264
      %v2937 = vsel %vm2935, %v2891, 0
      %2939 = vmatprep.subr.bf16.mxu0 0
      %2940 = vmatpush1.bf16.msra.mxu0 0
      %2941 = vmatprep.subr.bf16.mxu0 0
      %2942 = vmatpush1.bf16.msra.mxu0 0
      %2943 = vmatprep.subr.bf16.mxu0 0
      %2944 = vmatpush1.bf16.msra.mxu0 0
      %2945 = vmatprep.subr.bf16.mxu0 0
      %2946 = vmatpush1.bf16.msra.mxu0 0
      %2947 = vmatprep.subr.bf16.mxu0 0
      %2948 = vmatpush1.bf16.msra.mxu0 %v2930
      %2949 = vmatprep.subr.bf16.mxu0 0
      %2950 = vmatpush1.bf16.msra.mxu0 %v2929
      %2951 = vmatprep.subr.bf16.mxu0 0
      %2952 = vmatpush1.bf16.msra.mxu0 %v2928
      %2953 = vmatprep.subr.bf16.mxu0 0
      %2954 = vmatpush1.bf16.msra.mxu0 %v2927
      %2955 = vmatprep.subr.bf16.mxu0 0
      %2956 = vmatpush2.bf16.msra.mxu0 0
      %2957 = vmatprep.subr.bf16.mxu0 0
      %2958 = vmatpush2.bf16.msra.mxu0 0
      %2959 = vmatprep.subr.bf16.mxu0 0
      %2960 = vmatpush2.bf16.msra.mxu0 0
      %2961 = vmatprep.subr.bf16.mxu0 0
      %2962 = vmatpush2.bf16.msra.mxu0 0
      %2963 = vmatprep.subr.bf16.mxu0 0
      %2964 = vmatpush2.bf16.msra.mxu0 0
      %2965 = vmatprep.subr.bf16.mxu0 0
      %2966 = vmatpush2.bf16.msra.mxu0 0
      %2967 = vmatprep.subr.bf16.mxu0 0
      %2968 = vmatpush2.bf16.msra.mxu0 0
      %2969 = vmatprep.subr.bf16.mxu0 0
      %2970 = vmatpush2.bf16.msra.mxu0 0
      %2971 = vmatprep.mubr.bf16.mxu0 0
      %2972 = vmatmul.mubr.bf16.gmra.mxu0 %v2937
      %v2973 = vpop.f32.mrf.mxu0
      %v2974 = vadd.f32 %v2909, %v2973
      %v2975 = vpop.f32.mrf.mxu0
      %v2976 = vpop.f32.mrf.mxu0
      %v2977 = vadd.f32 %v2909, %v2976
      %v2978 = vpop.f32.mrf.mxu0
      %2979 = vdwg.mxu0
      %v2982 = vcombine.high %v2974, %v2974
      %v2984 = vunpack.c.l.s4 1966171168
      %v2985 = vunpack.c.0.s8 %v2984
      %v2986 = vlaneseq
      %v2987 = vshrl.u32 %v2986, 7
      %v2988 = vsub.s32 %v2985, %v2987
      %v2989 = vrot.slane %v2974, %v2988
      %v2991 = vunpack.c.l.s4 1966171168
      %v2992 = vunpack.c.0.s8 %v2991
      %v2993 = vlaneseq
      %v2994 = vshrl.u32 %v2993, 7
      %v2995 = vsub.s32 %v2992, %v2994
      %v2996 = vrot.slane %v2982, %v2995
      %v2997 = vcombine.high %v2989, %v2989
      %v2998 = vcombine.high %v2996, %v2996
      %v3000 = vunpack.c.l.s4 1966171168
      %v3001 = vunpack.c.0.s8 %v3000
      %v3002 = vlaneseq
      %v3003 = vshrl.u32 %v3002, 7
      %v3004 = vsub.s32 %v3001, %v3003
      %v3005 = vrot.slane %v2989, %v3004
      %v3007 = vunpack.c.l.s4 1966171168
      %v3008 = vunpack.c.0.s8 %v3007
      %v3009 = vlaneseq
      %v3010 = vshrl.u32 %v3009, 7
      %v3011 = vsub.s32 %v3008, %v3010
      %v3012 = vrot.slane %v2996, %v3011
      %v3014 = vunpack.c.l.s4 1966171168
      %v3015 = vunpack.c.0.s8 %v3014
      %v3016 = vlaneseq
      %v3017 = vshrl.u32 %v3016, 7
      %v3018 = vsub.s32 %v3015, %v3017
      %v3019 = vrot.slane %v2997, %v3018
      %v3021 = vunpack.c.l.s4 1966171168
      %v3022 = vunpack.c.0.s8 %v3021
      %v3023 = vlaneseq
      %v3024 = vshrl.u32 %v3023, 7
      %v3025 = vsub.s32 %v3022, %v3024
      %v3026 = vrot.slane %v2998, %v3025
      %v3027 = vcombine.high %v3005, %v3005
      %v3028 = vcombine.high %v3012, %v3012
      %v3029 = vcombine.high %v3019, %v3019
      %v3030 = vcombine.high %v3026, %v3026
      %v3032 = vunpack.c.l.s4 1966171168
      %v3033 = vunpack.c.0.s8 %v3032
      %v3034 = vlaneseq
      %v3035 = vshrl.u32 %v3034, 7
      %v3036 = vsub.s32 %v3033, %v3035
      %v3037 = vrot.slane %v2977, %v3036
      %v3038 = vcombine.high %v3037, %v3037
      %v3040 = vunpack.c.l.s4 1966171168
      %v3041 = vunpack.c.0.s8 %v3040
      %v3042 = vlaneseq
      %v3043 = vshrl.u32 %v3042, 7
      %v3044 = vsub.s32 %v3041, %v3043
      %v3045 = vrot.slane %v3037, %v3044
      %v3047 = vunpack.c.l.s4 1966171168
      %v3048 = vunpack.c.0.s8 %v3047
      %v3049 = vlaneseq
      %v3050 = vshrl.u32 %v3049, 7
      %v3051 = vsub.s32 %v3048, %v3050
      %v3052 = vrot.slane %v3038, %v3051
      %v3063 = vadd.f32 %v2262, %v3005
      %v3064 = vadd.f32 %v2263, %v3019
      %v3065 = vadd.f32 %v2264, %v3027
      %v3066 = vadd.f32 %v2265, %v3029
      %v3067 = vadd.f32 %v2266, %v3012
      %v3068 = vadd.f32 %v2267, %v3026
      %v3069 = vadd.f32 %v2268, %v3028
      %v3070 = vadd.f32 %v2269, %v3030
      %v3071 = vadd.f32 %v2270, %v3045
      %v3072 = vadd.f32 %v2271, %v3052
      %v3083 = vcombine.low %v3063, %v3064
      %v3084 = vcombine.low %v3065, %v3066
      %v3086 = vunpack.c.l.s4 1966171168
      %v3087 = vunpack.c.0.s8 %v3086
      %v3088 = vlaneseq
      %v3089 = vshrl.u32 %v3088, 7
      %v3090 = vsub.s32 %v3087, %v3089
      %v3091 = vrot.slane %v3083, %v3090
      %v3093 = vunpack.c.l.s4 1966171168
      %v3094 = vunpack.c.0.s8 %v3093
      %v3095 = vlaneseq
      %v3096 = vshrl.u32 %v3095, 7
      %v3097 = vsub.s32 %v3094, %v3096
      %v3098 = vrot.slane %v3084, %v3097
      %v3100 = vunpack.c.l.s4 1966171168
      %v3101 = vunpack.c.0.s8 %v3100
      %v3102 = vlaneseq
      %v3103 = vshrl.u32 %v3102, 7
      %v3104 = vsub.s32 %v3101, %v3103
      %v3105 = vrot.slane %v3067, %v3104
      %v3106 = vcombine.low %v3091, %v3098
      %v3108 = vunpack.c.l.s4 1966171168
      %v3109 = vunpack.c.0.s8 %v3108
      %v3110 = vlaneseq
      %v3111 = vshrl.u32 %v3110, 7
      %v3112 = vsub.s32 %v3109, %v3111
      %v3113 = vrot.slane %v3106, %v3112
      %v3115 = vunpack.c.l.s4 1966171168
      %v3116 = vunpack.c.0.s8 %v3115
      %v3117 = vlaneseq
      %v3118 = vshrl.u32 %v3117, 7
      %v3119 = vsub.s32 %v3116, %v3118
      %v3120 = vrot.slane %v3105, %v3119
      %v3121 = vcombine.low %v3113, %v3120
      %v3122 = vcombine.low %v3068, %v3069
      %v3123 = vcombine.low %v3070, %v3071
      %v3125 = vunpack.c.l.s4 1966171168
      %v3126 = vunpack.c.0.s8 %v3125
      %v3127 = vlaneseq
      %v3128 = vshrl.u32 %v3127, 7
      %v3129 = vsub.s32 %v3126, %v3128
      %v3130 = vrot.slane %v3122, %v3129
      %v3132 = vunpack.c.l.s4 1966171168
      %v3133 = vunpack.c.0.s8 %v3132
      %v3134 = vlaneseq
      %v3135 = vshrl.u32 %v3134, 7
      %v3136 = vsub.s32 %v3133, %v3135
      %v3137 = vrot.slane %v3123, %v3136
      %v3139 = vunpack.c.l.s4 1966171168
      %v3140 = vunpack.c.0.s8 %v3139
      %v3141 = vlaneseq
      %v3142 = vshrl.u32 %v3141, 7
      %v3143 = vsub.s32 %v3140, %v3142
      %v3144 = vrot.slane %v3072, %v3143
      %v3145 = vcombine.low %v3130, %v3137
      %v3147 = vunpack.c.l.s4 1966171168
      %v3148 = vunpack.c.0.s8 %v3147
      %v3149 = vlaneseq
      %v3150 = vshrl.u32 %v3149, 7
      %v3151 = vsub.s32 %v3148, %v3150
      %v3152 = vrot.slane %v3145, %v3151
      %v3154 = vunpack.c.l.s4 1966171168
      %v3155 = vunpack.c.0.s8 %v3154
      %v3156 = vlaneseq
      %v3157 = vshrl.u32 %v3156, 7
      %v3158 = vsub.s32 %v3155, %v3157
      %v3159 = vrot.slane %v3144, %v3158
      %v3160 = vcombine.low %v3152, %v3159
      %v3163 = vpack.c.bf16 %v3121, %v3121
      %v3164 = vpack.c.bf16 %v3160, %v3160
      %vm3165 = vcmask 256000
      %vm3166 = vsmask.f32 2304
      %vm3167 = vmand %vm3165, %vm3166
      %v3168 = vld [vmem:[%s478] sm:$0x7]
      %v3169 = vsel %vm3167, %v3163, %v3168
      %3170 = vst [vmem:[%s478] sm:$0x7] %v3169
      %v3171 = vld [vmem:[%s478 + $0x4] sm:$0x7]
      %v3172 = vsel %vm3167, %v3164, %v3171
      %3173 = vst [vmem:[%s478 + $0x4] sm:$0x7] %v3172
      %s3174 = smul.u32 2, %s29
      %p3175 = scmp.lt.s32.totalorder %s28, 1
      %s3176 = scalar_select %p3175, %s28, 1
      %p3177 = scmp.lt.s32.totalorder %s3174, 1
      %s3178 = scalar_select %p3177, %s3174, 1
      %s3179 = smul.addr %s3176, 2
      %s3180 = sadd.s32 %s3178, %s3179
      %s3181 = smul.addr %s3180, 4
      %s3182 = scalar_lea.vmem %s13, %s3181
      // Predicated region
      $region73: #{vit_multitask_forward.9} parent=71 // pred_check
        %p3183 = pneg %p336
      $region74: #{vit_multitask_forward.9} parent=71 // pred_check_branch
        %3185 = sbr.rel (%p3183) target = $region76
      $region75: #{vit_multitask_forward.9} parent=71 // pred_region
        %s3186 = smul.u32 2, %s29
      $region76: #{vit_multitask_forward.9} parent=71 // pred_fallthru
        _
    $region72: #{vit_multitask_forward.9} parent=5 // pred_fallthru
      _
    %p3187 = scmp.le.s32.totalorder 2, %s19
    // Predicated region
    $region77: #{vit_multitask_forward.9} parent=5 // pred_check
      %p3188 = pneg %p3187
    $region78: #{vit_multitask_forward.9} parent=5 // pred_check_branch
      %3190 = sbr.rel (%p3188) target = $region80
    $region79: #{vit_multitask_forward.9} parent=5 // pred_region
      %s3191 = ssub.s32 %s19, 2
      // Predicated region
      $region81: #{vit_multitask_forward.9} parent=79 // pred_check
        %p3192 = pneg %p342
      $region82: #{vit_multitask_forward.9} parent=79 // pred_check_branch
        %3194 = sbr.rel (%p3192) target = $region84
      $region83: #{vit_multitask_forward.9} parent=79 // pred_region
        %s3195 = smul.u32 2, %s31
        %p3196 = scmp.lt.s32.totalorder %s30, 1
        %s3197 = scalar_select %p3196, %s30, 1
        %p3198 = scmp.lt.s32.totalorder %s3195, 1
        %s3199 = scalar_select %p3198, %s3195, 1
        %s3200 = smul.addr %s3197, 2
        %s3201 = sadd.s32 %s3199, %s3200
        %s3202 = smul.addr %s3201, 4
        %s3203 = scalar_lea.vmem %s13, %s3202
      $region84: #{vit_multitask_forward.9} parent=79 // pred_fallthru
        _
    $region80: #{vit_multitask_forward.9} parent=5 // pred_fallthru
      _
  $region6: #{vit_multitask_forward.9} parent=0 // loop_footer
    %s23 = sadd.s32 1, %s19
  $region7: #{vit_multitask_forward.9} parent=0 // loop_footer_branch
    %18 = sbr.rel target = $region3
  $region8: #{vit_multitask_forward.9} parent=0 // loop_exit
    _

</llo_original>
